<compile_context>
chip_gen: v5e
topology: v5e:2x2
jax: 0.10.0
libtpu: 0.0.40
codegen_flags: <defaults>
</compile_context>

<pallas_src>
import math

import jax
import jax.numpy as jnp
from jax.experimental import pallas as pl
from jax.experimental.pallas import tpu as pltpu


_INV_SQRT2 = 0.7071067811865476


def _gelu_exact(x):
    # torch.nn.GELU() default = exact erf formulation
    return 0.5 * x * (1.0 + jax.lax.erf(x * _INV_SQRT2))


def _make_fused_kernel(k1, cp, meta):
    """k1: layer-1 kernel size; cp: lane-padded channel width;
    meta: tuple of (k, stride, l_out) for layers 2..n (static Python ints)."""
    n_rest = len(meta)

    def kernel(p1_ref, w1_ref, ws_ref, bs_ref, o_ref, *scratch):
        act_refs = scratch[:n_rest]        # f32 (L_l, Cp) activations, layers 1..n-1
        col_refs = scratch[n_rest:]        # f32 (l_out, k*Cp) im2col tiles, layers 2..n

        # ---- layer 1: 1 input channel, K=k1 (<=10) -> VPU broadcast FMAs ----
        xt = p1_ref[0]                     # (L1, k1) f32
        w1 = w1_ref[...]                   # (k1, Cp) f32
        acc = xt[:, 0:1] * w1[0:1, :]      # (L1, Cp)
        for t in range(1, k1):
            acc = acc + xt[:, t:t + 1] * w1[t:t + 1, :]
        h = _gelu_exact(acc + bs_ref[pl.ds(0, 1), :])
        if n_rest == 0:
            o_ref[0] = h.astype(o_ref.dtype)
            return
        act_refs[0][...] = h

        # ---- layers 2..n: strided im2col (output resolution only) +
        #      ONE fused K = k*Cp bf16 MXU matmul per layer ----
        w_off = 0                                         # static Python int
        for li, (k, s, l_out) in enumerate(meta):
            prev = act_refs[li]
            col = col_refs[li]
            for t in range(k):
                # rows t, t+s, ..., t+(l_out-1)*s of the previous activation
                col[pl.ds(0, l_out), pl.ds(t * cp, cp)] = (
                    prev[pl.ds(t, l_out, stride=s), :])
            w_l = ws_ref[pl.ds(w_off, k * cp), :]          # (k*Cp, Cp) bf16
            w_off += k * cp
            pre = jnp.dot(col[...].astype(jnp.bfloat16), w_l,
                          preferred_element_type=jnp.float32)
            h = _gelu_exact(pre + bs_ref[pl.ds(li + 1, 1), :])
            if li + 1 < n_rest:
                act_refs[li + 1][...] = h
            else:
                o_ref[0] = h.astype(o_ref.dtype)

    return kernel


class WaveEncoderPallas:
    """JAX/Pallas port of WaveEncoder: Conv1d+GELU stack over a 1-channel waveform."""

    def __init__(self, d_model=128, kernel_sizes=None, strides=None, paddings=None,
                 key=jax.random.PRNGKey(0)):
        self.kernel_sizes = [10, 5, 5, 3, 3, 2, 2] if kernel_sizes is None else list(kernel_sizes)
        self.strides = [5, 4, 4, 2, 2, 2, 2] if strides is None else list(strides)
        self.paddings = [0] * len(self.strides) if paddings is None else list(paddings)
        # TODO(synk): non-zero Conv1d padding not implemented (WaveEncoder default is 0).
        assert all(p == 0 for p in self.paddings), "only padding=0 implemented"
        assert len(self.kernel_sizes) == len(self.strides) == len(self.paddings)
        self.d_model = d_model
        self.cp = ((d_model + 127) // 128) * 128        # lane-dense padded channel width
        n = len(self.kernel_sizes)
        C, Cp = d_model, self.cp

        # deterministic torch-style init: U(-1/sqrt(fan_in), 1/sqrt(fan_in))
        self.conv_params = []            # raw PyTorch-layout (C_out, C_in, k), (C_out,)
        for li, ksz in enumerate(self.kernel_sizes):
            in_c = 1 if li == 0 else d_model
            key, kw, kb = jax.random.split(key, 3)
            bound = 1.0 / math.sqrt(in_c * ksz)
            w = jax.random.uniform(kw, (d_model, in_c, ksz), jnp.float32, -bound, bound)
            b = jax.random.uniform(kb, (d_model,), jnp.float32, -bound, bound)
            self.conv_params.append((w, b))

        # --- pre-reshape / pad / cast weights ONCE (not per forward call) ---
        w0, _ = self.conv_params[0]
        # layer 1: (k1, Cp) f32, lane-padded (VPU path, keep f32 — v5e has no bf16 VPU)
        self.w1 = jnp.pad(jnp.transpose(w0[:, 0, :], (1, 0)), ((0, 0), (0, Cp - C)))
        # layers 2..n: [t*Cp + ci, co] = w[co, ci, t], stacked along rows, bf16
        blocks = []
        for (w, _) in self.conv_params[1:]:
            k = w.shape[2]
            wt = jnp.transpose(w, (2, 1, 0))                       # (k, C_in, C_out)
            wt = jnp.pad(wt, ((0, 0), (0, Cp - C), (0, Cp - C)))   # (k, Cp, Cp)
            blocks.append(wt.reshape(k * Cp, Cp))
        if blocks:
            self.ws = jnp.concatenate(blocks, axis=0).astype(jnp.bfloat16)
        else:
            self.ws = jnp.zeros((128, Cp), jnp.bfloat16)           # unused dummy
        self.bs = jnp.stack([jnp.pad(b, (0, Cp - C)) for (_, b) in self.conv_params],
                            axis=0)                                # (n, Cp) f32

        self._fwd = jax.jit(self._forward)

    # ---------------- forward (traced under jit) ----------------
    def _forward(self, x):
        B, T = x.shape
        C, Cp = self.d_model, self.cp
        ks, ss = self.kernel_sizes, self.strides
        n = len(ks)

        # layer-1 im2col with k strided slices (no gather)
        k1, s1 = ks[0], ss[0]
        L1 = (T - k1) // s1 + 1
        assert L1 >= 1, "input too short for this conv stack"
        taps = [x[:, t: t + (L1 - 1) * s1 + 1: s1] for t in range(k1)]
        patches1 = jnp.stack(taps, axis=-1)                        # (B, L1, k1) f32

        # static geometry for layers 2..n (each computed at output resolution)
        meta = []
        l_prev = L1
        for i in range(1, n):
            k, s = ks[i], ss[i]
            l_out = (l_prev - k) // s + 1
            assert l_out >= 1, "input too short for this conv stack"
            meta.append((k, s, l_out))
            l_prev = l_out
        l_final = l_prev
        meta = tuple(meta)

        kernel = _make_fused_kernel(k1, Cp, meta)

        # VMEM scratch: per-layer activations + im2col tiles (all f32, single-buffered)
        act_dims, col_dims = [], []
        if n > 1:
            act_dims.append((L1, Cp))
            for li, (k, s, l_out) in enumerate(meta):
                col_dims.append((l_out, k * Cp))
                if li + 1 < len(meta):
                    act_dims.append((l_out, Cp))
        scratch = ([pltpu.VMEM(d, jnp.float32) for d in act_dims]
                   + [pltpu.VMEM(d, jnp.float32) for d in col_dims])

        # rough VMEM budget (bytes): double-buffered inputs/outputs + scratch
        def r8(v):
            return -(-v // 8) * 8
        est = 2 * r8(L1) * 128 * 4                       # patches block (lane-padded)
        est += 2 * r8(self.w1.shape[0]) * Cp * 4
        est += 2 * r8(self.ws.shape[0]) * Cp * 2
        est += 2 * r8(self.bs.shape[0]) * Cp * 4
        est += 2 * r8(l_final) * Cp * 4
        est += sum(r8(r) * c * 4 for (r, c) in act_dims + col_dims)
        # TODO(synk): for very long waveforms, tile L1 across a grid axis (k-1 halo)
        # instead of holding the whole first activation in VMEM.
        assert est < 56 * 1024 * 1024, (
            f"VMEM budget {est/2**20:.1f} MiB too large for single-resident kernel")
        vmem_limit = int(min(64 * 1024 * 1024, max(16 * 1024 * 1024, 2 * est)))

        in_specs = [
            pl.BlockSpec((1, L1, k1), lambda b: (b, 0, 0)),        # per-batch patches
            pl.BlockSpec(self.w1.shape, lambda b: (0, 0)),
            pl.BlockSpec(self.ws.shape, lambda b: (0, 0)),
            pl.BlockSpec(self.bs.shape, lambda b: (0, 0)),
        ]

        # TODO(synk): for B==1 on v7x, split L1 over a second "parallel" axis so
        # both TensorCores get work; with B>=2 the batch axis already covers it.
        out = pl.pallas_call(
            kernel,
            out_shape=jax.ShapeDtypeStruct((B, l_final, Cp), jnp.float32),
            grid=(B,),
            in_specs=in_specs,
            out_specs=pl.BlockSpec((1, l_final, Cp), lambda b: (b, 0, 0)),
            scratch_shapes=scratch,
            compiler_params=pltpu.CompilerParams(
                dimension_semantics=("parallel",),
                vmem_limit_bytes=vmem_limit),
        )(patches1, self.w1, self.ws, self.bs)

        # drop lane padding, return PyTorch NCL layout (B, C, L_final)
        return jnp.transpose(out[:, :, :C], (0, 2, 1))

    def __call__(self, x):
        return self._fwd(x)

    # pure-JAX reference (lax conv) for correctness checking
    def reference(self, x):
        h = x[:, None, :]
        for (w, b), s in zip(self.conv_params, self.strides):
            h = jax.lax.conv_general_dilated(
                h, w, window_strides=(s,), padding="VALID",
                dimension_numbers=("NCH", "OIH", "NCH"))
            h = h + b[None, :, None]
            h = _gelu_exact(h)
        return h


if __name__ == "__main__":
    key = jax.random.PRNGKey(0)
    k_in, k_par = jax.random.split(key)

    B, T, D_MODEL = 2, 2000, 32       # per-layer lengths: 399, 99, 24, 11, 5, 2, 1
    x = jax.random.normal(k_in, (B, T), jnp.float32)

    enc = WaveEncoderPallas(d_model=D_MODEL, key=k_par)
    out = jax.block_until_ready(enc(x))

    assert out.shape == (B, D_MODEL, 1), out.shape
    assert bool(jnp.all(jnp.isfinite(out)))

    # correctness vs. a pure-JAX conv reference (tol: bf16-operand MXU matmuls)
    ref = jax.block_until_ready(enc.reference(x))
    max_err = float(jnp.max(jnp.abs(out - ref)))
    assert max_err < 2.5e-2, f"mismatch vs reference, max |err| = {max_err}"

    print("KERNEL_OK")
</pallas_src>

<mosaic_0001>
module attributes {stable_mosaic.version = 11 : i64} {
  func.func @kernel(%arg0: i32, %arg1: memref<1x399x10xf32, #tpu.memory_space<vmem>>, %arg2: memref<10x128xf32, #tpu.memory_space<vmem>>, %arg3: memref<2560x128xbf16, #tpu.memory_space<vmem>>, %arg4: memref<7x128xf32, #tpu.memory_space<vmem>>, %arg5: memref<1x1x128xf32, #tpu.memory_space<vmem>>, %arg6: memref<399x128xf32, #tpu.memory_space<vmem>>, %arg7: memref<99x128xf32, #tpu.memory_space<vmem>>, %arg8: memref<24x128xf32, #tpu.memory_space<vmem>>, %arg9: memref<11x128xf32, #tpu.memory_space<vmem>>, %arg10: memref<5x128xf32, #tpu.memory_space<vmem>>, %arg11: memref<2x128xf32, #tpu.memory_space<vmem>>, %arg12: memref<99x640xf32, #tpu.memory_space<vmem>>, %arg13: memref<24x640xf32, #tpu.memory_space<vmem>>, %arg14: memref<11x384xf32, #tpu.memory_space<vmem>>, %arg15: memref<5x384xf32, #tpu.memory_space<vmem>>, %arg16: memref<2x256xf32, #tpu.memory_space<vmem>>, %arg17: memref<1x256xf32, #tpu.memory_space<vmem>>) attributes {dimension_semantics = [#tpu.dimension_semantics<parallel>], iteration_bounds = array<i64: 2>, scalar_prefetch = 0 : i64, scratch_operands = 12 : i64, tpu.core_type = #tpu.core_type<tc>, window_params = [{transform_indices = @transform_0, window_bounds = array<i64: 1, 399, 10>}, {pipeline_mode = #tpu.pipeline_mode<synchronous>, transform_indices = @transform_1, window_bounds = array<i64: 10, 128>}, {pipeline_mode = #tpu.pipeline_mode<synchronous>, transform_indices = @transform_2, window_bounds = array<i64: 2560, 128>}, {pipeline_mode = #tpu.pipeline_mode<synchronous>, transform_indices = @transform_3, window_bounds = array<i64: 7, 128>}, {transform_indices = @transform_4, window_bounds = array<i64: 1, 1, 128>}]} {
    %c0 = arith.constant 0 : index
    %c0_0 = arith.constant 0 : index
    %c0_1 = arith.constant 0 : index
    %0 = vector.load %arg1[%c0, %c0_0, %c0_1] : memref<1x399x10xf32, #tpu.memory_space<vmem>>, vector<1x399x10xf32>
    %1 = vector.shape_cast %0 : vector<1x399x10xf32> to vector<399x10xf32>
    %c0_2 = arith.constant 0 : index
    %c0_3 = arith.constant 0 : index
    %2 = vector.load %arg2[%c0_2, %c0_3] : memref<10x128xf32, #tpu.memory_space<vmem>>, vector<10x128xf32>
    %3 = vector.extract_strided_slice %1 {offsets = [0, 0], sizes = [399, 1], strides = [1, 1]} : vector<399x10xf32> to vector<399x1xf32>
    %4 = vector.extract_strided_slice %2 {offsets = [0, 0], sizes = [1, 128], strides = [1, 1]} : vector<10x128xf32> to vector<1x128xf32>
    %5 = vector.broadcast %3 : vector<399x1xf32> to vector<399x128xf32>
    %6 = vector.broadcast %4 : vector<1x128xf32> to vector<399x128xf32>
    %7 = arith.mulf %5, %6 : vector<399x128xf32>
    %8 = vector.extract_strided_slice %1 {offsets = [0, 1], sizes = [399, 1], strides = [1, 1]} : vector<399x10xf32> to vector<399x1xf32>
    %9 = vector.extract_strided_slice %2 {offsets = [1, 0], sizes = [1, 128], strides = [1, 1]} : vector<10x128xf32> to vector<1x128xf32>
    %10 = vector.broadcast %8 : vector<399x1xf32> to vector<399x128xf32>
    %11 = vector.broadcast %9 : vector<1x128xf32> to vector<399x128xf32>
    %12 = arith.mulf %10, %11 : vector<399x128xf32>
    %13 = arith.addf %7, %12 : vector<399x128xf32>
    %14 = vector.extract_strided_slice %1 {offsets = [0, 2], sizes = [399, 1], strides = [1, 1]} : vector<399x10xf32> to vector<399x1xf32>
    %15 = vector.extract_strided_slice %2 {offsets = [2, 0], sizes = [1, 128], strides = [1, 1]} : vector<10x128xf32> to vector<1x128xf32>
    %16 = vector.broadcast %14 : vector<399x1xf32> to vector<399x128xf32>
    %17 = vector.broadcast %15 : vector<1x128xf32> to vector<399x128xf32>
    %18 = arith.mulf %16, %17 : vector<399x128xf32>
    %19 = arith.addf %13, %18 : vector<399x128xf32>
    %20 = vector.extract_strided_slice %1 {offsets = [0, 3], sizes = [399, 1], strides = [1, 1]} : vector<399x10xf32> to vector<399x1xf32>
    %21 = vector.extract_strided_slice %2 {offsets = [3, 0], sizes = [1, 128], strides = [1, 1]} : vector<10x128xf32> to vector<1x128xf32>
    %22 = vector.broadcast %20 : vector<399x1xf32> to vector<399x128xf32>
    %23 = vector.broadcast %21 : vector<1x128xf32> to vector<399x128xf32>
    %24 = arith.mulf %22, %23 : vector<399x128xf32>
    %25 = arith.addf %19, %24 : vector<399x128xf32>
    %26 = vector.extract_strided_slice %1 {offsets = [0, 4], sizes = [399, 1], strides = [1, 1]} : vector<399x10xf32> to vector<399x1xf32>
    %27 = vector.extract_strided_slice %2 {offsets = [4, 0], sizes = [1, 128], strides = [1, 1]} : vector<10x128xf32> to vector<1x128xf32>
    %28 = vector.broadcast %26 : vector<399x1xf32> to vector<399x128xf32>
    %29 = vector.broadcast %27 : vector<1x128xf32> to vector<399x128xf32>
    %30 = arith.mulf %28, %29 : vector<399x128xf32>
    %31 = arith.addf %25, %30 : vector<399x128xf32>
    %32 = vector.extract_strided_slice %1 {offsets = [0, 5], sizes = [399, 1], strides = [1, 1]} : vector<399x10xf32> to vector<399x1xf32>
    %33 = vector.extract_strided_slice %2 {offsets = [5, 0], sizes = [1, 128], strides = [1, 1]} : vector<10x128xf32> to vector<1x128xf32>
    %34 = vector.broadcast %32 : vector<399x1xf32> to vector<399x128xf32>
    %35 = vector.broadcast %33 : vector<1x128xf32> to vector<399x128xf32>
    %36 = arith.mulf %34, %35 : vector<399x128xf32>
    %37 = arith.addf %31, %36 : vector<399x128xf32>
    %38 = vector.extract_strided_slice %1 {offsets = [0, 6], sizes = [399, 1], strides = [1, 1]} : vector<399x10xf32> to vector<399x1xf32>
    %39 = vector.extract_strided_slice %2 {offsets = [6, 0], sizes = [1, 128], strides = [1, 1]} : vector<10x128xf32> to vector<1x128xf32>
    %40 = vector.broadcast %38 : vector<399x1xf32> to vector<399x128xf32>
    %41 = vector.broadcast %39 : vector<1x128xf32> to vector<399x128xf32>
    %42 = arith.mulf %40, %41 : vector<399x128xf32>
    %43 = arith.addf %37, %42 : vector<399x128xf32>
    %44 = vector.extract_strided_slice %1 {offsets = [0, 7], sizes = [399, 1], strides = [1, 1]} : vector<399x10xf32> to vector<399x1xf32>
    %45 = vector.extract_strided_slice %2 {offsets = [7, 0], sizes = [1, 128], strides = [1, 1]} : vector<10x128xf32> to vector<1x128xf32>
    %46 = vector.broadcast %44 : vector<399x1xf32> to vector<399x128xf32>
    %47 = vector.broadcast %45 : vector<1x128xf32> to vector<399x128xf32>
    %48 = arith.mulf %46, %47 : vector<399x128xf32>
    %49 = arith.addf %43, %48 : vector<399x128xf32>
    %50 = vector.extract_strided_slice %1 {offsets = [0, 8], sizes = [399, 1], strides = [1, 1]} : vector<399x10xf32> to vector<399x1xf32>
    %51 = vector.extract_strided_slice %2 {offsets = [8, 0], sizes = [1, 128], strides = [1, 1]} : vector<10x128xf32> to vector<1x128xf32>
    %52 = vector.broadcast %50 : vector<399x1xf32> to vector<399x128xf32>
    %53 = vector.broadcast %51 : vector<1x128xf32> to vector<399x128xf32>
    %54 = arith.mulf %52, %53 : vector<399x128xf32>
    %55 = arith.addf %49, %54 : vector<399x128xf32>
    %56 = vector.extract_strided_slice %1 {offsets = [0, 9], sizes = [399, 1], strides = [1, 1]} : vector<399x10xf32> to vector<399x1xf32>
    %57 = vector.extract_strided_slice %2 {offsets = [9, 0], sizes = [1, 128], strides = [1, 1]} : vector<10x128xf32> to vector<1x128xf32>
    %58 = vector.broadcast %56 : vector<399x1xf32> to vector<399x128xf32>
    %59 = vector.broadcast %57 : vector<1x128xf32> to vector<399x128xf32>
    %60 = arith.mulf %58, %59 : vector<399x128xf32>
    %61 = arith.addf %55, %60 : vector<399x128xf32>
    %c0_4 = arith.constant 0 : index
    %c0_5 = arith.constant 0 : index
    %62 = vector.load %arg4[%c0_4, %c0_5] : memref<7x128xf32, #tpu.memory_space<vmem>>, vector<1x128xf32>
    %63 = vector.broadcast %62 : vector<1x128xf32> to vector<399x128xf32>
    %64 = arith.addf %61, %63 : vector<399x128xf32>
    %cst = arith.constant 5.000000e-01 : f32
    %65 = vector.broadcast %cst : f32 to vector<399x128xf32>
    %66 = arith.mulf %65, %64 : vector<399x128xf32>
    %cst_6 = arith.constant 0.707106769 : f32
    %67 = vector.broadcast %cst_6 : f32 to vector<399x128xf32>
    %68 = arith.mulf %64, %67 : vector<399x128xf32>
    %69 = math.erf %68 : vector<399x128xf32>
    %cst_7 = arith.constant 1.000000e+00 : f32
    %70 = vector.broadcast %cst_7 : f32 to vector<399x128xf32>
    %71 = arith.addf %70, %69 : vector<399x128xf32>
    %72 = arith.mulf %66, %71 : vector<399x128xf32>
    %c0_8 = arith.constant 0 : index
    %c0_9 = arith.constant 0 : index
    %73 = vector.load %arg6[%c0_8, %c0_9] : memref<399x128xf32, #tpu.memory_space<vmem>>, vector<399x128xf32>
    tpu.vector_store %arg6[%c0_8, %c0_9], %72 {strides = array<i32>} : memref<399x128xf32, #tpu.memory_space<vmem>>, vector<399x128xf32>,
    %c0_10 = arith.constant 0 : index
    %c0_11 = arith.constant 0 : index
    %74 = tpu.strided_load %arg6[%c0_10, %c0_11] {strides = array<i32: 4, 1>} : memref<399x128xf32, #tpu.memory_space<vmem>>, vector<99x128xf32>
    %c0_12 = arith.constant 0 : index
    %c0_13 = arith.constant 0 : index
    %75 = vector.load %arg12[%c0_12, %c0_13] : memref<99x640xf32, #tpu.memory_space<vmem>>, vector<99x128xf32>
    tpu.vector_store %arg12[%c0_12, %c0_13], %74 {strides = array<i32>} : memref<99x640xf32, #tpu.memory_space<vmem>>, vector<99x128xf32>,
    %c1 = arith.constant 1 : index
    %c0_14 = arith.constant 0 : index
    %76 = tpu.strided_load %arg6[%c1, %c0_14] {strides = array<i32: 4, 1>} : memref<399x128xf32, #tpu.memory_space<vmem>>, vector<99x128xf32>
    %c0_15 = arith.constant 0 : index
    %c128 = arith.constant 128 : index
    %77 = vector.load %arg12[%c0_15, %c128] : memref<99x640xf32, #tpu.memory_space<vmem>>, vector<99x128xf32>
    tpu.vector_store %arg12[%c0_15, %c128], %76 {strides = array<i32>} : memref<99x640xf32, #tpu.memory_space<vmem>>, vector<99x128xf32>,
    %c2 = arith.constant 2 : index
    %c0_16 = arith.constant 0 : index
    %78 = tpu.strided_load %arg6[%c2, %c0_16] {strides = array<i32: 4, 1>} : memref<399x128xf32, #tpu.memory_space<vmem>>, vector<99x128xf32>
    %c0_17 = arith.constant 0 : index
    %c256 = arith.constant 256 : index
    %79 = vector.load %arg12[%c0_17, %c256] : memref<99x640xf32, #tpu.memory_space<vmem>>, vector<99x128xf32>
    tpu.vector_store %arg12[%c0_17, %c256], %78 {strides = array<i32>} : memref<99x640xf32, #tpu.memory_space<vmem>>, vector<99x128xf32>,
    %c3 = arith.constant 3 : index
    %c0_18 = arith.constant 0 : index
    %80 = tpu.strided_load %arg6[%c3, %c0_18] {strides = array<i32: 4, 1>} : memref<399x128xf32, #tpu.memory_space<vmem>>, vector<99x128xf32>
    %c0_19 = arith.constant 0 : index
    %c384 = arith.constant 384 : index
    %81 = vector.load %arg12[%c0_19, %c384] : memref<99x640xf32, #tpu.memory_space<vmem>>, vector<99x128xf32>
    tpu.vector_store %arg12[%c0_19, %c384], %80 {strides = array<i32>} : memref<99x640xf32, #tpu.memory_space<vmem>>, vector<99x128xf32>,
    %c4 = arith.constant 4 : index
    %c0_20 = arith.constant 0 : index
    %82 = tpu.strided_load %arg6[%c4, %c0_20] {strides = array<i32: 4, 1>} : memref<399x128xf32, #tpu.memory_space<vmem>>, vector<99x128xf32>
    %c0_21 = arith.constant 0 : index
    %c512 = arith.constant 512 : index
    %83 = vector.load %arg12[%c0_21, %c512] : memref<99x640xf32, #tpu.memory_space<vmem>>, vector<99x128xf32>
    tpu.vector_store %arg12[%c0_21, %c512], %82 {strides = array<i32>} : memref<99x640xf32, #tpu.memory_space<vmem>>, vector<99x128xf32>,
    %c0_22 = arith.constant 0 : index
    %c0_23 = arith.constant 0 : index
    %84 = vector.load %arg3[%c0_22, %c0_23] : memref<2560x128xbf16, #tpu.memory_space<vmem>>, vector<640x128xbf16>
    %c0_24 = arith.constant 0 : index
    %c0_25 = arith.constant 0 : index
    %85 = vector.load %arg12[%c0_24, %c0_25] : memref<99x640xf32, #tpu.memory_space<vmem>>, vector<99x640xf32>
    %86 = arith.truncf %85 : vector<99x640xf32> to vector<99x640xbf16>
    %cst_26 = arith.constant dense<0.000000e+00> : vector<99x128xf32>
    %87 = tpu.matmul %86, %84, %cst_26 {dimension_numbers = #tpu.dot_dimension_numbers<[1], [0], [0], [1], [0, 0, 1, 1], [], []>} : vector<99x640xbf16>, vector<640x128xbf16>, vector<99x128xf32> -> vector<99x128xf32>
    %c1_27 = arith.constant 1 : index
    %c0_28 = arith.constant 0 : index
    %88 = vector.load %arg4[%c1_27, %c0_28] : memref<7x128xf32, #tpu.memory_space<vmem>>, vector<1x128xf32>
    %89 = vector.broadcast %88 : vector<1x128xf32> to vector<99x128xf32>
    %90 = arith.addf %87, %89 : vector<99x128xf32>
    %cst_29 = arith.constant 5.000000e-01 : f32
    %91 = vector.broadcast %cst_29 : f32 to vector<99x128xf32>
    %92 = arith.mulf %91, %90 : vector<99x128xf32>
    %cst_30 = arith.constant 0.707106769 : f32
    %93 = vector.broadcast %cst_30 : f32 to vector<99x128xf32>
    %94 = arith.mulf %90, %93 : vector<99x128xf32>
    %95 = math.erf %94 : vector<99x128xf32>
    %cst_31 = arith.constant 1.000000e+00 : f32
    %96 = vector.broadcast %cst_31 : f32 to vector<99x128xf32>
    %97 = arith.addf %96, %95 : vector<99x128xf32>
    %98 = arith.mulf %92, %97 : vector<99x128xf32>
    %c0_32 = arith.constant 0 : index
    %c0_33 = arith.constant 0 : index
    %99 = vector.load %arg7[%c0_32, %c0_33] : memref<99x128xf32, #tpu.memory_space<vmem>>, vector<99x128xf32>
    tpu.vector_store %arg7[%c0_32, %c0_33], %98 {strides = array<i32>} : memref<99x128xf32, #tpu.memory_space<vmem>>, vector<99x128xf32>,
    %c0_34 = arith.constant 0 : index
    %c0_35 = arith.constant 0 : index
    %100 = tpu.strided_load %arg7[%c0_34, %c0_35] {strides = array<i32: 4, 1>} : memref<99x128xf32, #tpu.memory_space<vmem>>, vector<24x128xf32>
    %c0_36 = arith.constant 0 : index
    %c0_37 = arith.constant 0 : index
    %101 = vector.load %arg13[%c0_36, %c0_37] : memref<24x640xf32, #tpu.memory_space<vmem>>, vector<24x128xf32>
    tpu.vector_store %arg13[%c0_36, %c0_37], %100 {strides = array<i32>} : memref<24x640xf32, #tpu.memory_space<vmem>>, vector<24x128xf32>,
    %c1_38 = arith.constant 1 : index
    %c0_39 = arith.constant 0 : index
    %102 = tpu.strided_load %arg7[%c1_38, %c0_39] {strides = array<i32: 4, 1>} : memref<99x128xf32, #tpu.memory_space<vmem>>, vector<24x128xf32>
    %c0_40 = arith.constant 0 : index
    %c128_41 = arith.constant 128 : index
    %103 = vector.load %arg13[%c0_40, %c128_41] : memref<24x640xf32, #tpu.memory_space<vmem>>, vector<24x128xf32>
    tpu.vector_store %arg13[%c0_40, %c128_41], %102 {strides = array<i32>} : memref<24x640xf32, #tpu.memory_space<vmem>>, vector<24x128xf32>,
    %c2_42 = arith.constant 2 : index
    %c0_43 = arith.constant 0 : index
    %104 = tpu.strided_load %arg7[%c2_42, %c0_43] {strides = array<i32: 4, 1>} : memref<99x128xf32, #tpu.memory_space<vmem>>, vector<24x128xf32>
    %c0_44 = arith.constant 0 : index
    %c256_45 = arith.constant 256 : index
    %105 = vector.load %arg13[%c0_44, %c256_45] : memref<24x640xf32, #tpu.memory_space<vmem>>, vector<24x128xf32>
    tpu.vector_store %arg13[%c0_44, %c256_45], %104 {strides = array<i32>} : memref<24x640xf32, #tpu.memory_space<vmem>>, vector<24x128xf32>,
    %c3_46 = arith.constant 3 : index
    %c0_47 = arith.constant 0 : index
    %106 = tpu.strided_load %arg7[%c3_46, %c0_47] {strides = array<i32: 4, 1>} : memref<99x128xf32, #tpu.memory_space<vmem>>, vector<24x128xf32>
    %c0_48 = arith.constant 0 : index
    %c384_49 = arith.constant 384 : index
    %107 = vector.load %arg13[%c0_48, %c384_49] : memref<24x640xf32, #tpu.memory_space<vmem>>, vector<24x128xf32>
    tpu.vector_store %arg13[%c0_48, %c384_49], %106 {strides = array<i32>} : memref<24x640xf32, #tpu.memory_space<vmem>>, vector<24x128xf32>,
    %c4_50 = arith.constant 4 : index
    %c0_51 = arith.constant 0 : index
    %108 = tpu.strided_load %arg7[%c4_50, %c0_51] {strides = array<i32: 4, 1>} : memref<99x128xf32, #tpu.memory_space<vmem>>, vector<24x128xf32>
    %c0_52 = arith.constant 0 : index
    %c512_53 = arith.constant 512 : index
    %109 = vector.load %arg13[%c0_52, %c512_53] : memref<24x640xf32, #tpu.memory_space<vmem>>, vector<24x128xf32>
    tpu.vector_store %arg13[%c0_52, %c512_53], %108 {strides = array<i32>} : memref<24x640xf32, #tpu.memory_space<vmem>>, vector<24x128xf32>,
    %c640 = arith.constant 640 : index
    %c0_54 = arith.constant 0 : index
    %110 = vector.load %arg3[%c640, %c0_54] : memref<2560x128xbf16, #tpu.memory_space<vmem>>, vector<640x128xbf16>
    %c0_55 = arith.constant 0 : index
    %c0_56 = arith.constant 0 : index
    %111 = vector.load %arg13[%c0_55, %c0_56] : memref<24x640xf32, #tpu.memory_space<vmem>>, vector<24x640xf32>
    %112 = arith.truncf %111 : vector<24x640xf32> to vector<24x640xbf16>
    %cst_57 = arith.constant dense<0.000000e+00> : vector<24x128xf32>
    %113 = tpu.matmul %112, %110, %cst_57 {dimension_numbers = #tpu.dot_dimension_numbers<[1], [0], [0], [1], [0, 0, 1, 1], [], []>} : vector<24x640xbf16>, vector<640x128xbf16>, vector<24x128xf32> -> vector<24x128xf32>
    %c2_58 = arith.constant 2 : index
    %c0_59 = arith.constant 0 : index
    %114 = vector.load %arg4[%c2_58, %c0_59] : memref<7x128xf32, #tpu.memory_space<vmem>>, vector<1x128xf32>
    %115 = vector.broadcast %114 : vector<1x128xf32> to vector<24x128xf32>
    %116 = arith.addf %113, %115 : vector<24x128xf32>
    %cst_60 = arith.constant 5.000000e-01 : f32
    %117 = vector.broadcast %cst_60 : f32 to vector<24x128xf32>
    %118 = arith.mulf %117, %116 : vector<24x128xf32>
    %cst_61 = arith.constant 0.707106769 : f32
    %119 = vector.broadcast %cst_61 : f32 to vector<24x128xf32>
    %120 = arith.mulf %116, %119 : vector<24x128xf32>
    %121 = math.erf %120 : vector<24x128xf32>
    %cst_62 = arith.constant 1.000000e+00 : f32
    %122 = vector.broadcast %cst_62 : f32 to vector<24x128xf32>
    %123 = arith.addf %122, %121 : vector<24x128xf32>
    %124 = arith.mulf %118, %123 : vector<24x128xf32>
    %c0_63 = arith.constant 0 : index
    %c0_64 = arith.constant 0 : index
    %125 = vector.load %arg8[%c0_63, %c0_64] : memref<24x128xf32, #tpu.memory_space<vmem>>, vector<24x128xf32>
    tpu.vector_store %arg8[%c0_63, %c0_64], %124 {strides = array<i32>} : memref<24x128xf32, #tpu.memory_space<vmem>>, vector<24x128xf32>,
    %c0_65 = arith.constant 0 : index
    %c0_66 = arith.constant 0 : index
    %126 = tpu.strided_load %arg8[%c0_65, %c0_66] {strides = array<i32: 2, 1>} : memref<24x128xf32, #tpu.memory_space<vmem>>, vector<11x128xf32>
    %c0_67 = arith.constant 0 : index
    %c0_68 = arith.constant 0 : index
    %127 = vector.load %arg14[%c0_67, %c0_68] : memref<11x384xf32, #tpu.memory_space<vmem>>, vector<11x128xf32>
    tpu.vector_store %arg14[%c0_67, %c0_68], %126 {strides = array<i32>} : memref<11x384xf32, #tpu.memory_space<vmem>>, vector<11x128xf32>,
    %c1_69 = arith.constant 1 : index
    %c0_70 = arith.constant 0 : index
    %128 = tpu.strided_load %arg8[%c1_69, %c0_70] {strides = array<i32: 2, 1>} : memref<24x128xf32, #tpu.memory_space<vmem>>, vector<11x128xf32>
    %c0_71 = arith.constant 0 : index
    %c128_72 = arith.constant 128 : index
    %129 = vector.load %arg14[%c0_71, %c128_72] : memref<11x384xf32, #tpu.memory_space<vmem>>, vector<11x128xf32>
    tpu.vector_store %arg14[%c0_71, %c128_72], %128 {strides = array<i32>} : memref<11x384xf32, #tpu.memory_space<vmem>>, vector<11x128xf32>,
    %c2_73 = arith.constant 2 : index
    %c0_74 = arith.constant 0 : index
    %130 = tpu.strided_load %arg8[%c2_73, %c0_74] {strides = array<i32: 2, 1>} : memref<24x128xf32, #tpu.memory_space<vmem>>, vector<11x128xf32>
    %c0_75 = arith.constant 0 : index
    %c256_76 = arith.constant 256 : index
    %131 = vector.load %arg14[%c0_75, %c256_76] : memref<11x384xf32, #tpu.memory_space<vmem>>, vector<11x128xf32>
    tpu.vector_store %arg14[%c0_75, %c256_76], %130 {strides = array<i32>} : memref<11x384xf32, #tpu.memory_space<vmem>>, vector<11x128xf32>,
    %c1280 = arith.constant 1280 : index
    %c0_77 = arith.constant 0 : index
    %132 = vector.load %arg3[%c1280, %c0_77] : memref<2560x128xbf16, #tpu.memory_space<vmem>>, vector<384x128xbf16>
    %c0_78 = arith.constant 0 : index
    %c0_79 = arith.constant 0 : index
    %133 = vector.load %arg14[%c0_78, %c0_79] : memref<11x384xf32, #tpu.memory_space<vmem>>, vector<11x384xf32>
    %134 = arith.truncf %133 : vector<11x384xf32> to vector<11x384xbf16>
    %cst_80 = arith.constant dense<0.000000e+00> : vector<11x128xf32>
    %135 = tpu.matmul %134, %132, %cst_80 {dimension_numbers = #tpu.dot_dimension_numbers<[1], [0], [0], [1], [0, 0, 1, 1], [], []>} : vector<11x384xbf16>, vector<384x128xbf16>, vector<11x128xf32> -> vector<11x128xf32>
    %c3_81 = arith.constant 3 : index
    %c0_82 = arith.constant 0 : index
    %136 = vector.load %arg4[%c3_81, %c0_82] : memref<7x128xf32, #tpu.memory_space<vmem>>, vector<1x128xf32>
    %137 = vector.broadcast %136 : vector<1x128xf32> to vector<11x128xf32>
    %138 = arith.addf %135, %137 : vector<11x128xf32>
    %cst_83 = arith.constant 5.000000e-01 : f32
    %139 = vector.broadcast %cst_83 : f32 to vector<11x128xf32>
    %140 = arith.mulf %139, %138 : vector<11x128xf32>
    %cst_84 = arith.constant 0.707106769 : f32
    %141 = vector.broadcast %cst_84 : f32 to vector<11x128xf32>
    %142 = arith.mulf %138, %141 : vector<11x128xf32>
    %143 = math.erf %142 : vector<11x128xf32>
    %cst_85 = arith.constant 1.000000e+00 : f32
    %144 = vector.broadcast %cst_85 : f32 to vector<11x128xf32>
    %145 = arith.addf %144, %143 : vector<11x128xf32>
    %146 = arith.mulf %140, %145 : vector<11x128xf32>
    %c0_86 = arith.constant 0 : index
    %c0_87 = arith.constant 0 : index
    %147 = vector.load %arg9[%c0_86, %c0_87] : memref<11x128xf32, #tpu.memory_space<vmem>>, vector<11x128xf32>
    tpu.vector_store %arg9[%c0_86, %c0_87], %146 {strides = array<i32>} : memref<11x128xf32, #tpu.memory_space<vmem>>, vector<11x128xf32>,
    %c0_88 = arith.constant 0 : index
    %c0_89 = arith.constant 0 : index
    %148 = tpu.strided_load %arg9[%c0_88, %c0_89] {strides = array<i32: 2, 1>} : memref<11x128xf32, #tpu.memory_space<vmem>>, vector<5x128xf32>
    %c0_90 = arith.constant 0 : index
    %c0_91 = arith.constant 0 : index
    %149 = vector.load %arg15[%c0_90, %c0_91] : memref<5x384xf32, #tpu.memory_space<vmem>>, vector<5x128xf32>
    tpu.vector_store %arg15[%c0_90, %c0_91], %148 {strides = array<i32>} : memref<5x384xf32, #tpu.memory_space<vmem>>, vector<5x128xf32>,
    %c1_92 = arith.constant 1 : index
    %c0_93 = arith.constant 0 : index
    %150 = tpu.strided_load %arg9[%c1_92, %c0_93] {strides = array<i32: 2, 1>} : memref<11x128xf32, #tpu.memory_space<vmem>>, vector<5x128xf32>
    %c0_94 = arith.constant 0 : index
    %c128_95 = arith.constant 128 : index
    %151 = vector.load %arg15[%c0_94, %c128_95] : memref<5x384xf32, #tpu.memory_space<vmem>>, vector<5x128xf32>
    tpu.vector_store %arg15[%c0_94, %c128_95], %150 {strides = array<i32>} : memref<5x384xf32, #tpu.memory_space<vmem>>, vector<5x128xf32>,
    %c2_96 = arith.constant 2 : index
    %c0_97 = arith.constant 0 : index
    %152 = tpu.strided_load %arg9[%c2_96, %c0_97] {strides = array<i32: 2, 1>} : memref<11x128xf32, #tpu.memory_space<vmem>>, vector<5x128xf32>
    %c0_98 = arith.constant 0 : index
    %c256_99 = arith.constant 256 : index
    %153 = vector.load %arg15[%c0_98, %c256_99] : memref<5x384xf32, #tpu.memory_space<vmem>>, vector<5x128xf32>
    tpu.vector_store %arg15[%c0_98, %c256_99], %152 {strides = array<i32>} : memref<5x384xf32, #tpu.memory_space<vmem>>, vector<5x128xf32>,
    %c1664 = arith.constant 1664 : index
    %c0_100 = arith.constant 0 : index
    %154 = vector.load %arg3[%c1664, %c0_100] : memref<2560x128xbf16, #tpu.memory_space<vmem>>, vector<384x128xbf16>
    %c0_101 = arith.constant 0 : index
    %c0_102 = arith.constant 0 : index
    %155 = vector.load %arg15[%c0_101, %c0_102] : memref<5x384xf32, #tpu.memory_space<vmem>>, vector<5x384xf32>
    %156 = arith.truncf %155 : vector<5x384xf32> to vector<5x384xbf16>
    %cst_103 = arith.constant dense<0.000000e+00> : vector<5x128xf32>
    %157 = tpu.matmul %156, %154, %cst_103 {dimension_numbers = #tpu.dot_dimension_numbers<[1], [0], [0], [1], [0, 0, 1, 1], [], []>} : vector<5x384xbf16>, vector<384x128xbf16>, vector<5x128xf32> -> vector<5x128xf32>
    %c4_104 = arith.constant 4 : index
    %c0_105 = arith.constant 0 : index
    %158 = vector.load %arg4[%c4_104, %c0_105] : memref<7x128xf32, #tpu.memory_space<vmem>>, vector<1x128xf32>
    %159 = vector.broadcast %158 : vector<1x128xf32> to vector<5x128xf32>
    %160 = arith.addf %157, %159 : vector<5x128xf32>
    %cst_106 = arith.constant 5.000000e-01 : f32
    %161 = vector.broadcast %cst_106 : f32 to vector<5x128xf32>
    %162 = arith.mulf %161, %160 : vector<5x128xf32>
    %cst_107 = arith.constant 0.707106769 : f32
    %163 = vector.broadcast %cst_107 : f32 to vector<5x128xf32>
    %164 = arith.mulf %160, %163 : vector<5x128xf32>
    %165 = math.erf %164 : vector<5x128xf32>
    %cst_108 = arith.constant 1.000000e+00 : f32
    %166 = vector.broadcast %cst_108 : f32 to vector<5x128xf32>
    %167 = arith.addf %166, %165 : vector<5x128xf32>
    %168 = arith.mulf %162, %167 : vector<5x128xf32>
    %c0_109 = arith.constant 0 : index
    %c0_110 = arith.constant 0 : index
    %169 = vector.load %arg10[%c0_109, %c0_110] : memref<5x128xf32, #tpu.memory_space<vmem>>, vector<5x128xf32>
    tpu.vector_store %arg10[%c0_109, %c0_110], %168 {strides = array<i32>} : memref<5x128xf32, #tpu.memory_space<vmem>>, vector<5x128xf32>,
    %c0_111 = arith.constant 0 : index
    %c0_112 = arith.constant 0 : index
    %170 = tpu.strided_load %arg10[%c0_111, %c0_112] {strides = array<i32: 2, 1>} : memref<5x128xf32, #tpu.memory_space<vmem>>, vector<2x128xf32>
    %c0_113 = arith.constant 0 : index
    %c0_114 = arith.constant 0 : index
    %171 = vector.load %arg16[%c0_113, %c0_114] : memref<2x256xf32, #tpu.memory_space<vmem>>, vector<2x128xf32>
    tpu.vector_store %arg16[%c0_113, %c0_114], %170 {strides = array<i32>} : memref<2x256xf32, #tpu.memory_space<vmem>>, vector<2x128xf32>,
    %c1_115 = arith.constant 1 : index
    %c0_116 = arith.constant 0 : index
    %172 = tpu.strided_load %arg10[%c1_115, %c0_116] {strides = array<i32: 2, 1>} : memref<5x128xf32, #tpu.memory_space<vmem>>, vector<2x128xf32>
    %c0_117 = arith.constant 0 : index
    %c128_118 = arith.constant 128 : index
    %173 = vector.load %arg16[%c0_117, %c128_118] : memref<2x256xf32, #tpu.memory_space<vmem>>, vector<2x128xf32>
    tpu.vector_store %arg16[%c0_117, %c128_118], %172 {strides = array<i32>} : memref<2x256xf32, #tpu.memory_space<vmem>>, vector<2x128xf32>,
    %c2048 = arith.constant 2048 : index
    %c0_119 = arith.constant 0 : index
    %174 = vector.load %arg3[%c2048, %c0_119] : memref<2560x128xbf16, #tpu.memory_space<vmem>>, vector<256x128xbf16>
    %c0_120 = arith.constant 0 : index
    %c0_121 = arith.constant 0 : index
    %175 = vector.load %arg16[%c0_120, %c0_121] : memref<2x256xf32, #tpu.memory_space<vmem>>, vector<2x256xf32>
    %176 = arith.truncf %175 : vector<2x256xf32> to vector<2x256xbf16>
    %cst_122 = arith.constant dense<0.000000e+00> : vector<2x128xf32>
    %177 = tpu.matmul %176, %174, %cst_122 {dimension_numbers = #tpu.dot_dimension_numbers<[1], [0], [0], [1], [0, 0, 1, 1], [], []>} : vector<2x256xbf16>, vector<256x128xbf16>, vector<2x128xf32> -> vector<2x128xf32>
    %c5 = arith.constant 5 : index
    %c0_123 = arith.constant 0 : index
    %178 = vector.load %arg4[%c5, %c0_123] : memref<7x128xf32, #tpu.memory_space<vmem>>, vector<1x128xf32>
    %179 = vector.broadcast %178 : vector<1x128xf32> to vector<2x128xf32>
    %180 = arith.addf %177, %179 : vector<2x128xf32>
    %cst_124 = arith.constant 5.000000e-01 : f32
    %181 = vector.broadcast %cst_124 : f32 to vector<2x128xf32>
    %182 = arith.mulf %181, %180 : vector<2x128xf32>
    %cst_125 = arith.constant 0.707106769 : f32
    %183 = vector.broadcast %cst_125 : f32 to vector<2x128xf32>
    %184 = arith.mulf %180, %183 : vector<2x128xf32>
    %185 = math.erf %184 : vector<2x128xf32>
    %cst_126 = arith.constant 1.000000e+00 : f32
    %186 = vector.broadcast %cst_126 : f32 to vector<2x128xf32>
    %187 = arith.addf %186, %185 : vector<2x128xf32>
    %188 = arith.mulf %182, %187 : vector<2x128xf32>
    %c0_127 = arith.constant 0 : index
    %c0_128 = arith.constant 0 : index
    %189 = vector.load %arg11[%c0_127, %c0_128] : memref<2x128xf32, #tpu.memory_space<vmem>>, vector<2x128xf32>
    tpu.vector_store %arg11[%c0_127, %c0_128], %188 {strides = array<i32>} : memref<2x128xf32, #tpu.memory_space<vmem>>, vector<2x128xf32>,
    %c0_129 = arith.constant 0 : index
    %c0_130 = arith.constant 0 : index
    %190 = tpu.strided_load %arg11[%c0_129, %c0_130] {strides = array<i32: 2, 1>} : memref<2x128xf32, #tpu.memory_space<vmem>>, vector<1x128xf32>
    %c0_131 = arith.constant 0 : index
    %c0_132 = arith.constant 0 : index
    %191 = vector.load %arg17[%c0_131, %c0_132] : memref<1x256xf32, #tpu.memory_space<vmem>>, vector<1x128xf32>
    tpu.vector_store %arg17[%c0_131, %c0_132], %190 {strides = array<i32>} : memref<1x256xf32, #tpu.memory_space<vmem>>, vector<1x128xf32>,
    %c1_133 = arith.constant 1 : index
    %c0_134 = arith.constant 0 : index
    %192 = tpu.strided_load %arg11[%c1_133, %c0_134] {strides = array<i32: 2, 1>} : memref<2x128xf32, #tpu.memory_space<vmem>>, vector<1x128xf32>
    %c0_135 = arith.constant 0 : index
    %c128_136 = arith.constant 128 : index
    %193 = vector.load %arg17[%c0_135, %c128_136] : memref<1x256xf32, #tpu.memory_space<vmem>>, vector<1x128xf32>
    tpu.vector_store %arg17[%c0_135, %c128_136], %192 {strides = array<i32>} : memref<1x256xf32, #tpu.memory_space<vmem>>, vector<1x128xf32>,
    %c2304 = arith.constant 2304 : index
    %c0_137 = arith.constant 0 : index
    %194 = vector.load %arg3[%c2304, %c0_137] : memref<2560x128xbf16, #tpu.memory_space<vmem>>, vector<256x128xbf16>
    %c0_138 = arith.constant 0 : index
    %c0_139 = arith.constant 0 : index
    %195 = vector.load %arg17[%c0_138, %c0_139] : memref<1x256xf32, #tpu.memory_space<vmem>>, vector<1x256xf32>
    %196 = arith.truncf %195 : vector<1x256xf32> to vector<1x256xbf16>
    %cst_140 = arith.constant dense<0.000000e+00> : vector<1x128xf32>
    %197 = tpu.matmul %196, %194, %cst_140 {dimension_numbers = #tpu.dot_dimension_numbers<[1], [0], [0], [1], [0, 0, 1, 1], [], []>} : vector<1x256xbf16>, vector<256x128xbf16>, vector<1x128xf32> -> vector<1x128xf32>
    %c6 = arith.constant 6 : index
    %c0_141 = arith.constant 0 : index
    %198 = vector.load %arg4[%c6, %c0_141] : memref<7x128xf32, #tpu.memory_space<vmem>>, vector<1x128xf32>
    %199 = arith.addf %197, %198 : vector<1x128xf32>
    %cst_142 = arith.constant 5.000000e-01 : f32
    %200 = vector.broadcast %cst_142 : f32 to vector<1x128xf32>
    %201 = arith.mulf %200, %199 : vector<1x128xf32>
    %cst_143 = arith.constant 0.707106769 : f32
    %202 = vector.broadcast %cst_143 : f32 to vector<1x128xf32>
    %203 = arith.mulf %199, %202 : vector<1x128xf32>
    %204 = math.erf %203 : vector<1x128xf32>
    %cst_144 = arith.constant 1.000000e+00 : f32
    %205 = vector.broadcast %cst_144 : f32 to vector<1x128xf32>
    %206 = arith.addf %205, %204 : vector<1x128xf32>
    %207 = arith.mulf %201, %206 : vector<1x128xf32>
    %c0_145 = arith.constant 0 : index
    %c0_146 = arith.constant 0 : index
    %c0_147 = arith.constant 0 : index
    %208 = vector.load %arg5[%c0_145, %c0_146, %c0_147] : memref<1x1x128xf32, #tpu.memory_space<vmem>>, vector<1x1x128xf32>
    %209 = vector.shape_cast %208 : vector<1x1x128xf32> to vector<1x128xf32>
    %210 = vector.shape_cast %207 : vector<1x128xf32> to vector<1x1x128xf32>
    tpu.vector_store %arg5[%c0_145, %c0_146, %c0_147], %210 {strides = array<i32>} : memref<1x1x128xf32, #tpu.memory_space<vmem>>, vector<1x1x128xf32>,
    return
  }
  func.func @transform_0(%arg0: i32) -> (i32, i32, i32) {
    %c0_i32 = arith.constant 0 : i32
    %c0_i32_0 = arith.constant 0 : i32
    %c0_i32_1 = arith.constant 0 : i32
    return %arg0, %c0_i32, %c0_i32_0 : i32, i32, i32
  }
  func.func @transform_1(%arg0: i32) -> (i32, i32) {
    %c0_i32 = arith.constant 0 : i32
    %c0_i32_0 = arith.constant 0 : i32
    %c0_i32_1 = arith.constant 0 : i32
    return %c0_i32, %c0_i32_0 : i32, i32
  }
  func.func @transform_2(%arg0: i32) -> (i32, i32) {
    %c0_i32 = arith.constant 0 : i32
    %c0_i32_0 = arith.constant 0 : i32
    %c0_i32_1 = arith.constant 0 : i32
    return %c0_i32, %c0_i32_0 : i32, i32
  }
  func.func @transform_3(%arg0: i32) -> (i32, i32) {
    %c0_i32 = arith.constant 0 : i32
    %c0_i32_0 = arith.constant 0 : i32
    %c0_i32_1 = arith.constant 0 : i32
    return %c0_i32, %c0_i32_0 : i32, i32
  }
  func.func @transform_4(%arg0: i32) -> (i32, i32, i32) {
    %c0_i32 = arith.constant 0 : i32
    %c0_i32_0 = arith.constant 0 : i32
    %c0_i32_1 = arith.constant 0 : i32
    return %arg0, %c0_i32, %c0_i32_0 : i32, i32, i32
  }
}

</mosaic_0001>

<llo_original>
// kernel: _forward.1
$region0: #{_forward.1}
  #allocation0 [shape = 'u32[]', space=smem, size = 0x4, offset = 0x4, fixed_abs, tag = 'smem constant byte address 0x4 - core index']
  #allocation1 [shape = 'u32[72,128]{1,0:T(1,128)}', space=vmem, size = 0x9000, scoped, tag = 'internal scratch']
  #allocation2 [shape = 'f32[399,128]{1,0:T(8,128)}', space=vmem, size = 0x32000, scoped, tag = 'scratch operand']
  #allocation3 [shape = 'f32[99,128]{1,0:T(8,128)}', space=vmem, size = 0xd000, scoped, tag = 'scratch operand']
  #allocation4 [shape = 'f32[24,128]{1,0:T(8,128)}', space=vmem, size = 0x3000, scoped, tag = 'scratch operand']
  #allocation5 [shape = 'f32[11,128]{1,0:T(8,128)}', space=vmem, size = 0x2000, scoped, tag = 'scratch operand']
  #allocation6 [shape = 'f32[5,128]{1,0:T(8,128)}', space=vmem, size = 0x1000, scoped, tag = 'scratch operand']
  #allocation7 [shape = 'f32[2,128]{1,0:T(2,128)}', space=vmem, size = 0x400, scoped, tag = 'scratch operand']
  #allocation8 [shape = 'f32[99,640]{1,0:T(8,128)}', space=vmem, size = 0x41000, scoped, tag = 'scratch operand']
  #allocation9 [shape = 'f32[24,640]{1,0:T(8,128)}', space=vmem, size = 0xf000, scoped, tag = 'scratch operand']
  #allocation10 [shape = 'f32[11,384]{1,0:T(8,128)}', space=vmem, size = 0x6000, scoped, tag = 'scratch operand']
  #allocation11 [shape = 'f32[5,384]{1,0:T(8,128)}', space=vmem, size = 0x3000, scoped, tag = 'scratch operand']
  #allocation12 [shape = 'f32[2,256]{1,0:T(2,128)}', space=vmem, size = 0x800, scoped, tag = 'scratch operand']
  #allocation13 [shape = 'f32[1,256]{1,0:T(1,128)}', space=vmem, size = 0x400, scoped, tag = 'scratch operand']
  %s0 = inlined_call_operand.vmem [shape: f32[2,399,10], index: 0, kind: input, shape index: {}]
  %s1 = inlined_call_operand.vmem [shape: f32[10,128], index: 1, kind: input, shape index: {}]
  %s2 = inlined_call_operand.hbm [shape: bf16[2560,128], index: 2, kind: input, shape index: {}]
  %s3 = inlined_call_operand.vmem [shape: f32[7,128], index: 3, kind: input, shape index: {}]
  %s4 = inlined_call_operand.vmem [shape: f32[2,1,128], index: 4, kind: output, shape index: {}]
  %s5 = sld [smem:[#allocation0]]
  $region53: #{_forward.1} parent=0
    _
  %s7 = ssub.s32 1, %s5
  %s8 = scalar_select 0, %s7, %s5
  $region1: #{_forward.1} parent=0
    #allocation14 [shape = 'u8[655360]{0}', space=vmem, size = 0xa0000, scoped, tag = 'input window, operand 2, single buffered']
    #allocation15 [shape = 's32[2]{0}', space=sflag, size = 0x8, scoped, tag = 'scoped memory for _forward.1']
    %9 = vsyncpa [#allocation15], 0
    loop: start=0, step=1, limit=4
    $region2: #{_forward.1} parent=1 // loop_pre_header
      _
    $region3: #{_forward.1} parent=1 // loop_header
      %s11 = sphi 0, %s15
      %p12 = scmp.ge.s32.totalorder %s11, 4
      %s21 = sphi 0, %s23
      %s24 = sphi 0, %s21
      %s25 = sphi 0, %s24
      %s41 = sphi 0, %s25
      %s45 = sphi 0, %s45
      %s47 = sphi 0, %s45
      %s48 = sphi 0, %s47
      %s62 = sphi 0, %s48
      %s66 = sphi 0, %s66
      %s68 = sphi 0, %s66
      %s69 = sphi 0, %s68
      %s83 = sphi 0, %s69
      %s87 = sphi 0, %s87
      %s89 = sphi 0, %s87
      %s90 = sphi 0, %s89
      %s104 = sphi 0, %s90
      %s110 = sphi 0, %s112
      %s113 = sphi 0, %s110
      %s114 = sphi 0, %s113
      %s130 = sphi 0, %s114
    $region4: #{_forward.1} parent=1 // loop_header_branch
      %14 = sbr.rel (%p12) target = $region8
    $region5: #{_forward.1} parent=1 // loop_body
      %s16 = ssub.s32 %s11, 1
      %s17 = ssub.s32 %s11, 2
      %s18 = sadd.s32 %s11, 1
      %s19 = ssub.s32 %s11, %s18
      %p20 = scmp.eq.s32.totalorder %s19, 0
      %s22 = sadd.s32 %s21, 1
      %s23 = scalar_select %p20, %s21, %s22
      %p26 = pneg %p20
      %p27 = scmp.eq.s32.totalorder %s11, 1
      %p28 = por %p26, %p27
      %p29 = scmp.ne.s32.totalorder %s21, %s24
      %p30 = scmp.eq.s32.totalorder %s11, 0
      %p31 = por %p29, %p30
      %p32 = scmp.ne.s32.totalorder %s21, %s24
      %p33 = scmp.eq.s32.totalorder %s16, 1
      %p34 = por %p32, %p33
      %p35 = scmp.ne.s32.totalorder %s24, %s25
      %p36 = scmp.eq.s32.totalorder %s16, 0
      %p37 = por %p35, %p36
      %p38 = scmp.ne.s32.totalorder %s24, %s25
      %p39 = scmp.eq.s32.totalorder %s17, 1
      %p40 = por %p38, %p39
      %p42 = scmp.ne.s32.totalorder %s25, %s41
      %p43 = scmp.eq.s32.totalorder %s17, 0
      %p44 = por %p42, %p43
      %s46 = sadd.s32 %s45, 1
      %p49 = scmp.eq.s32.totalorder %s11, 1
      %p50 = scmp.ne.s32.totalorder %s45, %s47
      %p51 = scmp.eq.s32.totalorder %s11, 0
      %p52 = por %p50, %p51
      %p53 = scmp.ne.s32.totalorder %s45, %s47
      %p54 = scmp.eq.s32.totalorder %s16, 1
      %p55 = por %p53, %p54
      %p56 = scmp.ne.s32.totalorder %s47, %s48
      %p57 = scmp.eq.s32.totalorder %s16, 0
      %p58 = por %p56, %p57
      %p59 = scmp.ne.s32.totalorder %s47, %s48
      %p60 = scmp.eq.s32.totalorder %s17, 1
      %p61 = por %p59, %p60
      %p63 = scmp.ne.s32.totalorder %s48, %s62
      %p64 = scmp.eq.s32.totalorder %s17, 0
      %p65 = por %p63, %p64
      %s67 = sadd.s32 %s66, 1
      %p70 = scmp.eq.s32.totalorder %s11, 1
      %p71 = scmp.ne.s32.totalorder %s66, %s68
      %p72 = scmp.eq.s32.totalorder %s11, 0
      %p73 = por %p71, %p72
      %p74 = scmp.ne.s32.totalorder %s66, %s68
      %p75 = scmp.eq.s32.totalorder %s16, 1
      %p76 = por %p74, %p75
      %p77 = scmp.ne.s32.totalorder %s68, %s69
      %p78 = scmp.eq.s32.totalorder %s16, 0
      %p79 = por %p77, %p78
      %p80 = scmp.ne.s32.totalorder %s68, %s69
      %p81 = scmp.eq.s32.totalorder %s17, 1
      %p82 = por %p80, %p81
      %p84 = scmp.ne.s32.totalorder %s69, %s83
      %p85 = scmp.eq.s32.totalorder %s17, 0
      %p86 = por %p84, %p85
      %s88 = sadd.s32 %s87, 1
      %p91 = scmp.eq.s32.totalorder %s11, 1
      %p92 = scmp.ne.s32.totalorder %s87, %s89
      %p93 = scmp.eq.s32.totalorder %s11, 0
      %p94 = por %p92, %p93
      %p95 = scmp.ne.s32.totalorder %s87, %s89
      %p96 = scmp.eq.s32.totalorder %s16, 1
      %p97 = por %p95, %p96
      %p98 = scmp.ne.s32.totalorder %s89, %s90
      %p99 = scmp.eq.s32.totalorder %s16, 0
      %p100 = por %p98, %p99
      %p101 = scmp.ne.s32.totalorder %s89, %s90
      %p102 = scmp.eq.s32.totalorder %s17, 1
      %p103 = por %p101, %p102
      %p105 = scmp.ne.s32.totalorder %s90, %s104
      %p106 = scmp.eq.s32.totalorder %s17, 0
      %p107 = por %p105, %p106
      %s108 = ssub.s32 %s11, %s18
      %p109 = scmp.eq.s32.totalorder %s108, 0
      %s111 = sadd.s32 %s110, 1
      %s112 = scalar_select %p109, %s110, %s111
      %p115 = pneg %p109
      %p116 = scmp.eq.s32.totalorder %s11, 1
      %p117 = por %p115, %p116
      %p118 = scmp.ne.s32.totalorder %s110, %s113
      %p119 = scmp.eq.s32.totalorder %s11, 0
      %p120 = por %p118, %p119
      %p121 = scmp.ne.s32.totalorder %s110, %s113
      %p122 = scmp.eq.s32.totalorder %s16, 1
      %p123 = por %p121, %p122
      %p124 = scmp.ne.s32.totalorder %s113, %s114
      %p125 = scmp.eq.s32.totalorder %s16, 0
      %p126 = por %p124, %p125
      %p127 = scmp.ne.s32.totalorder %s113, %s114
      %p128 = scmp.eq.s32.totalorder %s17, 1
      %p129 = por %p127, %p128
      %p131 = scmp.ne.s32.totalorder %s114, %s130
      %p132 = scmp.eq.s32.totalorder %s17, 0
      %p133 = por %p131, %p132
      %p134 = scmp.le.s32.totalorder 1, %s11
      %p135 = scmp.lt.s32.totalorder %s11, 3
      %p136 = pnand %p134, %p135
      %p137 = pneg %p136
      // Predicated region
      $region9: #{_forward.1} parent=5 // pred_check
        _
      $region10: #{_forward.1} parent=5 // pred_check_branch
        %139 = sbr.rel (%p136) target = $region12
      $region11: #{_forward.1} parent=5 // pred_region
        %s140 = ssub.s32 %s11, 1
        // Predicated region
        $region13: #{_forward.1} parent=11 // pred_check
          %p141 = pneg %p58
        $region14: #{_forward.1} parent=11 // pred_check_branch
          %143 = sbr.rel (%p141) target = $region16
        $region15: #{_forward.1} parent=11 // pred_region
          _
        $region16: #{_forward.1} parent=11 // pred_fallthru
          _
        // Predicated region
        $region17: #{_forward.1} parent=11 // pred_check
          %p144 = pneg %p79
        $region18: #{_forward.1} parent=11 // pred_check_branch
          %146 = sbr.rel (%p144) target = $region20
        $region19: #{_forward.1} parent=11 // pred_region
          %148 = vsyncadd [#allocation15], 0
          %s149 = sshll.u32 %s2, 4
          %s150 = int_to_ptr.hbm [resolvable:$true] %s149
          %s151 = sshll.u32 [#allocation14], 4
          %s152 = int_to_ptr.vmem [resolvable:$true] %s151
          %157 = dma.hbm_to_vmem [thread:$0]  %s150, 20480, %s152, [#allocation15], 64, 64, 4
        $region20: #{_forward.1} parent=11 // pred_fallthru
          _
        // Predicated region
        $region21: #{_forward.1} parent=11 // pred_check
          %p158 = pneg %p100
        $region22: #{_forward.1} parent=11 // pred_check_branch
          %160 = sbr.rel (%p158) target = $region24
        $region23: #{_forward.1} parent=11 // pred_region
          _
        $region24: #{_forward.1} parent=11 // pred_fallthru
          _
      $region12: #{_forward.1} parent=5 // pred_fallthru
        _
      %p161 = scmp.lt.s32.totalorder %s11, 2
      // Predicated region
      $region25: #{_forward.1} parent=5 // pred_check
        %p162 = pneg %p161
      $region26: #{_forward.1} parent=5 // pred_check_branch
        %164 = sbr.rel (%p162) target = $region28
      $region27: #{_forward.1} parent=5 // pred_region
        // Predicated region
        $region29: #{_forward.1} parent=27 // pred_check
          %p165 = pneg %p31
        $region30: #{_forward.1} parent=27 // pred_check_branch
          %167 = sbr.rel (%p165) target = $region32
        $region31: #{_forward.1} parent=27 // pred_region
          %p168 = scmp.lt.s32.totalorder %s11, 1
          %s169 = scalar_select %p168, %s11, 1
          %s170 = smul.addr %s169, 50
          %s171 = smul.addr %s170, 8
          %s172 = scalar_lea.vmem %s0, %s171
        $region32: #{_forward.1} parent=27 // pred_fallthru
          _
      $region28: #{_forward.1} parent=5 // pred_fallthru
        _
      %p173 = scmp.le.s32.totalorder 1, %s11
      %p174 = scmp.lt.s32.totalorder %s11, 3
      %p175 = pnand %p173, %p174
      %p176 = pneg %p175
      // Predicated region
      $region33: #{_forward.1} parent=5 // pred_check
        _
      $region34: #{_forward.1} parent=5 // pred_check_branch
        %178 = sbr.rel (%p175) target = $region36
      $region35: #{_forward.1} parent=5 // pred_region
        %s179 = ssub.s32 %s11, 1
        // Predicated region
        $region37: #{_forward.1} parent=35 // pred_check
          %p180 = pneg %p79
        $region38: #{_forward.1} parent=35 // pred_check_branch
          %182 = sbr.rel (%p180) target = $region40
        $region39: #{_forward.1} parent=35 // pred_region
          %184 = dma.done [#allocation15], 20480
        $region40: #{_forward.1} parent=35 // pred_fallthru
          _
        %p185 = scmp.lt.s32.totalorder %s16, 1
        %s186 = scalar_select %p185, %s16, 1
        %s187 = smul.addr %s186, 50
        %s188 = smul.addr %s187, 8
        %s189 = scalar_lea.vmem %s0, %s188
        %p190 = pneg %p37
        %p191 = pneg %p34
        %p192 = pneg %p58
        %p193 = pneg %p55
        %p194 = pneg %p79
        %p195 = pneg %p76
        %p196 = pneg %p100
        %p197 = pneg %p97
        %p198 = pneg %p126
        %p199 = pneg %p123
        %p200 = scmp.lt.s32.totalorder %s16, 1
        %s201 = scalar_select %p200, %s16, 1
        %s202 = scalar_lea.vmem %s4, %s201
        %p203 = scmp.lt.s32.totalorder %s16, 1
        %s204 = scalar_select %p203, %s16, 1
        %s205 = smul.addr %s204, 50
        %s206 = smul.addr %s205, 8
        %s207 = scalar_lea.vmem %s0, %s206
        %p208 = scmp.lt.s32.totalorder %s16, 1
        %s209 = scalar_select %p208, %s16, 1
        %s210 = scalar_lea.vmem %s4, %s209
        %v211 = vld [vmem:[%s207] sm:$0xff]
        %v212 = vld [vmem:[%s207 + $0x8] sm:$0xff]
        %v213 = vld [vmem:[%s207 + $0x10] sm:$0xff]
        %v214 = vld [vmem:[%s207 + $0x18] sm:$0xff]
        %v215 = vld [vmem:[%s207 + $0x20] sm:$0xff]
        %v216 = vld [vmem:[%s207 + $0x28] sm:$0xff]
        %v217 = vld [vmem:[%s207 + $0x30] sm:$0xff]
        %v218 = vld [vmem:[%s207 + $0x38] sm:$0xff]
        %v219 = vld [vmem:[%s207 + $0x40] sm:$0xff]
        %v220 = vld [vmem:[%s207 + $0x48] sm:$0xff]
        %v221 = vld [vmem:[%s207 + $0x50] sm:$0xff]
        %v222 = vld [vmem:[%s207 + $0x58] sm:$0xff]
        %v223 = vld [vmem:[%s207 + $0x60] sm:$0xff]
        %v224 = vld [vmem:[%s207 + $0x68] sm:$0xff]
        %v225 = vld [vmem:[%s207 + $0x70] sm:$0xff]
        %v226 = vld [vmem:[%s207 + $0x78] sm:$0xff]
        %v227 = vld [vmem:[%s207 + $0x80] sm:$0xff]
        %v228 = vld [vmem:[%s207 + $0x88] sm:$0xff]
        %v229 = vld [vmem:[%s207 + $0x90] sm:$0xff]
        %v230 = vld [vmem:[%s207 + $0x98] sm:$0xff]
        %v231 = vld [vmem:[%s207 + $0xa0] sm:$0xff]
        %v232 = vld [vmem:[%s207 + $0xa8] sm:$0xff]
        %v233 = vld [vmem:[%s207 + $0xb0] sm:$0xff]
        %v234 = vld [vmem:[%s207 + $0xb8] sm:$0xff]
        %v235 = vld [vmem:[%s207 + $0xc0] sm:$0xff]
        %v236 = vld [vmem:[%s207 + $0xc8] sm:$0xff]
        %v237 = vld [vmem:[%s207 + $0xd0] sm:$0xff]
        %v238 = vld [vmem:[%s207 + $0xd8] sm:$0xff]
        %v239 = vld [vmem:[%s207 + $0xe0] sm:$0xff]
        %v240 = vld [vmem:[%s207 + $0xe8] sm:$0xff]
        %v241 = vld [vmem:[%s207 + $0xf0] sm:$0xff]
        %v242 = vld [vmem:[%s207 + $0xf8] sm:$0xff]
        %v243 = vld [vmem:[%s207 + $0x100] sm:$0xff]
        %v244 = vld [vmem:[%s207 + $0x108] sm:$0xff]
        %v245 = vld [vmem:[%s207 + $0x110] sm:$0xff]
        %v246 = vld [vmem:[%s207 + $0x118] sm:$0xff]
        %v247 = vld [vmem:[%s207 + $0x120] sm:$0xff]
        %v248 = vld [vmem:[%s207 + $0x128] sm:$0xff]
        %v249 = vld [vmem:[%s207 + $0x130] sm:$0xff]
        %v250 = vld [vmem:[%s207 + $0x138] sm:$0xff]
        %v251 = vld [vmem:[%s207 + $0x140] sm:$0xff]
        %v252 = vld [vmem:[%s207 + $0x148] sm:$0xff]
        %v253 = vld [vmem:[%s207 + $0x150] sm:$0xff]
        %v254 = vld [vmem:[%s207 + $0x158] sm:$0xff]
        %v255 = vld [vmem:[%s207 + $0x160] sm:$0xff]
        %v256 = vld [vmem:[%s207 + $0x168] sm:$0xff]
        %v257 = vld [vmem:[%s207 + $0x170] sm:$0xff]
        %v258 = vld [vmem:[%s207 + $0x178] sm:$0xff]
        %v259 = vld [vmem:[%s207 + $0x180] sm:$0xff]
        %v260 = vld [vmem:[%s207 + $0x188] sm:$0x7f]
        %v261 = vld [vmem:[%s1] sm:$0xff]
        %v262 = vld [vmem:[%s1 + $0x8] sm:$0x3]
        %264 = vset.pattern.permute.xlu0 0
        %265 = vperm.xlu0 %264, %v211
        %v266 = vpop.permute.xlu0 %265
        %269 = vset.pattern.permute.xlu0 0
        %270 = vperm.xlu0 %269, %v212
        %v271 = vpop.permute.xlu0 %270
        %274 = vset.pattern.permute.xlu0 0
        %275 = vperm.xlu0 %274, %v213
        %v276 = vpop.permute.xlu0 %275
        %279 = vset.pattern.permute.xlu0 0
        %280 = vperm.xlu0 %279, %v214
        %v281 = vpop.permute.xlu0 %280
        %284 = vset.pattern.permute.xlu0 0
        %285 = vperm.xlu0 %284, %v215
        %v286 = vpop.permute.xlu0 %285
        %289 = vset.pattern.permute.xlu0 0
        %290 = vperm.xlu0 %289, %v216
        %v291 = vpop.permute.xlu0 %290
        %294 = vset.pattern.permute.xlu0 0
        %295 = vperm.xlu0 %294, %v217
        %v296 = vpop.permute.xlu0 %295
        %299 = vset.pattern.permute.xlu0 0
        %300 = vperm.xlu0 %299, %v218
        %v301 = vpop.permute.xlu0 %300
        %304 = vset.pattern.permute.xlu0 0
        %305 = vperm.xlu0 %304, %v219
        %v306 = vpop.permute.xlu0 %305
        %309 = vset.pattern.permute.xlu0 0
        %310 = vperm.xlu0 %309, %v220
        %v311 = vpop.permute.xlu0 %310
        %314 = vset.pattern.permute.xlu0 0
        %315 = vperm.xlu0 %314, %v221
        %v316 = vpop.permute.xlu0 %315
        %319 = vset.pattern.permute.xlu0 0
        %320 = vperm.xlu0 %319, %v222
        %v321 = vpop.permute.xlu0 %320
        %324 = vset.pattern.permute.xlu0 0
        %325 = vperm.xlu0 %324, %v223
        %v326 = vpop.permute.xlu0 %325
        %329 = vset.pattern.permute.xlu0 0
        %330 = vperm.xlu0 %329, %v224
        %v331 = vpop.permute.xlu0 %330
        %334 = vset.pattern.permute.xlu0 0
        %335 = vperm.xlu0 %334, %v225
        %v336 = vpop.permute.xlu0 %335
        %339 = vset.pattern.permute.xlu0 0
        %340 = vperm.xlu0 %339, %v226
        %v341 = vpop.permute.xlu0 %340
        %344 = vset.pattern.permute.xlu0 0
        %345 = vperm.xlu0 %344, %v227
        %v346 = vpop.permute.xlu0 %345
        %349 = vset.pattern.permute.xlu0 0
        %350 = vperm.xlu0 %349, %v228
        %v351 = vpop.permute.xlu0 %350
        %354 = vset.pattern.permute.xlu0 0
        %355 = vperm.xlu0 %354, %v229
        %v356 = vpop.permute.xlu0 %355
        %359 = vset.pattern.permute.xlu0 0
        %360 = vperm.xlu0 %359, %v230
        %v361 = vpop.permute.xlu0 %360
        %364 = vset.pattern.permute.xlu0 0
        %365 = vperm.xlu0 %364, %v231
        %v366 = vpop.permute.xlu0 %365
        %369 = vset.pattern.permute.xlu0 0
        %370 = vperm.xlu0 %369, %v232
        %v371 = vpop.permute.xlu0 %370
        %374 = vset.pattern.permute.xlu0 0
        %375 = vperm.xlu0 %374, %v233
        %v376 = vpop.permute.xlu0 %375
        %379 = vset.pattern.permute.xlu0 0
        %380 = vperm.xlu0 %379, %v234
        %v381 = vpop.permute.xlu0 %380
        %384 = vset.pattern.permute.xlu0 0
        %385 = vperm.xlu0 %384, %v235
        %v386 = vpop.permute.xlu0 %385
        %389 = vset.pattern.permute.xlu0 0
        %390 = vperm.xlu0 %389, %v236
        %v391 = vpop.permute.xlu0 %390
        %394 = vset.pattern.permute.xlu0 0
        %395 = vperm.xlu0 %394, %v237
        %v396 = vpop.permute.xlu0 %395
        %399 = vset.pattern.permute.xlu0 0
        %400 = vperm.xlu0 %399, %v238
        %v401 = vpop.permute.xlu0 %400
        %404 = vset.pattern.permute.xlu0 0
        %405 = vperm.xlu0 %404, %v239
        %v406 = vpop.permute.xlu0 %405
        %409 = vset.pattern.permute.xlu0 0
        %410 = vperm.xlu0 %409, %v240
        %v411 = vpop.permute.xlu0 %410
        %414 = vset.pattern.permute.xlu0 0
        %415 = vperm.xlu0 %414, %v241
        %v416 = vpop.permute.xlu0 %415
        %419 = vset.pattern.permute.xlu0 0
        %420 = vperm.xlu0 %419, %v242
        %v421 = vpop.permute.xlu0 %420
        %424 = vset.pattern.permute.xlu0 0
        %425 = vperm.xlu0 %424, %v243
        %v426 = vpop.permute.xlu0 %425
        %429 = vset.pattern.permute.xlu0 0
        %430 = vperm.xlu0 %429, %v244
        %v431 = vpop.permute.xlu0 %430
        %434 = vset.pattern.permute.xlu0 0
        %435 = vperm.xlu0 %434, %v245
        %v436 = vpop.permute.xlu0 %435
        %439 = vset.pattern.permute.xlu0 0
        %440 = vperm.xlu0 %439, %v246
        %v441 = vpop.permute.xlu0 %440
        %444 = vset.pattern.permute.xlu0 0
        %445 = vperm.xlu0 %444, %v247
        %v446 = vpop.permute.xlu0 %445
        %449 = vset.pattern.permute.xlu0 0
        %450 = vperm.xlu0 %449, %v248
        %v451 = vpop.permute.xlu0 %450
        %454 = vset.pattern.permute.xlu0 0
        %455 = vperm.xlu0 %454, %v249
        %v456 = vpop.permute.xlu0 %455
        %459 = vset.pattern.permute.xlu0 0
        %460 = vperm.xlu0 %459, %v250
        %v461 = vpop.permute.xlu0 %460
        %464 = vset.pattern.permute.xlu0 0
        %465 = vperm.xlu0 %464, %v251
        %v466 = vpop.permute.xlu0 %465
        %469 = vset.pattern.permute.xlu0 0
        %470 = vperm.xlu0 %469, %v252
        %v471 = vpop.permute.xlu0 %470
        %474 = vset.pattern.permute.xlu0 0
        %475 = vperm.xlu0 %474, %v253
        %v476 = vpop.permute.xlu0 %475
        %479 = vset.pattern.permute.xlu0 0
        %480 = vperm.xlu0 %479, %v254
        %v481 = vpop.permute.xlu0 %480
        %484 = vset.pattern.permute.xlu0 0
        %485 = vperm.xlu0 %484, %v255
        %v486 = vpop.permute.xlu0 %485
        %489 = vset.pattern.permute.xlu0 0
        %490 = vperm.xlu0 %489, %v256
        %v491 = vpop.permute.xlu0 %490
        %494 = vset.pattern.permute.xlu0 0
        %495 = vperm.xlu0 %494, %v257
        %v496 = vpop.permute.xlu0 %495
        %499 = vset.pattern.permute.xlu0 0
        %500 = vperm.xlu0 %499, %v258
        %v501 = vpop.permute.xlu0 %500
        %504 = vset.pattern.permute.xlu0 0
        %505 = vperm.xlu0 %504, %v259
        %v506 = vpop.permute.xlu0 %505
        %509 = vset.pattern.permute.xlu0 0
        %510 = vperm.xlu0 %509, %v260
        %v511 = vpop.permute.xlu0 %510
        %v513 = vperm.slane %v261, 0
        %v514 = vmul.f32 %v266, %v513
        %v515 = vmul.f32 %v271, %v513
        %v516 = vmul.f32 %v276, %v513
        %v517 = vmul.f32 %v281, %v513
        %v518 = vmul.f32 %v286, %v513
        %v519 = vmul.f32 %v291, %v513
        %v520 = vmul.f32 %v296, %v513
        %v521 = vmul.f32 %v301, %v513
        %v522 = vmul.f32 %v306, %v513
        %v523 = vmul.f32 %v311, %v513
        %v524 = vmul.f32 %v316, %v513
        %v525 = vmul.f32 %v321, %v513
        %v526 = vmul.f32 %v326, %v513
        %v527 = vmul.f32 %v331, %v513
        %v528 = vmul.f32 %v336, %v513
        %v529 = vmul.f32 %v341, %v513
        %v530 = vmul.f32 %v346, %v513
        %v531 = vmul.f32 %v351, %v513
        %v532 = vmul.f32 %v356, %v513
        %v533 = vmul.f32 %v361, %v513
        %v534 = vmul.f32 %v366, %v513
        %v535 = vmul.f32 %v371, %v513
        %v536 = vmul.f32 %v376, %v513
        %v537 = vmul.f32 %v381, %v513
        %v538 = vmul.f32 %v386, %v513
        %v539 = vmul.f32 %v391, %v513
        %v540 = vmul.f32 %v396, %v513
        %v541 = vmul.f32 %v401, %v513
        %v542 = vmul.f32 %v406, %v513
        %v543 = vmul.f32 %v411, %v513
        %v544 = vmul.f32 %v416, %v513
        %v545 = vmul.f32 %v421, %v513
        %v546 = vmul.f32 %v426, %v513
        %v547 = vmul.f32 %v431, %v513
        %v548 = vmul.f32 %v436, %v513
        %v549 = vmul.f32 %v441, %v513
        %v550 = vmul.f32 %v446, %v513
        %v551 = vmul.f32 %v451, %v513
        %v552 = vmul.f32 %v456, %v513
        %v553 = vmul.f32 %v461, %v513
        %v554 = vmul.f32 %v466, %v513
        %v555 = vmul.f32 %v471, %v513
        %v556 = vmul.f32 %v476, %v513
        %v557 = vmul.f32 %v481, %v513
        %v558 = vmul.f32 %v486, %v513
        %v559 = vmul.f32 %v491, %v513
        %v560 = vmul.f32 %v496, %v513
        %v561 = vmul.f32 %v501, %v513
        %v562 = vmul.f32 %v506, %v513
        %v563 = vmul.f32 %v511, %v513
        %564 = vset.pattern.permute.xlu0 1
        %565 = vperm.xlu0 %564, %v211
        %v566 = vpop.permute.xlu0 %565
        %568 = vset.pattern.permute.xlu0 1
        %569 = vperm.xlu0 %568, %v212
        %v570 = vpop.permute.xlu0 %569
        %572 = vset.pattern.permute.xlu0 1
        %573 = vperm.xlu0 %572, %v213
        %v574 = vpop.permute.xlu0 %573
        %576 = vset.pattern.permute.xlu0 1
        %577 = vperm.xlu0 %576, %v214
        %v578 = vpop.permute.xlu0 %577
        %580 = vset.pattern.permute.xlu0 1
        %581 = vperm.xlu0 %580, %v215
        %v582 = vpop.permute.xlu0 %581
        %584 = vset.pattern.permute.xlu0 1
        %585 = vperm.xlu0 %584, %v216
        %v586 = vpop.permute.xlu0 %585
        %588 = vset.pattern.permute.xlu0 1
        %589 = vperm.xlu0 %588, %v217
        %v590 = vpop.permute.xlu0 %589
        %592 = vset.pattern.permute.xlu0 1
        %593 = vperm.xlu0 %592, %v218
        %v594 = vpop.permute.xlu0 %593
        %596 = vset.pattern.permute.xlu0 1
        %597 = vperm.xlu0 %596, %v219
        %v598 = vpop.permute.xlu0 %597
        %600 = vset.pattern.permute.xlu0 1
        %601 = vperm.xlu0 %600, %v220
        %v602 = vpop.permute.xlu0 %601
        %604 = vset.pattern.permute.xlu0 1
        %605 = vperm.xlu0 %604, %v221
        %v606 = vpop.permute.xlu0 %605
        %608 = vset.pattern.permute.xlu0 1
        %609 = vperm.xlu0 %608, %v222
        %v610 = vpop.permute.xlu0 %609
        %612 = vset.pattern.permute.xlu0 1
        %613 = vperm.xlu0 %612, %v223
        %v614 = vpop.permute.xlu0 %613
        %616 = vset.pattern.permute.xlu0 1
        %617 = vperm.xlu0 %616, %v224
        %v618 = vpop.permute.xlu0 %617
        %620 = vset.pattern.permute.xlu0 1
        %621 = vperm.xlu0 %620, %v225
        %v622 = vpop.permute.xlu0 %621
        %624 = vset.pattern.permute.xlu0 1
        %625 = vperm.xlu0 %624, %v226
        %v626 = vpop.permute.xlu0 %625
        %628 = vset.pattern.permute.xlu0 1
        %629 = vperm.xlu0 %628, %v227
        %v630 = vpop.permute.xlu0 %629
        %632 = vset.pattern.permute.xlu0 1
        %633 = vperm.xlu0 %632, %v228
        %v634 = vpop.permute.xlu0 %633
        %636 = vset.pattern.permute.xlu0 1
        %637 = vperm.xlu0 %636, %v229
        %v638 = vpop.permute.xlu0 %637
        %640 = vset.pattern.permute.xlu0 1
        %641 = vperm.xlu0 %640, %v230
        %v642 = vpop.permute.xlu0 %641
        %644 = vset.pattern.permute.xlu0 1
        %645 = vperm.xlu0 %644, %v231
        %v646 = vpop.permute.xlu0 %645
        %648 = vset.pattern.permute.xlu0 1
        %649 = vperm.xlu0 %648, %v232
        %v650 = vpop.permute.xlu0 %649
        %652 = vset.pattern.permute.xlu0 1
        %653 = vperm.xlu0 %652, %v233
        %v654 = vpop.permute.xlu0 %653
        %656 = vset.pattern.permute.xlu0 1
        %657 = vperm.xlu0 %656, %v234
        %v658 = vpop.permute.xlu0 %657
        %660 = vset.pattern.permute.xlu0 1
        %661 = vperm.xlu0 %660, %v235
        %v662 = vpop.permute.xlu0 %661
        %664 = vset.pattern.permute.xlu0 1
        %665 = vperm.xlu0 %664, %v236
        %v666 = vpop.permute.xlu0 %665
        %668 = vset.pattern.permute.xlu0 1
        %669 = vperm.xlu0 %668, %v237
        %v670 = vpop.permute.xlu0 %669
        %672 = vset.pattern.permute.xlu0 1
        %673 = vperm.xlu0 %672, %v238
        %v674 = vpop.permute.xlu0 %673
        %676 = vset.pattern.permute.xlu0 1
        %677 = vperm.xlu0 %676, %v239
        %v678 = vpop.permute.xlu0 %677
        %680 = vset.pattern.permute.xlu0 1
        %681 = vperm.xlu0 %680, %v240
        %v682 = vpop.permute.xlu0 %681
        %684 = vset.pattern.permute.xlu0 1
        %685 = vperm.xlu0 %684, %v241
        %v686 = vpop.permute.xlu0 %685
        %688 = vset.pattern.permute.xlu0 1
        %689 = vperm.xlu0 %688, %v242
        %v690 = vpop.permute.xlu0 %689
        %692 = vset.pattern.permute.xlu0 1
        %693 = vperm.xlu0 %692, %v243
        %v694 = vpop.permute.xlu0 %693
        %696 = vset.pattern.permute.xlu0 1
        %697 = vperm.xlu0 %696, %v244
        %v698 = vpop.permute.xlu0 %697
        %700 = vset.pattern.permute.xlu0 1
        %701 = vperm.xlu0 %700, %v245
        %v702 = vpop.permute.xlu0 %701
        %704 = vset.pattern.permute.xlu0 1
        %705 = vperm.xlu0 %704, %v246
        %v706 = vpop.permute.xlu0 %705
        %708 = vset.pattern.permute.xlu0 1
        %709 = vperm.xlu0 %708, %v247
        %v710 = vpop.permute.xlu0 %709
        %712 = vset.pattern.permute.xlu0 1
        %713 = vperm.xlu0 %712, %v248
        %v714 = vpop.permute.xlu0 %713
        %716 = vset.pattern.permute.xlu0 1
        %717 = vperm.xlu0 %716, %v249
        %v718 = vpop.permute.xlu0 %717
        %720 = vset.pattern.permute.xlu0 1
        %721 = vperm.xlu0 %720, %v250
        %v722 = vpop.permute.xlu0 %721
        %724 = vset.pattern.permute.xlu0 1
        %725 = vperm.xlu0 %724, %v251
        %v726 = vpop.permute.xlu0 %725
        %728 = vset.pattern.permute.xlu0 1
        %729 = vperm.xlu0 %728, %v252
        %v730 = vpop.permute.xlu0 %729
        %732 = vset.pattern.permute.xlu0 1
        %733 = vperm.xlu0 %732, %v253
        %v734 = vpop.permute.xlu0 %733
        %736 = vset.pattern.permute.xlu0 1
        %737 = vperm.xlu0 %736, %v254
        %v738 = vpop.permute.xlu0 %737
        %740 = vset.pattern.permute.xlu0 1
        %741 = vperm.xlu0 %740, %v255
        %v742 = vpop.permute.xlu0 %741
        %744 = vset.pattern.permute.xlu0 1
        %745 = vperm.xlu0 %744, %v256
        %v746 = vpop.permute.xlu0 %745
        %748 = vset.pattern.permute.xlu0 1
        %749 = vperm.xlu0 %748, %v257
        %v750 = vpop.permute.xlu0 %749
        %752 = vset.pattern.permute.xlu0 1
        %753 = vperm.xlu0 %752, %v258
        %v754 = vpop.permute.xlu0 %753
        %756 = vset.pattern.permute.xlu0 1
        %757 = vperm.xlu0 %756, %v259
        %v758 = vpop.permute.xlu0 %757
        %760 = vset.pattern.permute.xlu0 1
        %761 = vperm.xlu0 %760, %v260
        %v762 = vpop.permute.xlu0 %761
        %v764 = vperm.slane %v261, 1
        %v765 = vmul.f32 %v566, %v764
        %v766 = vmul.f32 %v570, %v764
        %v767 = vmul.f32 %v574, %v764
        %v768 = vmul.f32 %v578, %v764
        %v769 = vmul.f32 %v582, %v764
        %v770 = vmul.f32 %v586, %v764
        %v771 = vmul.f32 %v590, %v764
        %v772 = vmul.f32 %v594, %v764
        %v773 = vmul.f32 %v598, %v764
        %v774 = vmul.f32 %v602, %v764
        %v775 = vmul.f32 %v606, %v764
        %v776 = vmul.f32 %v610, %v764
        %v777 = vmul.f32 %v614, %v764
        %v778 = vmul.f32 %v618, %v764
        %v779 = vmul.f32 %v622, %v764
        %v780 = vmul.f32 %v626, %v764
        %v781 = vmul.f32 %v630, %v764
        %v782 = vmul.f32 %v634, %v764
        %v783 = vmul.f32 %v638, %v764
        %v784 = vmul.f32 %v642, %v764
        %v785 = vmul.f32 %v646, %v764
        %v786 = vmul.f32 %v650, %v764
        %v787 = vmul.f32 %v654, %v764
        %v788 = vmul.f32 %v658, %v764
        %v789 = vmul.f32 %v662, %v764
        %v790 = vmul.f32 %v666, %v764
        %v791 = vmul.f32 %v670, %v764
        %v792 = vmul.f32 %v674, %v764
        %v793 = vmul.f32 %v678, %v764
        %v794 = vmul.f32 %v682, %v764
        %v795 = vmul.f32 %v686, %v764
        %v796 = vmul.f32 %v690, %v764
        %v797 = vmul.f32 %v694, %v764
        %v798 = vmul.f32 %v698, %v764
        %v799 = vmul.f32 %v702, %v764
        %v800 = vmul.f32 %v706, %v764
        %v801 = vmul.f32 %v710, %v764
        %v802 = vmul.f32 %v714, %v764
        %v803 = vmul.f32 %v718, %v764
        %v804 = vmul.f32 %v722, %v764
        %v805 = vmul.f32 %v726, %v764
        %v806 = vmul.f32 %v730, %v764
        %v807 = vmul.f32 %v734, %v764
        %v808 = vmul.f32 %v738, %v764
        %v809 = vmul.f32 %v742, %v764
        %v810 = vmul.f32 %v746, %v764
        %v811 = vmul.f32 %v750, %v764
        %v812 = vmul.f32 %v754, %v764
        %v813 = vmul.f32 %v758, %v764
        %v814 = vmul.f32 %v762, %v764
        %v815 = vadd.f32 %v514, %v765
        %v816 = vadd.f32 %v515, %v766
        %v817 = vadd.f32 %v516, %v767
        %v818 = vadd.f32 %v517, %v768
        %v819 = vadd.f32 %v518, %v769
        %v820 = vadd.f32 %v519, %v770
        %v821 = vadd.f32 %v520, %v771
        %v822 = vadd.f32 %v521, %v772
        %v823 = vadd.f32 %v522, %v773
        %v824 = vadd.f32 %v523, %v774
        %v825 = vadd.f32 %v524, %v775
        %v826 = vadd.f32 %v525, %v776
        %v827 = vadd.f32 %v526, %v777
        %v828 = vadd.f32 %v527, %v778
        %v829 = vadd.f32 %v528, %v779
        %v830 = vadd.f32 %v529, %v780
        %v831 = vadd.f32 %v530, %v781
        %v832 = vadd.f32 %v531, %v782
        %v833 = vadd.f32 %v532, %v783
        %v834 = vadd.f32 %v533, %v784
        %v835 = vadd.f32 %v534, %v785
        %v836 = vadd.f32 %v535, %v786
        %v837 = vadd.f32 %v536, %v787
        %v838 = vadd.f32 %v537, %v788
        %v839 = vadd.f32 %v538, %v789
        %v840 = vadd.f32 %v539, %v790
        %v841 = vadd.f32 %v540, %v791
        %v842 = vadd.f32 %v541, %v792
        %v843 = vadd.f32 %v542, %v793
        %v844 = vadd.f32 %v543, %v794
        %v845 = vadd.f32 %v544, %v795
        %v846 = vadd.f32 %v545, %v796
        %v847 = vadd.f32 %v546, %v797
        %v848 = vadd.f32 %v547, %v798
        %v849 = vadd.f32 %v548, %v799
        %v850 = vadd.f32 %v549, %v800
        %v851 = vadd.f32 %v550, %v801
        %v852 = vadd.f32 %v551, %v802
        %v853 = vadd.f32 %v552, %v803
        %v854 = vadd.f32 %v553, %v804
        %v855 = vadd.f32 %v554, %v805
        %v856 = vadd.f32 %v555, %v806
        %v857 = vadd.f32 %v556, %v807
        %v858 = vadd.f32 %v557, %v808
        %v859 = vadd.f32 %v558, %v809
        %v860 = vadd.f32 %v559, %v810
        %v861 = vadd.f32 %v560, %v811
        %v862 = vadd.f32 %v561, %v812
        %v863 = vadd.f32 %v562, %v813
        %v864 = vadd.f32 %v563, %v814
        %865 = vset.pattern.permute.xlu0 2
        %866 = vperm.xlu0 %865, %v211
        %v867 = vpop.permute.xlu0 %866
        %869 = vset.pattern.permute.xlu0 2
        %870 = vperm.xlu0 %869, %v212
        %v871 = vpop.permute.xlu0 %870
        %873 = vset.pattern.permute.xlu0 2
        %874 = vperm.xlu0 %873, %v213
        %v875 = vpop.permute.xlu0 %874
        %877 = vset.pattern.permute.xlu0 2
        %878 = vperm.xlu0 %877, %v214
        %v879 = vpop.permute.xlu0 %878
        %881 = vset.pattern.permute.xlu0 2
        %882 = vperm.xlu0 %881, %v215
        %v883 = vpop.permute.xlu0 %882
        %885 = vset.pattern.permute.xlu0 2
        %886 = vperm.xlu0 %885, %v216
        %v887 = vpop.permute.xlu0 %886
        %889 = vset.pattern.permute.xlu0 2
        %890 = vperm.xlu0 %889, %v217
        %v891 = vpop.permute.xlu0 %890
        %893 = vset.pattern.permute.xlu0 2
        %894 = vperm.xlu0 %893, %v218
        %v895 = vpop.permute.xlu0 %894
        %897 = vset.pattern.permute.xlu0 2
        %898 = vperm.xlu0 %897, %v219
        %v899 = vpop.permute.xlu0 %898
        %901 = vset.pattern.permute.xlu0 2
        %902 = vperm.xlu0 %901, %v220
        %v903 = vpop.permute.xlu0 %902
        %905 = vset.pattern.permute.xlu0 2
        %906 = vperm.xlu0 %905, %v221
        %v907 = vpop.permute.xlu0 %906
        %909 = vset.pattern.permute.xlu0 2
        %910 = vperm.xlu0 %909, %v222
        %v911 = vpop.permute.xlu0 %910
        %913 = vset.pattern.permute.xlu0 2
        %914 = vperm.xlu0 %913, %v223
        %v915 = vpop.permute.xlu0 %914
        %917 = vset.pattern.permute.xlu0 2
        %918 = vperm.xlu0 %917, %v224
        %v919 = vpop.permute.xlu0 %918
        %921 = vset.pattern.permute.xlu0 2
        %922 = vperm.xlu0 %921, %v225
        %v923 = vpop.permute.xlu0 %922
        %925 = vset.pattern.permute.xlu0 2
        %926 = vperm.xlu0 %925, %v226
        %v927 = vpop.permute.xlu0 %926
        %929 = vset.pattern.permute.xlu0 2
        %930 = vperm.xlu0 %929, %v227
        %v931 = vpop.permute.xlu0 %930
        %933 = vset.pattern.permute.xlu0 2
        %934 = vperm.xlu0 %933, %v228
        %v935 = vpop.permute.xlu0 %934
        %937 = vset.pattern.permute.xlu0 2
        %938 = vperm.xlu0 %937, %v229
        %v939 = vpop.permute.xlu0 %938
        %941 = vset.pattern.permute.xlu0 2
        %942 = vperm.xlu0 %941, %v230
        %v943 = vpop.permute.xlu0 %942
        %945 = vset.pattern.permute.xlu0 2
        %946 = vperm.xlu0 %945, %v231
        %v947 = vpop.permute.xlu0 %946
        %949 = vset.pattern.permute.xlu0 2
        %950 = vperm.xlu0 %949, %v232
        %v951 = vpop.permute.xlu0 %950
        %953 = vset.pattern.permute.xlu0 2
        %954 = vperm.xlu0 %953, %v233
        %v955 = vpop.permute.xlu0 %954
        %957 = vset.pattern.permute.xlu0 2
        %958 = vperm.xlu0 %957, %v234
        %v959 = vpop.permute.xlu0 %958
        %961 = vset.pattern.permute.xlu0 2
        %962 = vperm.xlu0 %961, %v235
        %v963 = vpop.permute.xlu0 %962
        %965 = vset.pattern.permute.xlu0 2
        %966 = vperm.xlu0 %965, %v236
        %v967 = vpop.permute.xlu0 %966
        %969 = vset.pattern.permute.xlu0 2
        %970 = vperm.xlu0 %969, %v237
        %v971 = vpop.permute.xlu0 %970
        %973 = vset.pattern.permute.xlu0 2
        %974 = vperm.xlu0 %973, %v238
        %v975 = vpop.permute.xlu0 %974
        %977 = vset.pattern.permute.xlu0 2
        %978 = vperm.xlu0 %977, %v239
        %v979 = vpop.permute.xlu0 %978
        %981 = vset.pattern.permute.xlu0 2
        %982 = vperm.xlu0 %981, %v240
        %v983 = vpop.permute.xlu0 %982
        %985 = vset.pattern.permute.xlu0 2
        %986 = vperm.xlu0 %985, %v241
        %v987 = vpop.permute.xlu0 %986
        %989 = vset.pattern.permute.xlu0 2
        %990 = vperm.xlu0 %989, %v242
        %v991 = vpop.permute.xlu0 %990
        %993 = vset.pattern.permute.xlu0 2
        %994 = vperm.xlu0 %993, %v243
        %v995 = vpop.permute.xlu0 %994
        %997 = vset.pattern.permute.xlu0 2
        %998 = vperm.xlu0 %997, %v244
        %v999 = vpop.permute.xlu0 %998
        %1001 = vset.pattern.permute.xlu0 2
        %1002 = vperm.xlu0 %1001, %v245
        %v1003 = vpop.permute.xlu0 %1002
        %1005 = vset.pattern.permute.xlu0 2
        %1006 = vperm.xlu0 %1005, %v246
        %v1007 = vpop.permute.xlu0 %1006
        %1009 = vset.pattern.permute.xlu0 2
        %1010 = vperm.xlu0 %1009, %v247
        %v1011 = vpop.permute.xlu0 %1010
        %1013 = vset.pattern.permute.xlu0 2
        %1014 = vperm.xlu0 %1013, %v248
        %v1015 = vpop.permute.xlu0 %1014
        %1017 = vset.pattern.permute.xlu0 2
        %1018 = vperm.xlu0 %1017, %v249
        %v1019 = vpop.permute.xlu0 %1018
        %1021 = vset.pattern.permute.xlu0 2
        %1022 = vperm.xlu0 %1021, %v250
        %v1023 = vpop.permute.xlu0 %1022
        %1025 = vset.pattern.permute.xlu0 2
        %1026 = vperm.xlu0 %1025, %v251
        %v1027 = vpop.permute.xlu0 %1026
        %1029 = vset.pattern.permute.xlu0 2
        %1030 = vperm.xlu0 %1029, %v252
        %v1031 = vpop.permute.xlu0 %1030
        %1033 = vset.pattern.permute.xlu0 2
        %1034 = vperm.xlu0 %1033, %v253
        %v1035 = vpop.permute.xlu0 %1034
        %1037 = vset.pattern.permute.xlu0 2
        %1038 = vperm.xlu0 %1037, %v254
        %v1039 = vpop.permute.xlu0 %1038
        %1041 = vset.pattern.permute.xlu0 2
        %1042 = vperm.xlu0 %1041, %v255
        %v1043 = vpop.permute.xlu0 %1042
        %1045 = vset.pattern.permute.xlu0 2
        %1046 = vperm.xlu0 %1045, %v256
        %v1047 = vpop.permute.xlu0 %1046
        %1049 = vset.pattern.permute.xlu0 2
        %1050 = vperm.xlu0 %1049, %v257
        %v1051 = vpop.permute.xlu0 %1050
        %1053 = vset.pattern.permute.xlu0 2
        %1054 = vperm.xlu0 %1053, %v258
        %v1055 = vpop.permute.xlu0 %1054
        %1057 = vset.pattern.permute.xlu0 2
        %1058 = vperm.xlu0 %1057, %v259
        %v1059 = vpop.permute.xlu0 %1058
        %1061 = vset.pattern.permute.xlu0 2
        %1062 = vperm.xlu0 %1061, %v260
        %v1063 = vpop.permute.xlu0 %1062
        %v1065 = vperm.slane %v261, 2
        %v1066 = vmul.f32 %v867, %v1065
        %v1067 = vmul.f32 %v871, %v1065
        %v1068 = vmul.f32 %v875, %v1065
        %v1069 = vmul.f32 %v879, %v1065
        %v1070 = vmul.f32 %v883, %v1065
        %v1071 = vmul.f32 %v887, %v1065
        %v1072 = vmul.f32 %v891, %v1065
        %v1073 = vmul.f32 %v895, %v1065
        %v1074 = vmul.f32 %v899, %v1065
        %v1075 = vmul.f32 %v903, %v1065
        %v1076 = vmul.f32 %v907, %v1065
        %v1077 = vmul.f32 %v911, %v1065
        %v1078 = vmul.f32 %v915, %v1065
        %v1079 = vmul.f32 %v919, %v1065
        %v1080 = vmul.f32 %v923, %v1065
        %v1081 = vmul.f32 %v927, %v1065
        %v1082 = vmul.f32 %v931, %v1065
        %v1083 = vmul.f32 %v935, %v1065
        %v1084 = vmul.f32 %v939, %v1065
        %v1085 = vmul.f32 %v943, %v1065
        %v1086 = vmul.f32 %v947, %v1065
        %v1087 = vmul.f32 %v951, %v1065
        %v1088 = vmul.f32 %v955, %v1065
        %v1089 = vmul.f32 %v959, %v1065
        %v1090 = vmul.f32 %v963, %v1065
        %v1091 = vmul.f32 %v967, %v1065
        %v1092 = vmul.f32 %v971, %v1065
        %v1093 = vmul.f32 %v975, %v1065
        %v1094 = vmul.f32 %v979, %v1065
        %v1095 = vmul.f32 %v983, %v1065
        %v1096 = vmul.f32 %v987, %v1065
        %v1097 = vmul.f32 %v991, %v1065
        %v1098 = vmul.f32 %v995, %v1065
        %v1099 = vmul.f32 %v999, %v1065
        %v1100 = vmul.f32 %v1003, %v1065
        %v1101 = vmul.f32 %v1007, %v1065
        %v1102 = vmul.f32 %v1011, %v1065
        %v1103 = vmul.f32 %v1015, %v1065
        %v1104 = vmul.f32 %v1019, %v1065
        %v1105 = vmul.f32 %v1023, %v1065
        %v1106 = vmul.f32 %v1027, %v1065
        %v1107 = vmul.f32 %v1031, %v1065
        %v1108 = vmul.f32 %v1035, %v1065
        %v1109 = vmul.f32 %v1039, %v1065
        %v1110 = vmul.f32 %v1043, %v1065
        %v1111 = vmul.f32 %v1047, %v1065
        %v1112 = vmul.f32 %v1051, %v1065
        %v1113 = vmul.f32 %v1055, %v1065
        %v1114 = vmul.f32 %v1059, %v1065
        %v1115 = vmul.f32 %v1063, %v1065
        %v1116 = vadd.f32 %v815, %v1066
        %v1117 = vadd.f32 %v816, %v1067
        %v1118 = vadd.f32 %v817, %v1068
        %v1119 = vadd.f32 %v818, %v1069
        %v1120 = vadd.f32 %v819, %v1070
        %v1121 = vadd.f32 %v820, %v1071
        %v1122 = vadd.f32 %v821, %v1072
        %v1123 = vadd.f32 %v822, %v1073
        %v1124 = vadd.f32 %v823, %v1074
        %v1125 = vadd.f32 %v824, %v1075
        %v1126 = vadd.f32 %v825, %v1076
        %v1127 = vadd.f32 %v826, %v1077
        %v1128 = vadd.f32 %v827, %v1078
        %v1129 = vadd.f32 %v828, %v1079
        %v1130 = vadd.f32 %v829, %v1080
        %v1131 = vadd.f32 %v830, %v1081
        %v1132 = vadd.f32 %v831, %v1082
        %v1133 = vadd.f32 %v832, %v1083
        %v1134 = vadd.f32 %v833, %v1084
        %v1135 = vadd.f32 %v834, %v1085
        %v1136 = vadd.f32 %v835, %v1086
        %v1137 = vadd.f32 %v836, %v1087
        %v1138 = vadd.f32 %v837, %v1088
        %v1139 = vadd.f32 %v838, %v1089
        %v1140 = vadd.f32 %v839, %v1090
        %v1141 = vadd.f32 %v840, %v1091
        %v1142 = vadd.f32 %v841, %v1092
        %v1143 = vadd.f32 %v842, %v1093
        %v1144 = vadd.f32 %v843, %v1094
        %v1145 = vadd.f32 %v844, %v1095
        %v1146 = vadd.f32 %v845, %v1096
        %v1147 = vadd.f32 %v846, %v1097
        %v1148 = vadd.f32 %v847, %v1098
        %v1149 = vadd.f32 %v848, %v1099
        %v1150 = vadd.f32 %v849, %v1100
        %v1151 = vadd.f32 %v850, %v1101
        %v1152 = vadd.f32 %v851, %v1102
        %v1153 = vadd.f32 %v852, %v1103
        %v1154 = vadd.f32 %v853, %v1104
        %v1155 = vadd.f32 %v854, %v1105
        %v1156 = vadd.f32 %v855, %v1106
        %v1157 = vadd.f32 %v856, %v1107
        %v1158 = vadd.f32 %v857, %v1108
        %v1159 = vadd.f32 %v858, %v1109
        %v1160 = vadd.f32 %v859, %v1110
        %v1161 = vadd.f32 %v860, %v1111
        %v1162 = vadd.f32 %v861, %v1112
        %v1163 = vadd.f32 %v862, %v1113
        %v1164 = vadd.f32 %v863, %v1114
        %v1165 = vadd.f32 %v864, %v1115
        %1166 = vset.pattern.permute.xlu0 3
        %1167 = vperm.xlu0 %1166, %v211
        %v1168 = vpop.permute.xlu0 %1167
        %1170 = vset.pattern.permute.xlu0 3
        %1171 = vperm.xlu0 %1170, %v212
        %v1172 = vpop.permute.xlu0 %1171
        %1174 = vset.pattern.permute.xlu0 3
        %1175 = vperm.xlu0 %1174, %v213
        %v1176 = vpop.permute.xlu0 %1175
        %1178 = vset.pattern.permute.xlu0 3
        %1179 = vperm.xlu0 %1178, %v214
        %v1180 = vpop.permute.xlu0 %1179
        %1182 = vset.pattern.permute.xlu0 3
        %1183 = vperm.xlu0 %1182, %v215
        %v1184 = vpop.permute.xlu0 %1183
        %1186 = vset.pattern.permute.xlu0 3
        %1187 = vperm.xlu0 %1186, %v216
        %v1188 = vpop.permute.xlu0 %1187
        %1190 = vset.pattern.permute.xlu0 3
        %1191 = vperm.xlu0 %1190, %v217
        %v1192 = vpop.permute.xlu0 %1191
        %1194 = vset.pattern.permute.xlu0 3
        %1195 = vperm.xlu0 %1194, %v218
        %v1196 = vpop.permute.xlu0 %1195
        %1198 = vset.pattern.permute.xlu0 3
        %1199 = vperm.xlu0 %1198, %v219
        %v1200 = vpop.permute.xlu0 %1199
        %1202 = vset.pattern.permute.xlu0 3
        %1203 = vperm.xlu0 %1202, %v220
        %v1204 = vpop.permute.xlu0 %1203
        %1206 = vset.pattern.permute.xlu0 3
        %1207 = vperm.xlu0 %1206, %v221
        %v1208 = vpop.permute.xlu0 %1207
        %1210 = vset.pattern.permute.xlu0 3
        %1211 = vperm.xlu0 %1210, %v222
        %v1212 = vpop.permute.xlu0 %1211
        %1214 = vset.pattern.permute.xlu0 3
        %1215 = vperm.xlu0 %1214, %v223
        %v1216 = vpop.permute.xlu0 %1215
        %1218 = vset.pattern.permute.xlu0 3
        %1219 = vperm.xlu0 %1218, %v224
        %v1220 = vpop.permute.xlu0 %1219
        %1222 = vset.pattern.permute.xlu0 3
        %1223 = vperm.xlu0 %1222, %v225
        %v1224 = vpop.permute.xlu0 %1223
        %1226 = vset.pattern.permute.xlu0 3
        %1227 = vperm.xlu0 %1226, %v226
        %v1228 = vpop.permute.xlu0 %1227
        %1230 = vset.pattern.permute.xlu0 3
        %1231 = vperm.xlu0 %1230, %v227
        %v1232 = vpop.permute.xlu0 %1231
        %1234 = vset.pattern.permute.xlu0 3
        %1235 = vperm.xlu0 %1234, %v228
        %v1236 = vpop.permute.xlu0 %1235
        %1238 = vset.pattern.permute.xlu0 3
        %1239 = vperm.xlu0 %1238, %v229
        %v1240 = vpop.permute.xlu0 %1239
        %1242 = vset.pattern.permute.xlu0 3
        %1243 = vperm.xlu0 %1242, %v230
        %v1244 = vpop.permute.xlu0 %1243
        %1246 = vset.pattern.permute.xlu0 3
        %1247 = vperm.xlu0 %1246, %v231
        %v1248 = vpop.permute.xlu0 %1247
        %1250 = vset.pattern.permute.xlu0 3
        %1251 = vperm.xlu0 %1250, %v232
        %v1252 = vpop.permute.xlu0 %1251
        %1254 = vset.pattern.permute.xlu0 3
        %1255 = vperm.xlu0 %1254, %v233
        %v1256 = vpop.permute.xlu0 %1255
        %1258 = vset.pattern.permute.xlu0 3
        %1259 = vperm.xlu0 %1258, %v234
        %v1260 = vpop.permute.xlu0 %1259
        %1262 = vset.pattern.permute.xlu0 3
        %1263 = vperm.xlu0 %1262, %v235
        %v1264 = vpop.permute.xlu0 %1263
        %1266 = vset.pattern.permute.xlu0 3
        %1267 = vperm.xlu0 %1266, %v236
        %v1268 = vpop.permute.xlu0 %1267
        %1270 = vset.pattern.permute.xlu0 3
        %1271 = vperm.xlu0 %1270, %v237
        %v1272 = vpop.permute.xlu0 %1271
        %1274 = vset.pattern.permute.xlu0 3
        %1275 = vperm.xlu0 %1274, %v238
        %v1276 = vpop.permute.xlu0 %1275
        %1278 = vset.pattern.permute.xlu0 3
        %1279 = vperm.xlu0 %1278, %v239
        %v1280 = vpop.permute.xlu0 %1279
        %1282 = vset.pattern.permute.xlu0 3
        %1283 = vperm.xlu0 %1282, %v240
        %v1284 = vpop.permute.xlu0 %1283
        %1286 = vset.pattern.permute.xlu0 3
        %1287 = vperm.xlu0 %1286, %v241
        %v1288 = vpop.permute.xlu0 %1287
        %1290 = vset.pattern.permute.xlu0 3
        %1291 = vperm.xlu0 %1290, %v242
        %v1292 = vpop.permute.xlu0 %1291
        %1294 = vset.pattern.permute.xlu0 3
        %1295 = vperm.xlu0 %1294, %v243
        %v1296 = vpop.permute.xlu0 %1295
        %1298 = vset.pattern.permute.xlu0 3
        %1299 = vperm.xlu0 %1298, %v244
        %v1300 = vpop.permute.xlu0 %1299
        %1302 = vset.pattern.permute.xlu0 3
        %1303 = vperm.xlu0 %1302, %v245
        %v1304 = vpop.permute.xlu0 %1303
        %1306 = vset.pattern.permute.xlu0 3
        %1307 = vperm.xlu0 %1306, %v246
        %v1308 = vpop.permute.xlu0 %1307
        %1310 = vset.pattern.permute.xlu0 3
        %1311 = vperm.xlu0 %1310, %v247
        %v1312 = vpop.permute.xlu0 %1311
        %1314 = vset.pattern.permute.xlu0 3
        %1315 = vperm.xlu0 %1314, %v248
        %v1316 = vpop.permute.xlu0 %1315
        %1318 = vset.pattern.permute.xlu0 3
        %1319 = vperm.xlu0 %1318, %v249
        %v1320 = vpop.permute.xlu0 %1319
        %1322 = vset.pattern.permute.xlu0 3
        %1323 = vperm.xlu0 %1322, %v250
        %v1324 = vpop.permute.xlu0 %1323
        %1326 = vset.pattern.permute.xlu0 3
        %1327 = vperm.xlu0 %1326, %v251
        %v1328 = vpop.permute.xlu0 %1327
        %1330 = vset.pattern.permute.xlu0 3
        %1331 = vperm.xlu0 %1330, %v252
        %v1332 = vpop.permute.xlu0 %1331
        %1334 = vset.pattern.permute.xlu0 3
        %1335 = vperm.xlu0 %1334, %v253
        %v1336 = vpop.permute.xlu0 %1335
        %1338 = vset.pattern.permute.xlu0 3
        %1339 = vperm.xlu0 %1338, %v254
        %v1340 = vpop.permute.xlu0 %1339
        %1342 = vset.pattern.permute.xlu0 3
        %1343 = vperm.xlu0 %1342, %v255
        %v1344 = vpop.permute.xlu0 %1343
        %1346 = vset.pattern.permute.xlu0 3
        %1347 = vperm.xlu0 %1346, %v256
        %v1348 = vpop.permute.xlu0 %1347
        %1350 = vset.pattern.permute.xlu0 3
        %1351 = vperm.xlu0 %1350, %v257
        %v1352 = vpop.permute.xlu0 %1351
        %1354 = vset.pattern.permute.xlu0 3
        %1355 = vperm.xlu0 %1354, %v258
        %v1356 = vpop.permute.xlu0 %1355
        %1358 = vset.pattern.permute.xlu0 3
        %1359 = vperm.xlu0 %1358, %v259
        %v1360 = vpop.permute.xlu0 %1359
        %1362 = vset.pattern.permute.xlu0 3
        %1363 = vperm.xlu0 %1362, %v260
        %v1364 = vpop.permute.xlu0 %1363
        %v1366 = vperm.slane %v261, 3
        %v1367 = vmul.f32 %v1168, %v1366
        %v1368 = vmul.f32 %v1172, %v1366
        %v1369 = vmul.f32 %v1176, %v1366
        %v1370 = vmul.f32 %v1180, %v1366
        %v1371 = vmul.f32 %v1184, %v1366
        %v1372 = vmul.f32 %v1188, %v1366
        %v1373 = vmul.f32 %v1192, %v1366
        %v1374 = vmul.f32 %v1196, %v1366
        %v1375 = vmul.f32 %v1200, %v1366
        %v1376 = vmul.f32 %v1204, %v1366
        %v1377 = vmul.f32 %v1208, %v1366
        %v1378 = vmul.f32 %v1212, %v1366
        %v1379 = vmul.f32 %v1216, %v1366
        %v1380 = vmul.f32 %v1220, %v1366
        %v1381 = vmul.f32 %v1224, %v1366
        %v1382 = vmul.f32 %v1228, %v1366
        %v1383 = vmul.f32 %v1232, %v1366
        %v1384 = vmul.f32 %v1236, %v1366
        %v1385 = vmul.f32 %v1240, %v1366
        %v1386 = vmul.f32 %v1244, %v1366
        %v1387 = vmul.f32 %v1248, %v1366
        %v1388 = vmul.f32 %v1252, %v1366
        %v1389 = vmul.f32 %v1256, %v1366
        %v1390 = vmul.f32 %v1260, %v1366
        %v1391 = vmul.f32 %v1264, %v1366
        %v1392 = vmul.f32 %v1268, %v1366
        %v1393 = vmul.f32 %v1272, %v1366
        %v1394 = vmul.f32 %v1276, %v1366
        %v1395 = vmul.f32 %v1280, %v1366
        %v1396 = vmul.f32 %v1284, %v1366
        %v1397 = vmul.f32 %v1288, %v1366
        %v1398 = vmul.f32 %v1292, %v1366
        %v1399 = vmul.f32 %v1296, %v1366
        %v1400 = vmul.f32 %v1300, %v1366
        %v1401 = vmul.f32 %v1304, %v1366
        %v1402 = vmul.f32 %v1308, %v1366
        %v1403 = vmul.f32 %v1312, %v1366
        %v1404 = vmul.f32 %v1316, %v1366
        %v1405 = vmul.f32 %v1320, %v1366
        %v1406 = vmul.f32 %v1324, %v1366
        %v1407 = vmul.f32 %v1328, %v1366
        %v1408 = vmul.f32 %v1332, %v1366
        %v1409 = vmul.f32 %v1336, %v1366
        %v1410 = vmul.f32 %v1340, %v1366
        %v1411 = vmul.f32 %v1344, %v1366
        %v1412 = vmul.f32 %v1348, %v1366
        %v1413 = vmul.f32 %v1352, %v1366
        %v1414 = vmul.f32 %v1356, %v1366
        %v1415 = vmul.f32 %v1360, %v1366
        %v1416 = vmul.f32 %v1364, %v1366
        %v1417 = vadd.f32 %v1116, %v1367
        %v1418 = vadd.f32 %v1117, %v1368
        %v1419 = vadd.f32 %v1118, %v1369
        %v1420 = vadd.f32 %v1119, %v1370
        %v1421 = vadd.f32 %v1120, %v1371
        %v1422 = vadd.f32 %v1121, %v1372
        %v1423 = vadd.f32 %v1122, %v1373
        %v1424 = vadd.f32 %v1123, %v1374
        %v1425 = vadd.f32 %v1124, %v1375
        %v1426 = vadd.f32 %v1125, %v1376
        %v1427 = vadd.f32 %v1126, %v1377
        %v1428 = vadd.f32 %v1127, %v1378
        %v1429 = vadd.f32 %v1128, %v1379
        %v1430 = vadd.f32 %v1129, %v1380
        %v1431 = vadd.f32 %v1130, %v1381
        %v1432 = vadd.f32 %v1131, %v1382
        %v1433 = vadd.f32 %v1132, %v1383
        %v1434 = vadd.f32 %v1133, %v1384
        %v1435 = vadd.f32 %v1134, %v1385
        %v1436 = vadd.f32 %v1135, %v1386
        %v1437 = vadd.f32 %v1136, %v1387
        %v1438 = vadd.f32 %v1137, %v1388
        %v1439 = vadd.f32 %v1138, %v1389
        %v1440 = vadd.f32 %v1139, %v1390
        %v1441 = vadd.f32 %v1140, %v1391
        %v1442 = vadd.f32 %v1141, %v1392
        %v1443 = vadd.f32 %v1142, %v1393
        %v1444 = vadd.f32 %v1143, %v1394
        %v1445 = vadd.f32 %v1144, %v1395
        %v1446 = vadd.f32 %v1145, %v1396
        %v1447 = vadd.f32 %v1146, %v1397
        %v1448 = vadd.f32 %v1147, %v1398
        %v1449 = vadd.f32 %v1148, %v1399
        %v1450 = vadd.f32 %v1149, %v1400
        %v1451 = vadd.f32 %v1150, %v1401
        %v1452 = vadd.f32 %v1151, %v1402
        %v1453 = vadd.f32 %v1152, %v1403
        %v1454 = vadd.f32 %v1153, %v1404
        %v1455 = vadd.f32 %v1154, %v1405
        %v1456 = vadd.f32 %v1155, %v1406
        %v1457 = vadd.f32 %v1156, %v1407
        %v1458 = vadd.f32 %v1157, %v1408
        %v1459 = vadd.f32 %v1158, %v1409
        %v1460 = vadd.f32 %v1159, %v1410
        %v1461 = vadd.f32 %v1160, %v1411
        %v1462 = vadd.f32 %v1161, %v1412
        %v1463 = vadd.f32 %v1162, %v1413
        %v1464 = vadd.f32 %v1163, %v1414
        %v1465 = vadd.f32 %v1164, %v1415
        %v1466 = vadd.f32 %v1165, %v1416
        %1467 = vset.pattern.permute.xlu0 4
        %1468 = vperm.xlu0 %1467, %v211
        %v1469 = vpop.permute.xlu0 %1468
        %1471 = vset.pattern.permute.xlu0 4
        %1472 = vperm.xlu0 %1471, %v212
        %v1473 = vpop.permute.xlu0 %1472
        %1475 = vset.pattern.permute.xlu0 4
        %1476 = vperm.xlu0 %1475, %v213
        %v1477 = vpop.permute.xlu0 %1476
        %1479 = vset.pattern.permute.xlu0 4
        %1480 = vperm.xlu0 %1479, %v214
        %v1481 = vpop.permute.xlu0 %1480
        %1483 = vset.pattern.permute.xlu0 4
        %1484 = vperm.xlu0 %1483, %v215
        %v1485 = vpop.permute.xlu0 %1484
        %1487 = vset.pattern.permute.xlu0 4
        %1488 = vperm.xlu0 %1487, %v216
        %v1489 = vpop.permute.xlu0 %1488
        %1491 = vset.pattern.permute.xlu0 4
        %1492 = vperm.xlu0 %1491, %v217
        %v1493 = vpop.permute.xlu0 %1492
        %1495 = vset.pattern.permute.xlu0 4
        %1496 = vperm.xlu0 %1495, %v218
        %v1497 = vpop.permute.xlu0 %1496
        %1499 = vset.pattern.permute.xlu0 4
        %1500 = vperm.xlu0 %1499, %v219
        %v1501 = vpop.permute.xlu0 %1500
        %1503 = vset.pattern.permute.xlu0 4
        %1504 = vperm.xlu0 %1503, %v220
        %v1505 = vpop.permute.xlu0 %1504
        %1507 = vset.pattern.permute.xlu0 4
        %1508 = vperm.xlu0 %1507, %v221
        %v1509 = vpop.permute.xlu0 %1508
        %1511 = vset.pattern.permute.xlu0 4
        %1512 = vperm.xlu0 %1511, %v222
        %v1513 = vpop.permute.xlu0 %1512
        %1515 = vset.pattern.permute.xlu0 4
        %1516 = vperm.xlu0 %1515, %v223
        %v1517 = vpop.permute.xlu0 %1516
        %1519 = vset.pattern.permute.xlu0 4
        %1520 = vperm.xlu0 %1519, %v224
        %v1521 = vpop.permute.xlu0 %1520
        %1523 = vset.pattern.permute.xlu0 4
        %1524 = vperm.xlu0 %1523, %v225
        %v1525 = vpop.permute.xlu0 %1524
        %1527 = vset.pattern.permute.xlu0 4
        %1528 = vperm.xlu0 %1527, %v226
        %v1529 = vpop.permute.xlu0 %1528
        %1531 = vset.pattern.permute.xlu0 4
        %1532 = vperm.xlu0 %1531, %v227
        %v1533 = vpop.permute.xlu0 %1532
        %1535 = vset.pattern.permute.xlu0 4
        %1536 = vperm.xlu0 %1535, %v228
        %v1537 = vpop.permute.xlu0 %1536
        %1539 = vset.pattern.permute.xlu0 4
        %1540 = vperm.xlu0 %1539, %v229
        %v1541 = vpop.permute.xlu0 %1540
        %1543 = vset.pattern.permute.xlu0 4
        %1544 = vperm.xlu0 %1543, %v230
        %v1545 = vpop.permute.xlu0 %1544
        %1547 = vset.pattern.permute.xlu0 4
        %1548 = vperm.xlu0 %1547, %v231
        %v1549 = vpop.permute.xlu0 %1548
        %1551 = vset.pattern.permute.xlu0 4
        %1552 = vperm.xlu0 %1551, %v232
        %v1553 = vpop.permute.xlu0 %1552
        %1555 = vset.pattern.permute.xlu0 4
        %1556 = vperm.xlu0 %1555, %v233
        %v1557 = vpop.permute.xlu0 %1556
        %1559 = vset.pattern.permute.xlu0 4
        %1560 = vperm.xlu0 %1559, %v234
        %v1561 = vpop.permute.xlu0 %1560
        %1563 = vset.pattern.permute.xlu0 4
        %1564 = vperm.xlu0 %1563, %v235
        %v1565 = vpop.permute.xlu0 %1564
        %1567 = vset.pattern.permute.xlu0 4
        %1568 = vperm.xlu0 %1567, %v236
        %v1569 = vpop.permute.xlu0 %1568
        %1571 = vset.pattern.permute.xlu0 4
        %1572 = vperm.xlu0 %1571, %v237
        %v1573 = vpop.permute.xlu0 %1572
        %1575 = vset.pattern.permute.xlu0 4
        %1576 = vperm.xlu0 %1575, %v238
        %v1577 = vpop.permute.xlu0 %1576
        %1579 = vset.pattern.permute.xlu0 4
        %1580 = vperm.xlu0 %1579, %v239
        %v1581 = vpop.permute.xlu0 %1580
        %1583 = vset.pattern.permute.xlu0 4
        %1584 = vperm.xlu0 %1583, %v240
        %v1585 = vpop.permute.xlu0 %1584
        %1587 = vset.pattern.permute.xlu0 4
        %1588 = vperm.xlu0 %1587, %v241
        %v1589 = vpop.permute.xlu0 %1588
        %1591 = vset.pattern.permute.xlu0 4
        %1592 = vperm.xlu0 %1591, %v242
        %v1593 = vpop.permute.xlu0 %1592
        %1595 = vset.pattern.permute.xlu0 4
        %1596 = vperm.xlu0 %1595, %v243
        %v1597 = vpop.permute.xlu0 %1596
        %1599 = vset.pattern.permute.xlu0 4
        %1600 = vperm.xlu0 %1599, %v244
        %v1601 = vpop.permute.xlu0 %1600
        %1603 = vset.pattern.permute.xlu0 4
        %1604 = vperm.xlu0 %1603, %v245
        %v1605 = vpop.permute.xlu0 %1604
        %1607 = vset.pattern.permute.xlu0 4
        %1608 = vperm.xlu0 %1607, %v246
        %v1609 = vpop.permute.xlu0 %1608
        %1611 = vset.pattern.permute.xlu0 4
        %1612 = vperm.xlu0 %1611, %v247
        %v1613 = vpop.permute.xlu0 %1612
        %1615 = vset.pattern.permute.xlu0 4
        %1616 = vperm.xlu0 %1615, %v248
        %v1617 = vpop.permute.xlu0 %1616
        %1619 = vset.pattern.permute.xlu0 4
        %1620 = vperm.xlu0 %1619, %v249
        %v1621 = vpop.permute.xlu0 %1620
        %1623 = vset.pattern.permute.xlu0 4
        %1624 = vperm.xlu0 %1623, %v250
        %v1625 = vpop.permute.xlu0 %1624
        %1627 = vset.pattern.permute.xlu0 4
        %1628 = vperm.xlu0 %1627, %v251
        %v1629 = vpop.permute.xlu0 %1628
        %1631 = vset.pattern.permute.xlu0 4
        %1632 = vperm.xlu0 %1631, %v252
        %v1633 = vpop.permute.xlu0 %1632
        %1635 = vset.pattern.permute.xlu0 4
        %1636 = vperm.xlu0 %1635, %v253
        %v1637 = vpop.permute.xlu0 %1636
        %1639 = vset.pattern.permute.xlu0 4
        %1640 = vperm.xlu0 %1639, %v254
        %v1641 = vpop.permute.xlu0 %1640
        %1643 = vset.pattern.permute.xlu0 4
        %1644 = vperm.xlu0 %1643, %v255
        %v1645 = vpop.permute.xlu0 %1644
        %1647 = vset.pattern.permute.xlu0 4
        %1648 = vperm.xlu0 %1647, %v256
        %v1649 = vpop.permute.xlu0 %1648
        %1651 = vset.pattern.permute.xlu0 4
        %1652 = vperm.xlu0 %1651, %v257
        %v1653 = vpop.permute.xlu0 %1652
        %1655 = vset.pattern.permute.xlu0 4
        %1656 = vperm.xlu0 %1655, %v258
        %v1657 = vpop.permute.xlu0 %1656
        %1659 = vset.pattern.permute.xlu0 4
        %1660 = vperm.xlu0 %1659, %v259
        %v1661 = vpop.permute.xlu0 %1660
        %1663 = vset.pattern.permute.xlu0 4
        %1664 = vperm.xlu0 %1663, %v260
        %v1665 = vpop.permute.xlu0 %1664
        %v1667 = vperm.slane %v261, 4
        %v1668 = vmul.f32 %v1469, %v1667
        %v1669 = vmul.f32 %v1473, %v1667
        %v1670 = vmul.f32 %v1477, %v1667
        %v1671 = vmul.f32 %v1481, %v1667
        %v1672 = vmul.f32 %v1485, %v1667
        %v1673 = vmul.f32 %v1489, %v1667
        %v1674 = vmul.f32 %v1493, %v1667
        %v1675 = vmul.f32 %v1497, %v1667
        %v1676 = vmul.f32 %v1501, %v1667
        %v1677 = vmul.f32 %v1505, %v1667
        %v1678 = vmul.f32 %v1509, %v1667
        %v1679 = vmul.f32 %v1513, %v1667
        %v1680 = vmul.f32 %v1517, %v1667
        %v1681 = vmul.f32 %v1521, %v1667
        %v1682 = vmul.f32 %v1525, %v1667
        %v1683 = vmul.f32 %v1529, %v1667
        %v1684 = vmul.f32 %v1533, %v1667
        %v1685 = vmul.f32 %v1537, %v1667
        %v1686 = vmul.f32 %v1541, %v1667
        %v1687 = vmul.f32 %v1545, %v1667
        %v1688 = vmul.f32 %v1549, %v1667
        %v1689 = vmul.f32 %v1553, %v1667
        %v1690 = vmul.f32 %v1557, %v1667
        %v1691 = vmul.f32 %v1561, %v1667
        %v1692 = vmul.f32 %v1565, %v1667
        %v1693 = vmul.f32 %v1569, %v1667
        %v1694 = vmul.f32 %v1573, %v1667
        %v1695 = vmul.f32 %v1577, %v1667
        %v1696 = vmul.f32 %v1581, %v1667
        %v1697 = vmul.f32 %v1585, %v1667
        %v1698 = vmul.f32 %v1589, %v1667
        %v1699 = vmul.f32 %v1593, %v1667
        %v1700 = vmul.f32 %v1597, %v1667
        %v1701 = vmul.f32 %v1601, %v1667
        %v1702 = vmul.f32 %v1605, %v1667
        %v1703 = vmul.f32 %v1609, %v1667
        %v1704 = vmul.f32 %v1613, %v1667
        %v1705 = vmul.f32 %v1617, %v1667
        %v1706 = vmul.f32 %v1621, %v1667
        %v1707 = vmul.f32 %v1625, %v1667
        %v1708 = vmul.f32 %v1629, %v1667
        %v1709 = vmul.f32 %v1633, %v1667
        %v1710 = vmul.f32 %v1637, %v1667
        %v1711 = vmul.f32 %v1641, %v1667
        %v1712 = vmul.f32 %v1645, %v1667
        %v1713 = vmul.f32 %v1649, %v1667
        %v1714 = vmul.f32 %v1653, %v1667
        %v1715 = vmul.f32 %v1657, %v1667
        %v1716 = vmul.f32 %v1661, %v1667
        %v1717 = vmul.f32 %v1665, %v1667
        %v1718 = vadd.f32 %v1417, %v1668
        %v1719 = vadd.f32 %v1418, %v1669
        %v1720 = vadd.f32 %v1419, %v1670
        %v1721 = vadd.f32 %v1420, %v1671
        %v1722 = vadd.f32 %v1421, %v1672
        %v1723 = vadd.f32 %v1422, %v1673
        %v1724 = vadd.f32 %v1423, %v1674
        %v1725 = vadd.f32 %v1424, %v1675
        %v1726 = vadd.f32 %v1425, %v1676
        %v1727 = vadd.f32 %v1426, %v1677
        %v1728 = vadd.f32 %v1427, %v1678
        %v1729 = vadd.f32 %v1428, %v1679
        %v1730 = vadd.f32 %v1429, %v1680
        %v1731 = vadd.f32 %v1430, %v1681
        %v1732 = vadd.f32 %v1431, %v1682
        %v1733 = vadd.f32 %v1432, %v1683
        %v1734 = vadd.f32 %v1433, %v1684
        %v1735 = vadd.f32 %v1434, %v1685
        %v1736 = vadd.f32 %v1435, %v1686
        %v1737 = vadd.f32 %v1436, %v1687
        %v1738 = vadd.f32 %v1437, %v1688
        %v1739 = vadd.f32 %v1438, %v1689
        %v1740 = vadd.f32 %v1439, %v1690
        %v1741 = vadd.f32 %v1440, %v1691
        %v1742 = vadd.f32 %v1441, %v1692
        %v1743 = vadd.f32 %v1442, %v1693
        %v1744 = vadd.f32 %v1443, %v1694
        %v1745 = vadd.f32 %v1444, %v1695
        %v1746 = vadd.f32 %v1445, %v1696
        %v1747 = vadd.f32 %v1446, %v1697
        %v1748 = vadd.f32 %v1447, %v1698
        %v1749 = vadd.f32 %v1448, %v1699
        %v1750 = vadd.f32 %v1449, %v1700
        %v1751 = vadd.f32 %v1450, %v1701
        %v1752 = vadd.f32 %v1451, %v1702
        %v1753 = vadd.f32 %v1452, %v1703
        %v1754 = vadd.f32 %v1453, %v1704
        %v1755 = vadd.f32 %v1454, %v1705
        %v1756 = vadd.f32 %v1455, %v1706
        %v1757 = vadd.f32 %v1456, %v1707
        %v1758 = vadd.f32 %v1457, %v1708
        %v1759 = vadd.f32 %v1458, %v1709
        %v1760 = vadd.f32 %v1459, %v1710
        %v1761 = vadd.f32 %v1460, %v1711
        %v1762 = vadd.f32 %v1461, %v1712
        %v1763 = vadd.f32 %v1462, %v1713
        %v1764 = vadd.f32 %v1463, %v1714
        %v1765 = vadd.f32 %v1464, %v1715
        %v1766 = vadd.f32 %v1465, %v1716
        %v1767 = vadd.f32 %v1466, %v1717
        %1768 = vset.pattern.permute.xlu0 5
        %1769 = vperm.xlu0 %1768, %v211
        %v1770 = vpop.permute.xlu0 %1769
        %1772 = vset.pattern.permute.xlu0 5
        %1773 = vperm.xlu0 %1772, %v212
        %v1774 = vpop.permute.xlu0 %1773
        %1776 = vset.pattern.permute.xlu0 5
        %1777 = vperm.xlu0 %1776, %v213
        %v1778 = vpop.permute.xlu0 %1777
        %1780 = vset.pattern.permute.xlu0 5
        %1781 = vperm.xlu0 %1780, %v214
        %v1782 = vpop.permute.xlu0 %1781
        %1784 = vset.pattern.permute.xlu0 5
        %1785 = vperm.xlu0 %1784, %v215
        %v1786 = vpop.permute.xlu0 %1785
        %1788 = vset.pattern.permute.xlu0 5
        %1789 = vperm.xlu0 %1788, %v216
        %v1790 = vpop.permute.xlu0 %1789
        %1792 = vset.pattern.permute.xlu0 5
        %1793 = vperm.xlu0 %1792, %v217
        %v1794 = vpop.permute.xlu0 %1793
        %1796 = vset.pattern.permute.xlu0 5
        %1797 = vperm.xlu0 %1796, %v218
        %v1798 = vpop.permute.xlu0 %1797
        %1800 = vset.pattern.permute.xlu0 5
        %1801 = vperm.xlu0 %1800, %v219
        %v1802 = vpop.permute.xlu0 %1801
        %1804 = vset.pattern.permute.xlu0 5
        %1805 = vperm.xlu0 %1804, %v220
        %v1806 = vpop.permute.xlu0 %1805
        %1808 = vset.pattern.permute.xlu0 5
        %1809 = vperm.xlu0 %1808, %v221
        %v1810 = vpop.permute.xlu0 %1809
        %1812 = vset.pattern.permute.xlu0 5
        %1813 = vperm.xlu0 %1812, %v222
        %v1814 = vpop.permute.xlu0 %1813
        %1816 = vset.pattern.permute.xlu0 5
        %1817 = vperm.xlu0 %1816, %v223
        %v1818 = vpop.permute.xlu0 %1817
        %1820 = vset.pattern.permute.xlu0 5
        %1821 = vperm.xlu0 %1820, %v224
        %v1822 = vpop.permute.xlu0 %1821
        %1824 = vset.pattern.permute.xlu0 5
        %1825 = vperm.xlu0 %1824, %v225
        %v1826 = vpop.permute.xlu0 %1825
        %1828 = vset.pattern.permute.xlu0 5
        %1829 = vperm.xlu0 %1828, %v226
        %v1830 = vpop.permute.xlu0 %1829
        %1832 = vset.pattern.permute.xlu0 5
        %1833 = vperm.xlu0 %1832, %v227
        %v1834 = vpop.permute.xlu0 %1833
        %1836 = vset.pattern.permute.xlu0 5
        %1837 = vperm.xlu0 %1836, %v228
        %v1838 = vpop.permute.xlu0 %1837
        %1840 = vset.pattern.permute.xlu0 5
        %1841 = vperm.xlu0 %1840, %v229
        %v1842 = vpop.permute.xlu0 %1841
        %1844 = vset.pattern.permute.xlu0 5
        %1845 = vperm.xlu0 %1844, %v230
        %v1846 = vpop.permute.xlu0 %1845
        %1848 = vset.pattern.permute.xlu0 5
        %1849 = vperm.xlu0 %1848, %v231
        %v1850 = vpop.permute.xlu0 %1849
        %1852 = vset.pattern.permute.xlu0 5
        %1853 = vperm.xlu0 %1852, %v232
        %v1854 = vpop.permute.xlu0 %1853
        %1856 = vset.pattern.permute.xlu0 5
        %1857 = vperm.xlu0 %1856, %v233
        %v1858 = vpop.permute.xlu0 %1857
        %1860 = vset.pattern.permute.xlu0 5
        %1861 = vperm.xlu0 %1860, %v234
        %v1862 = vpop.permute.xlu0 %1861
        %1864 = vset.pattern.permute.xlu0 5
        %1865 = vperm.xlu0 %1864, %v235
        %v1866 = vpop.permute.xlu0 %1865
        %1868 = vset.pattern.permute.xlu0 5
        %1869 = vperm.xlu0 %1868, %v236
        %v1870 = vpop.permute.xlu0 %1869
        %1872 = vset.pattern.permute.xlu0 5
        %1873 = vperm.xlu0 %1872, %v237
        %v1874 = vpop.permute.xlu0 %1873
        %1876 = vset.pattern.permute.xlu0 5
        %1877 = vperm.xlu0 %1876, %v238
        %v1878 = vpop.permute.xlu0 %1877
        %1880 = vset.pattern.permute.xlu0 5
        %1881 = vperm.xlu0 %1880, %v239
        %v1882 = vpop.permute.xlu0 %1881
        %1884 = vset.pattern.permute.xlu0 5
        %1885 = vperm.xlu0 %1884, %v240
        %v1886 = vpop.permute.xlu0 %1885
        %1888 = vset.pattern.permute.xlu0 5
        %1889 = vperm.xlu0 %1888, %v241
        %v1890 = vpop.permute.xlu0 %1889
        %1892 = vset.pattern.permute.xlu0 5
        %1893 = vperm.xlu0 %1892, %v242
        %v1894 = vpop.permute.xlu0 %1893
        %1896 = vset.pattern.permute.xlu0 5
        %1897 = vperm.xlu0 %1896, %v243
        %v1898 = vpop.permute.xlu0 %1897
        %1900 = vset.pattern.permute.xlu0 5
        %1901 = vperm.xlu0 %1900, %v244
        %v1902 = vpop.permute.xlu0 %1901
        %1904 = vset.pattern.permute.xlu0 5
        %1905 = vperm.xlu0 %1904, %v245
        %v1906 = vpop.permute.xlu0 %1905
        %1908 = vset.pattern.permute.xlu0 5
        %1909 = vperm.xlu0 %1908, %v246
        %v1910 = vpop.permute.xlu0 %1909
        %1912 = vset.pattern.permute.xlu0 5
        %1913 = vperm.xlu0 %1912, %v247
        %v1914 = vpop.permute.xlu0 %1913
        %1916 = vset.pattern.permute.xlu0 5
        %1917 = vperm.xlu0 %1916, %v248
        %v1918 = vpop.permute.xlu0 %1917
        %1920 = vset.pattern.permute.xlu0 5
        %1921 = vperm.xlu0 %1920, %v249
        %v1922 = vpop.permute.xlu0 %1921
        %1924 = vset.pattern.permute.xlu0 5
        %1925 = vperm.xlu0 %1924, %v250
        %v1926 = vpop.permute.xlu0 %1925
        %1928 = vset.pattern.permute.xlu0 5
        %1929 = vperm.xlu0 %1928, %v251
        %v1930 = vpop.permute.xlu0 %1929
        %1932 = vset.pattern.permute.xlu0 5
        %1933 = vperm.xlu0 %1932, %v252
        %v1934 = vpop.permute.xlu0 %1933
        %1936 = vset.pattern.permute.xlu0 5
        %1937 = vperm.xlu0 %1936, %v253
        %v1938 = vpop.permute.xlu0 %1937
        %1940 = vset.pattern.permute.xlu0 5
        %1941 = vperm.xlu0 %1940, %v254
        %v1942 = vpop.permute.xlu0 %1941
        %1944 = vset.pattern.permute.xlu0 5
        %1945 = vperm.xlu0 %1944, %v255
        %v1946 = vpop.permute.xlu0 %1945
        %1948 = vset.pattern.permute.xlu0 5
        %1949 = vperm.xlu0 %1948, %v256
        %v1950 = vpop.permute.xlu0 %1949
        %1952 = vset.pattern.permute.xlu0 5
        %1953 = vperm.xlu0 %1952, %v257
        %v1954 = vpop.permute.xlu0 %1953
        %1956 = vset.pattern.permute.xlu0 5
        %1957 = vperm.xlu0 %1956, %v258
        %v1958 = vpop.permute.xlu0 %1957
        %1960 = vset.pattern.permute.xlu0 5
        %1961 = vperm.xlu0 %1960, %v259
        %v1962 = vpop.permute.xlu0 %1961
        %1964 = vset.pattern.permute.xlu0 5
        %1965 = vperm.xlu0 %1964, %v260
        %v1966 = vpop.permute.xlu0 %1965
        %v1968 = vperm.slane %v261, 5
        %v1969 = vmul.f32 %v1770, %v1968
        %v1970 = vmul.f32 %v1774, %v1968
        %v1971 = vmul.f32 %v1778, %v1968
        %v1972 = vmul.f32 %v1782, %v1968
        %v1973 = vmul.f32 %v1786, %v1968
        %v1974 = vmul.f32 %v1790, %v1968
        %v1975 = vmul.f32 %v1794, %v1968
        %v1976 = vmul.f32 %v1798, %v1968
        %v1977 = vmul.f32 %v1802, %v1968
        %v1978 = vmul.f32 %v1806, %v1968
        %v1979 = vmul.f32 %v1810, %v1968
        %v1980 = vmul.f32 %v1814, %v1968
        %v1981 = vmul.f32 %v1818, %v1968
        %v1982 = vmul.f32 %v1822, %v1968
        %v1983 = vmul.f32 %v1826, %v1968
        %v1984 = vmul.f32 %v1830, %v1968
        %v1985 = vmul.f32 %v1834, %v1968
        %v1986 = vmul.f32 %v1838, %v1968
        %v1987 = vmul.f32 %v1842, %v1968
        %v1988 = vmul.f32 %v1846, %v1968
        %v1989 = vmul.f32 %v1850, %v1968
        %v1990 = vmul.f32 %v1854, %v1968
        %v1991 = vmul.f32 %v1858, %v1968
        %v1992 = vmul.f32 %v1862, %v1968
        %v1993 = vmul.f32 %v1866, %v1968
        %v1994 = vmul.f32 %v1870, %v1968
        %v1995 = vmul.f32 %v1874, %v1968
        %v1996 = vmul.f32 %v1878, %v1968
        %v1997 = vmul.f32 %v1882, %v1968
        %v1998 = vmul.f32 %v1886, %v1968
        %v1999 = vmul.f32 %v1890, %v1968
        %v2000 = vmul.f32 %v1894, %v1968
        %v2001 = vmul.f32 %v1898, %v1968
        %v2002 = vmul.f32 %v1902, %v1968
        %v2003 = vmul.f32 %v1906, %v1968
        %v2004 = vmul.f32 %v1910, %v1968
        %v2005 = vmul.f32 %v1914, %v1968
        %v2006 = vmul.f32 %v1918, %v1968
        %v2007 = vmul.f32 %v1922, %v1968
        %v2008 = vmul.f32 %v1926, %v1968
        %v2009 = vmul.f32 %v1930, %v1968
        %v2010 = vmul.f32 %v1934, %v1968
        %v2011 = vmul.f32 %v1938, %v1968
        %v2012 = vmul.f32 %v1942, %v1968
        %v2013 = vmul.f32 %v1946, %v1968
        %v2014 = vmul.f32 %v1950, %v1968
        %v2015 = vmul.f32 %v1954, %v1968
        %v2016 = vmul.f32 %v1958, %v1968
        %v2017 = vmul.f32 %v1962, %v1968
        %v2018 = vmul.f32 %v1966, %v1968
        %v2019 = vadd.f32 %v1718, %v1969
        %v2020 = vadd.f32 %v1719, %v1970
        %v2021 = vadd.f32 %v1720, %v1971
        %v2022 = vadd.f32 %v1721, %v1972
        %v2023 = vadd.f32 %v1722, %v1973
        %v2024 = vadd.f32 %v1723, %v1974
        %v2025 = vadd.f32 %v1724, %v1975
        %v2026 = vadd.f32 %v1725, %v1976
        %v2027 = vadd.f32 %v1726, %v1977
        %v2028 = vadd.f32 %v1727, %v1978
        %v2029 = vadd.f32 %v1728, %v1979
        %v2030 = vadd.f32 %v1729, %v1980
        %v2031 = vadd.f32 %v1730, %v1981
        %v2032 = vadd.f32 %v1731, %v1982
        %v2033 = vadd.f32 %v1732, %v1983
        %v2034 = vadd.f32 %v1733, %v1984
        %v2035 = vadd.f32 %v1734, %v1985
        %v2036 = vadd.f32 %v1735, %v1986
        %v2037 = vadd.f32 %v1736, %v1987
        %v2038 = vadd.f32 %v1737, %v1988
        %v2039 = vadd.f32 %v1738, %v1989
        %v2040 = vadd.f32 %v1739, %v1990
        %v2041 = vadd.f32 %v1740, %v1991
        %v2042 = vadd.f32 %v1741, %v1992
        %v2043 = vadd.f32 %v1742, %v1993
        %v2044 = vadd.f32 %v1743, %v1994
        %v2045 = vadd.f32 %v1744, %v1995
        %v2046 = vadd.f32 %v1745, %v1996
        %v2047 = vadd.f32 %v1746, %v1997
        %v2048 = vadd.f32 %v1747, %v1998
        %v2049 = vadd.f32 %v1748, %v1999
        %v2050 = vadd.f32 %v1749, %v2000
        %v2051 = vadd.f32 %v1750, %v2001
        %v2052 = vadd.f32 %v1751, %v2002
        %v2053 = vadd.f32 %v1752, %v2003
        %v2054 = vadd.f32 %v1753, %v2004
        %v2055 = vadd.f32 %v1754, %v2005
        %v2056 = vadd.f32 %v1755, %v2006
        %v2057 = vadd.f32 %v1756, %v2007
        %v2058 = vadd.f32 %v1757, %v2008
        %v2059 = vadd.f32 %v1758, %v2009
        %v2060 = vadd.f32 %v1759, %v2010
        %v2061 = vadd.f32 %v1760, %v2011
        %v2062 = vadd.f32 %v1761, %v2012
        %v2063 = vadd.f32 %v1762, %v2013
        %v2064 = vadd.f32 %v1763, %v2014
        %v2065 = vadd.f32 %v1764, %v2015
        %v2066 = vadd.f32 %v1765, %v2016
        %v2067 = vadd.f32 %v1766, %v2017
        %v2068 = vadd.f32 %v1767, %v2018
        %2069 = vset.pattern.permute.xlu0 6
        %2070 = vperm.xlu0 %2069, %v211
        %v2071 = vpop.permute.xlu0 %2070
        %2073 = vset.pattern.permute.xlu0 6
        %2074 = vperm.xlu0 %2073, %v212
        %v2075 = vpop.permute.xlu0 %2074
        %2077 = vset.pattern.permute.xlu0 6
        %2078 = vperm.xlu0 %2077, %v213
        %v2079 = vpop.permute.xlu0 %2078
        %2081 = vset.pattern.permute.xlu0 6
        %2082 = vperm.xlu0 %2081, %v214
        %v2083 = vpop.permute.xlu0 %2082
        %2085 = vset.pattern.permute.xlu0 6
        %2086 = vperm.xlu0 %2085, %v215
        %v2087 = vpop.permute.xlu0 %2086
        %2089 = vset.pattern.permute.xlu0 6
        %2090 = vperm.xlu0 %2089, %v216
        %v2091 = vpop.permute.xlu0 %2090
        %2093 = vset.pattern.permute.xlu0 6
        %2094 = vperm.xlu0 %2093, %v217
        %v2095 = vpop.permute.xlu0 %2094
        %2097 = vset.pattern.permute.xlu0 6
        %2098 = vperm.xlu0 %2097, %v218
        %v2099 = vpop.permute.xlu0 %2098
        %2101 = vset.pattern.permute.xlu0 6
        %2102 = vperm.xlu0 %2101, %v219
        %v2103 = vpop.permute.xlu0 %2102
        %2105 = vset.pattern.permute.xlu0 6
        %2106 = vperm.xlu0 %2105, %v220
        %v2107 = vpop.permute.xlu0 %2106
        %2109 = vset.pattern.permute.xlu0 6
        %2110 = vperm.xlu0 %2109, %v221
        %v2111 = vpop.permute.xlu0 %2110
        %2113 = vset.pattern.permute.xlu0 6
        %2114 = vperm.xlu0 %2113, %v222
        %v2115 = vpop.permute.xlu0 %2114
        %2117 = vset.pattern.permute.xlu0 6
        %2118 = vperm.xlu0 %2117, %v223
        %v2119 = vpop.permute.xlu0 %2118
        %2121 = vset.pattern.permute.xlu0 6
        %2122 = vperm.xlu0 %2121, %v224
        %v2123 = vpop.permute.xlu0 %2122
        %2125 = vset.pattern.permute.xlu0 6
        %2126 = vperm.xlu0 %2125, %v225
        %v2127 = vpop.permute.xlu0 %2126
        %2129 = vset.pattern.permute.xlu0 6
        %2130 = vperm.xlu0 %2129, %v226
        %v2131 = vpop.permute.xlu0 %2130
        %2133 = vset.pattern.permute.xlu0 6
        %2134 = vperm.xlu0 %2133, %v227
        %v2135 = vpop.permute.xlu0 %2134
        %2137 = vset.pattern.permute.xlu0 6
        %2138 = vperm.xlu0 %2137, %v228
        %v2139 = vpop.permute.xlu0 %2138
        %2141 = vset.pattern.permute.xlu0 6
        %2142 = vperm.xlu0 %2141, %v229
        %v2143 = vpop.permute.xlu0 %2142
        %2145 = vset.pattern.permute.xlu0 6
        %2146 = vperm.xlu0 %2145, %v230
        %v2147 = vpop.permute.xlu0 %2146
        %2149 = vset.pattern.permute.xlu0 6
        %2150 = vperm.xlu0 %2149, %v231
        %v2151 = vpop.permute.xlu0 %2150
        %2153 = vset.pattern.permute.xlu0 6
        %2154 = vperm.xlu0 %2153, %v232
        %v2155 = vpop.permute.xlu0 %2154
        %2157 = vset.pattern.permute.xlu0 6
        %2158 = vperm.xlu0 %2157, %v233
        %v2159 = vpop.permute.xlu0 %2158
        %2161 = vset.pattern.permute.xlu0 6
        %2162 = vperm.xlu0 %2161, %v234
        %v2163 = vpop.permute.xlu0 %2162
        %2165 = vset.pattern.permute.xlu0 6
        %2166 = vperm.xlu0 %2165, %v235
        %v2167 = vpop.permute.xlu0 %2166
        %2169 = vset.pattern.permute.xlu0 6
        %2170 = vperm.xlu0 %2169, %v236
        %v2171 = vpop.permute.xlu0 %2170
        %2173 = vset.pattern.permute.xlu0 6
        %2174 = vperm.xlu0 %2173, %v237
        %v2175 = vpop.permute.xlu0 %2174
        %2177 = vset.pattern.permute.xlu0 6
        %2178 = vperm.xlu0 %2177, %v238
        %v2179 = vpop.permute.xlu0 %2178
        %2181 = vset.pattern.permute.xlu0 6
        %2182 = vperm.xlu0 %2181, %v239
        %v2183 = vpop.permute.xlu0 %2182
        %2185 = vset.pattern.permute.xlu0 6
        %2186 = vperm.xlu0 %2185, %v240
        %v2187 = vpop.permute.xlu0 %2186
        %2189 = vset.pattern.permute.xlu0 6
        %2190 = vperm.xlu0 %2189, %v241
        %v2191 = vpop.permute.xlu0 %2190
        %2193 = vset.pattern.permute.xlu0 6
        %2194 = vperm.xlu0 %2193, %v242
        %v2195 = vpop.permute.xlu0 %2194
        %2197 = vset.pattern.permute.xlu0 6
        %2198 = vperm.xlu0 %2197, %v243
        %v2199 = vpop.permute.xlu0 %2198
        %2201 = vset.pattern.permute.xlu0 6
        %2202 = vperm.xlu0 %2201, %v244
        %v2203 = vpop.permute.xlu0 %2202
        %2205 = vset.pattern.permute.xlu0 6
        %2206 = vperm.xlu0 %2205, %v245
        %v2207 = vpop.permute.xlu0 %2206
        %2209 = vset.pattern.permute.xlu0 6
        %2210 = vperm.xlu0 %2209, %v246
        %v2211 = vpop.permute.xlu0 %2210
        %2213 = vset.pattern.permute.xlu0 6
        %2214 = vperm.xlu0 %2213, %v247
        %v2215 = vpop.permute.xlu0 %2214
        %2217 = vset.pattern.permute.xlu0 6
        %2218 = vperm.xlu0 %2217, %v248
        %v2219 = vpop.permute.xlu0 %2218
        %2221 = vset.pattern.permute.xlu0 6
        %2222 = vperm.xlu0 %2221, %v249
        %v2223 = vpop.permute.xlu0 %2222
        %2225 = vset.pattern.permute.xlu0 6
        %2226 = vperm.xlu0 %2225, %v250
        %v2227 = vpop.permute.xlu0 %2226
        %2229 = vset.pattern.permute.xlu0 6
        %2230 = vperm.xlu0 %2229, %v251
        %v2231 = vpop.permute.xlu0 %2230
        %2233 = vset.pattern.permute.xlu0 6
        %2234 = vperm.xlu0 %2233, %v252
        %v2235 = vpop.permute.xlu0 %2234
        %2237 = vset.pattern.permute.xlu0 6
        %2238 = vperm.xlu0 %2237, %v253
        %v2239 = vpop.permute.xlu0 %2238
        %2241 = vset.pattern.permute.xlu0 6
        %2242 = vperm.xlu0 %2241, %v254
        %v2243 = vpop.permute.xlu0 %2242
        %2245 = vset.pattern.permute.xlu0 6
        %2246 = vperm.xlu0 %2245, %v255
        %v2247 = vpop.permute.xlu0 %2246
        %2249 = vset.pattern.permute.xlu0 6
        %2250 = vperm.xlu0 %2249, %v256
        %v2251 = vpop.permute.xlu0 %2250
        %2253 = vset.pattern.permute.xlu0 6
        %2254 = vperm.xlu0 %2253, %v257
        %v2255 = vpop.permute.xlu0 %2254
        %2257 = vset.pattern.permute.xlu0 6
        %2258 = vperm.xlu0 %2257, %v258
        %v2259 = vpop.permute.xlu0 %2258
        %2261 = vset.pattern.permute.xlu0 6
        %2262 = vperm.xlu0 %2261, %v259
        %v2263 = vpop.permute.xlu0 %2262
        %2265 = vset.pattern.permute.xlu0 6
        %2266 = vperm.xlu0 %2265, %v260
        %v2267 = vpop.permute.xlu0 %2266
        %v2269 = vperm.slane %v261, 6
        %v2270 = vmul.f32 %v2071, %v2269
        %v2271 = vmul.f32 %v2075, %v2269
        %v2272 = vmul.f32 %v2079, %v2269
        %v2273 = vmul.f32 %v2083, %v2269
        %v2274 = vmul.f32 %v2087, %v2269
        %v2275 = vmul.f32 %v2091, %v2269
        %v2276 = vmul.f32 %v2095, %v2269
        %v2277 = vmul.f32 %v2099, %v2269
        %v2278 = vmul.f32 %v2103, %v2269
        %v2279 = vmul.f32 %v2107, %v2269
        %v2280 = vmul.f32 %v2111, %v2269
        %v2281 = vmul.f32 %v2115, %v2269
        %v2282 = vmul.f32 %v2119, %v2269
        %v2283 = vmul.f32 %v2123, %v2269
        %v2284 = vmul.f32 %v2127, %v2269
        %v2285 = vmul.f32 %v2131, %v2269
        %v2286 = vmul.f32 %v2135, %v2269
        %v2287 = vmul.f32 %v2139, %v2269
        %v2288 = vmul.f32 %v2143, %v2269
        %v2289 = vmul.f32 %v2147, %v2269
        %v2290 = vmul.f32 %v2151, %v2269
        %v2291 = vmul.f32 %v2155, %v2269
        %v2292 = vmul.f32 %v2159, %v2269
        %v2293 = vmul.f32 %v2163, %v2269
        %v2294 = vmul.f32 %v2167, %v2269
        %v2295 = vmul.f32 %v2171, %v2269
        %v2296 = vmul.f32 %v2175, %v2269
        %v2297 = vmul.f32 %v2179, %v2269
        %v2298 = vmul.f32 %v2183, %v2269
        %v2299 = vmul.f32 %v2187, %v2269
        %v2300 = vmul.f32 %v2191, %v2269
        %v2301 = vmul.f32 %v2195, %v2269
        %v2302 = vmul.f32 %v2199, %v2269
        %v2303 = vmul.f32 %v2203, %v2269
        %v2304 = vmul.f32 %v2207, %v2269
        %v2305 = vmul.f32 %v2211, %v2269
        %v2306 = vmul.f32 %v2215, %v2269
        %v2307 = vmul.f32 %v2219, %v2269
        %v2308 = vmul.f32 %v2223, %v2269
        %v2309 = vmul.f32 %v2227, %v2269
        %v2310 = vmul.f32 %v2231, %v2269
        %v2311 = vmul.f32 %v2235, %v2269
        %v2312 = vmul.f32 %v2239, %v2269
        %v2313 = vmul.f32 %v2243, %v2269
        %v2314 = vmul.f32 %v2247, %v2269
        %v2315 = vmul.f32 %v2251, %v2269
        %v2316 = vmul.f32 %v2255, %v2269
        %v2317 = vmul.f32 %v2259, %v2269
        %v2318 = vmul.f32 %v2263, %v2269
        %v2319 = vmul.f32 %v2267, %v2269
        %v2320 = vadd.f32 %v2019, %v2270
        %v2321 = vadd.f32 %v2020, %v2271
        %v2322 = vadd.f32 %v2021, %v2272
        %v2323 = vadd.f32 %v2022, %v2273
        %v2324 = vadd.f32 %v2023, %v2274
        %v2325 = vadd.f32 %v2024, %v2275
        %v2326 = vadd.f32 %v2025, %v2276
        %v2327 = vadd.f32 %v2026, %v2277
        %v2328 = vadd.f32 %v2027, %v2278
        %v2329 = vadd.f32 %v2028, %v2279
        %v2330 = vadd.f32 %v2029, %v2280
        %v2331 = vadd.f32 %v2030, %v2281
        %v2332 = vadd.f32 %v2031, %v2282
        %v2333 = vadd.f32 %v2032, %v2283
        %v2334 = vadd.f32 %v2033, %v2284
        %v2335 = vadd.f32 %v2034, %v2285
        %v2336 = vadd.f32 %v2035, %v2286
        %v2337 = vadd.f32 %v2036, %v2287
        %v2338 = vadd.f32 %v2037, %v2288
        %v2339 = vadd.f32 %v2038, %v2289
        %v2340 = vadd.f32 %v2039, %v2290
        %v2341 = vadd.f32 %v2040, %v2291
        %v2342 = vadd.f32 %v2041, %v2292
        %v2343 = vadd.f32 %v2042, %v2293
        %v2344 = vadd.f32 %v2043, %v2294
        %v2345 = vadd.f32 %v2044, %v2295
        %v2346 = vadd.f32 %v2045, %v2296
        %v2347 = vadd.f32 %v2046, %v2297
        %v2348 = vadd.f32 %v2047, %v2298
        %v2349 = vadd.f32 %v2048, %v2299
        %v2350 = vadd.f32 %v2049, %v2300
        %v2351 = vadd.f32 %v2050, %v2301
        %v2352 = vadd.f32 %v2051, %v2302
        %v2353 = vadd.f32 %v2052, %v2303
        %v2354 = vadd.f32 %v2053, %v2304
        %v2355 = vadd.f32 %v2054, %v2305
        %v2356 = vadd.f32 %v2055, %v2306
        %v2357 = vadd.f32 %v2056, %v2307
        %v2358 = vadd.f32 %v2057, %v2308
        %v2359 = vadd.f32 %v2058, %v2309
        %v2360 = vadd.f32 %v2059, %v2310
        %v2361 = vadd.f32 %v2060, %v2311
        %v2362 = vadd.f32 %v2061, %v2312
        %v2363 = vadd.f32 %v2062, %v2313
        %v2364 = vadd.f32 %v2063, %v2314
        %v2365 = vadd.f32 %v2064, %v2315
        %v2366 = vadd.f32 %v2065, %v2316
        %v2367 = vadd.f32 %v2066, %v2317
        %v2368 = vadd.f32 %v2067, %v2318
        %v2369 = vadd.f32 %v2068, %v2319
        %2370 = vset.pattern.permute.xlu0 7
        %2371 = vperm.xlu0 %2370, %v211
        %v2372 = vpop.permute.xlu0 %2371
        %2374 = vset.pattern.permute.xlu0 7
        %2375 = vperm.xlu0 %2374, %v212
        %v2376 = vpop.permute.xlu0 %2375
        %2378 = vset.pattern.permute.xlu0 7
        %2379 = vperm.xlu0 %2378, %v213
        %v2380 = vpop.permute.xlu0 %2379
        %2382 = vset.pattern.permute.xlu0 7
        %2383 = vperm.xlu0 %2382, %v214
        %v2384 = vpop.permute.xlu0 %2383
        %2386 = vset.pattern.permute.xlu0 7
        %2387 = vperm.xlu0 %2386, %v215
        %v2388 = vpop.permute.xlu0 %2387
        %2390 = vset.pattern.permute.xlu0 7
        %2391 = vperm.xlu0 %2390, %v216
        %v2392 = vpop.permute.xlu0 %2391
        %2394 = vset.pattern.permute.xlu0 7
        %2395 = vperm.xlu0 %2394, %v217
        %v2396 = vpop.permute.xlu0 %2395
        %2398 = vset.pattern.permute.xlu0 7
        %2399 = vperm.xlu0 %2398, %v218
        %v2400 = vpop.permute.xlu0 %2399
        %2402 = vset.pattern.permute.xlu0 7
        %2403 = vperm.xlu0 %2402, %v219
        %v2404 = vpop.permute.xlu0 %2403
        %2406 = vset.pattern.permute.xlu0 7
        %2407 = vperm.xlu0 %2406, %v220
        %v2408 = vpop.permute.xlu0 %2407
        %2410 = vset.pattern.permute.xlu0 7
        %2411 = vperm.xlu0 %2410, %v221
        %v2412 = vpop.permute.xlu0 %2411
        %2414 = vset.pattern.permute.xlu0 7
        %2415 = vperm.xlu0 %2414, %v222
        %v2416 = vpop.permute.xlu0 %2415
        %2418 = vset.pattern.permute.xlu0 7
        %2419 = vperm.xlu0 %2418, %v223
        %v2420 = vpop.permute.xlu0 %2419
        %2422 = vset.pattern.permute.xlu0 7
        %2423 = vperm.xlu0 %2422, %v224
        %v2424 = vpop.permute.xlu0 %2423
        %2426 = vset.pattern.permute.xlu0 7
        %2427 = vperm.xlu0 %2426, %v225
        %v2428 = vpop.permute.xlu0 %2427
        %2430 = vset.pattern.permute.xlu0 7
        %2431 = vperm.xlu0 %2430, %v226
        %v2432 = vpop.permute.xlu0 %2431
        %2434 = vset.pattern.permute.xlu0 7
        %2435 = vperm.xlu0 %2434, %v227
        %v2436 = vpop.permute.xlu0 %2435
        %2438 = vset.pattern.permute.xlu0 7
        %2439 = vperm.xlu0 %2438, %v228
        %v2440 = vpop.permute.xlu0 %2439
        %2442 = vset.pattern.permute.xlu0 7
        %2443 = vperm.xlu0 %2442, %v229
        %v2444 = vpop.permute.xlu0 %2443
        %2446 = vset.pattern.permute.xlu0 7
        %2447 = vperm.xlu0 %2446, %v230
        %v2448 = vpop.permute.xlu0 %2447
        %2450 = vset.pattern.permute.xlu0 7
        %2451 = vperm.xlu0 %2450, %v231
        %v2452 = vpop.permute.xlu0 %2451
        %2454 = vset.pattern.permute.xlu0 7
        %2455 = vperm.xlu0 %2454, %v232
        %v2456 = vpop.permute.xlu0 %2455
        %2458 = vset.pattern.permute.xlu0 7
        %2459 = vperm.xlu0 %2458, %v233
        %v2460 = vpop.permute.xlu0 %2459
        %2462 = vset.pattern.permute.xlu0 7
        %2463 = vperm.xlu0 %2462, %v234
        %v2464 = vpop.permute.xlu0 %2463
        %2466 = vset.pattern.permute.xlu0 7
        %2467 = vperm.xlu0 %2466, %v235
        %v2468 = vpop.permute.xlu0 %2467
        %2470 = vset.pattern.permute.xlu0 7
        %2471 = vperm.xlu0 %2470, %v236
        %v2472 = vpop.permute.xlu0 %2471
        %2474 = vset.pattern.permute.xlu0 7
        %2475 = vperm.xlu0 %2474, %v237
        %v2476 = vpop.permute.xlu0 %2475
        %2478 = vset.pattern.permute.xlu0 7
        %2479 = vperm.xlu0 %2478, %v238
        %v2480 = vpop.permute.xlu0 %2479
        %2482 = vset.pattern.permute.xlu0 7
        %2483 = vperm.xlu0 %2482, %v239
        %v2484 = vpop.permute.xlu0 %2483
        %2486 = vset.pattern.permute.xlu0 7
        %2487 = vperm.xlu0 %2486, %v240
        %v2488 = vpop.permute.xlu0 %2487
        %2490 = vset.pattern.permute.xlu0 7
        %2491 = vperm.xlu0 %2490, %v241
        %v2492 = vpop.permute.xlu0 %2491
        %2494 = vset.pattern.permute.xlu0 7
        %2495 = vperm.xlu0 %2494, %v242
        %v2496 = vpop.permute.xlu0 %2495
        %2498 = vset.pattern.permute.xlu0 7
        %2499 = vperm.xlu0 %2498, %v243
        %v2500 = vpop.permute.xlu0 %2499
        %2502 = vset.pattern.permute.xlu0 7
        %2503 = vperm.xlu0 %2502, %v244
        %v2504 = vpop.permute.xlu0 %2503
        %2506 = vset.pattern.permute.xlu0 7
        %2507 = vperm.xlu0 %2506, %v245
        %v2508 = vpop.permute.xlu0 %2507
        %2510 = vset.pattern.permute.xlu0 7
        %2511 = vperm.xlu0 %2510, %v246
        %v2512 = vpop.permute.xlu0 %2511
        %2514 = vset.pattern.permute.xlu0 7
        %2515 = vperm.xlu0 %2514, %v247
        %v2516 = vpop.permute.xlu0 %2515
        %2518 = vset.pattern.permute.xlu0 7
        %2519 = vperm.xlu0 %2518, %v248
        %v2520 = vpop.permute.xlu0 %2519
        %2522 = vset.pattern.permute.xlu0 7
        %2523 = vperm.xlu0 %2522, %v249
        %v2524 = vpop.permute.xlu0 %2523
        %2526 = vset.pattern.permute.xlu0 7
        %2527 = vperm.xlu0 %2526, %v250
        %v2528 = vpop.permute.xlu0 %2527
        %2530 = vset.pattern.permute.xlu0 7
        %2531 = vperm.xlu0 %2530, %v251
        %v2532 = vpop.permute.xlu0 %2531
        %2534 = vset.pattern.permute.xlu0 7
        %2535 = vperm.xlu0 %2534, %v252
        %v2536 = vpop.permute.xlu0 %2535
        %2538 = vset.pattern.permute.xlu0 7
        %2539 = vperm.xlu0 %2538, %v253
        %v2540 = vpop.permute.xlu0 %2539
        %2542 = vset.pattern.permute.xlu0 7
        %2543 = vperm.xlu0 %2542, %v254
        %v2544 = vpop.permute.xlu0 %2543
        %2546 = vset.pattern.permute.xlu0 7
        %2547 = vperm.xlu0 %2546, %v255
        %v2548 = vpop.permute.xlu0 %2547
        %2550 = vset.pattern.permute.xlu0 7
        %2551 = vperm.xlu0 %2550, %v256
        %v2552 = vpop.permute.xlu0 %2551
        %2554 = vset.pattern.permute.xlu0 7
        %2555 = vperm.xlu0 %2554, %v257
        %v2556 = vpop.permute.xlu0 %2555
        %2558 = vset.pattern.permute.xlu0 7
        %2559 = vperm.xlu0 %2558, %v258
        %v2560 = vpop.permute.xlu0 %2559
        %2562 = vset.pattern.permute.xlu0 7
        %2563 = vperm.xlu0 %2562, %v259
        %v2564 = vpop.permute.xlu0 %2563
        %2566 = vset.pattern.permute.xlu0 7
        %2567 = vperm.xlu0 %2566, %v260
        %v2568 = vpop.permute.xlu0 %2567
        %v2570 = vperm.slane %v261, 7
        %v2571 = vmul.f32 %v2372, %v2570
        %v2572 = vmul.f32 %v2376, %v2570
        %v2573 = vmul.f32 %v2380, %v2570
        %v2574 = vmul.f32 %v2384, %v2570
        %v2575 = vmul.f32 %v2388, %v2570
        %v2576 = vmul.f32 %v2392, %v2570
        %v2577 = vmul.f32 %v2396, %v2570
        %v2578 = vmul.f32 %v2400, %v2570
        %v2579 = vmul.f32 %v2404, %v2570
        %v2580 = vmul.f32 %v2408, %v2570
        %v2581 = vmul.f32 %v2412, %v2570
        %v2582 = vmul.f32 %v2416, %v2570
        %v2583 = vmul.f32 %v2420, %v2570
        %v2584 = vmul.f32 %v2424, %v2570
        %v2585 = vmul.f32 %v2428, %v2570
        %v2586 = vmul.f32 %v2432, %v2570
        %v2587 = vmul.f32 %v2436, %v2570
        %v2588 = vmul.f32 %v2440, %v2570
        %v2589 = vmul.f32 %v2444, %v2570
        %v2590 = vmul.f32 %v2448, %v2570
        %v2591 = vmul.f32 %v2452, %v2570
        %v2592 = vmul.f32 %v2456, %v2570
        %v2593 = vmul.f32 %v2460, %v2570
        %v2594 = vmul.f32 %v2464, %v2570
        %v2595 = vmul.f32 %v2468, %v2570
        %v2596 = vmul.f32 %v2472, %v2570
        %v2597 = vmul.f32 %v2476, %v2570
        %v2598 = vmul.f32 %v2480, %v2570
        %v2599 = vmul.f32 %v2484, %v2570
        %v2600 = vmul.f32 %v2488, %v2570
        %v2601 = vmul.f32 %v2492, %v2570
        %v2602 = vmul.f32 %v2496, %v2570
        %v2603 = vmul.f32 %v2500, %v2570
        %v2604 = vmul.f32 %v2504, %v2570
        %v2605 = vmul.f32 %v2508, %v2570
        %v2606 = vmul.f32 %v2512, %v2570
        %v2607 = vmul.f32 %v2516, %v2570
        %v2608 = vmul.f32 %v2520, %v2570
        %v2609 = vmul.f32 %v2524, %v2570
        %v2610 = vmul.f32 %v2528, %v2570
        %v2611 = vmul.f32 %v2532, %v2570
        %v2612 = vmul.f32 %v2536, %v2570
        %v2613 = vmul.f32 %v2540, %v2570
        %v2614 = vmul.f32 %v2544, %v2570
        %v2615 = vmul.f32 %v2548, %v2570
        %v2616 = vmul.f32 %v2552, %v2570
        %v2617 = vmul.f32 %v2556, %v2570
        %v2618 = vmul.f32 %v2560, %v2570
        %v2619 = vmul.f32 %v2564, %v2570
        %v2620 = vmul.f32 %v2568, %v2570
        %v2621 = vadd.f32 %v2320, %v2571
        %v2622 = vadd.f32 %v2321, %v2572
        %v2623 = vadd.f32 %v2322, %v2573
        %v2624 = vadd.f32 %v2323, %v2574
        %v2625 = vadd.f32 %v2324, %v2575
        %v2626 = vadd.f32 %v2325, %v2576
        %v2627 = vadd.f32 %v2326, %v2577
        %v2628 = vadd.f32 %v2327, %v2578
        %v2629 = vadd.f32 %v2328, %v2579
        %v2630 = vadd.f32 %v2329, %v2580
        %v2631 = vadd.f32 %v2330, %v2581
        %v2632 = vadd.f32 %v2331, %v2582
        %v2633 = vadd.f32 %v2332, %v2583
        %v2634 = vadd.f32 %v2333, %v2584
        %v2635 = vadd.f32 %v2334, %v2585
        %v2636 = vadd.f32 %v2335, %v2586
        %v2637 = vadd.f32 %v2336, %v2587
        %v2638 = vadd.f32 %v2337, %v2588
        %v2639 = vadd.f32 %v2338, %v2589
        %v2640 = vadd.f32 %v2339, %v2590
        %v2641 = vadd.f32 %v2340, %v2591
        %v2642 = vadd.f32 %v2341, %v2592
        %v2643 = vadd.f32 %v2342, %v2593
        %v2644 = vadd.f32 %v2343, %v2594
        %v2645 = vadd.f32 %v2344, %v2595
        %v2646 = vadd.f32 %v2345, %v2596
        %v2647 = vadd.f32 %v2346, %v2597
        %v2648 = vadd.f32 %v2347, %v2598
        %v2649 = vadd.f32 %v2348, %v2599
        %v2650 = vadd.f32 %v2349, %v2600
        %v2651 = vadd.f32 %v2350, %v2601
        %v2652 = vadd.f32 %v2351, %v2602
        %v2653 = vadd.f32 %v2352, %v2603
        %v2654 = vadd.f32 %v2353, %v2604
        %v2655 = vadd.f32 %v2354, %v2605
        %v2656 = vadd.f32 %v2355, %v2606
        %v2657 = vadd.f32 %v2356, %v2607
        %v2658 = vadd.f32 %v2357, %v2608
        %v2659 = vadd.f32 %v2358, %v2609
        %v2660 = vadd.f32 %v2359, %v2610
        %v2661 = vadd.f32 %v2360, %v2611
        %v2662 = vadd.f32 %v2361, %v2612
        %v2663 = vadd.f32 %v2362, %v2613
        %v2664 = vadd.f32 %v2363, %v2614
        %v2665 = vadd.f32 %v2364, %v2615
        %v2666 = vadd.f32 %v2365, %v2616
        %v2667 = vadd.f32 %v2366, %v2617
        %v2668 = vadd.f32 %v2367, %v2618
        %v2669 = vadd.f32 %v2368, %v2619
        %v2670 = vadd.f32 %v2369, %v2620
        %2671 = vset.pattern.permute.xlu0 8
        %2672 = vperm.xlu0 %2671, %v211
        %v2673 = vpop.permute.xlu0 %2672
        %2675 = vset.pattern.permute.xlu0 8
        %2676 = vperm.xlu0 %2675, %v212
        %v2677 = vpop.permute.xlu0 %2676
        %2679 = vset.pattern.permute.xlu0 8
        %2680 = vperm.xlu0 %2679, %v213
        %v2681 = vpop.permute.xlu0 %2680
        %2683 = vset.pattern.permute.xlu0 8
        %2684 = vperm.xlu0 %2683, %v214
        %v2685 = vpop.permute.xlu0 %2684
        %2687 = vset.pattern.permute.xlu0 8
        %2688 = vperm.xlu0 %2687, %v215
        %v2689 = vpop.permute.xlu0 %2688
        %2691 = vset.pattern.permute.xlu0 8
        %2692 = vperm.xlu0 %2691, %v216
        %v2693 = vpop.permute.xlu0 %2692
        %2695 = vset.pattern.permute.xlu0 8
        %2696 = vperm.xlu0 %2695, %v217
        %v2697 = vpop.permute.xlu0 %2696
        %2699 = vset.pattern.permute.xlu0 8
        %2700 = vperm.xlu0 %2699, %v218
        %v2701 = vpop.permute.xlu0 %2700
        %2703 = vset.pattern.permute.xlu0 8
        %2704 = vperm.xlu0 %2703, %v219
        %v2705 = vpop.permute.xlu0 %2704
        %2707 = vset.pattern.permute.xlu0 8
        %2708 = vperm.xlu0 %2707, %v220
        %v2709 = vpop.permute.xlu0 %2708
        %2711 = vset.pattern.permute.xlu0 8
        %2712 = vperm.xlu0 %2711, %v221
        %v2713 = vpop.permute.xlu0 %2712
        %2715 = vset.pattern.permute.xlu0 8
        %2716 = vperm.xlu0 %2715, %v222
        %v2717 = vpop.permute.xlu0 %2716
        %2719 = vset.pattern.permute.xlu0 8
        %2720 = vperm.xlu0 %2719, %v223
        %v2721 = vpop.permute.xlu0 %2720
        %2723 = vset.pattern.permute.xlu0 8
        %2724 = vperm.xlu0 %2723, %v224
        %v2725 = vpop.permute.xlu0 %2724
        %2727 = vset.pattern.permute.xlu0 8
        %2728 = vperm.xlu0 %2727, %v225
        %v2729 = vpop.permute.xlu0 %2728
        %2731 = vset.pattern.permute.xlu0 8
        %2732 = vperm.xlu0 %2731, %v226
        %v2733 = vpop.permute.xlu0 %2732
        %2735 = vset.pattern.permute.xlu0 8
        %2736 = vperm.xlu0 %2735, %v227
        %v2737 = vpop.permute.xlu0 %2736
        %2739 = vset.pattern.permute.xlu0 8
        %2740 = vperm.xlu0 %2739, %v228
        %v2741 = vpop.permute.xlu0 %2740
        %2743 = vset.pattern.permute.xlu0 8
        %2744 = vperm.xlu0 %2743, %v229
        %v2745 = vpop.permute.xlu0 %2744
        %2747 = vset.pattern.permute.xlu0 8
        %2748 = vperm.xlu0 %2747, %v230
        %v2749 = vpop.permute.xlu0 %2748
        %2751 = vset.pattern.permute.xlu0 8
        %2752 = vperm.xlu0 %2751, %v231
        %v2753 = vpop.permute.xlu0 %2752
        %2755 = vset.pattern.permute.xlu0 8
        %2756 = vperm.xlu0 %2755, %v232
        %v2757 = vpop.permute.xlu0 %2756
        %2759 = vset.pattern.permute.xlu0 8
        %2760 = vperm.xlu0 %2759, %v233
        %v2761 = vpop.permute.xlu0 %2760
        %2763 = vset.pattern.permute.xlu0 8
        %2764 = vperm.xlu0 %2763, %v234
        %v2765 = vpop.permute.xlu0 %2764
        %2767 = vset.pattern.permute.xlu0 8
        %2768 = vperm.xlu0 %2767, %v235
        %v2769 = vpop.permute.xlu0 %2768
        %2771 = vset.pattern.permute.xlu0 8
        %2772 = vperm.xlu0 %2771, %v236
        %v2773 = vpop.permute.xlu0 %2772
        %2775 = vset.pattern.permute.xlu0 8
        %2776 = vperm.xlu0 %2775, %v237
        %v2777 = vpop.permute.xlu0 %2776
        %2779 = vset.pattern.permute.xlu0 8
        %2780 = vperm.xlu0 %2779, %v238
        %v2781 = vpop.permute.xlu0 %2780
        %2783 = vset.pattern.permute.xlu0 8
        %2784 = vperm.xlu0 %2783, %v239
        %v2785 = vpop.permute.xlu0 %2784
        %2787 = vset.pattern.permute.xlu0 8
        %2788 = vperm.xlu0 %2787, %v240
        %v2789 = vpop.permute.xlu0 %2788
        %2791 = vset.pattern.permute.xlu0 8
        %2792 = vperm.xlu0 %2791, %v241
        %v2793 = vpop.permute.xlu0 %2792
        %2795 = vset.pattern.permute.xlu0 8
        %2796 = vperm.xlu0 %2795, %v242
        %v2797 = vpop.permute.xlu0 %2796
        %2799 = vset.pattern.permute.xlu0 8
        %2800 = vperm.xlu0 %2799, %v243
        %v2801 = vpop.permute.xlu0 %2800
        %2803 = vset.pattern.permute.xlu0 8
        %2804 = vperm.xlu0 %2803, %v244
        %v2805 = vpop.permute.xlu0 %2804
        %2807 = vset.pattern.permute.xlu0 8
        %2808 = vperm.xlu0 %2807, %v245
        %v2809 = vpop.permute.xlu0 %2808
        %2811 = vset.pattern.permute.xlu0 8
        %2812 = vperm.xlu0 %2811, %v246
        %v2813 = vpop.permute.xlu0 %2812
        %2815 = vset.pattern.permute.xlu0 8
        %2816 = vperm.xlu0 %2815, %v247
        %v2817 = vpop.permute.xlu0 %2816
        %2819 = vset.pattern.permute.xlu0 8
        %2820 = vperm.xlu0 %2819, %v248
        %v2821 = vpop.permute.xlu0 %2820
        %2823 = vset.pattern.permute.xlu0 8
        %2824 = vperm.xlu0 %2823, %v249
        %v2825 = vpop.permute.xlu0 %2824
        %2827 = vset.pattern.permute.xlu0 8
        %2828 = vperm.xlu0 %2827, %v250
        %v2829 = vpop.permute.xlu0 %2828
        %2831 = vset.pattern.permute.xlu0 8
        %2832 = vperm.xlu0 %2831, %v251
        %v2833 = vpop.permute.xlu0 %2832
        %2835 = vset.pattern.permute.xlu0 8
        %2836 = vperm.xlu0 %2835, %v252
        %v2837 = vpop.permute.xlu0 %2836
        %2839 = vset.pattern.permute.xlu0 8
        %2840 = vperm.xlu0 %2839, %v253
        %v2841 = vpop.permute.xlu0 %2840
        %2843 = vset.pattern.permute.xlu0 8
        %2844 = vperm.xlu0 %2843, %v254
        %v2845 = vpop.permute.xlu0 %2844
        %2847 = vset.pattern.permute.xlu0 8
        %2848 = vperm.xlu0 %2847, %v255
        %v2849 = vpop.permute.xlu0 %2848
        %2851 = vset.pattern.permute.xlu0 8
        %2852 = vperm.xlu0 %2851, %v256
        %v2853 = vpop.permute.xlu0 %2852
        %2855 = vset.pattern.permute.xlu0 8
        %2856 = vperm.xlu0 %2855, %v257
        %v2857 = vpop.permute.xlu0 %2856
        %2859 = vset.pattern.permute.xlu0 8
        %2860 = vperm.xlu0 %2859, %v258
        %v2861 = vpop.permute.xlu0 %2860
        %2863 = vset.pattern.permute.xlu0 8
        %2864 = vperm.xlu0 %2863, %v259
        %v2865 = vpop.permute.xlu0 %2864
        %2867 = vset.pattern.permute.xlu0 8
        %2868 = vperm.xlu0 %2867, %v260
        %v2869 = vpop.permute.xlu0 %2868
        %v2871 = vperm.slane %v262, 0
        %v2872 = vmul.f32 %v2673, %v2871
        %v2873 = vmul.f32 %v2677, %v2871
        %v2874 = vmul.f32 %v2681, %v2871
        %v2875 = vmul.f32 %v2685, %v2871
        %v2876 = vmul.f32 %v2689, %v2871
        %v2877 = vmul.f32 %v2693, %v2871
        %v2878 = vmul.f32 %v2697, %v2871
        %v2879 = vmul.f32 %v2701, %v2871
        %v2880 = vmul.f32 %v2705, %v2871
        %v2881 = vmul.f32 %v2709, %v2871
        %v2882 = vmul.f32 %v2713, %v2871
        %v2883 = vmul.f32 %v2717, %v2871
        %v2884 = vmul.f32 %v2721, %v2871
        %v2885 = vmul.f32 %v2725, %v2871
        %v2886 = vmul.f32 %v2729, %v2871
        %v2887 = vmul.f32 %v2733, %v2871
        %v2888 = vmul.f32 %v2737, %v2871
        %v2889 = vmul.f32 %v2741, %v2871
        %v2890 = vmul.f32 %v2745, %v2871
        %v2891 = vmul.f32 %v2749, %v2871
        %v2892 = vmul.f32 %v2753, %v2871
        %v2893 = vmul.f32 %v2757, %v2871
        %v2894 = vmul.f32 %v2761, %v2871
        %v2895 = vmul.f32 %v2765, %v2871
        %v2896 = vmul.f32 %v2769, %v2871
        %v2897 = vmul.f32 %v2773, %v2871
        %v2898 = vmul.f32 %v2777, %v2871
        %v2899 = vmul.f32 %v2781, %v2871
        %v2900 = vmul.f32 %v2785, %v2871
        %v2901 = vmul.f32 %v2789, %v2871
        %v2902 = vmul.f32 %v2793, %v2871
        %v2903 = vmul.f32 %v2797, %v2871
        %v2904 = vmul.f32 %v2801, %v2871
        %v2905 = vmul.f32 %v2805, %v2871
        %v2906 = vmul.f32 %v2809, %v2871
        %v2907 = vmul.f32 %v2813, %v2871
        %v2908 = vmul.f32 %v2817, %v2871
        %v2909 = vmul.f32 %v2821, %v2871
        %v2910 = vmul.f32 %v2825, %v2871
        %v2911 = vmul.f32 %v2829, %v2871
        %v2912 = vmul.f32 %v2833, %v2871
        %v2913 = vmul.f32 %v2837, %v2871
        %v2914 = vmul.f32 %v2841, %v2871
        %v2915 = vmul.f32 %v2845, %v2871
        %v2916 = vmul.f32 %v2849, %v2871
        %v2917 = vmul.f32 %v2853, %v2871
        %v2918 = vmul.f32 %v2857, %v2871
        %v2919 = vmul.f32 %v2861, %v2871
        %v2920 = vmul.f32 %v2865, %v2871
        %v2921 = vmul.f32 %v2869, %v2871
        %v2922 = vadd.f32 %v2621, %v2872
        %v2923 = vadd.f32 %v2622, %v2873
        %v2924 = vadd.f32 %v2623, %v2874
        %v2925 = vadd.f32 %v2624, %v2875
        %v2926 = vadd.f32 %v2625, %v2876
        %v2927 = vadd.f32 %v2626, %v2877
        %v2928 = vadd.f32 %v2627, %v2878
        %v2929 = vadd.f32 %v2628, %v2879
        %v2930 = vadd.f32 %v2629, %v2880
        %v2931 = vadd.f32 %v2630, %v2881
        %v2932 = vadd.f32 %v2631, %v2882
        %v2933 = vadd.f32 %v2632, %v2883
        %v2934 = vadd.f32 %v2633, %v2884
        %v2935 = vadd.f32 %v2634, %v2885
        %v2936 = vadd.f32 %v2635, %v2886
        %v2937 = vadd.f32 %v2636, %v2887
        %v2938 = vadd.f32 %v2637, %v2888
        %v2939 = vadd.f32 %v2638, %v2889
        %v2940 = vadd.f32 %v2639, %v2890
        %v2941 = vadd.f32 %v2640, %v2891
        %v2942 = vadd.f32 %v2641, %v2892
        %v2943 = vadd.f32 %v2642, %v2893
        %v2944 = vadd.f32 %v2643, %v2894
        %v2945 = vadd.f32 %v2644, %v2895
        %v2946 = vadd.f32 %v2645, %v2896
        %v2947 = vadd.f32 %v2646, %v2897
        %v2948 = vadd.f32 %v2647, %v2898
        %v2949 = vadd.f32 %v2648, %v2899
        %v2950 = vadd.f32 %v2649, %v2900
        %v2951 = vadd.f32 %v2650, %v2901
        %v2952 = vadd.f32 %v2651, %v2902
        %v2953 = vadd.f32 %v2652, %v2903
        %v2954 = vadd.f32 %v2653, %v2904
        %v2955 = vadd.f32 %v2654, %v2905
        %v2956 = vadd.f32 %v2655, %v2906
        %v2957 = vadd.f32 %v2656, %v2907
        %v2958 = vadd.f32 %v2657, %v2908
        %v2959 = vadd.f32 %v2658, %v2909
        %v2960 = vadd.f32 %v2659, %v2910
        %v2961 = vadd.f32 %v2660, %v2911
        %v2962 = vadd.f32 %v2661, %v2912
        %v2963 = vadd.f32 %v2662, %v2913
        %v2964 = vadd.f32 %v2663, %v2914
        %v2965 = vadd.f32 %v2664, %v2915
        %v2966 = vadd.f32 %v2665, %v2916
        %v2967 = vadd.f32 %v2666, %v2917
        %v2968 = vadd.f32 %v2667, %v2918
        %v2969 = vadd.f32 %v2668, %v2919
        %v2970 = vadd.f32 %v2669, %v2920
        %v2971 = vadd.f32 %v2670, %v2921
        %2972 = vset.pattern.permute.xlu0 9
        %2973 = vperm.xlu0 %2972, %v211
        %v2974 = vpop.permute.xlu0 %2973
        %2976 = vset.pattern.permute.xlu0 9
        %2977 = vperm.xlu0 %2976, %v212
        %v2978 = vpop.permute.xlu0 %2977
        %2980 = vset.pattern.permute.xlu0 9
        %2981 = vperm.xlu0 %2980, %v213
        %v2982 = vpop.permute.xlu0 %2981
        %2984 = vset.pattern.permute.xlu0 9
        %2985 = vperm.xlu0 %2984, %v214
        %v2986 = vpop.permute.xlu0 %2985
        %2988 = vset.pattern.permute.xlu0 9
        %2989 = vperm.xlu0 %2988, %v215
        %v2990 = vpop.permute.xlu0 %2989
        %2992 = vset.pattern.permute.xlu0 9
        %2993 = vperm.xlu0 %2992, %v216
        %v2994 = vpop.permute.xlu0 %2993
        %2996 = vset.pattern.permute.xlu0 9
        %2997 = vperm.xlu0 %2996, %v217
        %v2998 = vpop.permute.xlu0 %2997
        %3000 = vset.pattern.permute.xlu0 9
        %3001 = vperm.xlu0 %3000, %v218
        %v3002 = vpop.permute.xlu0 %3001
        %3004 = vset.pattern.permute.xlu0 9
        %3005 = vperm.xlu0 %3004, %v219
        %v3006 = vpop.permute.xlu0 %3005
        %3008 = vset.pattern.permute.xlu0 9
        %3009 = vperm.xlu0 %3008, %v220
        %v3010 = vpop.permute.xlu0 %3009
        %3012 = vset.pattern.permute.xlu0 9
        %3013 = vperm.xlu0 %3012, %v221
        %v3014 = vpop.permute.xlu0 %3013
        %3016 = vset.pattern.permute.xlu0 9
        %3017 = vperm.xlu0 %3016, %v222
        %v3018 = vpop.permute.xlu0 %3017
        %3020 = vset.pattern.permute.xlu0 9
        %3021 = vperm.xlu0 %3020, %v223
        %v3022 = vpop.permute.xlu0 %3021
        %3024 = vset.pattern.permute.xlu0 9
        %3025 = vperm.xlu0 %3024, %v224
        %v3026 = vpop.permute.xlu0 %3025
        %3028 = vset.pattern.permute.xlu0 9
        %3029 = vperm.xlu0 %3028, %v225
        %v3030 = vpop.permute.xlu0 %3029
        %3032 = vset.pattern.permute.xlu0 9
        %3033 = vperm.xlu0 %3032, %v226
        %v3034 = vpop.permute.xlu0 %3033
        %3036 = vset.pattern.permute.xlu0 9
        %3037 = vperm.xlu0 %3036, %v227
        %v3038 = vpop.permute.xlu0 %3037
        %3040 = vset.pattern.permute.xlu0 9
        %3041 = vperm.xlu0 %3040, %v228
        %v3042 = vpop.permute.xlu0 %3041
        %3044 = vset.pattern.permute.xlu0 9
        %3045 = vperm.xlu0 %3044, %v229
        %v3046 = vpop.permute.xlu0 %3045
        %3048 = vset.pattern.permute.xlu0 9
        %3049 = vperm.xlu0 %3048, %v230
        %v3050 = vpop.permute.xlu0 %3049
        %3052 = vset.pattern.permute.xlu0 9
        %3053 = vperm.xlu0 %3052, %v231
        %v3054 = vpop.permute.xlu0 %3053
        %3056 = vset.pattern.permute.xlu0 9
        %3057 = vperm.xlu0 %3056, %v232
        %v3058 = vpop.permute.xlu0 %3057
        %3060 = vset.pattern.permute.xlu0 9
        %3061 = vperm.xlu0 %3060, %v233
        %v3062 = vpop.permute.xlu0 %3061
        %3064 = vset.pattern.permute.xlu0 9
        %3065 = vperm.xlu0 %3064, %v234
        %v3066 = vpop.permute.xlu0 %3065
        %3068 = vset.pattern.permute.xlu0 9
        %3069 = vperm.xlu0 %3068, %v235
        %v3070 = vpop.permute.xlu0 %3069
        %3072 = vset.pattern.permute.xlu0 9
        %3073 = vperm.xlu0 %3072, %v236
        %v3074 = vpop.permute.xlu0 %3073
        %3076 = vset.pattern.permute.xlu0 9
        %3077 = vperm.xlu0 %3076, %v237
        %v3078 = vpop.permute.xlu0 %3077
        %3080 = vset.pattern.permute.xlu0 9
        %3081 = vperm.xlu0 %3080, %v238
        %v3082 = vpop.permute.xlu0 %3081
        %3084 = vset.pattern.permute.xlu0 9
        %3085 = vperm.xlu0 %3084, %v239
        %v3086 = vpop.permute.xlu0 %3085
        %3088 = vset.pattern.permute.xlu0 9
        %3089 = vperm.xlu0 %3088, %v240
        %v3090 = vpop.permute.xlu0 %3089
        %3092 = vset.pattern.permute.xlu0 9
        %3093 = vperm.xlu0 %3092, %v241
        %v3094 = vpop.permute.xlu0 %3093
        %3096 = vset.pattern.permute.xlu0 9
        %3097 = vperm.xlu0 %3096, %v242
        %v3098 = vpop.permute.xlu0 %3097
        %3100 = vset.pattern.permute.xlu0 9
        %3101 = vperm.xlu0 %3100, %v243
        %v3102 = vpop.permute.xlu0 %3101
        %3104 = vset.pattern.permute.xlu0 9
        %3105 = vperm.xlu0 %3104, %v244
        %v3106 = vpop.permute.xlu0 %3105
        %3108 = vset.pattern.permute.xlu0 9
        %3109 = vperm.xlu0 %3108, %v245
        %v3110 = vpop.permute.xlu0 %3109
        %3112 = vset.pattern.permute.xlu0 9
        %3113 = vperm.xlu0 %3112, %v246
        %v3114 = vpop.permute.xlu0 %3113
        %3116 = vset.pattern.permute.xlu0 9
        %3117 = vperm.xlu0 %3116, %v247
        %v3118 = vpop.permute.xlu0 %3117
        %3120 = vset.pattern.permute.xlu0 9
        %3121 = vperm.xlu0 %3120, %v248
        %v3122 = vpop.permute.xlu0 %3121
        %3124 = vset.pattern.permute.xlu0 9
        %3125 = vperm.xlu0 %3124, %v249
        %v3126 = vpop.permute.xlu0 %3125
        %3128 = vset.pattern.permute.xlu0 9
        %3129 = vperm.xlu0 %3128, %v250
        %v3130 = vpop.permute.xlu0 %3129
        %3132 = vset.pattern.permute.xlu0 9
        %3133 = vperm.xlu0 %3132, %v251
        %v3134 = vpop.permute.xlu0 %3133
        %3136 = vset.pattern.permute.xlu0 9
        %3137 = vperm.xlu0 %3136, %v252
        %v3138 = vpop.permute.xlu0 %3137
        %3140 = vset.pattern.permute.xlu0 9
        %3141 = vperm.xlu0 %3140, %v253
        %v3142 = vpop.permute.xlu0 %3141
        %3144 = vset.pattern.permute.xlu0 9
        %3145 = vperm.xlu0 %3144, %v254
        %v3146 = vpop.permute.xlu0 %3145
        %3148 = vset.pattern.permute.xlu0 9
        %3149 = vperm.xlu0 %3148, %v255
        %v3150 = vpop.permute.xlu0 %3149
        %3152 = vset.pattern.permute.xlu0 9
        %3153 = vperm.xlu0 %3152, %v256
        %v3154 = vpop.permute.xlu0 %3153
        %3156 = vset.pattern.permute.xlu0 9
        %3157 = vperm.xlu0 %3156, %v257
        %v3158 = vpop.permute.xlu0 %3157
        %3160 = vset.pattern.permute.xlu0 9
        %3161 = vperm.xlu0 %3160, %v258
        %v3162 = vpop.permute.xlu0 %3161
        %3164 = vset.pattern.permute.xlu0 9
        %3165 = vperm.xlu0 %3164, %v259
        %v3166 = vpop.permute.xlu0 %3165
        %3168 = vset.pattern.permute.xlu0 9
        %3169 = vperm.xlu0 %3168, %v260
        %v3170 = vpop.permute.xlu0 %3169
        %v3172 = vperm.slane %v262, 1
        %v3173 = vmul.f32 %v2974, %v3172
        %v3174 = vmul.f32 %v2978, %v3172
        %v3175 = vmul.f32 %v2982, %v3172
        %v3176 = vmul.f32 %v2986, %v3172
        %v3177 = vmul.f32 %v2990, %v3172
        %v3178 = vmul.f32 %v2994, %v3172
        %v3179 = vmul.f32 %v2998, %v3172
        %v3180 = vmul.f32 %v3002, %v3172
        %v3181 = vmul.f32 %v3006, %v3172
        %v3182 = vmul.f32 %v3010, %v3172
        %v3183 = vmul.f32 %v3014, %v3172
        %v3184 = vmul.f32 %v3018, %v3172
        %v3185 = vmul.f32 %v3022, %v3172
        %v3186 = vmul.f32 %v3026, %v3172
        %v3187 = vmul.f32 %v3030, %v3172
        %v3188 = vmul.f32 %v3034, %v3172
        %v3189 = vmul.f32 %v3038, %v3172
        %v3190 = vmul.f32 %v3042, %v3172
        %v3191 = vmul.f32 %v3046, %v3172
        %v3192 = vmul.f32 %v3050, %v3172
        %v3193 = vmul.f32 %v3054, %v3172
        %v3194 = vmul.f32 %v3058, %v3172
        %v3195 = vmul.f32 %v3062, %v3172
        %v3196 = vmul.f32 %v3066, %v3172
        %v3197 = vmul.f32 %v3070, %v3172
        %v3198 = vmul.f32 %v3074, %v3172
        %v3199 = vmul.f32 %v3078, %v3172
        %v3200 = vmul.f32 %v3082, %v3172
        %v3201 = vmul.f32 %v3086, %v3172
        %v3202 = vmul.f32 %v3090, %v3172
        %v3203 = vmul.f32 %v3094, %v3172
        %v3204 = vmul.f32 %v3098, %v3172
        %v3205 = vmul.f32 %v3102, %v3172
        %v3206 = vmul.f32 %v3106, %v3172
        %v3207 = vmul.f32 %v3110, %v3172
        %v3208 = vmul.f32 %v3114, %v3172
        %v3209 = vmul.f32 %v3118, %v3172
        %v3210 = vmul.f32 %v3122, %v3172
        %v3211 = vmul.f32 %v3126, %v3172
        %v3212 = vmul.f32 %v3130, %v3172
        %v3213 = vmul.f32 %v3134, %v3172
        %v3214 = vmul.f32 %v3138, %v3172
        %v3215 = vmul.f32 %v3142, %v3172
        %v3216 = vmul.f32 %v3146, %v3172
        %v3217 = vmul.f32 %v3150, %v3172
        %v3218 = vmul.f32 %v3154, %v3172
        %v3219 = vmul.f32 %v3158, %v3172
        %v3220 = vmul.f32 %v3162, %v3172
        %v3221 = vmul.f32 %v3166, %v3172
        %v3222 = vmul.f32 %v3170, %v3172
        %v3223 = vadd.f32 %v2922, %v3173
        %v3224 = vadd.f32 %v2923, %v3174
        %v3225 = vadd.f32 %v2924, %v3175
        %v3226 = vadd.f32 %v2925, %v3176
        %v3227 = vadd.f32 %v2926, %v3177
        %v3228 = vadd.f32 %v2927, %v3178
        %v3229 = vadd.f32 %v2928, %v3179
        %v3230 = vadd.f32 %v2929, %v3180
        %v3231 = vadd.f32 %v2930, %v3181
        %v3232 = vadd.f32 %v2931, %v3182
        %v3233 = vadd.f32 %v2932, %v3183
        %v3234 = vadd.f32 %v2933, %v3184
        %v3235 = vadd.f32 %v2934, %v3185
        %v3236 = vadd.f32 %v2935, %v3186
        %v3237 = vadd.f32 %v2936, %v3187
        %v3238 = vadd.f32 %v2937, %v3188
        %v3239 = vadd.f32 %v2938, %v3189
        %v3240 = vadd.f32 %v2939, %v3190
        %v3241 = vadd.f32 %v2940, %v3191
        %v3242 = vadd.f32 %v2941, %v3192
        %v3243 = vadd.f32 %v2942, %v3193
        %v3244 = vadd.f32 %v2943, %v3194
        %v3245 = vadd.f32 %v2944, %v3195
        %v3246 = vadd.f32 %v2945, %v3196
        %v3247 = vadd.f32 %v2946, %v3197
        %v3248 = vadd.f32 %v2947, %v3198
        %v3249 = vadd.f32 %v2948, %v3199
        %v3250 = vadd.f32 %v2949, %v3200
        %v3251 = vadd.f32 %v2950, %v3201
        %v3252 = vadd.f32 %v2951, %v3202
        %v3253 = vadd.f32 %v2952, %v3203
        %v3254 = vadd.f32 %v2953, %v3204
        %v3255 = vadd.f32 %v2954, %v3205
        %v3256 = vadd.f32 %v2955, %v3206
        %v3257 = vadd.f32 %v2956, %v3207
        %v3258 = vadd.f32 %v2957, %v3208
        %v3259 = vadd.f32 %v2958, %v3209
        %v3260 = vadd.f32 %v2959, %v3210
        %v3261 = vadd.f32 %v2960, %v3211
        %v3262 = vadd.f32 %v2961, %v3212
        %v3263 = vadd.f32 %v2962, %v3213
        %v3264 = vadd.f32 %v2963, %v3214
        %v3265 = vadd.f32 %v2964, %v3215
        %v3266 = vadd.f32 %v2965, %v3216
        %v3267 = vadd.f32 %v2966, %v3217
        %v3268 = vadd.f32 %v2967, %v3218
        %v3269 = vadd.f32 %v2968, %v3219
        %v3270 = vadd.f32 %v2969, %v3220
        %v3271 = vadd.f32 %v2970, %v3221
        %v3272 = vadd.f32 %v2971, %v3222
        %v3273 = vld [vmem:[%s3] sm:$0x1]
        %v3274 = vperm.slane %v3273, 0
        %v3275 = vadd.f32 %v3223, %v3274
        %v3276 = vadd.f32 %v3224, %v3274
        %v3277 = vadd.f32 %v3225, %v3274
        %v3278 = vadd.f32 %v3226, %v3274
        %v3279 = vadd.f32 %v3227, %v3274
        %v3280 = vadd.f32 %v3228, %v3274
        %v3281 = vadd.f32 %v3229, %v3274
        %v3282 = vadd.f32 %v3230, %v3274
        %v3283 = vadd.f32 %v3231, %v3274
        %v3284 = vadd.f32 %v3232, %v3274
        %v3285 = vadd.f32 %v3233, %v3274
        %v3286 = vadd.f32 %v3234, %v3274
        %v3287 = vadd.f32 %v3235, %v3274
        %v3288 = vadd.f32 %v3236, %v3274
        %v3289 = vadd.f32 %v3237, %v3274
        %v3290 = vadd.f32 %v3238, %v3274
        %v3291 = vadd.f32 %v3239, %v3274
        %v3292 = vadd.f32 %v3240, %v3274
        %v3293 = vadd.f32 %v3241, %v3274
        %v3294 = vadd.f32 %v3242, %v3274
        %v3295 = vadd.f32 %v3243, %v3274
        %v3296 = vadd.f32 %v3244, %v3274
        %v3297 = vadd.f32 %v3245, %v3274
        %v3298 = vadd.f32 %v3246, %v3274
        %v3299 = vadd.f32 %v3247, %v3274
        %v3300 = vadd.f32 %v3248, %v3274
        %v3301 = vadd.f32 %v3249, %v3274
        %v3302 = vadd.f32 %v3250, %v3274
        %v3303 = vadd.f32 %v3251, %v3274
        %v3304 = vadd.f32 %v3252, %v3274
        %v3305 = vadd.f32 %v3253, %v3274
        %v3306 = vadd.f32 %v3254, %v3274
        %v3307 = vadd.f32 %v3255, %v3274
        %v3308 = vadd.f32 %v3256, %v3274
        %v3309 = vadd.f32 %v3257, %v3274
        %v3310 = vadd.f32 %v3258, %v3274
        %v3311 = vadd.f32 %v3259, %v3274
        %v3312 = vadd.f32 %v3260, %v3274
        %v3313 = vadd.f32 %v3261, %v3274
        %v3314 = vadd.f32 %v3262, %v3274
        %v3315 = vadd.f32 %v3263, %v3274
        %v3316 = vadd.f32 %v3264, %v3274
        %v3317 = vadd.f32 %v3265, %v3274
        %v3318 = vadd.f32 %v3266, %v3274
        %v3319 = vadd.f32 %v3267, %v3274
        %v3320 = vadd.f32 %v3268, %v3274
        %v3321 = vadd.f32 %v3269, %v3274
        %v3322 = vadd.f32 %v3270, %v3274
        %v3323 = vadd.f32 %v3271, %v3274
        %v3324 = vadd.f32 %v3272, %v3274
        %v3325 = vmul.f32 %v3275, 0.5
        %v3326 = vmul.f32 %v3276, 0.5
        %v3327 = vmul.f32 %v3277, 0.5
        %v3328 = vmul.f32 %v3278, 0.5
        %v3329 = vmul.f32 %v3279, 0.5
        %v3330 = vmul.f32 %v3280, 0.5
        %v3331 = vmul.f32 %v3281, 0.5
        %v3332 = vmul.f32 %v3282, 0.5
        %v3333 = vmul.f32 %v3283, 0.5
        %v3334 = vmul.f32 %v3284, 0.5
        %v3335 = vmul.f32 %v3285, 0.5
        %v3336 = vmul.f32 %v3286, 0.5
        %v3337 = vmul.f32 %v3287, 0.5
        %v3338 = vmul.f32 %v3288, 0.5
        %v3339 = vmul.f32 %v3289, 0.5
        %v3340 = vmul.f32 %v3290, 0.5
        %v3341 = vmul.f32 %v3291, 0.5
        %v3342 = vmul.f32 %v3292, 0.5
        %v3343 = vmul.f32 %v3293, 0.5
        %v3344 = vmul.f32 %v3294, 0.5
        %v3345 = vmul.f32 %v3295, 0.5
        %v3346 = vmul.f32 %v3296, 0.5
        %v3347 = vmul.f32 %v3297, 0.5
        %v3348 = vmul.f32 %v3298, 0.5
        %v3349 = vmul.f32 %v3299, 0.5
        %v3350 = vmul.f32 %v3300, 0.5
        %v3351 = vmul.f32 %v3301, 0.5
        %v3352 = vmul.f32 %v3302, 0.5
        %v3353 = vmul.f32 %v3303, 0.5
        %v3354 = vmul.f32 %v3304, 0.5
        %v3355 = vmul.f32 %v3305, 0.5
        %v3356 = vmul.f32 %v3306, 0.5
        %v3357 = vmul.f32 %v3307, 0.5
        %v3358 = vmul.f32 %v3308, 0.5
        %v3359 = vmul.f32 %v3309, 0.5
        %v3360 = vmul.f32 %v3310, 0.5
        %v3361 = vmul.f32 %v3311, 0.5
        %v3362 = vmul.f32 %v3312, 0.5
        %v3363 = vmul.f32 %v3313, 0.5
        %v3364 = vmul.f32 %v3314, 0.5
        %v3365 = vmul.f32 %v3315, 0.5
        %v3366 = vmul.f32 %v3316, 0.5
        %v3367 = vmul.f32 %v3317, 0.5
        %v3368 = vmul.f32 %v3318, 0.5
        %v3369 = vmul.f32 %v3319, 0.5
        %v3370 = vmul.f32 %v3320, 0.5
        %v3371 = vmul.f32 %v3321, 0.5
        %v3372 = vmul.f32 %v3322, 0.5
        %v3373 = vmul.f32 %v3323, 0.5
        %v3374 = vmul.f32 %v3324, 0.5
        %v3375 = vmul.f32 %v3275, 0.70710677
        %v3376 = vmul.f32 %v3276, 0.70710677
        %v3377 = vmul.f32 %v3277, 0.70710677
        %v3378 = vmul.f32 %v3278, 0.70710677
        %v3379 = vmul.f32 %v3279, 0.70710677
        %v3380 = vmul.f32 %v3280, 0.70710677
        %v3381 = vmul.f32 %v3281, 0.70710677
        %v3382 = vmul.f32 %v3282, 0.70710677
        %v3383 = vmul.f32 %v3283, 0.70710677
        %v3384 = vmul.f32 %v3284, 0.70710677
        %v3385 = vmul.f32 %v3285, 0.70710677
        %v3386 = vmul.f32 %v3286, 0.70710677
        %v3387 = vmul.f32 %v3287, 0.70710677
        %v3388 = vmul.f32 %v3288, 0.70710677
        %v3389 = vmul.f32 %v3289, 0.70710677
        %v3390 = vmul.f32 %v3290, 0.70710677
        %v3391 = vmul.f32 %v3291, 0.70710677
        %v3392 = vmul.f32 %v3292, 0.70710677
        %v3393 = vmul.f32 %v3293, 0.70710677
        %v3394 = vmul.f32 %v3294, 0.70710677
        %v3395 = vmul.f32 %v3295, 0.70710677
        %v3396 = vmul.f32 %v3296, 0.70710677
        %v3397 = vmul.f32 %v3297, 0.70710677
        %v3398 = vmul.f32 %v3298, 0.70710677
        %v3399 = vmul.f32 %v3299, 0.70710677
        %v3400 = vmul.f32 %v3300, 0.70710677
        %v3401 = vmul.f32 %v3301, 0.70710677
        %v3402 = vmul.f32 %v3302, 0.70710677
        %v3403 = vmul.f32 %v3303, 0.70710677
        %v3404 = vmul.f32 %v3304, 0.70710677
        %v3405 = vmul.f32 %v3305, 0.70710677
        %v3406 = vmul.f32 %v3306, 0.70710677
        %v3407 = vmul.f32 %v3307, 0.70710677
        %v3408 = vmul.f32 %v3308, 0.70710677
        %v3409 = vmul.f32 %v3309, 0.70710677
        %v3410 = vmul.f32 %v3310, 0.70710677
        %v3411 = vmul.f32 %v3311, 0.70710677
        %v3412 = vmul.f32 %v3312, 0.70710677
        %v3413 = vmul.f32 %v3313, 0.70710677
        %v3414 = vmul.f32 %v3314, 0.70710677
        %v3415 = vmul.f32 %v3315, 0.70710677
        %v3416 = vmul.f32 %v3316, 0.70710677
        %v3417 = vmul.f32 %v3317, 0.70710677
        %v3418 = vmul.f32 %v3318, 0.70710677
        %v3419 = vmul.f32 %v3319, 0.70710677
        %v3420 = vmul.f32 %v3320, 0.70710677
        %v3421 = vmul.f32 %v3321, 0.70710677
        %v3422 = vmul.f32 %v3322, 0.70710677
        %v3423 = vmul.f32 %v3323, 0.70710677
        %v3424 = vmul.f32 %v3324, 0.70710677
        %v3425 = vmul.f32 %v3375, %v3375
        %v3426 = vmin.f32 16.0, %v3425
        %v3427 = vmul.f32 %v3426, 2.1237322e-06
        %v3428 = vadd.f32 %v3427, 0.00028619796
        %v3429 = vmul.f32 %v3426, %v3428
        %v3430 = vadd.f32 %v3429, 0.0036580483
        %v3431 = vmul.f32 %v3426, %v3430
        %v3432 = vadd.f32 %v3431, 0.05243302
        %v3433 = vmul.f32 %v3426, %v3432
        %v3434 = vadd.f32 %v3433, 0.18741608
        %v3435 = vmul.f32 %v3426, %v3434
        %v3436 = vadd.f32 %v3435, 1.1283791
        %v3437 = vmul.f32 %v3375, %v3436
        %v3438 = vmul.f32 %v3426, 3.8918573e-05
        %v3439 = vadd.f32 %v3438, 0.001143296
        %v3440 = vmul.f32 %v3426, %v3439
        %v3441 = vadd.f32 %v3440, 0.014752088
        %v3442 = vmul.f32 %v3426, %v3441
        %v3443 = vadd.f32 %v3442, 0.112945676
        %v3444 = vmul.f32 %v3426, %v3443
        %v3445 = vadd.f32 %v3444, 0.4994258
        %v3446 = vmul.f32 %v3426, %v3445
        %v3447 = vadd.f32 %v3446, 1.0
        %v3448 = vrcp.pop %v3447
        %v3449 = vmul.f32 %v3447, %v3448
        %v3450 = vsub.f32 1.0, %v3449
        %v3451 = vmul.f32 %v3448, %v3450
        %v3452 = vadd.f32 %v3448, %v3451
        %vm3453 = vweird.f32 %v3447
        %vm3454 = vweird.f32 %v3448
        %vm3455 = vmor %vm3453, %vm3454
        %v3456 = vsel %vm3455, %v3448, %v3452
        %v3457 = vand.u32 2147483647, %v3447
        %vm3458 = vcmp.eq.f32.partialorder %v3457, 8.507059e+37
        %v3459 = vand.u32 %v3447, 2147483648
        %v3460 = vor.u32 1.1754944e-38, %v3459
        %v3461 = vsel %vm3458, %v3460, %v3456
        %v3462 = vmul.f32 %v3437, %v3461
        %v3463 = vmin.f32 %v3462, 1.0
        %v3464 = vmax.f32 %v3463, -1.0
        %v3465 = vmul.f32 %v3376, %v3376
        %v3466 = vmin.f32 16.0, %v3465
        %v3467 = vmul.f32 %v3466, 2.1237322e-06
        %v3468 = vadd.f32 %v3467, 0.00028619796
        %v3469 = vmul.f32 %v3466, %v3468
        %v3470 = vadd.f32 %v3469, 0.0036580483
        %v3471 = vmul.f32 %v3466, %v3470
        %v3472 = vadd.f32 %v3471, 0.05243302
        %v3473 = vmul.f32 %v3466, %v3472
        %v3474 = vadd.f32 %v3473, 0.18741608
        %v3475 = vmul.f32 %v3466, %v3474
        %v3476 = vadd.f32 %v3475, 1.1283791
        %v3477 = vmul.f32 %v3376, %v3476
        %v3478 = vmul.f32 %v3466, 3.8918573e-05
        %v3479 = vadd.f32 %v3478, 0.001143296
        %v3480 = vmul.f32 %v3466, %v3479
        %v3481 = vadd.f32 %v3480, 0.014752088
        %v3482 = vmul.f32 %v3466, %v3481
        %v3483 = vadd.f32 %v3482, 0.112945676
        %v3484 = vmul.f32 %v3466, %v3483
        %v3485 = vadd.f32 %v3484, 0.4994258
        %v3486 = vmul.f32 %v3466, %v3485
        %v3487 = vadd.f32 %v3486, 1.0
        %v3488 = vrcp.pop %v3487
        %v3489 = vmul.f32 %v3487, %v3488
        %v3490 = vsub.f32 1.0, %v3489
        %v3491 = vmul.f32 %v3488, %v3490
        %v3492 = vadd.f32 %v3488, %v3491
        %vm3493 = vweird.f32 %v3487
        %vm3494 = vweird.f32 %v3488
        %vm3495 = vmor %vm3493, %vm3494
        %v3496 = vsel %vm3495, %v3488, %v3492
        %v3497 = vand.u32 2147483647, %v3487
        %vm3498 = vcmp.eq.f32.partialorder %v3497, 8.507059e+37
        %v3499 = vand.u32 %v3487, 2147483648
        %v3500 = vor.u32 1.1754944e-38, %v3499
        %v3501 = vsel %vm3498, %v3500, %v3496
        %v3502 = vmul.f32 %v3477, %v3501
        %v3503 = vmin.f32 %v3502, 1.0
        %v3504 = vmax.f32 %v3503, -1.0
        %v3505 = vmul.f32 %v3377, %v3377
        %v3506 = vmin.f32 16.0, %v3505
        %v3507 = vmul.f32 %v3506, 2.1237322e-06
        %v3508 = vadd.f32 %v3507, 0.00028619796
        %v3509 = vmul.f32 %v3506, %v3508
        %v3510 = vadd.f32 %v3509, 0.0036580483
        %v3511 = vmul.f32 %v3506, %v3510
        %v3512 = vadd.f32 %v3511, 0.05243302
        %v3513 = vmul.f32 %v3506, %v3512
        %v3514 = vadd.f32 %v3513, 0.18741608
        %v3515 = vmul.f32 %v3506, %v3514
        %v3516 = vadd.f32 %v3515, 1.1283791
        %v3517 = vmul.f32 %v3377, %v3516
        %v3518 = vmul.f32 %v3506, 3.8918573e-05
        %v3519 = vadd.f32 %v3518, 0.001143296
        %v3520 = vmul.f32 %v3506, %v3519
        %v3521 = vadd.f32 %v3520, 0.014752088
        %v3522 = vmul.f32 %v3506, %v3521
        %v3523 = vadd.f32 %v3522, 0.112945676
        %v3524 = vmul.f32 %v3506, %v3523
        %v3525 = vadd.f32 %v3524, 0.4994258
        %v3526 = vmul.f32 %v3506, %v3525
        %v3527 = vadd.f32 %v3526, 1.0
        %v3528 = vrcp.pop %v3527
        %v3529 = vmul.f32 %v3527, %v3528
        %v3530 = vsub.f32 1.0, %v3529
        %v3531 = vmul.f32 %v3528, %v3530
        %v3532 = vadd.f32 %v3528, %v3531
        %vm3533 = vweird.f32 %v3527
        %vm3534 = vweird.f32 %v3528
        %vm3535 = vmor %vm3533, %vm3534
        %v3536 = vsel %vm3535, %v3528, %v3532
        %v3537 = vand.u32 2147483647, %v3527
        %vm3538 = vcmp.eq.f32.partialorder %v3537, 8.507059e+37
        %v3539 = vand.u32 %v3527, 2147483648
        %v3540 = vor.u32 1.1754944e-38, %v3539
        %v3541 = vsel %vm3538, %v3540, %v3536
        %v3542 = vmul.f32 %v3517, %v3541
        %v3543 = vmin.f32 %v3542, 1.0
        %v3544 = vmax.f32 %v3543, -1.0
        %v3545 = vmul.f32 %v3378, %v3378
        %v3546 = vmin.f32 16.0, %v3545
        %v3547 = vmul.f32 %v3546, 2.1237322e-06
        %v3548 = vadd.f32 %v3547, 0.00028619796
        %v3549 = vmul.f32 %v3546, %v3548
        %v3550 = vadd.f32 %v3549, 0.0036580483
        %v3551 = vmul.f32 %v3546, %v3550
        %v3552 = vadd.f32 %v3551, 0.05243302
        %v3553 = vmul.f32 %v3546, %v3552
        %v3554 = vadd.f32 %v3553, 0.18741608
        %v3555 = vmul.f32 %v3546, %v3554
        %v3556 = vadd.f32 %v3555, 1.1283791
        %v3557 = vmul.f32 %v3378, %v3556
        %v3558 = vmul.f32 %v3546, 3.8918573e-05
        %v3559 = vadd.f32 %v3558, 0.001143296
        %v3560 = vmul.f32 %v3546, %v3559
        %v3561 = vadd.f32 %v3560, 0.014752088
        %v3562 = vmul.f32 %v3546, %v3561
        %v3563 = vadd.f32 %v3562, 0.112945676
        %v3564 = vmul.f32 %v3546, %v3563
        %v3565 = vadd.f32 %v3564, 0.4994258
        %v3566 = vmul.f32 %v3546, %v3565
        %v3567 = vadd.f32 %v3566, 1.0
        %v3568 = vrcp.pop %v3567
        %v3569 = vmul.f32 %v3567, %v3568
        %v3570 = vsub.f32 1.0, %v3569
        %v3571 = vmul.f32 %v3568, %v3570
        %v3572 = vadd.f32 %v3568, %v3571
        %vm3573 = vweird.f32 %v3567
        %vm3574 = vweird.f32 %v3568
        %vm3575 = vmor %vm3573, %vm3574
        %v3576 = vsel %vm3575, %v3568, %v3572
        %v3577 = vand.u32 2147483647, %v3567
        %vm3578 = vcmp.eq.f32.partialorder %v3577, 8.507059e+37
        %v3579 = vand.u32 %v3567, 2147483648
        %v3580 = vor.u32 1.1754944e-38, %v3579
        %v3581 = vsel %vm3578, %v3580, %v3576
        %v3582 = vmul.f32 %v3557, %v3581
        %v3583 = vmin.f32 %v3582, 1.0
        %v3584 = vmax.f32 %v3583, -1.0
        %v3585 = vmul.f32 %v3379, %v3379
        %v3586 = vmin.f32 16.0, %v3585
        %v3587 = vmul.f32 %v3586, 2.1237322e-06
        %v3588 = vadd.f32 %v3587, 0.00028619796
        %v3589 = vmul.f32 %v3586, %v3588
        %v3590 = vadd.f32 %v3589, 0.0036580483
        %v3591 = vmul.f32 %v3586, %v3590
        %v3592 = vadd.f32 %v3591, 0.05243302
        %v3593 = vmul.f32 %v3586, %v3592
        %v3594 = vadd.f32 %v3593, 0.18741608
        %v3595 = vmul.f32 %v3586, %v3594
        %v3596 = vadd.f32 %v3595, 1.1283791
        %v3597 = vmul.f32 %v3379, %v3596
        %v3598 = vmul.f32 %v3586, 3.8918573e-05
        %v3599 = vadd.f32 %v3598, 0.001143296
        %v3600 = vmul.f32 %v3586, %v3599
        %v3601 = vadd.f32 %v3600, 0.014752088
        %v3602 = vmul.f32 %v3586, %v3601
        %v3603 = vadd.f32 %v3602, 0.112945676
        %v3604 = vmul.f32 %v3586, %v3603
        %v3605 = vadd.f32 %v3604, 0.4994258
        %v3606 = vmul.f32 %v3586, %v3605
        %v3607 = vadd.f32 %v3606, 1.0
        %v3608 = vrcp.pop %v3607
        %v3609 = vmul.f32 %v3607, %v3608
        %v3610 = vsub.f32 1.0, %v3609
        %v3611 = vmul.f32 %v3608, %v3610
        %v3612 = vadd.f32 %v3608, %v3611
        %vm3613 = vweird.f32 %v3607
        %vm3614 = vweird.f32 %v3608
        %vm3615 = vmor %vm3613, %vm3614
        %v3616 = vsel %vm3615, %v3608, %v3612
        %v3617 = vand.u32 2147483647, %v3607
        %vm3618 = vcmp.eq.f32.partialorder %v3617, 8.507059e+37
        %v3619 = vand.u32 %v3607, 2147483648
        %v3620 = vor.u32 1.1754944e-38, %v3619
        %v3621 = vsel %vm3618, %v3620, %v3616
        %v3622 = vmul.f32 %v3597, %v3621
        %v3623 = vmin.f32 %v3622, 1.0
        %v3624 = vmax.f32 %v3623, -1.0
        %v3625 = vmul.f32 %v3380, %v3380
        %v3626 = vmin.f32 16.0, %v3625
        %v3627 = vmul.f32 %v3626, 2.1237322e-06
        %v3628 = vadd.f32 %v3627, 0.00028619796
        %v3629 = vmul.f32 %v3626, %v3628
        %v3630 = vadd.f32 %v3629, 0.0036580483
        %v3631 = vmul.f32 %v3626, %v3630
        %v3632 = vadd.f32 %v3631, 0.05243302
        %v3633 = vmul.f32 %v3626, %v3632
        %v3634 = vadd.f32 %v3633, 0.18741608
        %v3635 = vmul.f32 %v3626, %v3634
        %v3636 = vadd.f32 %v3635, 1.1283791
        %v3637 = vmul.f32 %v3380, %v3636
        %v3638 = vmul.f32 %v3626, 3.8918573e-05
        %v3639 = vadd.f32 %v3638, 0.001143296
        %v3640 = vmul.f32 %v3626, %v3639
        %v3641 = vadd.f32 %v3640, 0.014752088
        %v3642 = vmul.f32 %v3626, %v3641
        %v3643 = vadd.f32 %v3642, 0.112945676
        %v3644 = vmul.f32 %v3626, %v3643
        %v3645 = vadd.f32 %v3644, 0.4994258
        %v3646 = vmul.f32 %v3626, %v3645
        %v3647 = vadd.f32 %v3646, 1.0
        %v3648 = vrcp.pop %v3647
        %v3649 = vmul.f32 %v3647, %v3648
        %v3650 = vsub.f32 1.0, %v3649
        %v3651 = vmul.f32 %v3648, %v3650
        %v3652 = vadd.f32 %v3648, %v3651
        %vm3653 = vweird.f32 %v3647
        %vm3654 = vweird.f32 %v3648
        %vm3655 = vmor %vm3653, %vm3654
        %v3656 = vsel %vm3655, %v3648, %v3652
        %v3657 = vand.u32 2147483647, %v3647
        %vm3658 = vcmp.eq.f32.partialorder %v3657, 8.507059e+37
        %v3659 = vand.u32 %v3647, 2147483648
        %v3660 = vor.u32 1.1754944e-38, %v3659
        %v3661 = vsel %vm3658, %v3660, %v3656
        %v3662 = vmul.f32 %v3637, %v3661
        %v3663 = vmin.f32 %v3662, 1.0
        %v3664 = vmax.f32 %v3663, -1.0
        %v3665 = vmul.f32 %v3381, %v3381
        %v3666 = vmin.f32 16.0, %v3665
        %v3667 = vmul.f32 %v3666, 2.1237322e-06
        %v3668 = vadd.f32 %v3667, 0.00028619796
        %v3669 = vmul.f32 %v3666, %v3668
        %v3670 = vadd.f32 %v3669, 0.0036580483
        %v3671 = vmul.f32 %v3666, %v3670
        %v3672 = vadd.f32 %v3671, 0.05243302
        %v3673 = vmul.f32 %v3666, %v3672
        %v3674 = vadd.f32 %v3673, 0.18741608
        %v3675 = vmul.f32 %v3666, %v3674
        %v3676 = vadd.f32 %v3675, 1.1283791
        %v3677 = vmul.f32 %v3381, %v3676
        %v3678 = vmul.f32 %v3666, 3.8918573e-05
        %v3679 = vadd.f32 %v3678, 0.001143296
        %v3680 = vmul.f32 %v3666, %v3679
        %v3681 = vadd.f32 %v3680, 0.014752088
        %v3682 = vmul.f32 %v3666, %v3681
        %v3683 = vadd.f32 %v3682, 0.112945676
        %v3684 = vmul.f32 %v3666, %v3683
        %v3685 = vadd.f32 %v3684, 0.4994258
        %v3686 = vmul.f32 %v3666, %v3685
        %v3687 = vadd.f32 %v3686, 1.0
        %v3688 = vrcp.pop %v3687
        %v3689 = vmul.f32 %v3687, %v3688
        %v3690 = vsub.f32 1.0, %v3689
        %v3691 = vmul.f32 %v3688, %v3690
        %v3692 = vadd.f32 %v3688, %v3691
        %vm3693 = vweird.f32 %v3687
        %vm3694 = vweird.f32 %v3688
        %vm3695 = vmor %vm3693, %vm3694
        %v3696 = vsel %vm3695, %v3688, %v3692
        %v3697 = vand.u32 2147483647, %v3687
        %vm3698 = vcmp.eq.f32.partialorder %v3697, 8.507059e+37
        %v3699 = vand.u32 %v3687, 2147483648
        %v3700 = vor.u32 1.1754944e-38, %v3699
        %v3701 = vsel %vm3698, %v3700, %v3696
        %v3702 = vmul.f32 %v3677, %v3701
        %v3703 = vmin.f32 %v3702, 1.0
        %v3704 = vmax.f32 %v3703, -1.0
        %v3705 = vmul.f32 %v3382, %v3382
        %v3706 = vmin.f32 16.0, %v3705
        %v3707 = vmul.f32 %v3706, 2.1237322e-06
        %v3708 = vadd.f32 %v3707, 0.00028619796
        %v3709 = vmul.f32 %v3706, %v3708
        %v3710 = vadd.f32 %v3709, 0.0036580483
        %v3711 = vmul.f32 %v3706, %v3710
        %v3712 = vadd.f32 %v3711, 0.05243302
        %v3713 = vmul.f32 %v3706, %v3712
        %v3714 = vadd.f32 %v3713, 0.18741608
        %v3715 = vmul.f32 %v3706, %v3714
        %v3716 = vadd.f32 %v3715, 1.1283791
        %v3717 = vmul.f32 %v3382, %v3716
        %v3718 = vmul.f32 %v3706, 3.8918573e-05
        %v3719 = vadd.f32 %v3718, 0.001143296
        %v3720 = vmul.f32 %v3706, %v3719
        %v3721 = vadd.f32 %v3720, 0.014752088
        %v3722 = vmul.f32 %v3706, %v3721
        %v3723 = vadd.f32 %v3722, 0.112945676
        %v3724 = vmul.f32 %v3706, %v3723
        %v3725 = vadd.f32 %v3724, 0.4994258
        %v3726 = vmul.f32 %v3706, %v3725
        %v3727 = vadd.f32 %v3726, 1.0
        %v3728 = vrcp.pop %v3727
        %v3729 = vmul.f32 %v3727, %v3728
        %v3730 = vsub.f32 1.0, %v3729
        %v3731 = vmul.f32 %v3728, %v3730
        %v3732 = vadd.f32 %v3728, %v3731
        %vm3733 = vweird.f32 %v3727
        %vm3734 = vweird.f32 %v3728
        %vm3735 = vmor %vm3733, %vm3734
        %v3736 = vsel %vm3735, %v3728, %v3732
        %v3737 = vand.u32 2147483647, %v3727
        %vm3738 = vcmp.eq.f32.partialorder %v3737, 8.507059e+37
        %v3739 = vand.u32 %v3727, 2147483648
        %v3740 = vor.u32 1.1754944e-38, %v3739
        %v3741 = vsel %vm3738, %v3740, %v3736
        %v3742 = vmul.f32 %v3717, %v3741
        %v3743 = vmin.f32 %v3742, 1.0
        %v3744 = vmax.f32 %v3743, -1.0
        %v3745 = vmul.f32 %v3383, %v3383
        %v3746 = vmin.f32 16.0, %v3745
        %v3747 = vmul.f32 %v3746, 2.1237322e-06
        %v3748 = vadd.f32 %v3747, 0.00028619796
        %v3749 = vmul.f32 %v3746, %v3748
        %v3750 = vadd.f32 %v3749, 0.0036580483
        %v3751 = vmul.f32 %v3746, %v3750
        %v3752 = vadd.f32 %v3751, 0.05243302
        %v3753 = vmul.f32 %v3746, %v3752
        %v3754 = vadd.f32 %v3753, 0.18741608
        %v3755 = vmul.f32 %v3746, %v3754
        %v3756 = vadd.f32 %v3755, 1.1283791
        %v3757 = vmul.f32 %v3383, %v3756
        %v3758 = vmul.f32 %v3746, 3.8918573e-05
        %v3759 = vadd.f32 %v3758, 0.001143296
        %v3760 = vmul.f32 %v3746, %v3759
        %v3761 = vadd.f32 %v3760, 0.014752088
        %v3762 = vmul.f32 %v3746, %v3761
        %v3763 = vadd.f32 %v3762, 0.112945676
        %v3764 = vmul.f32 %v3746, %v3763
        %v3765 = vadd.f32 %v3764, 0.4994258
        %v3766 = vmul.f32 %v3746, %v3765
        %v3767 = vadd.f32 %v3766, 1.0
        %v3768 = vrcp.pop %v3767
        %v3769 = vmul.f32 %v3767, %v3768
        %v3770 = vsub.f32 1.0, %v3769
        %v3771 = vmul.f32 %v3768, %v3770
        %v3772 = vadd.f32 %v3768, %v3771
        %vm3773 = vweird.f32 %v3767
        %vm3774 = vweird.f32 %v3768
        %vm3775 = vmor %vm3773, %vm3774
        %v3776 = vsel %vm3775, %v3768, %v3772
        %v3777 = vand.u32 2147483647, %v3767
        %vm3778 = vcmp.eq.f32.partialorder %v3777, 8.507059e+37
        %v3779 = vand.u32 %v3767, 2147483648
        %v3780 = vor.u32 1.1754944e-38, %v3779
        %v3781 = vsel %vm3778, %v3780, %v3776
        %v3782 = vmul.f32 %v3757, %v3781
        %v3783 = vmin.f32 %v3782, 1.0
        %v3784 = vmax.f32 %v3783, -1.0
        %v3785 = vmul.f32 %v3384, %v3384
        %v3786 = vmin.f32 16.0, %v3785
        %v3787 = vmul.f32 %v3786, 2.1237322e-06
        %v3788 = vadd.f32 %v3787, 0.00028619796
        %v3789 = vmul.f32 %v3786, %v3788
        %v3790 = vadd.f32 %v3789, 0.0036580483
        %v3791 = vmul.f32 %v3786, %v3790
        %v3792 = vadd.f32 %v3791, 0.05243302
        %v3793 = vmul.f32 %v3786, %v3792
        %v3794 = vadd.f32 %v3793, 0.18741608
        %v3795 = vmul.f32 %v3786, %v3794
        %v3796 = vadd.f32 %v3795, 1.1283791
        %v3797 = vmul.f32 %v3384, %v3796
        %v3798 = vmul.f32 %v3786, 3.8918573e-05
        %v3799 = vadd.f32 %v3798, 0.001143296
        %v3800 = vmul.f32 %v3786, %v3799
        %v3801 = vadd.f32 %v3800, 0.014752088
        %v3802 = vmul.f32 %v3786, %v3801
        %v3803 = vadd.f32 %v3802, 0.112945676
        %v3804 = vmul.f32 %v3786, %v3803
        %v3805 = vadd.f32 %v3804, 0.4994258
        %v3806 = vmul.f32 %v3786, %v3805
        %v3807 = vadd.f32 %v3806, 1.0
        %v3808 = vrcp.pop %v3807
        %v3809 = vmul.f32 %v3807, %v3808
        %v3810 = vsub.f32 1.0, %v3809
        %v3811 = vmul.f32 %v3808, %v3810
        %v3812 = vadd.f32 %v3808, %v3811
        %vm3813 = vweird.f32 %v3807
        %vm3814 = vweird.f32 %v3808
        %vm3815 = vmor %vm3813, %vm3814
        %v3816 = vsel %vm3815, %v3808, %v3812
        %v3817 = vand.u32 2147483647, %v3807
        %vm3818 = vcmp.eq.f32.partialorder %v3817, 8.507059e+37
        %v3819 = vand.u32 %v3807, 2147483648
        %v3820 = vor.u32 1.1754944e-38, %v3819
        %v3821 = vsel %vm3818, %v3820, %v3816
        %v3822 = vmul.f32 %v3797, %v3821
        %v3823 = vmin.f32 %v3822, 1.0
        %v3824 = vmax.f32 %v3823, -1.0
        %v3825 = vmul.f32 %v3385, %v3385
        %v3826 = vmin.f32 16.0, %v3825
        %v3827 = vmul.f32 %v3826, 2.1237322e-06
        %v3828 = vadd.f32 %v3827, 0.00028619796
        %v3829 = vmul.f32 %v3826, %v3828
        %v3830 = vadd.f32 %v3829, 0.0036580483
        %v3831 = vmul.f32 %v3826, %v3830
        %v3832 = vadd.f32 %v3831, 0.05243302
        %v3833 = vmul.f32 %v3826, %v3832
        %v3834 = vadd.f32 %v3833, 0.18741608
        %v3835 = vmul.f32 %v3826, %v3834
        %v3836 = vadd.f32 %v3835, 1.1283791
        %v3837 = vmul.f32 %v3385, %v3836
        %v3838 = vmul.f32 %v3826, 3.8918573e-05
        %v3839 = vadd.f32 %v3838, 0.001143296
        %v3840 = vmul.f32 %v3826, %v3839
        %v3841 = vadd.f32 %v3840, 0.014752088
        %v3842 = vmul.f32 %v3826, %v3841
        %v3843 = vadd.f32 %v3842, 0.112945676
        %v3844 = vmul.f32 %v3826, %v3843
        %v3845 = vadd.f32 %v3844, 0.4994258
        %v3846 = vmul.f32 %v3826, %v3845
        %v3847 = vadd.f32 %v3846, 1.0
        %v3848 = vrcp.pop %v3847
        %v3849 = vmul.f32 %v3847, %v3848
        %v3850 = vsub.f32 1.0, %v3849
        %v3851 = vmul.f32 %v3848, %v3850
        %v3852 = vadd.f32 %v3848, %v3851
        %vm3853 = vweird.f32 %v3847
        %vm3854 = vweird.f32 %v3848
        %vm3855 = vmor %vm3853, %vm3854
        %v3856 = vsel %vm3855, %v3848, %v3852
        %v3857 = vand.u32 2147483647, %v3847
        %vm3858 = vcmp.eq.f32.partialorder %v3857, 8.507059e+37
        %v3859 = vand.u32 %v3847, 2147483648
        %v3860 = vor.u32 1.1754944e-38, %v3859
        %v3861 = vsel %vm3858, %v3860, %v3856
        %v3862 = vmul.f32 %v3837, %v3861
        %v3863 = vmin.f32 %v3862, 1.0
        %v3864 = vmax.f32 %v3863, -1.0
        %v3865 = vmul.f32 %v3386, %v3386
        %v3866 = vmin.f32 16.0, %v3865
        %v3867 = vmul.f32 %v3866, 2.1237322e-06
        %v3868 = vadd.f32 %v3867, 0.00028619796
        %v3869 = vmul.f32 %v3866, %v3868
        %v3870 = vadd.f32 %v3869, 0.0036580483
        %v3871 = vmul.f32 %v3866, %v3870
        %v3872 = vadd.f32 %v3871, 0.05243302
        %v3873 = vmul.f32 %v3866, %v3872
        %v3874 = vadd.f32 %v3873, 0.18741608
        %v3875 = vmul.f32 %v3866, %v3874
        %v3876 = vadd.f32 %v3875, 1.1283791
        %v3877 = vmul.f32 %v3386, %v3876
        %v3878 = vmul.f32 %v3866, 3.8918573e-05
        %v3879 = vadd.f32 %v3878, 0.001143296
        %v3880 = vmul.f32 %v3866, %v3879
        %v3881 = vadd.f32 %v3880, 0.014752088
        %v3882 = vmul.f32 %v3866, %v3881
        %v3883 = vadd.f32 %v3882, 0.112945676
        %v3884 = vmul.f32 %v3866, %v3883
        %v3885 = vadd.f32 %v3884, 0.4994258
        %v3886 = vmul.f32 %v3866, %v3885
        %v3887 = vadd.f32 %v3886, 1.0
        %v3888 = vrcp.pop %v3887
        %v3889 = vmul.f32 %v3887, %v3888
        %v3890 = vsub.f32 1.0, %v3889
        %v3891 = vmul.f32 %v3888, %v3890
        %v3892 = vadd.f32 %v3888, %v3891
        %vm3893 = vweird.f32 %v3887
        %vm3894 = vweird.f32 %v3888
        %vm3895 = vmor %vm3893, %vm3894
        %v3896 = vsel %vm3895, %v3888, %v3892
        %v3897 = vand.u32 2147483647, %v3887
        %vm3898 = vcmp.eq.f32.partialorder %v3897, 8.507059e+37
        %v3899 = vand.u32 %v3887, 2147483648
        %v3900 = vor.u32 1.1754944e-38, %v3899
        %v3901 = vsel %vm3898, %v3900, %v3896
        %v3902 = vmul.f32 %v3877, %v3901
        %v3903 = vmin.f32 %v3902, 1.0
        %v3904 = vmax.f32 %v3903, -1.0
        %v3905 = vmul.f32 %v3387, %v3387
        %v3906 = vmin.f32 16.0, %v3905
        %v3907 = vmul.f32 %v3906, 2.1237322e-06
        %v3908 = vadd.f32 %v3907, 0.00028619796
        %v3909 = vmul.f32 %v3906, %v3908
        %v3910 = vadd.f32 %v3909, 0.0036580483
        %v3911 = vmul.f32 %v3906, %v3910
        %v3912 = vadd.f32 %v3911, 0.05243302
        %v3913 = vmul.f32 %v3906, %v3912
        %v3914 = vadd.f32 %v3913, 0.18741608
        %v3915 = vmul.f32 %v3906, %v3914
        %v3916 = vadd.f32 %v3915, 1.1283791
        %v3917 = vmul.f32 %v3387, %v3916
        %v3918 = vmul.f32 %v3906, 3.8918573e-05
        %v3919 = vadd.f32 %v3918, 0.001143296
        %v3920 = vmul.f32 %v3906, %v3919
        %v3921 = vadd.f32 %v3920, 0.014752088
        %v3922 = vmul.f32 %v3906, %v3921
        %v3923 = vadd.f32 %v3922, 0.112945676
        %v3924 = vmul.f32 %v3906, %v3923
        %v3925 = vadd.f32 %v3924, 0.4994258
        %v3926 = vmul.f32 %v3906, %v3925
        %v3927 = vadd.f32 %v3926, 1.0
        %v3928 = vrcp.pop %v3927
        %v3929 = vmul.f32 %v3927, %v3928
        %v3930 = vsub.f32 1.0, %v3929
        %v3931 = vmul.f32 %v3928, %v3930
        %v3932 = vadd.f32 %v3928, %v3931
        %vm3933 = vweird.f32 %v3927
        %vm3934 = vweird.f32 %v3928
        %vm3935 = vmor %vm3933, %vm3934
        %v3936 = vsel %vm3935, %v3928, %v3932
        %v3937 = vand.u32 2147483647, %v3927
        %vm3938 = vcmp.eq.f32.partialorder %v3937, 8.507059e+37
        %v3939 = vand.u32 %v3927, 2147483648
        %v3940 = vor.u32 1.1754944e-38, %v3939
        %v3941 = vsel %vm3938, %v3940, %v3936
        %v3942 = vmul.f32 %v3917, %v3941
        %v3943 = vmin.f32 %v3942, 1.0
        %v3944 = vmax.f32 %v3943, -1.0
        %v3945 = vmul.f32 %v3388, %v3388
        %v3946 = vmin.f32 16.0, %v3945
        %v3947 = vmul.f32 %v3946, 2.1237322e-06
        %v3948 = vadd.f32 %v3947, 0.00028619796
        %v3949 = vmul.f32 %v3946, %v3948
        %v3950 = vadd.f32 %v3949, 0.0036580483
        %v3951 = vmul.f32 %v3946, %v3950
        %v3952 = vadd.f32 %v3951, 0.05243302
        %v3953 = vmul.f32 %v3946, %v3952
        %v3954 = vadd.f32 %v3953, 0.18741608
        %v3955 = vmul.f32 %v3946, %v3954
        %v3956 = vadd.f32 %v3955, 1.1283791
        %v3957 = vmul.f32 %v3388, %v3956
        %v3958 = vmul.f32 %v3946, 3.8918573e-05
        %v3959 = vadd.f32 %v3958, 0.001143296
        %v3960 = vmul.f32 %v3946, %v3959
        %v3961 = vadd.f32 %v3960, 0.014752088
        %v3962 = vmul.f32 %v3946, %v3961
        %v3963 = vadd.f32 %v3962, 0.112945676
        %v3964 = vmul.f32 %v3946, %v3963
        %v3965 = vadd.f32 %v3964, 0.4994258
        %v3966 = vmul.f32 %v3946, %v3965
        %v3967 = vadd.f32 %v3966, 1.0
        %v3968 = vrcp.pop %v3967
        %v3969 = vmul.f32 %v3967, %v3968
        %v3970 = vsub.f32 1.0, %v3969
        %v3971 = vmul.f32 %v3968, %v3970
        %v3972 = vadd.f32 %v3968, %v3971
        %vm3973 = vweird.f32 %v3967
        %vm3974 = vweird.f32 %v3968
        %vm3975 = vmor %vm3973, %vm3974
        %v3976 = vsel %vm3975, %v3968, %v3972
        %v3977 = vand.u32 2147483647, %v3967
        %vm3978 = vcmp.eq.f32.partialorder %v3977, 8.507059e+37
        %v3979 = vand.u32 %v3967, 2147483648
        %v3980 = vor.u32 1.1754944e-38, %v3979
        %v3981 = vsel %vm3978, %v3980, %v3976
        %v3982 = vmul.f32 %v3957, %v3981
        %v3983 = vmin.f32 %v3982, 1.0
        %v3984 = vmax.f32 %v3983, -1.0
        %v3985 = vmul.f32 %v3389, %v3389
        %v3986 = vmin.f32 16.0, %v3985
        %v3987 = vmul.f32 %v3986, 2.1237322e-06
        %v3988 = vadd.f32 %v3987, 0.00028619796
        %v3989 = vmul.f32 %v3986, %v3988
        %v3990 = vadd.f32 %v3989, 0.0036580483
        %v3991 = vmul.f32 %v3986, %v3990
        %v3992 = vadd.f32 %v3991, 0.05243302
        %v3993 = vmul.f32 %v3986, %v3992
        %v3994 = vadd.f32 %v3993, 0.18741608
        %v3995 = vmul.f32 %v3986, %v3994
        %v3996 = vadd.f32 %v3995, 1.1283791
        %v3997 = vmul.f32 %v3389, %v3996
        %v3998 = vmul.f32 %v3986, 3.8918573e-05
        %v3999 = vadd.f32 %v3998, 0.001143296
        %v4000 = vmul.f32 %v3986, %v3999
        %v4001 = vadd.f32 %v4000, 0.014752088
        %v4002 = vmul.f32 %v3986, %v4001
        %v4003 = vadd.f32 %v4002, 0.112945676
        %v4004 = vmul.f32 %v3986, %v4003
        %v4005 = vadd.f32 %v4004, 0.4994258
        %v4006 = vmul.f32 %v3986, %v4005
        %v4007 = vadd.f32 %v4006, 1.0
        %v4008 = vrcp.pop %v4007
        %v4009 = vmul.f32 %v4007, %v4008
        %v4010 = vsub.f32 1.0, %v4009
        %v4011 = vmul.f32 %v4008, %v4010
        %v4012 = vadd.f32 %v4008, %v4011
        %vm4013 = vweird.f32 %v4007
        %vm4014 = vweird.f32 %v4008
        %vm4015 = vmor %vm4013, %vm4014
        %v4016 = vsel %vm4015, %v4008, %v4012
        %v4017 = vand.u32 2147483647, %v4007
        %vm4018 = vcmp.eq.f32.partialorder %v4017, 8.507059e+37
        %v4019 = vand.u32 %v4007, 2147483648
        %v4020 = vor.u32 1.1754944e-38, %v4019
        %v4021 = vsel %vm4018, %v4020, %v4016
        %v4022 = vmul.f32 %v3997, %v4021
        %v4023 = vmin.f32 %v4022, 1.0
        %v4024 = vmax.f32 %v4023, -1.0
        %v4025 = vmul.f32 %v3390, %v3390
        %v4026 = vmin.f32 16.0, %v4025
        %v4027 = vmul.f32 %v4026, 2.1237322e-06
        %v4028 = vadd.f32 %v4027, 0.00028619796
        %v4029 = vmul.f32 %v4026, %v4028
        %v4030 = vadd.f32 %v4029, 0.0036580483
        %v4031 = vmul.f32 %v4026, %v4030
        %v4032 = vadd.f32 %v4031, 0.05243302
        %v4033 = vmul.f32 %v4026, %v4032
        %v4034 = vadd.f32 %v4033, 0.18741608
        %v4035 = vmul.f32 %v4026, %v4034
        %v4036 = vadd.f32 %v4035, 1.1283791
        %v4037 = vmul.f32 %v3390, %v4036
        %v4038 = vmul.f32 %v4026, 3.8918573e-05
        %v4039 = vadd.f32 %v4038, 0.001143296
        %v4040 = vmul.f32 %v4026, %v4039
        %v4041 = vadd.f32 %v4040, 0.014752088
        %v4042 = vmul.f32 %v4026, %v4041
        %v4043 = vadd.f32 %v4042, 0.112945676
        %v4044 = vmul.f32 %v4026, %v4043
        %v4045 = vadd.f32 %v4044, 0.4994258
        %v4046 = vmul.f32 %v4026, %v4045
        %v4047 = vadd.f32 %v4046, 1.0
        %v4048 = vrcp.pop %v4047
        %v4049 = vmul.f32 %v4047, %v4048
        %v4050 = vsub.f32 1.0, %v4049
        %v4051 = vmul.f32 %v4048, %v4050
        %v4052 = vadd.f32 %v4048, %v4051
        %vm4053 = vweird.f32 %v4047
        %vm4054 = vweird.f32 %v4048
        %vm4055 = vmor %vm4053, %vm4054
        %v4056 = vsel %vm4055, %v4048, %v4052
        %v4057 = vand.u32 2147483647, %v4047
        %vm4058 = vcmp.eq.f32.partialorder %v4057, 8.507059e+37
        %v4059 = vand.u32 %v4047, 2147483648
        %v4060 = vor.u32 1.1754944e-38, %v4059
        %v4061 = vsel %vm4058, %v4060, %v4056
        %v4062 = vmul.f32 %v4037, %v4061
        %v4063 = vmin.f32 %v4062, 1.0
        %v4064 = vmax.f32 %v4063, -1.0
        %v4065 = vmul.f32 %v3391, %v3391
        %v4066 = vmin.f32 16.0, %v4065
        %v4067 = vmul.f32 %v4066, 2.1237322e-06
        %v4068 = vadd.f32 %v4067, 0.00028619796
        %v4069 = vmul.f32 %v4066, %v4068
        %v4070 = vadd.f32 %v4069, 0.0036580483
        %v4071 = vmul.f32 %v4066, %v4070
        %v4072 = vadd.f32 %v4071, 0.05243302
        %v4073 = vmul.f32 %v4066, %v4072
        %v4074 = vadd.f32 %v4073, 0.18741608
        %v4075 = vmul.f32 %v4066, %v4074
        %v4076 = vadd.f32 %v4075, 1.1283791
        %v4077 = vmul.f32 %v3391, %v4076
        %v4078 = vmul.f32 %v4066, 3.8918573e-05
        %v4079 = vadd.f32 %v4078, 0.001143296
        %v4080 = vmul.f32 %v4066, %v4079
        %v4081 = vadd.f32 %v4080, 0.014752088
        %v4082 = vmul.f32 %v4066, %v4081
        %v4083 = vadd.f32 %v4082, 0.112945676
        %v4084 = vmul.f32 %v4066, %v4083
        %v4085 = vadd.f32 %v4084, 0.4994258
        %v4086 = vmul.f32 %v4066, %v4085
        %v4087 = vadd.f32 %v4086, 1.0
        %v4088 = vrcp.pop %v4087
        %v4089 = vmul.f32 %v4087, %v4088
        %v4090 = vsub.f32 1.0, %v4089
        %v4091 = vmul.f32 %v4088, %v4090
        %v4092 = vadd.f32 %v4088, %v4091
        %vm4093 = vweird.f32 %v4087
        %vm4094 = vweird.f32 %v4088
        %vm4095 = vmor %vm4093, %vm4094
        %v4096 = vsel %vm4095, %v4088, %v4092
        %v4097 = vand.u32 2147483647, %v4087
        %vm4098 = vcmp.eq.f32.partialorder %v4097, 8.507059e+37
        %v4099 = vand.u32 %v4087, 2147483648
        %v4100 = vor.u32 1.1754944e-38, %v4099
        %v4101 = vsel %vm4098, %v4100, %v4096
        %v4102 = vmul.f32 %v4077, %v4101
        %v4103 = vmin.f32 %v4102, 1.0
        %v4104 = vmax.f32 %v4103, -1.0
        %v4105 = vmul.f32 %v3392, %v3392
        %v4106 = vmin.f32 16.0, %v4105
        %v4107 = vmul.f32 %v4106, 2.1237322e-06
        %v4108 = vadd.f32 %v4107, 0.00028619796
        %v4109 = vmul.f32 %v4106, %v4108
        %v4110 = vadd.f32 %v4109, 0.0036580483
        %v4111 = vmul.f32 %v4106, %v4110
        %v4112 = vadd.f32 %v4111, 0.05243302
        %v4113 = vmul.f32 %v4106, %v4112
        %v4114 = vadd.f32 %v4113, 0.18741608
        %v4115 = vmul.f32 %v4106, %v4114
        %v4116 = vadd.f32 %v4115, 1.1283791
        %v4117 = vmul.f32 %v3392, %v4116
        %v4118 = vmul.f32 %v4106, 3.8918573e-05
        %v4119 = vadd.f32 %v4118, 0.001143296
        %v4120 = vmul.f32 %v4106, %v4119
        %v4121 = vadd.f32 %v4120, 0.014752088
        %v4122 = vmul.f32 %v4106, %v4121
        %v4123 = vadd.f32 %v4122, 0.112945676
        %v4124 = vmul.f32 %v4106, %v4123
        %v4125 = vadd.f32 %v4124, 0.4994258
        %v4126 = vmul.f32 %v4106, %v4125
        %v4127 = vadd.f32 %v4126, 1.0
        %v4128 = vrcp.pop %v4127
        %v4129 = vmul.f32 %v4127, %v4128
        %v4130 = vsub.f32 1.0, %v4129
        %v4131 = vmul.f32 %v4128, %v4130
        %v4132 = vadd.f32 %v4128, %v4131
        %vm4133 = vweird.f32 %v4127
        %vm4134 = vweird.f32 %v4128
        %vm4135 = vmor %vm4133, %vm4134
        %v4136 = vsel %vm4135, %v4128, %v4132
        %v4137 = vand.u32 2147483647, %v4127
        %vm4138 = vcmp.eq.f32.partialorder %v4137, 8.507059e+37
        %v4139 = vand.u32 %v4127, 2147483648
        %v4140 = vor.u32 1.1754944e-38, %v4139
        %v4141 = vsel %vm4138, %v4140, %v4136
        %v4142 = vmul.f32 %v4117, %v4141
        %v4143 = vmin.f32 %v4142, 1.0
        %v4144 = vmax.f32 %v4143, -1.0
        %v4145 = vmul.f32 %v3393, %v3393
        %v4146 = vmin.f32 16.0, %v4145
        %v4147 = vmul.f32 %v4146, 2.1237322e-06
        %v4148 = vadd.f32 %v4147, 0.00028619796
        %v4149 = vmul.f32 %v4146, %v4148
        %v4150 = vadd.f32 %v4149, 0.0036580483
        %v4151 = vmul.f32 %v4146, %v4150
        %v4152 = vadd.f32 %v4151, 0.05243302
        %v4153 = vmul.f32 %v4146, %v4152
        %v4154 = vadd.f32 %v4153, 0.18741608
        %v4155 = vmul.f32 %v4146, %v4154
        %v4156 = vadd.f32 %v4155, 1.1283791
        %v4157 = vmul.f32 %v3393, %v4156
        %v4158 = vmul.f32 %v4146, 3.8918573e-05
        %v4159 = vadd.f32 %v4158, 0.001143296
        %v4160 = vmul.f32 %v4146, %v4159
        %v4161 = vadd.f32 %v4160, 0.014752088
        %v4162 = vmul.f32 %v4146, %v4161
        %v4163 = vadd.f32 %v4162, 0.112945676
        %v4164 = vmul.f32 %v4146, %v4163
        %v4165 = vadd.f32 %v4164, 0.4994258
        %v4166 = vmul.f32 %v4146, %v4165
        %v4167 = vadd.f32 %v4166, 1.0
        %v4168 = vrcp.pop %v4167
        %v4169 = vmul.f32 %v4167, %v4168
        %v4170 = vsub.f32 1.0, %v4169
        %v4171 = vmul.f32 %v4168, %v4170
        %v4172 = vadd.f32 %v4168, %v4171
        %vm4173 = vweird.f32 %v4167
        %vm4174 = vweird.f32 %v4168
        %vm4175 = vmor %vm4173, %vm4174
        %v4176 = vsel %vm4175, %v4168, %v4172
        %v4177 = vand.u32 2147483647, %v4167
        %vm4178 = vcmp.eq.f32.partialorder %v4177, 8.507059e+37
        %v4179 = vand.u32 %v4167, 2147483648
        %v4180 = vor.u32 1.1754944e-38, %v4179
        %v4181 = vsel %vm4178, %v4180, %v4176
        %v4182 = vmul.f32 %v4157, %v4181
        %v4183 = vmin.f32 %v4182, 1.0
        %v4184 = vmax.f32 %v4183, -1.0
        %v4185 = vmul.f32 %v3394, %v3394
        %v4186 = vmin.f32 16.0, %v4185
        %v4187 = vmul.f32 %v4186, 2.1237322e-06
        %v4188 = vadd.f32 %v4187, 0.00028619796
        %v4189 = vmul.f32 %v4186, %v4188
        %v4190 = vadd.f32 %v4189, 0.0036580483
        %v4191 = vmul.f32 %v4186, %v4190
        %v4192 = vadd.f32 %v4191, 0.05243302
        %v4193 = vmul.f32 %v4186, %v4192
        %v4194 = vadd.f32 %v4193, 0.18741608
        %v4195 = vmul.f32 %v4186, %v4194
        %v4196 = vadd.f32 %v4195, 1.1283791
        %v4197 = vmul.f32 %v3394, %v4196
        %v4198 = vmul.f32 %v4186, 3.8918573e-05
        %v4199 = vadd.f32 %v4198, 0.001143296
        %v4200 = vmul.f32 %v4186, %v4199
        %v4201 = vadd.f32 %v4200, 0.014752088
        %v4202 = vmul.f32 %v4186, %v4201
        %v4203 = vadd.f32 %v4202, 0.112945676
        %v4204 = vmul.f32 %v4186, %v4203
        %v4205 = vadd.f32 %v4204, 0.4994258
        %v4206 = vmul.f32 %v4186, %v4205
        %v4207 = vadd.f32 %v4206, 1.0
        %v4208 = vrcp.pop %v4207
        %v4209 = vmul.f32 %v4207, %v4208
        %v4210 = vsub.f32 1.0, %v4209
        %v4211 = vmul.f32 %v4208, %v4210
        %v4212 = vadd.f32 %v4208, %v4211
        %vm4213 = vweird.f32 %v4207
        %vm4214 = vweird.f32 %v4208
        %vm4215 = vmor %vm4213, %vm4214
        %v4216 = vsel %vm4215, %v4208, %v4212
        %v4217 = vand.u32 2147483647, %v4207
        %vm4218 = vcmp.eq.f32.partialorder %v4217, 8.507059e+37
        %v4219 = vand.u32 %v4207, 2147483648
        %v4220 = vor.u32 1.1754944e-38, %v4219
        %v4221 = vsel %vm4218, %v4220, %v4216
        %v4222 = vmul.f32 %v4197, %v4221
        %v4223 = vmin.f32 %v4222, 1.0
        %v4224 = vmax.f32 %v4223, -1.0
        %v4225 = vmul.f32 %v3395, %v3395
        %v4226 = vmin.f32 16.0, %v4225
        %v4227 = vmul.f32 %v4226, 2.1237322e-06
        %v4228 = vadd.f32 %v4227, 0.00028619796
        %v4229 = vmul.f32 %v4226, %v4228
        %v4230 = vadd.f32 %v4229, 0.0036580483
        %v4231 = vmul.f32 %v4226, %v4230
        %v4232 = vadd.f32 %v4231, 0.05243302
        %v4233 = vmul.f32 %v4226, %v4232
        %v4234 = vadd.f32 %v4233, 0.18741608
        %v4235 = vmul.f32 %v4226, %v4234
        %v4236 = vadd.f32 %v4235, 1.1283791
        %v4237 = vmul.f32 %v3395, %v4236
        %v4238 = vmul.f32 %v4226, 3.8918573e-05
        %v4239 = vadd.f32 %v4238, 0.001143296
        %v4240 = vmul.f32 %v4226, %v4239
        %v4241 = vadd.f32 %v4240, 0.014752088
        %v4242 = vmul.f32 %v4226, %v4241
        %v4243 = vadd.f32 %v4242, 0.112945676
        %v4244 = vmul.f32 %v4226, %v4243
        %v4245 = vadd.f32 %v4244, 0.4994258
        %v4246 = vmul.f32 %v4226, %v4245
        %v4247 = vadd.f32 %v4246, 1.0
        %v4248 = vrcp.pop %v4247
        %v4249 = vmul.f32 %v4247, %v4248
        %v4250 = vsub.f32 1.0, %v4249
        %v4251 = vmul.f32 %v4248, %v4250
        %v4252 = vadd.f32 %v4248, %v4251
        %vm4253 = vweird.f32 %v4247
        %vm4254 = vweird.f32 %v4248
        %vm4255 = vmor %vm4253, %vm4254
        %v4256 = vsel %vm4255, %v4248, %v4252
        %v4257 = vand.u32 2147483647, %v4247
        %vm4258 = vcmp.eq.f32.partialorder %v4257, 8.507059e+37
        %v4259 = vand.u32 %v4247, 2147483648
        %v4260 = vor.u32 1.1754944e-38, %v4259
        %v4261 = vsel %vm4258, %v4260, %v4256
        %v4262 = vmul.f32 %v4237, %v4261
        %v4263 = vmin.f32 %v4262, 1.0
        %v4264 = vmax.f32 %v4263, -1.0
        %v4265 = vmul.f32 %v3396, %v3396
        %v4266 = vmin.f32 16.0, %v4265
        %v4267 = vmul.f32 %v4266, 2.1237322e-06
        %v4268 = vadd.f32 %v4267, 0.00028619796
        %v4269 = vmul.f32 %v4266, %v4268
        %v4270 = vadd.f32 %v4269, 0.0036580483
        %v4271 = vmul.f32 %v4266, %v4270
        %v4272 = vadd.f32 %v4271, 0.05243302
        %v4273 = vmul.f32 %v4266, %v4272
        %v4274 = vadd.f32 %v4273, 0.18741608
        %v4275 = vmul.f32 %v4266, %v4274
        %v4276 = vadd.f32 %v4275, 1.1283791
        %v4277 = vmul.f32 %v3396, %v4276
        %v4278 = vmul.f32 %v4266, 3.8918573e-05
        %v4279 = vadd.f32 %v4278, 0.001143296
        %v4280 = vmul.f32 %v4266, %v4279
        %v4281 = vadd.f32 %v4280, 0.014752088
        %v4282 = vmul.f32 %v4266, %v4281
        %v4283 = vadd.f32 %v4282, 0.112945676
        %v4284 = vmul.f32 %v4266, %v4283
        %v4285 = vadd.f32 %v4284, 0.4994258
        %v4286 = vmul.f32 %v4266, %v4285
        %v4287 = vadd.f32 %v4286, 1.0
        %v4288 = vrcp.pop %v4287
        %v4289 = vmul.f32 %v4287, %v4288
        %v4290 = vsub.f32 1.0, %v4289
        %v4291 = vmul.f32 %v4288, %v4290
        %v4292 = vadd.f32 %v4288, %v4291
        %vm4293 = vweird.f32 %v4287
        %vm4294 = vweird.f32 %v4288
        %vm4295 = vmor %vm4293, %vm4294
        %v4296 = vsel %vm4295, %v4288, %v4292
        %v4297 = vand.u32 2147483647, %v4287
        %vm4298 = vcmp.eq.f32.partialorder %v4297, 8.507059e+37
        %v4299 = vand.u32 %v4287, 2147483648
        %v4300 = vor.u32 1.1754944e-38, %v4299
        %v4301 = vsel %vm4298, %v4300, %v4296
        %v4302 = vmul.f32 %v4277, %v4301
        %v4303 = vmin.f32 %v4302, 1.0
        %v4304 = vmax.f32 %v4303, -1.0
        %v4305 = vmul.f32 %v3397, %v3397
        %v4306 = vmin.f32 16.0, %v4305
        %v4307 = vmul.f32 %v4306, 2.1237322e-06
        %v4308 = vadd.f32 %v4307, 0.00028619796
        %v4309 = vmul.f32 %v4306, %v4308
        %v4310 = vadd.f32 %v4309, 0.0036580483
        %v4311 = vmul.f32 %v4306, %v4310
        %v4312 = vadd.f32 %v4311, 0.05243302
        %v4313 = vmul.f32 %v4306, %v4312
        %v4314 = vadd.f32 %v4313, 0.18741608
        %v4315 = vmul.f32 %v4306, %v4314
        %v4316 = vadd.f32 %v4315, 1.1283791
        %v4317 = vmul.f32 %v3397, %v4316
        %v4318 = vmul.f32 %v4306, 3.8918573e-05
        %v4319 = vadd.f32 %v4318, 0.001143296
        %v4320 = vmul.f32 %v4306, %v4319
        %v4321 = vadd.f32 %v4320, 0.014752088
        %v4322 = vmul.f32 %v4306, %v4321
        %v4323 = vadd.f32 %v4322, 0.112945676
        %v4324 = vmul.f32 %v4306, %v4323
        %v4325 = vadd.f32 %v4324, 0.4994258
        %v4326 = vmul.f32 %v4306, %v4325
        %v4327 = vadd.f32 %v4326, 1.0
        %v4328 = vrcp.pop %v4327
        %v4329 = vmul.f32 %v4327, %v4328
        %v4330 = vsub.f32 1.0, %v4329
        %v4331 = vmul.f32 %v4328, %v4330
        %v4332 = vadd.f32 %v4328, %v4331
        %vm4333 = vweird.f32 %v4327
        %vm4334 = vweird.f32 %v4328
        %vm4335 = vmor %vm4333, %vm4334
        %v4336 = vsel %vm4335, %v4328, %v4332
        %v4337 = vand.u32 2147483647, %v4327
        %vm4338 = vcmp.eq.f32.partialorder %v4337, 8.507059e+37
        %v4339 = vand.u32 %v4327, 2147483648
        %v4340 = vor.u32 1.1754944e-38, %v4339
        %v4341 = vsel %vm4338, %v4340, %v4336
        %v4342 = vmul.f32 %v4317, %v4341
        %v4343 = vmin.f32 %v4342, 1.0
        %v4344 = vmax.f32 %v4343, -1.0
        %v4345 = vmul.f32 %v3398, %v3398
        %v4346 = vmin.f32 16.0, %v4345
        %v4347 = vmul.f32 %v4346, 2.1237322e-06
        %v4348 = vadd.f32 %v4347, 0.00028619796
        %v4349 = vmul.f32 %v4346, %v4348
        %v4350 = vadd.f32 %v4349, 0.0036580483
        %v4351 = vmul.f32 %v4346, %v4350
        %v4352 = vadd.f32 %v4351, 0.05243302
        %v4353 = vmul.f32 %v4346, %v4352
        %v4354 = vadd.f32 %v4353, 0.18741608
        %v4355 = vmul.f32 %v4346, %v4354
        %v4356 = vadd.f32 %v4355, 1.1283791
        %v4357 = vmul.f32 %v3398, %v4356
        %v4358 = vmul.f32 %v4346, 3.8918573e-05
        %v4359 = vadd.f32 %v4358, 0.001143296
        %v4360 = vmul.f32 %v4346, %v4359
        %v4361 = vadd.f32 %v4360, 0.014752088
        %v4362 = vmul.f32 %v4346, %v4361
        %v4363 = vadd.f32 %v4362, 0.112945676
        %v4364 = vmul.f32 %v4346, %v4363
        %v4365 = vadd.f32 %v4364, 0.4994258
        %v4366 = vmul.f32 %v4346, %v4365
        %v4367 = vadd.f32 %v4366, 1.0
        %v4368 = vrcp.pop %v4367
        %v4369 = vmul.f32 %v4367, %v4368
        %v4370 = vsub.f32 1.0, %v4369
        %v4371 = vmul.f32 %v4368, %v4370
        %v4372 = vadd.f32 %v4368, %v4371
        %vm4373 = vweird.f32 %v4367
        %vm4374 = vweird.f32 %v4368
        %vm4375 = vmor %vm4373, %vm4374
        %v4376 = vsel %vm4375, %v4368, %v4372
        %v4377 = vand.u32 2147483647, %v4367
        %vm4378 = vcmp.eq.f32.partialorder %v4377, 8.507059e+37
        %v4379 = vand.u32 %v4367, 2147483648
        %v4380 = vor.u32 1.1754944e-38, %v4379
        %v4381 = vsel %vm4378, %v4380, %v4376
        %v4382 = vmul.f32 %v4357, %v4381
        %v4383 = vmin.f32 %v4382, 1.0
        %v4384 = vmax.f32 %v4383, -1.0
        %v4385 = vmul.f32 %v3399, %v3399
        %v4386 = vmin.f32 16.0, %v4385
        %v4387 = vmul.f32 %v4386, 2.1237322e-06
        %v4388 = vadd.f32 %v4387, 0.00028619796
        %v4389 = vmul.f32 %v4386, %v4388
        %v4390 = vadd.f32 %v4389, 0.0036580483
        %v4391 = vmul.f32 %v4386, %v4390
        %v4392 = vadd.f32 %v4391, 0.05243302
        %v4393 = vmul.f32 %v4386, %v4392
        %v4394 = vadd.f32 %v4393, 0.18741608
        %v4395 = vmul.f32 %v4386, %v4394
        %v4396 = vadd.f32 %v4395, 1.1283791
        %v4397 = vmul.f32 %v3399, %v4396
        %v4398 = vmul.f32 %v4386, 3.8918573e-05
        %v4399 = vadd.f32 %v4398, 0.001143296
        %v4400 = vmul.f32 %v4386, %v4399
        %v4401 = vadd.f32 %v4400, 0.014752088
        %v4402 = vmul.f32 %v4386, %v4401
        %v4403 = vadd.f32 %v4402, 0.112945676
        %v4404 = vmul.f32 %v4386, %v4403
        %v4405 = vadd.f32 %v4404, 0.4994258
        %v4406 = vmul.f32 %v4386, %v4405
        %v4407 = vadd.f32 %v4406, 1.0
        %v4408 = vrcp.pop %v4407
        %v4409 = vmul.f32 %v4407, %v4408
        %v4410 = vsub.f32 1.0, %v4409
        %v4411 = vmul.f32 %v4408, %v4410
        %v4412 = vadd.f32 %v4408, %v4411
        %vm4413 = vweird.f32 %v4407
        %vm4414 = vweird.f32 %v4408
        %vm4415 = vmor %vm4413, %vm4414
        %v4416 = vsel %vm4415, %v4408, %v4412
        %v4417 = vand.u32 2147483647, %v4407
        %vm4418 = vcmp.eq.f32.partialorder %v4417, 8.507059e+37
        %v4419 = vand.u32 %v4407, 2147483648
        %v4420 = vor.u32 1.1754944e-38, %v4419
        %v4421 = vsel %vm4418, %v4420, %v4416
        %v4422 = vmul.f32 %v4397, %v4421
        %v4423 = vmin.f32 %v4422, 1.0
        %v4424 = vmax.f32 %v4423, -1.0
        %v4425 = vmul.f32 %v3400, %v3400
        %v4426 = vmin.f32 16.0, %v4425
        %v4427 = vmul.f32 %v4426, 2.1237322e-06
        %v4428 = vadd.f32 %v4427, 0.00028619796
        %v4429 = vmul.f32 %v4426, %v4428
        %v4430 = vadd.f32 %v4429, 0.0036580483
        %v4431 = vmul.f32 %v4426, %v4430
        %v4432 = vadd.f32 %v4431, 0.05243302
        %v4433 = vmul.f32 %v4426, %v4432
        %v4434 = vadd.f32 %v4433, 0.18741608
        %v4435 = vmul.f32 %v4426, %v4434
        %v4436 = vadd.f32 %v4435, 1.1283791
        %v4437 = vmul.f32 %v3400, %v4436
        %v4438 = vmul.f32 %v4426, 3.8918573e-05
        %v4439 = vadd.f32 %v4438, 0.001143296
        %v4440 = vmul.f32 %v4426, %v4439
        %v4441 = vadd.f32 %v4440, 0.014752088
        %v4442 = vmul.f32 %v4426, %v4441
        %v4443 = vadd.f32 %v4442, 0.112945676
        %v4444 = vmul.f32 %v4426, %v4443
        %v4445 = vadd.f32 %v4444, 0.4994258
        %v4446 = vmul.f32 %v4426, %v4445
        %v4447 = vadd.f32 %v4446, 1.0
        %v4448 = vrcp.pop %v4447
        %v4449 = vmul.f32 %v4447, %v4448
        %v4450 = vsub.f32 1.0, %v4449
        %v4451 = vmul.f32 %v4448, %v4450
        %v4452 = vadd.f32 %v4448, %v4451
        %vm4453 = vweird.f32 %v4447
        %vm4454 = vweird.f32 %v4448
        %vm4455 = vmor %vm4453, %vm4454
        %v4456 = vsel %vm4455, %v4448, %v4452
        %v4457 = vand.u32 2147483647, %v4447
        %vm4458 = vcmp.eq.f32.partialorder %v4457, 8.507059e+37
        %v4459 = vand.u32 %v4447, 2147483648
        %v4460 = vor.u32 1.1754944e-38, %v4459
        %v4461 = vsel %vm4458, %v4460, %v4456
        %v4462 = vmul.f32 %v4437, %v4461
        %v4463 = vmin.f32 %v4462, 1.0
        %v4464 = vmax.f32 %v4463, -1.0
        %v4465 = vmul.f32 %v3401, %v3401
        %v4466 = vmin.f32 16.0, %v4465
        %v4467 = vmul.f32 %v4466, 2.1237322e-06
        %v4468 = vadd.f32 %v4467, 0.00028619796
        %v4469 = vmul.f32 %v4466, %v4468
        %v4470 = vadd.f32 %v4469, 0.0036580483
        %v4471 = vmul.f32 %v4466, %v4470
        %v4472 = vadd.f32 %v4471, 0.05243302
        %v4473 = vmul.f32 %v4466, %v4472
        %v4474 = vadd.f32 %v4473, 0.18741608
        %v4475 = vmul.f32 %v4466, %v4474
        %v4476 = vadd.f32 %v4475, 1.1283791
        %v4477 = vmul.f32 %v3401, %v4476
        %v4478 = vmul.f32 %v4466, 3.8918573e-05
        %v4479 = vadd.f32 %v4478, 0.001143296
        %v4480 = vmul.f32 %v4466, %v4479
        %v4481 = vadd.f32 %v4480, 0.014752088
        %v4482 = vmul.f32 %v4466, %v4481
        %v4483 = vadd.f32 %v4482, 0.112945676
        %v4484 = vmul.f32 %v4466, %v4483
        %v4485 = vadd.f32 %v4484, 0.4994258
        %v4486 = vmul.f32 %v4466, %v4485
        %v4487 = vadd.f32 %v4486, 1.0
        %v4488 = vrcp.pop %v4487
        %v4489 = vmul.f32 %v4487, %v4488
        %v4490 = vsub.f32 1.0, %v4489
        %v4491 = vmul.f32 %v4488, %v4490
        %v4492 = vadd.f32 %v4488, %v4491
        %vm4493 = vweird.f32 %v4487
        %vm4494 = vweird.f32 %v4488
        %vm4495 = vmor %vm4493, %vm4494
        %v4496 = vsel %vm4495, %v4488, %v4492
        %v4497 = vand.u32 2147483647, %v4487
        %vm4498 = vcmp.eq.f32.partialorder %v4497, 8.507059e+37
        %v4499 = vand.u32 %v4487, 2147483648
        %v4500 = vor.u32 1.1754944e-38, %v4499
        %v4501 = vsel %vm4498, %v4500, %v4496
        %v4502 = vmul.f32 %v4477, %v4501
        %v4503 = vmin.f32 %v4502, 1.0
        %v4504 = vmax.f32 %v4503, -1.0
        %v4505 = vmul.f32 %v3402, %v3402
        %v4506 = vmin.f32 16.0, %v4505
        %v4507 = vmul.f32 %v4506, 2.1237322e-06
        %v4508 = vadd.f32 %v4507, 0.00028619796
        %v4509 = vmul.f32 %v4506, %v4508
        %v4510 = vadd.f32 %v4509, 0.0036580483
        %v4511 = vmul.f32 %v4506, %v4510
        %v4512 = vadd.f32 %v4511, 0.05243302
        %v4513 = vmul.f32 %v4506, %v4512
        %v4514 = vadd.f32 %v4513, 0.18741608
        %v4515 = vmul.f32 %v4506, %v4514
        %v4516 = vadd.f32 %v4515, 1.1283791
        %v4517 = vmul.f32 %v3402, %v4516
        %v4518 = vmul.f32 %v4506, 3.8918573e-05
        %v4519 = vadd.f32 %v4518, 0.001143296
        %v4520 = vmul.f32 %v4506, %v4519
        %v4521 = vadd.f32 %v4520, 0.014752088
        %v4522 = vmul.f32 %v4506, %v4521
        %v4523 = vadd.f32 %v4522, 0.112945676
        %v4524 = vmul.f32 %v4506, %v4523
        %v4525 = vadd.f32 %v4524, 0.4994258
        %v4526 = vmul.f32 %v4506, %v4525
        %v4527 = vadd.f32 %v4526, 1.0
        %v4528 = vrcp.pop %v4527
        %v4529 = vmul.f32 %v4527, %v4528
        %v4530 = vsub.f32 1.0, %v4529
        %v4531 = vmul.f32 %v4528, %v4530
        %v4532 = vadd.f32 %v4528, %v4531
        %vm4533 = vweird.f32 %v4527
        %vm4534 = vweird.f32 %v4528
        %vm4535 = vmor %vm4533, %vm4534
        %v4536 = vsel %vm4535, %v4528, %v4532
        %v4537 = vand.u32 2147483647, %v4527
        %vm4538 = vcmp.eq.f32.partialorder %v4537, 8.507059e+37
        %v4539 = vand.u32 %v4527, 2147483648
        %v4540 = vor.u32 1.1754944e-38, %v4539
        %v4541 = vsel %vm4538, %v4540, %v4536
        %v4542 = vmul.f32 %v4517, %v4541
        %v4543 = vmin.f32 %v4542, 1.0
        %v4544 = vmax.f32 %v4543, -1.0
        %v4545 = vmul.f32 %v3403, %v3403
        %v4546 = vmin.f32 16.0, %v4545
        %v4547 = vmul.f32 %v4546, 2.1237322e-06
        %v4548 = vadd.f32 %v4547, 0.00028619796
        %v4549 = vmul.f32 %v4546, %v4548
        %v4550 = vadd.f32 %v4549, 0.0036580483
        %v4551 = vmul.f32 %v4546, %v4550
        %v4552 = vadd.f32 %v4551, 0.05243302
        %v4553 = vmul.f32 %v4546, %v4552
        %v4554 = vadd.f32 %v4553, 0.18741608
        %v4555 = vmul.f32 %v4546, %v4554
        %v4556 = vadd.f32 %v4555, 1.1283791
        %v4557 = vmul.f32 %v3403, %v4556
        %v4558 = vmul.f32 %v4546, 3.8918573e-05
        %v4559 = vadd.f32 %v4558, 0.001143296
        %v4560 = vmul.f32 %v4546, %v4559
        %v4561 = vadd.f32 %v4560, 0.014752088
        %v4562 = vmul.f32 %v4546, %v4561
        %v4563 = vadd.f32 %v4562, 0.112945676
        %v4564 = vmul.f32 %v4546, %v4563
        %v4565 = vadd.f32 %v4564, 0.4994258
        %v4566 = vmul.f32 %v4546, %v4565
        %v4567 = vadd.f32 %v4566, 1.0
        %v4568 = vrcp.pop %v4567
        %v4569 = vmul.f32 %v4567, %v4568
        %v4570 = vsub.f32 1.0, %v4569
        %v4571 = vmul.f32 %v4568, %v4570
        %v4572 = vadd.f32 %v4568, %v4571
        %vm4573 = vweird.f32 %v4567
        %vm4574 = vweird.f32 %v4568
        %vm4575 = vmor %vm4573, %vm4574
        %v4576 = vsel %vm4575, %v4568, %v4572
        %v4577 = vand.u32 2147483647, %v4567
        %vm4578 = vcmp.eq.f32.partialorder %v4577, 8.507059e+37
        %v4579 = vand.u32 %v4567, 2147483648
        %v4580 = vor.u32 1.1754944e-38, %v4579
        %v4581 = vsel %vm4578, %v4580, %v4576
        %v4582 = vmul.f32 %v4557, %v4581
        %v4583 = vmin.f32 %v4582, 1.0
        %v4584 = vmax.f32 %v4583, -1.0
        %v4585 = vmul.f32 %v3404, %v3404
        %v4586 = vmin.f32 16.0, %v4585
        %v4587 = vmul.f32 %v4586, 2.1237322e-06
        %v4588 = vadd.f32 %v4587, 0.00028619796
        %v4589 = vmul.f32 %v4586, %v4588
        %v4590 = vadd.f32 %v4589, 0.0036580483
        %v4591 = vmul.f32 %v4586, %v4590
        %v4592 = vadd.f32 %v4591, 0.05243302
        %v4593 = vmul.f32 %v4586, %v4592
        %v4594 = vadd.f32 %v4593, 0.18741608
        %v4595 = vmul.f32 %v4586, %v4594
        %v4596 = vadd.f32 %v4595, 1.1283791
        %v4597 = vmul.f32 %v3404, %v4596
        %v4598 = vmul.f32 %v4586, 3.8918573e-05
        %v4599 = vadd.f32 %v4598, 0.001143296
        %v4600 = vmul.f32 %v4586, %v4599
        %v4601 = vadd.f32 %v4600, 0.014752088
        %v4602 = vmul.f32 %v4586, %v4601
        %v4603 = vadd.f32 %v4602, 0.112945676
        %v4604 = vmul.f32 %v4586, %v4603
        %v4605 = vadd.f32 %v4604, 0.4994258
        %v4606 = vmul.f32 %v4586, %v4605
        %v4607 = vadd.f32 %v4606, 1.0
        %v4608 = vrcp.pop %v4607
        %v4609 = vmul.f32 %v4607, %v4608
        %v4610 = vsub.f32 1.0, %v4609
        %v4611 = vmul.f32 %v4608, %v4610
        %v4612 = vadd.f32 %v4608, %v4611
        %vm4613 = vweird.f32 %v4607
        %vm4614 = vweird.f32 %v4608
        %vm4615 = vmor %vm4613, %vm4614
        %v4616 = vsel %vm4615, %v4608, %v4612
        %v4617 = vand.u32 2147483647, %v4607
        %vm4618 = vcmp.eq.f32.partialorder %v4617, 8.507059e+37
        %v4619 = vand.u32 %v4607, 2147483648
        %v4620 = vor.u32 1.1754944e-38, %v4619
        %v4621 = vsel %vm4618, %v4620, %v4616
        %v4622 = vmul.f32 %v4597, %v4621
        %v4623 = vmin.f32 %v4622, 1.0
        %v4624 = vmax.f32 %v4623, -1.0
        %v4625 = vmul.f32 %v3405, %v3405
        %v4626 = vmin.f32 16.0, %v4625
        %v4627 = vmul.f32 %v4626, 2.1237322e-06
        %v4628 = vadd.f32 %v4627, 0.00028619796
        %v4629 = vmul.f32 %v4626, %v4628
        %v4630 = vadd.f32 %v4629, 0.0036580483
        %v4631 = vmul.f32 %v4626, %v4630
        %v4632 = vadd.f32 %v4631, 0.05243302
        %v4633 = vmul.f32 %v4626, %v4632
        %v4634 = vadd.f32 %v4633, 0.18741608
        %v4635 = vmul.f32 %v4626, %v4634
        %v4636 = vadd.f32 %v4635, 1.1283791
        %v4637 = vmul.f32 %v3405, %v4636
        %v4638 = vmul.f32 %v4626, 3.8918573e-05
        %v4639 = vadd.f32 %v4638, 0.001143296
        %v4640 = vmul.f32 %v4626, %v4639
        %v4641 = vadd.f32 %v4640, 0.014752088
        %v4642 = vmul.f32 %v4626, %v4641
        %v4643 = vadd.f32 %v4642, 0.112945676
        %v4644 = vmul.f32 %v4626, %v4643
        %v4645 = vadd.f32 %v4644, 0.4994258
        %v4646 = vmul.f32 %v4626, %v4645
        %v4647 = vadd.f32 %v4646, 1.0
        %v4648 = vrcp.pop %v4647
        %v4649 = vmul.f32 %v4647, %v4648
        %v4650 = vsub.f32 1.0, %v4649
        %v4651 = vmul.f32 %v4648, %v4650
        %v4652 = vadd.f32 %v4648, %v4651
        %vm4653 = vweird.f32 %v4647
        %vm4654 = vweird.f32 %v4648
        %vm4655 = vmor %vm4653, %vm4654
        %v4656 = vsel %vm4655, %v4648, %v4652
        %v4657 = vand.u32 2147483647, %v4647
        %vm4658 = vcmp.eq.f32.partialorder %v4657, 8.507059e+37
        %v4659 = vand.u32 %v4647, 2147483648
        %v4660 = vor.u32 1.1754944e-38, %v4659
        %v4661 = vsel %vm4658, %v4660, %v4656
        %v4662 = vmul.f32 %v4637, %v4661
        %v4663 = vmin.f32 %v4662, 1.0
        %v4664 = vmax.f32 %v4663, -1.0
        %v4665 = vmul.f32 %v3406, %v3406
        %v4666 = vmin.f32 16.0, %v4665
        %v4667 = vmul.f32 %v4666, 2.1237322e-06
        %v4668 = vadd.f32 %v4667, 0.00028619796
        %v4669 = vmul.f32 %v4666, %v4668
        %v4670 = vadd.f32 %v4669, 0.0036580483
        %v4671 = vmul.f32 %v4666, %v4670
        %v4672 = vadd.f32 %v4671, 0.05243302
        %v4673 = vmul.f32 %v4666, %v4672
        %v4674 = vadd.f32 %v4673, 0.18741608
        %v4675 = vmul.f32 %v4666, %v4674
        %v4676 = vadd.f32 %v4675, 1.1283791
        %v4677 = vmul.f32 %v3406, %v4676
        %v4678 = vmul.f32 %v4666, 3.8918573e-05
        %v4679 = vadd.f32 %v4678, 0.001143296
        %v4680 = vmul.f32 %v4666, %v4679
        %v4681 = vadd.f32 %v4680, 0.014752088
        %v4682 = vmul.f32 %v4666, %v4681
        %v4683 = vadd.f32 %v4682, 0.112945676
        %v4684 = vmul.f32 %v4666, %v4683
        %v4685 = vadd.f32 %v4684, 0.4994258
        %v4686 = vmul.f32 %v4666, %v4685
        %v4687 = vadd.f32 %v4686, 1.0
        %v4688 = vrcp.pop %v4687
        %v4689 = vmul.f32 %v4687, %v4688
        %v4690 = vsub.f32 1.0, %v4689
        %v4691 = vmul.f32 %v4688, %v4690
        %v4692 = vadd.f32 %v4688, %v4691
        %vm4693 = vweird.f32 %v4687
        %vm4694 = vweird.f32 %v4688
        %vm4695 = vmor %vm4693, %vm4694
        %v4696 = vsel %vm4695, %v4688, %v4692
        %v4697 = vand.u32 2147483647, %v4687
        %vm4698 = vcmp.eq.f32.partialorder %v4697, 8.507059e+37
        %v4699 = vand.u32 %v4687, 2147483648
        %v4700 = vor.u32 1.1754944e-38, %v4699
        %v4701 = vsel %vm4698, %v4700, %v4696
        %v4702 = vmul.f32 %v4677, %v4701
        %v4703 = vmin.f32 %v4702, 1.0
        %v4704 = vmax.f32 %v4703, -1.0
        %v4705 = vmul.f32 %v3407, %v3407
        %v4706 = vmin.f32 16.0, %v4705
        %v4707 = vmul.f32 %v4706, 2.1237322e-06
        %v4708 = vadd.f32 %v4707, 0.00028619796
        %v4709 = vmul.f32 %v4706, %v4708
        %v4710 = vadd.f32 %v4709, 0.0036580483
        %v4711 = vmul.f32 %v4706, %v4710
        %v4712 = vadd.f32 %v4711, 0.05243302
        %v4713 = vmul.f32 %v4706, %v4712
        %v4714 = vadd.f32 %v4713, 0.18741608
        %v4715 = vmul.f32 %v4706, %v4714
        %v4716 = vadd.f32 %v4715, 1.1283791
        %v4717 = vmul.f32 %v3407, %v4716
        %v4718 = vmul.f32 %v4706, 3.8918573e-05
        %v4719 = vadd.f32 %v4718, 0.001143296
        %v4720 = vmul.f32 %v4706, %v4719
        %v4721 = vadd.f32 %v4720, 0.014752088
        %v4722 = vmul.f32 %v4706, %v4721
        %v4723 = vadd.f32 %v4722, 0.112945676
        %v4724 = vmul.f32 %v4706, %v4723
        %v4725 = vadd.f32 %v4724, 0.4994258
        %v4726 = vmul.f32 %v4706, %v4725
        %v4727 = vadd.f32 %v4726, 1.0
        %v4728 = vrcp.pop %v4727
        %v4729 = vmul.f32 %v4727, %v4728
        %v4730 = vsub.f32 1.0, %v4729
        %v4731 = vmul.f32 %v4728, %v4730
        %v4732 = vadd.f32 %v4728, %v4731
        %vm4733 = vweird.f32 %v4727
        %vm4734 = vweird.f32 %v4728
        %vm4735 = vmor %vm4733, %vm4734
        %v4736 = vsel %vm4735, %v4728, %v4732
        %v4737 = vand.u32 2147483647, %v4727
        %vm4738 = vcmp.eq.f32.partialorder %v4737, 8.507059e+37
        %v4739 = vand.u32 %v4727, 2147483648
        %v4740 = vor.u32 1.1754944e-38, %v4739
        %v4741 = vsel %vm4738, %v4740, %v4736
        %v4742 = vmul.f32 %v4717, %v4741
        %v4743 = vmin.f32 %v4742, 1.0
        %v4744 = vmax.f32 %v4743, -1.0
        %v4745 = vmul.f32 %v3408, %v3408
        %v4746 = vmin.f32 16.0, %v4745
        %v4747 = vmul.f32 %v4746, 2.1237322e-06
        %v4748 = vadd.f32 %v4747, 0.00028619796
        %v4749 = vmul.f32 %v4746, %v4748
        %v4750 = vadd.f32 %v4749, 0.0036580483
        %v4751 = vmul.f32 %v4746, %v4750
        %v4752 = vadd.f32 %v4751, 0.05243302
        %v4753 = vmul.f32 %v4746, %v4752
        %v4754 = vadd.f32 %v4753, 0.18741608
        %v4755 = vmul.f32 %v4746, %v4754
        %v4756 = vadd.f32 %v4755, 1.1283791
        %v4757 = vmul.f32 %v3408, %v4756
        %v4758 = vmul.f32 %v4746, 3.8918573e-05
        %v4759 = vadd.f32 %v4758, 0.001143296
        %v4760 = vmul.f32 %v4746, %v4759
        %v4761 = vadd.f32 %v4760, 0.014752088
        %v4762 = vmul.f32 %v4746, %v4761
        %v4763 = vadd.f32 %v4762, 0.112945676
        %v4764 = vmul.f32 %v4746, %v4763
        %v4765 = vadd.f32 %v4764, 0.4994258
        %v4766 = vmul.f32 %v4746, %v4765
        %v4767 = vadd.f32 %v4766, 1.0
        %v4768 = vrcp.pop %v4767
        %v4769 = vmul.f32 %v4767, %v4768
        %v4770 = vsub.f32 1.0, %v4769
        %v4771 = vmul.f32 %v4768, %v4770
        %v4772 = vadd.f32 %v4768, %v4771
        %vm4773 = vweird.f32 %v4767
        %vm4774 = vweird.f32 %v4768
        %vm4775 = vmor %vm4773, %vm4774
        %v4776 = vsel %vm4775, %v4768, %v4772
        %v4777 = vand.u32 2147483647, %v4767
        %vm4778 = vcmp.eq.f32.partialorder %v4777, 8.507059e+37
        %v4779 = vand.u32 %v4767, 2147483648
        %v4780 = vor.u32 1.1754944e-38, %v4779
        %v4781 = vsel %vm4778, %v4780, %v4776
        %v4782 = vmul.f32 %v4757, %v4781
        %v4783 = vmin.f32 %v4782, 1.0
        %v4784 = vmax.f32 %v4783, -1.0
        %v4785 = vmul.f32 %v3409, %v3409
        %v4786 = vmin.f32 16.0, %v4785
        %v4787 = vmul.f32 %v4786, 2.1237322e-06
        %v4788 = vadd.f32 %v4787, 0.00028619796
        %v4789 = vmul.f32 %v4786, %v4788
        %v4790 = vadd.f32 %v4789, 0.0036580483
        %v4791 = vmul.f32 %v4786, %v4790
        %v4792 = vadd.f32 %v4791, 0.05243302
        %v4793 = vmul.f32 %v4786, %v4792
        %v4794 = vadd.f32 %v4793, 0.18741608
        %v4795 = vmul.f32 %v4786, %v4794
        %v4796 = vadd.f32 %v4795, 1.1283791
        %v4797 = vmul.f32 %v3409, %v4796
        %v4798 = vmul.f32 %v4786, 3.8918573e-05
        %v4799 = vadd.f32 %v4798, 0.001143296
        %v4800 = vmul.f32 %v4786, %v4799
        %v4801 = vadd.f32 %v4800, 0.014752088
        %v4802 = vmul.f32 %v4786, %v4801
        %v4803 = vadd.f32 %v4802, 0.112945676
        %v4804 = vmul.f32 %v4786, %v4803
        %v4805 = vadd.f32 %v4804, 0.4994258
        %v4806 = vmul.f32 %v4786, %v4805
        %v4807 = vadd.f32 %v4806, 1.0
        %v4808 = vrcp.pop %v4807
        %v4809 = vmul.f32 %v4807, %v4808
        %v4810 = vsub.f32 1.0, %v4809
        %v4811 = vmul.f32 %v4808, %v4810
        %v4812 = vadd.f32 %v4808, %v4811
        %vm4813 = vweird.f32 %v4807
        %vm4814 = vweird.f32 %v4808
        %vm4815 = vmor %vm4813, %vm4814
        %v4816 = vsel %vm4815, %v4808, %v4812
        %v4817 = vand.u32 2147483647, %v4807
        %vm4818 = vcmp.eq.f32.partialorder %v4817, 8.507059e+37
        %v4819 = vand.u32 %v4807, 2147483648
        %v4820 = vor.u32 1.1754944e-38, %v4819
        %v4821 = vsel %vm4818, %v4820, %v4816
        %v4822 = vmul.f32 %v4797, %v4821
        %v4823 = vmin.f32 %v4822, 1.0
        %v4824 = vmax.f32 %v4823, -1.0
        %v4825 = vmul.f32 %v3410, %v3410
        %v4826 = vmin.f32 16.0, %v4825
        %v4827 = vmul.f32 %v4826, 2.1237322e-06
        %v4828 = vadd.f32 %v4827, 0.00028619796
        %v4829 = vmul.f32 %v4826, %v4828
        %v4830 = vadd.f32 %v4829, 0.0036580483
        %v4831 = vmul.f32 %v4826, %v4830
        %v4832 = vadd.f32 %v4831, 0.05243302
        %v4833 = vmul.f32 %v4826, %v4832
        %v4834 = vadd.f32 %v4833, 0.18741608
        %v4835 = vmul.f32 %v4826, %v4834
        %v4836 = vadd.f32 %v4835, 1.1283791
        %v4837 = vmul.f32 %v3410, %v4836
        %v4838 = vmul.f32 %v4826, 3.8918573e-05
        %v4839 = vadd.f32 %v4838, 0.001143296
        %v4840 = vmul.f32 %v4826, %v4839
        %v4841 = vadd.f32 %v4840, 0.014752088
        %v4842 = vmul.f32 %v4826, %v4841
        %v4843 = vadd.f32 %v4842, 0.112945676
        %v4844 = vmul.f32 %v4826, %v4843
        %v4845 = vadd.f32 %v4844, 0.4994258
        %v4846 = vmul.f32 %v4826, %v4845
        %v4847 = vadd.f32 %v4846, 1.0
        %v4848 = vrcp.pop %v4847
        %v4849 = vmul.f32 %v4847, %v4848
        %v4850 = vsub.f32 1.0, %v4849
        %v4851 = vmul.f32 %v4848, %v4850
        %v4852 = vadd.f32 %v4848, %v4851
        %vm4853 = vweird.f32 %v4847
        %vm4854 = vweird.f32 %v4848
        %vm4855 = vmor %vm4853, %vm4854
        %v4856 = vsel %vm4855, %v4848, %v4852
        %v4857 = vand.u32 2147483647, %v4847
        %vm4858 = vcmp.eq.f32.partialorder %v4857, 8.507059e+37
        %v4859 = vand.u32 %v4847, 2147483648
        %v4860 = vor.u32 1.1754944e-38, %v4859
        %v4861 = vsel %vm4858, %v4860, %v4856
        %v4862 = vmul.f32 %v4837, %v4861
        %v4863 = vmin.f32 %v4862, 1.0
        %v4864 = vmax.f32 %v4863, -1.0
        %v4865 = vmul.f32 %v3411, %v3411
        %v4866 = vmin.f32 16.0, %v4865
        %v4867 = vmul.f32 %v4866, 2.1237322e-06
        %v4868 = vadd.f32 %v4867, 0.00028619796
        %v4869 = vmul.f32 %v4866, %v4868
        %v4870 = vadd.f32 %v4869, 0.0036580483
        %v4871 = vmul.f32 %v4866, %v4870
        %v4872 = vadd.f32 %v4871, 0.05243302
        %v4873 = vmul.f32 %v4866, %v4872
        %v4874 = vadd.f32 %v4873, 0.18741608
        %v4875 = vmul.f32 %v4866, %v4874
        %v4876 = vadd.f32 %v4875, 1.1283791
        %v4877 = vmul.f32 %v3411, %v4876
        %v4878 = vmul.f32 %v4866, 3.8918573e-05
        %v4879 = vadd.f32 %v4878, 0.001143296
        %v4880 = vmul.f32 %v4866, %v4879
        %v4881 = vadd.f32 %v4880, 0.014752088
        %v4882 = vmul.f32 %v4866, %v4881
        %v4883 = vadd.f32 %v4882, 0.112945676
        %v4884 = vmul.f32 %v4866, %v4883
        %v4885 = vadd.f32 %v4884, 0.4994258
        %v4886 = vmul.f32 %v4866, %v4885
        %v4887 = vadd.f32 %v4886, 1.0
        %v4888 = vrcp.pop %v4887
        %v4889 = vmul.f32 %v4887, %v4888
        %v4890 = vsub.f32 1.0, %v4889
        %v4891 = vmul.f32 %v4888, %v4890
        %v4892 = vadd.f32 %v4888, %v4891
        %vm4893 = vweird.f32 %v4887
        %vm4894 = vweird.f32 %v4888
        %vm4895 = vmor %vm4893, %vm4894
        %v4896 = vsel %vm4895, %v4888, %v4892
        %v4897 = vand.u32 2147483647, %v4887
        %vm4898 = vcmp.eq.f32.partialorder %v4897, 8.507059e+37
        %v4899 = vand.u32 %v4887, 2147483648
        %v4900 = vor.u32 1.1754944e-38, %v4899
        %v4901 = vsel %vm4898, %v4900, %v4896
        %v4902 = vmul.f32 %v4877, %v4901
        %v4903 = vmin.f32 %v4902, 1.0
        %v4904 = vmax.f32 %v4903, -1.0
        %v4905 = vmul.f32 %v3412, %v3412
        %v4906 = vmin.f32 16.0, %v4905
        %v4907 = vmul.f32 %v4906, 2.1237322e-06
        %v4908 = vadd.f32 %v4907, 0.00028619796
        %v4909 = vmul.f32 %v4906, %v4908
        %v4910 = vadd.f32 %v4909, 0.0036580483
        %v4911 = vmul.f32 %v4906, %v4910
        %v4912 = vadd.f32 %v4911, 0.05243302
        %v4913 = vmul.f32 %v4906, %v4912
        %v4914 = vadd.f32 %v4913, 0.18741608
        %v4915 = vmul.f32 %v4906, %v4914
        %v4916 = vadd.f32 %v4915, 1.1283791
        %v4917 = vmul.f32 %v3412, %v4916
        %v4918 = vmul.f32 %v4906, 3.8918573e-05
        %v4919 = vadd.f32 %v4918, 0.001143296
        %v4920 = vmul.f32 %v4906, %v4919
        %v4921 = vadd.f32 %v4920, 0.014752088
        %v4922 = vmul.f32 %v4906, %v4921
        %v4923 = vadd.f32 %v4922, 0.112945676
        %v4924 = vmul.f32 %v4906, %v4923
        %v4925 = vadd.f32 %v4924, 0.4994258
        %v4926 = vmul.f32 %v4906, %v4925
        %v4927 = vadd.f32 %v4926, 1.0
        %v4928 = vrcp.pop %v4927
        %v4929 = vmul.f32 %v4927, %v4928
        %v4930 = vsub.f32 1.0, %v4929
        %v4931 = vmul.f32 %v4928, %v4930
        %v4932 = vadd.f32 %v4928, %v4931
        %vm4933 = vweird.f32 %v4927
        %vm4934 = vweird.f32 %v4928
        %vm4935 = vmor %vm4933, %vm4934
        %v4936 = vsel %vm4935, %v4928, %v4932
        %v4937 = vand.u32 2147483647, %v4927
        %vm4938 = vcmp.eq.f32.partialorder %v4937, 8.507059e+37
        %v4939 = vand.u32 %v4927, 2147483648
        %v4940 = vor.u32 1.1754944e-38, %v4939
        %v4941 = vsel %vm4938, %v4940, %v4936
        %v4942 = vmul.f32 %v4917, %v4941
        %v4943 = vmin.f32 %v4942, 1.0
        %v4944 = vmax.f32 %v4943, -1.0
        %v4945 = vmul.f32 %v3413, %v3413
        %v4946 = vmin.f32 16.0, %v4945
        %v4947 = vmul.f32 %v4946, 2.1237322e-06
        %v4948 = vadd.f32 %v4947, 0.00028619796
        %v4949 = vmul.f32 %v4946, %v4948
        %v4950 = vadd.f32 %v4949, 0.0036580483
        %v4951 = vmul.f32 %v4946, %v4950
        %v4952 = vadd.f32 %v4951, 0.05243302
        %v4953 = vmul.f32 %v4946, %v4952
        %v4954 = vadd.f32 %v4953, 0.18741608
        %v4955 = vmul.f32 %v4946, %v4954
        %v4956 = vadd.f32 %v4955, 1.1283791
        %v4957 = vmul.f32 %v3413, %v4956
        %v4958 = vmul.f32 %v4946, 3.8918573e-05
        %v4959 = vadd.f32 %v4958, 0.001143296
        %v4960 = vmul.f32 %v4946, %v4959
        %v4961 = vadd.f32 %v4960, 0.014752088
        %v4962 = vmul.f32 %v4946, %v4961
        %v4963 = vadd.f32 %v4962, 0.112945676
        %v4964 = vmul.f32 %v4946, %v4963
        %v4965 = vadd.f32 %v4964, 0.4994258
        %v4966 = vmul.f32 %v4946, %v4965
        %v4967 = vadd.f32 %v4966, 1.0
        %v4968 = vrcp.pop %v4967
        %v4969 = vmul.f32 %v4967, %v4968
        %v4970 = vsub.f32 1.0, %v4969
        %v4971 = vmul.f32 %v4968, %v4970
        %v4972 = vadd.f32 %v4968, %v4971
        %vm4973 = vweird.f32 %v4967
        %vm4974 = vweird.f32 %v4968
        %vm4975 = vmor %vm4973, %vm4974
        %v4976 = vsel %vm4975, %v4968, %v4972
        %v4977 = vand.u32 2147483647, %v4967
        %vm4978 = vcmp.eq.f32.partialorder %v4977, 8.507059e+37
        %v4979 = vand.u32 %v4967, 2147483648
        %v4980 = vor.u32 1.1754944e-38, %v4979
        %v4981 = vsel %vm4978, %v4980, %v4976
        %v4982 = vmul.f32 %v4957, %v4981
        %v4983 = vmin.f32 %v4982, 1.0
        %v4984 = vmax.f32 %v4983, -1.0
        %v4985 = vmul.f32 %v3414, %v3414
        %v4986 = vmin.f32 16.0, %v4985
        %v4987 = vmul.f32 %v4986, 2.1237322e-06
        %v4988 = vadd.f32 %v4987, 0.00028619796
        %v4989 = vmul.f32 %v4986, %v4988
        %v4990 = vadd.f32 %v4989, 0.0036580483
        %v4991 = vmul.f32 %v4986, %v4990
        %v4992 = vadd.f32 %v4991, 0.05243302
        %v4993 = vmul.f32 %v4986, %v4992
        %v4994 = vadd.f32 %v4993, 0.18741608
        %v4995 = vmul.f32 %v4986, %v4994
        %v4996 = vadd.f32 %v4995, 1.1283791
        %v4997 = vmul.f32 %v3414, %v4996
        %v4998 = vmul.f32 %v4986, 3.8918573e-05
        %v4999 = vadd.f32 %v4998, 0.001143296
        %v5000 = vmul.f32 %v4986, %v4999
        %v5001 = vadd.f32 %v5000, 0.014752088
        %v5002 = vmul.f32 %v4986, %v5001
        %v5003 = vadd.f32 %v5002, 0.112945676
        %v5004 = vmul.f32 %v4986, %v5003
        %v5005 = vadd.f32 %v5004, 0.4994258
        %v5006 = vmul.f32 %v4986, %v5005
        %v5007 = vadd.f32 %v5006, 1.0
        %v5008 = vrcp.pop %v5007
        %v5009 = vmul.f32 %v5007, %v5008
        %v5010 = vsub.f32 1.0, %v5009
        %v5011 = vmul.f32 %v5008, %v5010
        %v5012 = vadd.f32 %v5008, %v5011
        %vm5013 = vweird.f32 %v5007
        %vm5014 = vweird.f32 %v5008
        %vm5015 = vmor %vm5013, %vm5014
        %v5016 = vsel %vm5015, %v5008, %v5012
        %v5017 = vand.u32 2147483647, %v5007
        %vm5018 = vcmp.eq.f32.partialorder %v5017, 8.507059e+37
        %v5019 = vand.u32 %v5007, 2147483648
        %v5020 = vor.u32 1.1754944e-38, %v5019
        %v5021 = vsel %vm5018, %v5020, %v5016
        %v5022 = vmul.f32 %v4997, %v5021
        %v5023 = vmin.f32 %v5022, 1.0
        %v5024 = vmax.f32 %v5023, -1.0
        %v5025 = vmul.f32 %v3415, %v3415
        %v5026 = vmin.f32 16.0, %v5025
        %v5027 = vmul.f32 %v5026, 2.1237322e-06
        %v5028 = vadd.f32 %v5027, 0.00028619796
        %v5029 = vmul.f32 %v5026, %v5028
        %v5030 = vadd.f32 %v5029, 0.0036580483
        %v5031 = vmul.f32 %v5026, %v5030
        %v5032 = vadd.f32 %v5031, 0.05243302
        %v5033 = vmul.f32 %v5026, %v5032
        %v5034 = vadd.f32 %v5033, 0.18741608
        %v5035 = vmul.f32 %v5026, %v5034
        %v5036 = vadd.f32 %v5035, 1.1283791
        %v5037 = vmul.f32 %v3415, %v5036
        %v5038 = vmul.f32 %v5026, 3.8918573e-05
        %v5039 = vadd.f32 %v5038, 0.001143296
        %v5040 = vmul.f32 %v5026, %v5039
        %v5041 = vadd.f32 %v5040, 0.014752088
        %v5042 = vmul.f32 %v5026, %v5041
        %v5043 = vadd.f32 %v5042, 0.112945676
        %v5044 = vmul.f32 %v5026, %v5043
        %v5045 = vadd.f32 %v5044, 0.4994258
        %v5046 = vmul.f32 %v5026, %v5045
        %v5047 = vadd.f32 %v5046, 1.0
        %v5048 = vrcp.pop %v5047
        %v5049 = vmul.f32 %v5047, %v5048
        %v5050 = vsub.f32 1.0, %v5049
        %v5051 = vmul.f32 %v5048, %v5050
        %v5052 = vadd.f32 %v5048, %v5051
        %vm5053 = vweird.f32 %v5047
        %vm5054 = vweird.f32 %v5048
        %vm5055 = vmor %vm5053, %vm5054
        %v5056 = vsel %vm5055, %v5048, %v5052
        %v5057 = vand.u32 2147483647, %v5047
        %vm5058 = vcmp.eq.f32.partialorder %v5057, 8.507059e+37
        %v5059 = vand.u32 %v5047, 2147483648
        %v5060 = vor.u32 1.1754944e-38, %v5059
        %v5061 = vsel %vm5058, %v5060, %v5056
        %v5062 = vmul.f32 %v5037, %v5061
        %v5063 = vmin.f32 %v5062, 1.0
        %v5064 = vmax.f32 %v5063, -1.0
        %v5065 = vmul.f32 %v3416, %v3416
        %v5066 = vmin.f32 16.0, %v5065
        %v5067 = vmul.f32 %v5066, 2.1237322e-06
        %v5068 = vadd.f32 %v5067, 0.00028619796
        %v5069 = vmul.f32 %v5066, %v5068
        %v5070 = vadd.f32 %v5069, 0.0036580483
        %v5071 = vmul.f32 %v5066, %v5070
        %v5072 = vadd.f32 %v5071, 0.05243302
        %v5073 = vmul.f32 %v5066, %v5072
        %v5074 = vadd.f32 %v5073, 0.18741608
        %v5075 = vmul.f32 %v5066, %v5074
        %v5076 = vadd.f32 %v5075, 1.1283791
        %v5077 = vmul.f32 %v3416, %v5076
        %v5078 = vmul.f32 %v5066, 3.8918573e-05
        %v5079 = vadd.f32 %v5078, 0.001143296
        %v5080 = vmul.f32 %v5066, %v5079
        %v5081 = vadd.f32 %v5080, 0.014752088
        %v5082 = vmul.f32 %v5066, %v5081
        %v5083 = vadd.f32 %v5082, 0.112945676
        %v5084 = vmul.f32 %v5066, %v5083
        %v5085 = vadd.f32 %v5084, 0.4994258
        %v5086 = vmul.f32 %v5066, %v5085
        %v5087 = vadd.f32 %v5086, 1.0
        %v5088 = vrcp.pop %v5087
        %v5089 = vmul.f32 %v5087, %v5088
        %v5090 = vsub.f32 1.0, %v5089
        %v5091 = vmul.f32 %v5088, %v5090
        %v5092 = vadd.f32 %v5088, %v5091
        %vm5093 = vweird.f32 %v5087
        %vm5094 = vweird.f32 %v5088
        %vm5095 = vmor %vm5093, %vm5094
        %v5096 = vsel %vm5095, %v5088, %v5092
        %v5097 = vand.u32 2147483647, %v5087
        %vm5098 = vcmp.eq.f32.partialorder %v5097, 8.507059e+37
        %v5099 = vand.u32 %v5087, 2147483648
        %v5100 = vor.u32 1.1754944e-38, %v5099
        %v5101 = vsel %vm5098, %v5100, %v5096
        %v5102 = vmul.f32 %v5077, %v5101
        %v5103 = vmin.f32 %v5102, 1.0
        %v5104 = vmax.f32 %v5103, -1.0
        %v5105 = vmul.f32 %v3417, %v3417
        %v5106 = vmin.f32 16.0, %v5105
        %v5107 = vmul.f32 %v5106, 2.1237322e-06
        %v5108 = vadd.f32 %v5107, 0.00028619796
        %v5109 = vmul.f32 %v5106, %v5108
        %v5110 = vadd.f32 %v5109, 0.0036580483
        %v5111 = vmul.f32 %v5106, %v5110
        %v5112 = vadd.f32 %v5111, 0.05243302
        %v5113 = vmul.f32 %v5106, %v5112
        %v5114 = vadd.f32 %v5113, 0.18741608
        %v5115 = vmul.f32 %v5106, %v5114
        %v5116 = vadd.f32 %v5115, 1.1283791
        %v5117 = vmul.f32 %v3417, %v5116
        %v5118 = vmul.f32 %v5106, 3.8918573e-05
        %v5119 = vadd.f32 %v5118, 0.001143296
        %v5120 = vmul.f32 %v5106, %v5119
        %v5121 = vadd.f32 %v5120, 0.014752088
        %v5122 = vmul.f32 %v5106, %v5121
        %v5123 = vadd.f32 %v5122, 0.112945676
        %v5124 = vmul.f32 %v5106, %v5123
        %v5125 = vadd.f32 %v5124, 0.4994258
        %v5126 = vmul.f32 %v5106, %v5125
        %v5127 = vadd.f32 %v5126, 1.0
        %v5128 = vrcp.pop %v5127
        %v5129 = vmul.f32 %v5127, %v5128
        %v5130 = vsub.f32 1.0, %v5129
        %v5131 = vmul.f32 %v5128, %v5130
        %v5132 = vadd.f32 %v5128, %v5131
        %vm5133 = vweird.f32 %v5127
        %vm5134 = vweird.f32 %v5128
        %vm5135 = vmor %vm5133, %vm5134
        %v5136 = vsel %vm5135, %v5128, %v5132
        %v5137 = vand.u32 2147483647, %v5127
        %vm5138 = vcmp.eq.f32.partialorder %v5137, 8.507059e+37
        %v5139 = vand.u32 %v5127, 2147483648
        %v5140 = vor.u32 1.1754944e-38, %v5139
        %v5141 = vsel %vm5138, %v5140, %v5136
        %v5142 = vmul.f32 %v5117, %v5141
        %v5143 = vmin.f32 %v5142, 1.0
        %v5144 = vmax.f32 %v5143, -1.0
        %v5145 = vmul.f32 %v3418, %v3418
        %v5146 = vmin.f32 16.0, %v5145
        %v5147 = vmul.f32 %v5146, 2.1237322e-06
        %v5148 = vadd.f32 %v5147, 0.00028619796
        %v5149 = vmul.f32 %v5146, %v5148
        %v5150 = vadd.f32 %v5149, 0.0036580483
        %v5151 = vmul.f32 %v5146, %v5150
        %v5152 = vadd.f32 %v5151, 0.05243302
        %v5153 = vmul.f32 %v5146, %v5152
        %v5154 = vadd.f32 %v5153, 0.18741608
        %v5155 = vmul.f32 %v5146, %v5154
        %v5156 = vadd.f32 %v5155, 1.1283791
        %v5157 = vmul.f32 %v3418, %v5156
        %v5158 = vmul.f32 %v5146, 3.8918573e-05
        %v5159 = vadd.f32 %v5158, 0.001143296
        %v5160 = vmul.f32 %v5146, %v5159
        %v5161 = vadd.f32 %v5160, 0.014752088
        %v5162 = vmul.f32 %v5146, %v5161
        %v5163 = vadd.f32 %v5162, 0.112945676
        %v5164 = vmul.f32 %v5146, %v5163
        %v5165 = vadd.f32 %v5164, 0.4994258
        %v5166 = vmul.f32 %v5146, %v5165
        %v5167 = vadd.f32 %v5166, 1.0
        %v5168 = vrcp.pop %v5167
        %v5169 = vmul.f32 %v5167, %v5168
        %v5170 = vsub.f32 1.0, %v5169
        %v5171 = vmul.f32 %v5168, %v5170
        %v5172 = vadd.f32 %v5168, %v5171
        %vm5173 = vweird.f32 %v5167
        %vm5174 = vweird.f32 %v5168
        %vm5175 = vmor %vm5173, %vm5174
        %v5176 = vsel %vm5175, %v5168, %v5172
        %v5177 = vand.u32 2147483647, %v5167
        %vm5178 = vcmp.eq.f32.partialorder %v5177, 8.507059e+37
        %v5179 = vand.u32 %v5167, 2147483648
        %v5180 = vor.u32 1.1754944e-38, %v5179
        %v5181 = vsel %vm5178, %v5180, %v5176
        %v5182 = vmul.f32 %v5157, %v5181
        %v5183 = vmin.f32 %v5182, 1.0
        %v5184 = vmax.f32 %v5183, -1.0
        %v5185 = vmul.f32 %v3419, %v3419
        %v5186 = vmin.f32 16.0, %v5185
        %v5187 = vmul.f32 %v5186, 2.1237322e-06
        %v5188 = vadd.f32 %v5187, 0.00028619796
        %v5189 = vmul.f32 %v5186, %v5188
        %v5190 = vadd.f32 %v5189, 0.0036580483
        %v5191 = vmul.f32 %v5186, %v5190
        %v5192 = vadd.f32 %v5191, 0.05243302
        %v5193 = vmul.f32 %v5186, %v5192
        %v5194 = vadd.f32 %v5193, 0.18741608
        %v5195 = vmul.f32 %v5186, %v5194
        %v5196 = vadd.f32 %v5195, 1.1283791
        %v5197 = vmul.f32 %v3419, %v5196
        %v5198 = vmul.f32 %v5186, 3.8918573e-05
        %v5199 = vadd.f32 %v5198, 0.001143296
        %v5200 = vmul.f32 %v5186, %v5199
        %v5201 = vadd.f32 %v5200, 0.014752088
        %v5202 = vmul.f32 %v5186, %v5201
        %v5203 = vadd.f32 %v5202, 0.112945676
        %v5204 = vmul.f32 %v5186, %v5203
        %v5205 = vadd.f32 %v5204, 0.4994258
        %v5206 = vmul.f32 %v5186, %v5205
        %v5207 = vadd.f32 %v5206, 1.0
        %v5208 = vrcp.pop %v5207
        %v5209 = vmul.f32 %v5207, %v5208
        %v5210 = vsub.f32 1.0, %v5209
        %v5211 = vmul.f32 %v5208, %v5210
        %v5212 = vadd.f32 %v5208, %v5211
        %vm5213 = vweird.f32 %v5207
        %vm5214 = vweird.f32 %v5208
        %vm5215 = vmor %vm5213, %vm5214
        %v5216 = vsel %vm5215, %v5208, %v5212
        %v5217 = vand.u32 2147483647, %v5207
        %vm5218 = vcmp.eq.f32.partialorder %v5217, 8.507059e+37
        %v5219 = vand.u32 %v5207, 2147483648
        %v5220 = vor.u32 1.1754944e-38, %v5219
        %v5221 = vsel %vm5218, %v5220, %v5216
        %v5222 = vmul.f32 %v5197, %v5221
        %v5223 = vmin.f32 %v5222, 1.0
        %v5224 = vmax.f32 %v5223, -1.0
        %v5225 = vmul.f32 %v3420, %v3420
        %v5226 = vmin.f32 16.0, %v5225
        %v5227 = vmul.f32 %v5226, 2.1237322e-06
        %v5228 = vadd.f32 %v5227, 0.00028619796
        %v5229 = vmul.f32 %v5226, %v5228
        %v5230 = vadd.f32 %v5229, 0.0036580483
        %v5231 = vmul.f32 %v5226, %v5230
        %v5232 = vadd.f32 %v5231, 0.05243302
        %v5233 = vmul.f32 %v5226, %v5232
        %v5234 = vadd.f32 %v5233, 0.18741608
        %v5235 = vmul.f32 %v5226, %v5234
        %v5236 = vadd.f32 %v5235, 1.1283791
        %v5237 = vmul.f32 %v3420, %v5236
        %v5238 = vmul.f32 %v5226, 3.8918573e-05
        %v5239 = vadd.f32 %v5238, 0.001143296
        %v5240 = vmul.f32 %v5226, %v5239
        %v5241 = vadd.f32 %v5240, 0.014752088
        %v5242 = vmul.f32 %v5226, %v5241
        %v5243 = vadd.f32 %v5242, 0.112945676
        %v5244 = vmul.f32 %v5226, %v5243
        %v5245 = vadd.f32 %v5244, 0.4994258
        %v5246 = vmul.f32 %v5226, %v5245
        %v5247 = vadd.f32 %v5246, 1.0
        %v5248 = vrcp.pop %v5247
        %v5249 = vmul.f32 %v5247, %v5248
        %v5250 = vsub.f32 1.0, %v5249
        %v5251 = vmul.f32 %v5248, %v5250
        %v5252 = vadd.f32 %v5248, %v5251
        %vm5253 = vweird.f32 %v5247
        %vm5254 = vweird.f32 %v5248
        %vm5255 = vmor %vm5253, %vm5254
        %v5256 = vsel %vm5255, %v5248, %v5252
        %v5257 = vand.u32 2147483647, %v5247
        %vm5258 = vcmp.eq.f32.partialorder %v5257, 8.507059e+37
        %v5259 = vand.u32 %v5247, 2147483648
        %v5260 = vor.u32 1.1754944e-38, %v5259
        %v5261 = vsel %vm5258, %v5260, %v5256
        %v5262 = vmul.f32 %v5237, %v5261
        %v5263 = vmin.f32 %v5262, 1.0
        %v5264 = vmax.f32 %v5263, -1.0
        %v5265 = vmul.f32 %v3421, %v3421
        %v5266 = vmin.f32 16.0, %v5265
        %v5267 = vmul.f32 %v5266, 2.1237322e-06
        %v5268 = vadd.f32 %v5267, 0.00028619796
        %v5269 = vmul.f32 %v5266, %v5268
        %v5270 = vadd.f32 %v5269, 0.0036580483
        %v5271 = vmul.f32 %v5266, %v5270
        %v5272 = vadd.f32 %v5271, 0.05243302
        %v5273 = vmul.f32 %v5266, %v5272
        %v5274 = vadd.f32 %v5273, 0.18741608
        %v5275 = vmul.f32 %v5266, %v5274
        %v5276 = vadd.f32 %v5275, 1.1283791
        %v5277 = vmul.f32 %v3421, %v5276
        %v5278 = vmul.f32 %v5266, 3.8918573e-05
        %v5279 = vadd.f32 %v5278, 0.001143296
        %v5280 = vmul.f32 %v5266, %v5279
        %v5281 = vadd.f32 %v5280, 0.014752088
        %v5282 = vmul.f32 %v5266, %v5281
        %v5283 = vadd.f32 %v5282, 0.112945676
        %v5284 = vmul.f32 %v5266, %v5283
        %v5285 = vadd.f32 %v5284, 0.4994258
        %v5286 = vmul.f32 %v5266, %v5285
        %v5287 = vadd.f32 %v5286, 1.0
        %v5288 = vrcp.pop %v5287
        %v5289 = vmul.f32 %v5287, %v5288
        %v5290 = vsub.f32 1.0, %v5289
        %v5291 = vmul.f32 %v5288, %v5290
        %v5292 = vadd.f32 %v5288, %v5291
        %vm5293 = vweird.f32 %v5287
        %vm5294 = vweird.f32 %v5288
        %vm5295 = vmor %vm5293, %vm5294
        %v5296 = vsel %vm5295, %v5288, %v5292
        %v5297 = vand.u32 2147483647, %v5287
        %vm5298 = vcmp.eq.f32.partialorder %v5297, 8.507059e+37
        %v5299 = vand.u32 %v5287, 2147483648
        %v5300 = vor.u32 1.1754944e-38, %v5299
        %v5301 = vsel %vm5298, %v5300, %v5296
        %v5302 = vmul.f32 %v5277, %v5301
        %v5303 = vmin.f32 %v5302, 1.0
        %v5304 = vmax.f32 %v5303, -1.0
        %v5305 = vmul.f32 %v3422, %v3422
        %v5306 = vmin.f32 16.0, %v5305
        %v5307 = vmul.f32 %v5306, 2.1237322e-06
        %v5308 = vadd.f32 %v5307, 0.00028619796
        %v5309 = vmul.f32 %v5306, %v5308
        %v5310 = vadd.f32 %v5309, 0.0036580483
        %v5311 = vmul.f32 %v5306, %v5310
        %v5312 = vadd.f32 %v5311, 0.05243302
        %v5313 = vmul.f32 %v5306, %v5312
        %v5314 = vadd.f32 %v5313, 0.18741608
        %v5315 = vmul.f32 %v5306, %v5314
        %v5316 = vadd.f32 %v5315, 1.1283791
        %v5317 = vmul.f32 %v3422, %v5316
        %v5318 = vmul.f32 %v5306, 3.8918573e-05
        %v5319 = vadd.f32 %v5318, 0.001143296
        %v5320 = vmul.f32 %v5306, %v5319
        %v5321 = vadd.f32 %v5320, 0.014752088
        %v5322 = vmul.f32 %v5306, %v5321
        %v5323 = vadd.f32 %v5322, 0.112945676
        %v5324 = vmul.f32 %v5306, %v5323
        %v5325 = vadd.f32 %v5324, 0.4994258
        %v5326 = vmul.f32 %v5306, %v5325
        %v5327 = vadd.f32 %v5326, 1.0
        %v5328 = vrcp.pop %v5327
        %v5329 = vmul.f32 %v5327, %v5328
        %v5330 = vsub.f32 1.0, %v5329
        %v5331 = vmul.f32 %v5328, %v5330
        %v5332 = vadd.f32 %v5328, %v5331
        %vm5333 = vweird.f32 %v5327
        %vm5334 = vweird.f32 %v5328
        %vm5335 = vmor %vm5333, %vm5334
        %v5336 = vsel %vm5335, %v5328, %v5332
        %v5337 = vand.u32 2147483647, %v5327
        %vm5338 = vcmp.eq.f32.partialorder %v5337, 8.507059e+37
        %v5339 = vand.u32 %v5327, 2147483648
        %v5340 = vor.u32 1.1754944e-38, %v5339
        %v5341 = vsel %vm5338, %v5340, %v5336
        %v5342 = vmul.f32 %v5317, %v5341
        %v5343 = vmin.f32 %v5342, 1.0
        %v5344 = vmax.f32 %v5343, -1.0
        %v5345 = vmul.f32 %v3423, %v3423
        %v5346 = vmin.f32 16.0, %v5345
        %v5347 = vmul.f32 %v5346, 2.1237322e-06
        %v5348 = vadd.f32 %v5347, 0.00028619796
        %v5349 = vmul.f32 %v5346, %v5348
        %v5350 = vadd.f32 %v5349, 0.0036580483
        %v5351 = vmul.f32 %v5346, %v5350
        %v5352 = vadd.f32 %v5351, 0.05243302
        %v5353 = vmul.f32 %v5346, %v5352
        %v5354 = vadd.f32 %v5353, 0.18741608
        %v5355 = vmul.f32 %v5346, %v5354
        %v5356 = vadd.f32 %v5355, 1.1283791
        %v5357 = vmul.f32 %v3423, %v5356
        %v5358 = vmul.f32 %v5346, 3.8918573e-05
        %v5359 = vadd.f32 %v5358, 0.001143296
        %v5360 = vmul.f32 %v5346, %v5359
        %v5361 = vadd.f32 %v5360, 0.014752088
        %v5362 = vmul.f32 %v5346, %v5361
        %v5363 = vadd.f32 %v5362, 0.112945676
        %v5364 = vmul.f32 %v5346, %v5363
        %v5365 = vadd.f32 %v5364, 0.4994258
        %v5366 = vmul.f32 %v5346, %v5365
        %v5367 = vadd.f32 %v5366, 1.0
        %v5368 = vrcp.pop %v5367
        %v5369 = vmul.f32 %v5367, %v5368
        %v5370 = vsub.f32 1.0, %v5369
        %v5371 = vmul.f32 %v5368, %v5370
        %v5372 = vadd.f32 %v5368, %v5371
        %vm5373 = vweird.f32 %v5367
        %vm5374 = vweird.f32 %v5368
        %vm5375 = vmor %vm5373, %vm5374
        %v5376 = vsel %vm5375, %v5368, %v5372
        %v5377 = vand.u32 2147483647, %v5367
        %vm5378 = vcmp.eq.f32.partialorder %v5377, 8.507059e+37
        %v5379 = vand.u32 %v5367, 2147483648
        %v5380 = vor.u32 1.1754944e-38, %v5379
        %v5381 = vsel %vm5378, %v5380, %v5376
        %v5382 = vmul.f32 %v5357, %v5381
        %v5383 = vmin.f32 %v5382, 1.0
        %v5384 = vmax.f32 %v5383, -1.0
        %v5385 = vmul.f32 %v3424, %v3424
        %v5386 = vmin.f32 16.0, %v5385
        %v5387 = vmul.f32 %v5386, 2.1237322e-06
        %v5388 = vadd.f32 %v5387, 0.00028619796
        %v5389 = vmul.f32 %v5386, %v5388
        %v5390 = vadd.f32 %v5389, 0.0036580483
        %v5391 = vmul.f32 %v5386, %v5390
        %v5392 = vadd.f32 %v5391, 0.05243302
        %v5393 = vmul.f32 %v5386, %v5392
        %v5394 = vadd.f32 %v5393, 0.18741608
        %v5395 = vmul.f32 %v5386, %v5394
        %v5396 = vadd.f32 %v5395, 1.1283791
        %v5397 = vmul.f32 %v3424, %v5396
        %v5398 = vmul.f32 %v5386, 3.8918573e-05
        %v5399 = vadd.f32 %v5398, 0.001143296
        %v5400 = vmul.f32 %v5386, %v5399
        %v5401 = vadd.f32 %v5400, 0.014752088
        %v5402 = vmul.f32 %v5386, %v5401
        %v5403 = vadd.f32 %v5402, 0.112945676
        %v5404 = vmul.f32 %v5386, %v5403
        %v5405 = vadd.f32 %v5404, 0.4994258
        %v5406 = vmul.f32 %v5386, %v5405
        %v5407 = vadd.f32 %v5406, 1.0
        %v5408 = vrcp.pop %v5407
        %v5409 = vmul.f32 %v5407, %v5408
        %v5410 = vsub.f32 1.0, %v5409
        %v5411 = vmul.f32 %v5408, %v5410
        %v5412 = vadd.f32 %v5408, %v5411
        %vm5413 = vweird.f32 %v5407
        %vm5414 = vweird.f32 %v5408
        %vm5415 = vmor %vm5413, %vm5414
        %v5416 = vsel %vm5415, %v5408, %v5412
        %v5417 = vand.u32 2147483647, %v5407
        %vm5418 = vcmp.eq.f32.partialorder %v5417, 8.507059e+37
        %v5419 = vand.u32 %v5407, 2147483648
        %v5420 = vor.u32 1.1754944e-38, %v5419
        %v5421 = vsel %vm5418, %v5420, %v5416
        %v5422 = vmul.f32 %v5397, %v5421
        %v5423 = vmin.f32 %v5422, 1.0
        %v5424 = vmax.f32 %v5423, -1.0
        %v5425 = vadd.f32 %v3464, 1.0
        %v5426 = vadd.f32 %v3504, 1.0
        %v5427 = vadd.f32 %v3544, 1.0
        %v5428 = vadd.f32 %v3584, 1.0
        %v5429 = vadd.f32 %v3624, 1.0
        %v5430 = vadd.f32 %v3664, 1.0
        %v5431 = vadd.f32 %v3704, 1.0
        %v5432 = vadd.f32 %v3744, 1.0
        %v5433 = vadd.f32 %v3784, 1.0
        %v5434 = vadd.f32 %v3824, 1.0
        %v5435 = vadd.f32 %v3864, 1.0
        %v5436 = vadd.f32 %v3904, 1.0
        %v5437 = vadd.f32 %v3944, 1.0
        %v5438 = vadd.f32 %v3984, 1.0
        %v5439 = vadd.f32 %v4024, 1.0
        %v5440 = vadd.f32 %v4064, 1.0
        %v5441 = vadd.f32 %v4104, 1.0
        %v5442 = vadd.f32 %v4144, 1.0
        %v5443 = vadd.f32 %v4184, 1.0
        %v5444 = vadd.f32 %v4224, 1.0
        %v5445 = vadd.f32 %v4264, 1.0
        %v5446 = vadd.f32 %v4304, 1.0
        %v5447 = vadd.f32 %v4344, 1.0
        %v5448 = vadd.f32 %v4384, 1.0
        %v5449 = vadd.f32 %v4424, 1.0
        %v5450 = vadd.f32 %v4464, 1.0
        %v5451 = vadd.f32 %v4504, 1.0
        %v5452 = vadd.f32 %v4544, 1.0
        %v5453 = vadd.f32 %v4584, 1.0
        %v5454 = vadd.f32 %v4624, 1.0
        %v5455 = vadd.f32 %v4664, 1.0
        %v5456 = vadd.f32 %v4704, 1.0
        %v5457 = vadd.f32 %v4744, 1.0
        %v5458 = vadd.f32 %v4784, 1.0
        %v5459 = vadd.f32 %v4824, 1.0
        %v5460 = vadd.f32 %v4864, 1.0
        %v5461 = vadd.f32 %v4904, 1.0
        %v5462 = vadd.f32 %v4944, 1.0
        %v5463 = vadd.f32 %v4984, 1.0
        %v5464 = vadd.f32 %v5024, 1.0
        %v5465 = vadd.f32 %v5064, 1.0
        %v5466 = vadd.f32 %v5104, 1.0
        %v5467 = vadd.f32 %v5144, 1.0
        %v5468 = vadd.f32 %v5184, 1.0
        %v5469 = vadd.f32 %v5224, 1.0
        %v5470 = vadd.f32 %v5264, 1.0
        %v5471 = vadd.f32 %v5304, 1.0
        %v5472 = vadd.f32 %v5344, 1.0
        %v5473 = vadd.f32 %v5384, 1.0
        %v5474 = vadd.f32 %v5424, 1.0
        %v5475 = vmul.f32 %v3325, %v5425
        %v5476 = vmul.f32 %v3326, %v5426
        %v5477 = vmul.f32 %v3327, %v5427
        %v5478 = vmul.f32 %v3328, %v5428
        %v5479 = vmul.f32 %v3329, %v5429
        %v5480 = vmul.f32 %v3330, %v5430
        %v5481 = vmul.f32 %v3331, %v5431
        %v5482 = vmul.f32 %v3332, %v5432
        %v5483 = vmul.f32 %v3333, %v5433
        %v5484 = vmul.f32 %v3334, %v5434
        %v5485 = vmul.f32 %v3335, %v5435
        %v5486 = vmul.f32 %v3336, %v5436
        %v5487 = vmul.f32 %v3337, %v5437
        %v5488 = vmul.f32 %v3338, %v5438
        %v5489 = vmul.f32 %v3339, %v5439
        %v5490 = vmul.f32 %v3340, %v5440
        %v5491 = vmul.f32 %v3341, %v5441
        %v5492 = vmul.f32 %v3342, %v5442
        %v5493 = vmul.f32 %v3343, %v5443
        %v5494 = vmul.f32 %v3344, %v5444
        %v5495 = vmul.f32 %v3345, %v5445
        %v5496 = vmul.f32 %v3346, %v5446
        %v5497 = vmul.f32 %v3347, %v5447
        %v5498 = vmul.f32 %v3348, %v5448
        %v5499 = vmul.f32 %v3349, %v5449
        %v5500 = vmul.f32 %v3350, %v5450
        %v5501 = vmul.f32 %v3351, %v5451
        %v5502 = vmul.f32 %v3352, %v5452
        %v5503 = vmul.f32 %v3353, %v5453
        %v5504 = vmul.f32 %v3354, %v5454
        %v5505 = vmul.f32 %v3355, %v5455
        %v5506 = vmul.f32 %v3356, %v5456
        %v5507 = vmul.f32 %v3357, %v5457
        %v5508 = vmul.f32 %v3358, %v5458
        %v5509 = vmul.f32 %v3359, %v5459
        %v5510 = vmul.f32 %v3360, %v5460
        %v5511 = vmul.f32 %v3361, %v5461
        %v5512 = vmul.f32 %v3362, %v5462
        %v5513 = vmul.f32 %v3363, %v5463
        %v5514 = vmul.f32 %v3364, %v5464
        %v5515 = vmul.f32 %v3365, %v5465
        %v5516 = vmul.f32 %v3366, %v5466
        %v5517 = vmul.f32 %v3367, %v5467
        %v5518 = vmul.f32 %v3368, %v5468
        %v5519 = vmul.f32 %v3369, %v5469
        %v5520 = vmul.f32 %v3370, %v5470
        %v5521 = vmul.f32 %v3371, %v5471
        %v5522 = vmul.f32 %v3372, %v5472
        %v5523 = vmul.f32 %v3373, %v5473
        %v5524 = vmul.f32 %v3374, %v5474
        %5525 = vst [vmem:[#allocation2] sm:$0xff] %v5475
        %5526 = vst [vmem:[#allocation2 + $0x8] sm:$0xff] %v5476
        %5527 = vst [vmem:[#allocation2 + $0x10] sm:$0xff] %v5477
        %5528 = vst [vmem:[#allocation2 + $0x18] sm:$0xff] %v5478
        %5529 = vst [vmem:[#allocation2 + $0x20] sm:$0xff] %v5479
        %5530 = vst [vmem:[#allocation2 + $0x28] sm:$0xff] %v5480
        %5531 = vst [vmem:[#allocation2 + $0x30] sm:$0xff] %v5481
        %5532 = vst [vmem:[#allocation2 + $0x38] sm:$0xff] %v5482
        %5533 = vst [vmem:[#allocation2 + $0x40] sm:$0xff] %v5483
        %5534 = vst [vmem:[#allocation2 + $0x48] sm:$0xff] %v5484
        %5535 = vst [vmem:[#allocation2 + $0x50] sm:$0xff] %v5485
        %5536 = vst [vmem:[#allocation2 + $0x58] sm:$0xff] %v5486
        %5537 = vst [vmem:[#allocation2 + $0x60] sm:$0xff] %v5487
        %5538 = vst [vmem:[#allocation2 + $0x68] sm:$0xff] %v5488
        %5539 = vst [vmem:[#allocation2 + $0x70] sm:$0xff] %v5489
        %5540 = vst [vmem:[#allocation2 + $0x78] sm:$0xff] %v5490
        %5541 = vst [vmem:[#allocation2 + $0x80] sm:$0xff] %v5491
        %5542 = vst [vmem:[#allocation2 + $0x88] sm:$0xff] %v5492
        %5543 = vst [vmem:[#allocation2 + $0x90] sm:$0xff] %v5493
        %5544 = vst [vmem:[#allocation2 + $0x98] sm:$0xff] %v5494
        %5545 = vst [vmem:[#allocation2 + $0xa0] sm:$0xff] %v5495
        %5546 = vst [vmem:[#allocation2 + $0xa8] sm:$0xff] %v5496
        %5547 = vst [vmem:[#allocation2 + $0xb0] sm:$0xff] %v5497
        %5548 = vst [vmem:[#allocation2 + $0xb8] sm:$0xff] %v5498
        %5549 = vst [vmem:[#allocation2 + $0xc0] sm:$0xff] %v5499
        %5550 = vst [vmem:[#allocation2 + $0xc8] sm:$0xff] %v5500
        %5551 = vst [vmem:[#allocation2 + $0xd0] sm:$0xff] %v5501
        %5552 = vst [vmem:[#allocation2 + $0xd8] sm:$0xff] %v5502
        %5553 = vst [vmem:[#allocation2 + $0xe0] sm:$0xff] %v5503
        %5554 = vst [vmem:[#allocation2 + $0xe8] sm:$0xff] %v5504
        %5555 = vst [vmem:[#allocation2 + $0xf0] sm:$0xff] %v5505
        %5556 = vst [vmem:[#allocation2 + $0xf8] sm:$0xff] %v5506
        %5557 = vst [vmem:[#allocation2 + $0x100] sm:$0xff] %v5507
        %5558 = vst [vmem:[#allocation2 + $0x108] sm:$0xff] %v5508
        %5559 = vst [vmem:[#allocation2 + $0x110] sm:$0xff] %v5509
        %5560 = vst [vmem:[#allocation2 + $0x118] sm:$0xff] %v5510
        %5561 = vst [vmem:[#allocation2 + $0x120] sm:$0xff] %v5511
        %5562 = vst [vmem:[#allocation2 + $0x128] sm:$0xff] %v5512
        %5563 = vst [vmem:[#allocation2 + $0x130] sm:$0xff] %v5513
        %5564 = vst [vmem:[#allocation2 + $0x138] sm:$0xff] %v5514
        %5565 = vst [vmem:[#allocation2 + $0x140] sm:$0xff] %v5515
        %5566 = vst [vmem:[#allocation2 + $0x148] sm:$0xff] %v5516
        %5567 = vst [vmem:[#allocation2 + $0x150] sm:$0xff] %v5517
        %5568 = vst [vmem:[#allocation2 + $0x158] sm:$0xff] %v5518
        %5569 = vst [vmem:[#allocation2 + $0x160] sm:$0xff] %v5519
        %5570 = vst [vmem:[#allocation2 + $0x168] sm:$0xff] %v5520
        %5571 = vst [vmem:[#allocation2 + $0x170] sm:$0xff] %v5521
        %5572 = vst [vmem:[#allocation2 + $0x178] sm:$0xff] %v5522
        %5573 = vst [vmem:[#allocation2 + $0x180] sm:$0xff] %v5523
        %5574 = vst [vmem:[#allocation2 + $0x188] sm:$0x7f] %v5524
        %v5575 = vld [vmem:[#allocation2] ss:$4 sm:$0xff]
        %s5576 = scalar_lea.vmem [#allocation2], 32
        %v5577 = vld [vmem:[%s5576] ss:$4 sm:$0xff]
        %s5578 = scalar_lea.vmem [#allocation2], 64
        %v5579 = vld [vmem:[%s5578] ss:$4 sm:$0xff]
        %s5580 = scalar_lea.vmem [#allocation2], 96
        %v5581 = vld [vmem:[%s5580] ss:$4 sm:$0xff]
        %s5582 = scalar_lea.vmem [#allocation2], 128
        %v5583 = vld [vmem:[%s5582] ss:$4 sm:$0xff]
        %s5584 = scalar_lea.vmem [#allocation2], 160
        %v5585 = vld [vmem:[%s5584] ss:$4 sm:$0xff]
        %s5586 = scalar_lea.vmem [#allocation2], 192
        %v5587 = vld [vmem:[%s5586] ss:$4 sm:$0xff]
        %s5588 = scalar_lea.vmem [#allocation2], 224
        %v5589 = vld [vmem:[%s5588] ss:$4 sm:$0xff]
        %s5590 = scalar_lea.vmem [#allocation2], 256
        %v5591 = vld [vmem:[%s5590] ss:$4 sm:$0xff]
        %s5592 = scalar_lea.vmem [#allocation2], 288
        %v5593 = vld [vmem:[%s5592] ss:$4 sm:$0xff]
        %s5594 = scalar_lea.vmem [#allocation2], 320
        %v5595 = vld [vmem:[%s5594] ss:$4 sm:$0xff]
        %s5596 = scalar_lea.vmem [#allocation2], 352
        %v5597 = vld [vmem:[%s5596] ss:$4 sm:$0xff]
        %s5598 = scalar_lea.vmem [#allocation2], 384
        %v5599 = vld [vmem:[%s5598] ss:$4 sm:$0x7]
        %5600 = vst [vmem:[#allocation8] sm:$0xff] %v5575
        %5601 = vst [vmem:[#allocation8 + $0x28] sm:$0xff] %v5577
        %5602 = vst [vmem:[#allocation8 + $0x50] sm:$0xff] %v5579
        %5603 = vst [vmem:[#allocation8 + $0x78] sm:$0xff] %v5581
        %5604 = vst [vmem:[#allocation8 + $0xa0] sm:$0xff] %v5583
        %5605 = vst [vmem:[#allocation8 + $0xc8] sm:$0xff] %v5585
        %5606 = vst [vmem:[#allocation8 + $0xf0] sm:$0xff] %v5587
        %5607 = vst [vmem:[#allocation8 + $0x118] sm:$0xff] %v5589
        %5608 = vst [vmem:[#allocation8 + $0x140] sm:$0xff] %v5591
        %5609 = vst [vmem:[#allocation8 + $0x168] sm:$0xff] %v5593
        %5610 = vst [vmem:[#allocation8 + $0x190] sm:$0xff] %v5595
        %5611 = vst [vmem:[#allocation8 + $0x1b8] sm:$0xff] %v5597
        %5612 = vst [vmem:[#allocation8 + $0x1e0] sm:$0x7] %v5599
        %s5613 = scalar_lea.vmem [#allocation2], 1
        %v5614 = vld [vmem:[%s5613] ss:$4 sm:$0xff]
        %s5615 = scalar_lea.vmem [#allocation2], 33
        %v5616 = vld [vmem:[%s5615] ss:$4 sm:$0xff]
        %s5617 = scalar_lea.vmem [#allocation2], 65
        %v5618 = vld [vmem:[%s5617] ss:$4 sm:$0xff]
        %s5619 = scalar_lea.vmem [#allocation2], 97
        %v5620 = vld [vmem:[%s5619] ss:$4 sm:$0xff]
        %s5621 = scalar_lea.vmem [#allocation2], 129
        %v5622 = vld [vmem:[%s5621] ss:$4 sm:$0xff]
        %s5623 = scalar_lea.vmem [#allocation2], 161
        %v5624 = vld [vmem:[%s5623] ss:$4 sm:$0xff]
        %s5625 = scalar_lea.vmem [#allocation2], 193
        %v5626 = vld [vmem:[%s5625] ss:$4 sm:$0xff]
        %s5627 = scalar_lea.vmem [#allocation2], 225
        %v5628 = vld [vmem:[%s5627] ss:$4 sm:$0xff]
        %s5629 = scalar_lea.vmem [#allocation2], 257
        %v5630 = vld [vmem:[%s5629] ss:$4 sm:$0xff]
        %s5631 = scalar_lea.vmem [#allocation2], 289
        %v5632 = vld [vmem:[%s5631] ss:$4 sm:$0xff]
        %s5633 = scalar_lea.vmem [#allocation2], 321
        %v5634 = vld [vmem:[%s5633] ss:$4 sm:$0xff]
        %s5635 = scalar_lea.vmem [#allocation2], 353
        %v5636 = vld [vmem:[%s5635] ss:$4 sm:$0xff]
        %s5637 = scalar_lea.vmem [#allocation2], 385
        %v5638 = vld [vmem:[%s5637] ss:$4 sm:$0x7]
        %5639 = vst [vmem:[#allocation8 + $0x8] sm:$0xff] %v5614
        %5640 = vst [vmem:[#allocation8 + $0x30] sm:$0xff] %v5616
        %5641 = vst [vmem:[#allocation8 + $0x58] sm:$0xff] %v5618
        %5642 = vst [vmem:[#allocation8 + $0x80] sm:$0xff] %v5620
        %5643 = vst [vmem:[#allocation8 + $0xa8] sm:$0xff] %v5622
        %5644 = vst [vmem:[#allocation8 + $0xd0] sm:$0xff] %v5624
        %5645 = vst [vmem:[#allocation8 + $0xf8] sm:$0xff] %v5626
        %5646 = vst [vmem:[#allocation8 + $0x120] sm:$0xff] %v5628
        %5647 = vst [vmem:[#allocation8 + $0x148] sm:$0xff] %v5630
        %5648 = vst [vmem:[#allocation8 + $0x170] sm:$0xff] %v5632
        %5649 = vst [vmem:[#allocation8 + $0x198] sm:$0xff] %v5634
        %5650 = vst [vmem:[#allocation8 + $0x1c0] sm:$0xff] %v5636
        %5651 = vst [vmem:[#allocation8 + $0x1e8] sm:$0x7] %v5638
        %s5652 = scalar_lea.vmem [#allocation2], 2
        %v5653 = vld [vmem:[%s5652] ss:$4 sm:$0xff]
        %s5654 = scalar_lea.vmem [#allocation2], 34
        %v5655 = vld [vmem:[%s5654] ss:$4 sm:$0xff]
        %s5656 = scalar_lea.vmem [#allocation2], 66
        %v5657 = vld [vmem:[%s5656] ss:$4 sm:$0xff]
        %s5658 = scalar_lea.vmem [#allocation2], 98
        %v5659 = vld [vmem:[%s5658] ss:$4 sm:$0xff]
        %s5660 = scalar_lea.vmem [#allocation2], 130
        %v5661 = vld [vmem:[%s5660] ss:$4 sm:$0xff]
        %s5662 = scalar_lea.vmem [#allocation2], 162
        %v5663 = vld [vmem:[%s5662] ss:$4 sm:$0xff]
        %s5664 = scalar_lea.vmem [#allocation2], 194
        %v5665 = vld [vmem:[%s5664] ss:$4 sm:$0xff]
        %s5666 = scalar_lea.vmem [#allocation2], 226
        %v5667 = vld [vmem:[%s5666] ss:$4 sm:$0xff]
        %s5668 = scalar_lea.vmem [#allocation2], 258
        %v5669 = vld [vmem:[%s5668] ss:$4 sm:$0xff]
        %s5670 = scalar_lea.vmem [#allocation2], 290
        %v5671 = vld [vmem:[%s5670] ss:$4 sm:$0xff]
        %s5672 = scalar_lea.vmem [#allocation2], 322
        %v5673 = vld [vmem:[%s5672] ss:$4 sm:$0xff]
        %s5674 = scalar_lea.vmem [#allocation2], 354
        %v5675 = vld [vmem:[%s5674] ss:$4 sm:$0xff]
        %s5676 = scalar_lea.vmem [#allocation2], 386
        %v5677 = vld [vmem:[%s5676] ss:$4 sm:$0x7]
        %5678 = vst [vmem:[#allocation8 + $0x10] sm:$0xff] %v5653
        %5679 = vst [vmem:[#allocation8 + $0x38] sm:$0xff] %v5655
        %5680 = vst [vmem:[#allocation8 + $0x60] sm:$0xff] %v5657
        %5681 = vst [vmem:[#allocation8 + $0x88] sm:$0xff] %v5659
        %5682 = vst [vmem:[#allocation8 + $0xb0] sm:$0xff] %v5661
        %5683 = vst [vmem:[#allocation8 + $0xd8] sm:$0xff] %v5663
        %5684 = vst [vmem:[#allocation8 + $0x100] sm:$0xff] %v5665
        %5685 = vst [vmem:[#allocation8 + $0x128] sm:$0xff] %v5667
        %5686 = vst [vmem:[#allocation8 + $0x150] sm:$0xff] %v5669
        %5687 = vst [vmem:[#allocation8 + $0x178] sm:$0xff] %v5671
        %5688 = vst [vmem:[#allocation8 + $0x1a0] sm:$0xff] %v5673
        %5689 = vst [vmem:[#allocation8 + $0x1c8] sm:$0xff] %v5675
        %5690 = vst [vmem:[#allocation8 + $0x1f0] sm:$0x7] %v5677
        %s5691 = scalar_lea.vmem [#allocation2], 3
        %v5692 = vld [vmem:[%s5691] ss:$4 sm:$0xff]
        %s5693 = scalar_lea.vmem [#allocation2], 35
        %v5694 = vld [vmem:[%s5693] ss:$4 sm:$0xff]
        %s5695 = scalar_lea.vmem [#allocation2], 67
        %v5696 = vld [vmem:[%s5695] ss:$4 sm:$0xff]
        %s5697 = scalar_lea.vmem [#allocation2], 99
        %v5698 = vld [vmem:[%s5697] ss:$4 sm:$0xff]
        %s5699 = scalar_lea.vmem [#allocation2], 131
        %v5700 = vld [vmem:[%s5699] ss:$4 sm:$0xff]
        %s5701 = scalar_lea.vmem [#allocation2], 163
        %v5702 = vld [vmem:[%s5701] ss:$4 sm:$0xff]
        %s5703 = scalar_lea.vmem [#allocation2], 195
        %v5704 = vld [vmem:[%s5703] ss:$4 sm:$0xff]
        %s5705 = scalar_lea.vmem [#allocation2], 227
        %v5706 = vld [vmem:[%s5705] ss:$4 sm:$0xff]
        %s5707 = scalar_lea.vmem [#allocation2], 259
        %v5708 = vld [vmem:[%s5707] ss:$4 sm:$0xff]
        %s5709 = scalar_lea.vmem [#allocation2], 291
        %v5710 = vld [vmem:[%s5709] ss:$4 sm:$0xff]
        %s5711 = scalar_lea.vmem [#allocation2], 323
        %v5712 = vld [vmem:[%s5711] ss:$4 sm:$0xff]
        %s5713 = scalar_lea.vmem [#allocation2], 355
        %v5714 = vld [vmem:[%s5713] ss:$4 sm:$0xff]
        %s5715 = scalar_lea.vmem [#allocation2], 387
        %v5716 = vld [vmem:[%s5715] ss:$4 sm:$0x7]
        %5717 = vst [vmem:[#allocation8 + $0x18] sm:$0xff] %v5692
        %5718 = vst [vmem:[#allocation8 + $0x40] sm:$0xff] %v5694
        %5719 = vst [vmem:[#allocation8 + $0x68] sm:$0xff] %v5696
        %5720 = vst [vmem:[#allocation8 + $0x90] sm:$0xff] %v5698
        %5721 = vst [vmem:[#allocation8 + $0xb8] sm:$0xff] %v5700
        %5722 = vst [vmem:[#allocation8 + $0xe0] sm:$0xff] %v5702
        %5723 = vst [vmem:[#allocation8 + $0x108] sm:$0xff] %v5704
        %5724 = vst [vmem:[#allocation8 + $0x130] sm:$0xff] %v5706
        %5725 = vst [vmem:[#allocation8 + $0x158] sm:$0xff] %v5708
        %5726 = vst [vmem:[#allocation8 + $0x180] sm:$0xff] %v5710
        %5727 = vst [vmem:[#allocation8 + $0x1a8] sm:$0xff] %v5712
        %5728 = vst [vmem:[#allocation8 + $0x1d0] sm:$0xff] %v5714
        %5729 = vst [vmem:[#allocation8 + $0x1f8] sm:$0x7] %v5716
        %s5730 = scalar_lea.vmem [#allocation2], 4
        %v5731 = vld [vmem:[%s5730] ss:$4 sm:$0xff]
        %s5732 = scalar_lea.vmem [#allocation2], 36
        %v5733 = vld [vmem:[%s5732] ss:$4 sm:$0xff]
        %s5734 = scalar_lea.vmem [#allocation2], 68
        %v5735 = vld [vmem:[%s5734] ss:$4 sm:$0xff]
        %s5736 = scalar_lea.vmem [#allocation2], 100
        %v5737 = vld [vmem:[%s5736] ss:$4 sm:$0xff]
        %s5738 = scalar_lea.vmem [#allocation2], 132
        %v5739 = vld [vmem:[%s5738] ss:$4 sm:$0xff]
        %s5740 = scalar_lea.vmem [#allocation2], 164
        %v5741 = vld [vmem:[%s5740] ss:$4 sm:$0xff]
        %s5742 = scalar_lea.vmem [#allocation2], 196
        %v5743 = vld [vmem:[%s5742] ss:$4 sm:$0xff]
        %s5744 = scalar_lea.vmem [#allocation2], 228
        %v5745 = vld [vmem:[%s5744] ss:$4 sm:$0xff]
        %s5746 = scalar_lea.vmem [#allocation2], 260
        %v5747 = vld [vmem:[%s5746] ss:$4 sm:$0xff]
        %s5748 = scalar_lea.vmem [#allocation2], 292
        %v5749 = vld [vmem:[%s5748] ss:$4 sm:$0xff]
        %s5750 = scalar_lea.vmem [#allocation2], 324
        %v5751 = vld [vmem:[%s5750] ss:$4 sm:$0xff]
        %s5752 = scalar_lea.vmem [#allocation2], 356
        %v5753 = vld [vmem:[%s5752] ss:$4 sm:$0xff]
        %s5754 = scalar_lea.vmem [#allocation2], 388
        %v5755 = vld [vmem:[%s5754] ss:$4 sm:$0x7]
        %5756 = vst [vmem:[#allocation8 + $0x20] sm:$0xff] %v5731
        %5757 = vst [vmem:[#allocation8 + $0x48] sm:$0xff] %v5733
        %5758 = vst [vmem:[#allocation8 + $0x70] sm:$0xff] %v5735
        %5759 = vst [vmem:[#allocation8 + $0x98] sm:$0xff] %v5737
        %5760 = vst [vmem:[#allocation8 + $0xc0] sm:$0xff] %v5739
        %5761 = vst [vmem:[#allocation8 + $0xe8] sm:$0xff] %v5741
        %5762 = vst [vmem:[#allocation8 + $0x110] sm:$0xff] %v5743
        %5763 = vst [vmem:[#allocation8 + $0x138] sm:$0xff] %v5745
        %5764 = vst [vmem:[#allocation8 + $0x160] sm:$0xff] %v5747
        %5765 = vst [vmem:[#allocation8 + $0x188] sm:$0xff] %v5749
        %5766 = vst [vmem:[#allocation8 + $0x1b0] sm:$0xff] %v5751
        %5767 = vst [vmem:[#allocation8 + $0x1d8] sm:$0xff] %v5753
        %5768 = vst [vmem:[#allocation8 + $0x200] sm:$0x7] %v5755
        %v5769 = vld [vmem:[#allocation14] sm:$0xf]
        %v5770 = vld [vmem:[#allocation14 + $0x4] sm:$0xf]
        %v5771 = vld [vmem:[#allocation14 + $0x8] sm:$0xf]
        %v5772 = vld [vmem:[#allocation14 + $0xc] sm:$0xf]
        %v5773 = vld [vmem:[#allocation14 + $0x10] sm:$0xf]
        %v5774 = vld [vmem:[#allocation14 + $0x14] sm:$0xf]
        %v5775 = vld [vmem:[#allocation14 + $0x18] sm:$0xf]
        %v5776 = vld [vmem:[#allocation14 + $0x1c] sm:$0xf]
        %v5777 = vld [vmem:[#allocation14 + $0x20] sm:$0xf]
        %v5778 = vld [vmem:[#allocation14 + $0x24] sm:$0xf]
        %v5779 = vld [vmem:[#allocation14 + $0x28] sm:$0xf]
        %v5780 = vld [vmem:[#allocation14 + $0x2c] sm:$0xf]
        %v5781 = vld [vmem:[#allocation14 + $0x30] sm:$0xf]
        %v5782 = vld [vmem:[#allocation14 + $0x34] sm:$0xf]
        %v5783 = vld [vmem:[#allocation14 + $0x38] sm:$0xf]
        %v5784 = vld [vmem:[#allocation14 + $0x3c] sm:$0xf]
        %v5785 = vld [vmem:[#allocation14 + $0x40] sm:$0xf]
        %v5786 = vld [vmem:[#allocation14 + $0x44] sm:$0xf]
        %v5787 = vld [vmem:[#allocation14 + $0x48] sm:$0xf]
        %v5788 = vld [vmem:[#allocation14 + $0x4c] sm:$0xf]
        %v5789 = vld [vmem:[#allocation14 + $0x50] sm:$0xf]
        %v5790 = vld [vmem:[#allocation14 + $0x54] sm:$0xf]
        %v5791 = vld [vmem:[#allocation14 + $0x58] sm:$0xf]
        %v5792 = vld [vmem:[#allocation14 + $0x5c] sm:$0xf]
        %v5793 = vld [vmem:[#allocation14 + $0x60] sm:$0xf]
        %v5794 = vld [vmem:[#allocation14 + $0x64] sm:$0xf]
        %v5795 = vld [vmem:[#allocation14 + $0x68] sm:$0xf]
        %v5796 = vld [vmem:[#allocation14 + $0x6c] sm:$0xf]
        %v5797 = vld [vmem:[#allocation14 + $0x70] sm:$0xf]
        %v5798 = vld [vmem:[#allocation14 + $0x74] sm:$0xf]
        %v5799 = vld [vmem:[#allocation14 + $0x78] sm:$0xf]
        %v5800 = vld [vmem:[#allocation14 + $0x7c] sm:$0xf]
        %v5801 = vld [vmem:[#allocation14 + $0x80] sm:$0xf]
        %v5802 = vld [vmem:[#allocation14 + $0x84] sm:$0xf]
        %v5803 = vld [vmem:[#allocation14 + $0x88] sm:$0xf]
        %v5804 = vld [vmem:[#allocation14 + $0x8c] sm:$0xf]
        %v5805 = vld [vmem:[#allocation14 + $0x90] sm:$0xf]
        %v5806 = vld [vmem:[#allocation14 + $0x94] sm:$0xf]
        %v5807 = vld [vmem:[#allocation14 + $0x98] sm:$0xf]
        %v5808 = vld [vmem:[#allocation14 + $0x9c] sm:$0xf]
        %v5809 = vld [vmem:[#allocation14 + $0xa0] sm:$0xf]
        %v5810 = vld [vmem:[#allocation14 + $0xa4] sm:$0xf]
        %v5811 = vld [vmem:[#allocation14 + $0xa8] sm:$0xf]
        %v5812 = vld [vmem:[#allocation14 + $0xac] sm:$0xf]
        %v5813 = vld [vmem:[#allocation14 + $0xb0] sm:$0xf]
        %v5814 = vld [vmem:[#allocation14 + $0xb4] sm:$0xf]
        %v5815 = vld [vmem:[#allocation14 + $0xb8] sm:$0xf]
        %v5816 = vld [vmem:[#allocation14 + $0xbc] sm:$0xf]
        %v5817 = vld [vmem:[#allocation14 + $0xc0] sm:$0xf]
        %v5818 = vld [vmem:[#allocation14 + $0xc4] sm:$0xf]
        %v5819 = vld [vmem:[#allocation14 + $0xc8] sm:$0xf]
        %v5820 = vld [vmem:[#allocation14 + $0xcc] sm:$0xf]
        %v5821 = vld [vmem:[#allocation14 + $0xd0] sm:$0xf]
        %v5822 = vld [vmem:[#allocation14 + $0xd4] sm:$0xf]
        %v5823 = vld [vmem:[#allocation14 + $0xd8] sm:$0xf]
        %v5824 = vld [vmem:[#allocation14 + $0xdc] sm:$0xf]
        %v5825 = vld [vmem:[#allocation14 + $0xe0] sm:$0xf]
        %v5826 = vld [vmem:[#allocation14 + $0xe4] sm:$0xf]
        %v5827 = vld [vmem:[#allocation14 + $0xe8] sm:$0xf]
        %v5828 = vld [vmem:[#allocation14 + $0xec] sm:$0xf]
        %v5829 = vld [vmem:[#allocation14 + $0xf0] sm:$0xf]
        %v5830 = vld [vmem:[#allocation14 + $0xf4] sm:$0xf]
        %v5831 = vld [vmem:[#allocation14 + $0xf8] sm:$0xf]
        %v5832 = vld [vmem:[#allocation14 + $0xfc] sm:$0xf]
        %v5833 = vld [vmem:[#allocation14 + $0x100] sm:$0xf]
        %v5834 = vld [vmem:[#allocation14 + $0x104] sm:$0xf]
        %v5835 = vld [vmem:[#allocation14 + $0x108] sm:$0xf]
        %v5836 = vld [vmem:[#allocation14 + $0x10c] sm:$0xf]
        %v5837 = vld [vmem:[#allocation14 + $0x110] sm:$0xf]
        %v5838 = vld [vmem:[#allocation14 + $0x114] sm:$0xf]
        %v5839 = vld [vmem:[#allocation14 + $0x118] sm:$0xf]
        %v5840 = vld [vmem:[#allocation14 + $0x11c] sm:$0xf]
        %v5841 = vld [vmem:[#allocation14 + $0x120] sm:$0xf]
        %v5842 = vld [vmem:[#allocation14 + $0x124] sm:$0xf]
        %v5843 = vld [vmem:[#allocation14 + $0x128] sm:$0xf]
        %v5844 = vld [vmem:[#allocation14 + $0x12c] sm:$0xf]
        %v5845 = vld [vmem:[#allocation14 + $0x130] sm:$0xf]
        %v5846 = vld [vmem:[#allocation14 + $0x134] sm:$0xf]
        %v5847 = vld [vmem:[#allocation14 + $0x138] sm:$0xf]
        %v5848 = vld [vmem:[#allocation14 + $0x13c] sm:$0xf]
        %v5849 = vld [vmem:[#allocation8] sm:$0xff]
        %v5850 = vld [vmem:[#allocation8 + $0x8] sm:$0xff]
        %v5851 = vld [vmem:[#allocation8 + $0x10] sm:$0xff]
        %v5852 = vld [vmem:[#allocation8 + $0x18] sm:$0xff]
        %v5853 = vld [vmem:[#allocation8 + $0x20] sm:$0xff]
        %v5854 = vld [vmem:[#allocation8 + $0x28] sm:$0xff]
        %v5855 = vld [vmem:[#allocation8 + $0x30] sm:$0xff]
        %v5856 = vld [vmem:[#allocation8 + $0x38] sm:$0xff]
        %v5857 = vld [vmem:[#allocation8 + $0x40] sm:$0xff]
        %v5858 = vld [vmem:[#allocation8 + $0x48] sm:$0xff]
        %v5859 = vld [vmem:[#allocation8 + $0x50] sm:$0xff]
        %v5860 = vld [vmem:[#allocation8 + $0x58] sm:$0xff]
        %v5861 = vld [vmem:[#allocation8 + $0x60] sm:$0xff]
        %v5862 = vld [vmem:[#allocation8 + $0x68] sm:$0xff]
        %v5863 = vld [vmem:[#allocation8 + $0x70] sm:$0xff]
        %v5864 = vld [vmem:[#allocation8 + $0x78] sm:$0xff]
        %v5865 = vld [vmem:[#allocation8 + $0x80] sm:$0xff]
        %v5866 = vld [vmem:[#allocation8 + $0x88] sm:$0xff]
        %v5867 = vld [vmem:[#allocation8 + $0x90] sm:$0xff]
        %v5868 = vld [vmem:[#allocation8 + $0x98] sm:$0xff]
        %v5869 = vld [vmem:[#allocation8 + $0xa0] sm:$0xff]
        %v5870 = vld [vmem:[#allocation8 + $0xa8] sm:$0xff]
        %v5871 = vld [vmem:[#allocation8 + $0xb0] sm:$0xff]
        %v5872 = vld [vmem:[#allocation8 + $0xb8] sm:$0xff]
        %v5873 = vld [vmem:[#allocation8 + $0xc0] sm:$0xff]
        %v5874 = vld [vmem:[#allocation8 + $0xc8] sm:$0xff]
        %v5875 = vld [vmem:[#allocation8 + $0xd0] sm:$0xff]
        %v5876 = vld [vmem:[#allocation8 + $0xd8] sm:$0xff]
        %v5877 = vld [vmem:[#allocation8 + $0xe0] sm:$0xff]
        %v5878 = vld [vmem:[#allocation8 + $0xe8] sm:$0xff]
        %v5879 = vld [vmem:[#allocation8 + $0xf0] sm:$0xff]
        %v5880 = vld [vmem:[#allocation8 + $0xf8] sm:$0xff]
        %v5881 = vld [vmem:[#allocation8 + $0x100] sm:$0xff]
        %v5882 = vld [vmem:[#allocation8 + $0x108] sm:$0xff]
        %v5883 = vld [vmem:[#allocation8 + $0x110] sm:$0xff]
        %v5884 = vld [vmem:[#allocation8 + $0x118] sm:$0xff]
        %v5885 = vld [vmem:[#allocation8 + $0x120] sm:$0xff]
        %v5886 = vld [vmem:[#allocation8 + $0x128] sm:$0xff]
        %v5887 = vld [vmem:[#allocation8 + $0x130] sm:$0xff]
        %v5888 = vld [vmem:[#allocation8 + $0x138] sm:$0xff]
        %v5889 = vld [vmem:[#allocation8 + $0x140] sm:$0xff]
        %v5890 = vld [vmem:[#allocation8 + $0x148] sm:$0xff]
        %v5891 = vld [vmem:[#allocation8 + $0x150] sm:$0xff]
        %v5892 = vld [vmem:[#allocation8 + $0x158] sm:$0xff]
        %v5893 = vld [vmem:[#allocation8 + $0x160] sm:$0xff]
        %v5894 = vld [vmem:[#allocation8 + $0x168] sm:$0xff]
        %v5895 = vld [vmem:[#allocation8 + $0x170] sm:$0xff]
        %v5896 = vld [vmem:[#allocation8 + $0x178] sm:$0xff]
        %v5897 = vld [vmem:[#allocation8 + $0x180] sm:$0xff]
        %v5898 = vld [vmem:[#allocation8 + $0x188] sm:$0xff]
        %v5899 = vld [vmem:[#allocation8 + $0x190] sm:$0xff]
        %v5900 = vld [vmem:[#allocation8 + $0x198] sm:$0xff]
        %v5901 = vld [vmem:[#allocation8 + $0x1a0] sm:$0xff]
        %v5902 = vld [vmem:[#allocation8 + $0x1a8] sm:$0xff]
        %v5903 = vld [vmem:[#allocation8 + $0x1b0] sm:$0xff]
        %v5904 = vld [vmem:[#allocation8 + $0x1b8] sm:$0xff]
        %v5905 = vld [vmem:[#allocation8 + $0x1c0] sm:$0xff]
        %v5906 = vld [vmem:[#allocation8 + $0x1c8] sm:$0xff]
        %v5907 = vld [vmem:[#allocation8 + $0x1d0] sm:$0xff]
        %v5908 = vld [vmem:[#allocation8 + $0x1d8] sm:$0xff]
        %v5909 = vld [vmem:[#allocation8 + $0x1e0] sm:$0x7]
        %v5910 = vld [vmem:[#allocation8 + $0x1e8] sm:$0x7]
        %v5911 = vld [vmem:[#allocation8 + $0x1f0] sm:$0x7]
        %v5912 = vld [vmem:[#allocation8 + $0x1f8] sm:$0x7]
        %v5913 = vld [vmem:[#allocation8 + $0x200] sm:$0x7]
        %v5914 = vpack.c.bf16 %v5854, %v5849
        %v5915 = vpack.c.bf16 %v5855, %v5850
        %v5916 = vpack.c.bf16 %v5856, %v5851
        %v5917 = vpack.c.bf16 %v5857, %v5852
        %v5918 = vpack.c.bf16 %v5858, %v5853
        %v5919 = vpack.c.bf16 %v5864, %v5859
        %v5920 = vpack.c.bf16 %v5865, %v5860
        %v5921 = vpack.c.bf16 %v5866, %v5861
        %v5922 = vpack.c.bf16 %v5867, %v5862
        %v5923 = vpack.c.bf16 %v5868, %v5863
        %v5924 = vpack.c.bf16 %v5874, %v5869
        %v5925 = vpack.c.bf16 %v5875, %v5870
        %v5926 = vpack.c.bf16 %v5876, %v5871
        %v5927 = vpack.c.bf16 %v5877, %v5872
        %v5928 = vpack.c.bf16 %v5878, %v5873
        %v5929 = vpack.c.bf16 %v5884, %v5879
        %v5930 = vpack.c.bf16 %v5885, %v5880
        %v5931 = vpack.c.bf16 %v5886, %v5881
        %v5932 = vpack.c.bf16 %v5887, %v5882
        %v5933 = vpack.c.bf16 %v5888, %v5883
        %v5934 = vpack.c.bf16 %v5894, %v5889
        %v5935 = vpack.c.bf16 %v5895, %v5890
        %v5936 = vpack.c.bf16 %v5896, %v5891
        %v5937 = vpack.c.bf16 %v5897, %v5892
        %v5938 = vpack.c.bf16 %v5898, %v5893
        %v5939 = vpack.c.bf16 %v5904, %v5899
        %v5940 = vpack.c.bf16 %v5905, %v5900
        %v5941 = vpack.c.bf16 %v5906, %v5901
        %v5942 = vpack.c.bf16 %v5907, %v5902
        %v5943 = vpack.c.bf16 %v5908, %v5903
        %v5944 = vpack.c.bf16 %v5909, %v5909
        %v5945 = vpack.c.bf16 %v5910, %v5910
        %v5946 = vpack.c.bf16 %v5911, %v5911
        %v5947 = vpack.c.bf16 %v5912, %v5912
        %v5948 = vpack.c.bf16 %v5913, %v5913
        %v5949 = vld [vmem:[%s3 + $0x1] sm:$0x1]
        %v5950 = vperm.slane %v5949, 0
        %v6031 = vunpack.c.l.b16 %v5769
        %v6032 = vunpack.c.l.b16 %v5770
        %v6033 = vunpack.c.l.b16 %v5771
        %v6034 = vunpack.c.l.b16 %v5772
        %v6035 = vunpack.c.l.b16 %v5773
        %v6036 = vunpack.c.l.b16 %v5774
        %v6037 = vunpack.c.l.b16 %v5775
        %v6038 = vunpack.c.l.b16 %v5776
        %v6039 = vunpack.c.l.b16 %v5777
        %v6040 = vunpack.c.l.b16 %v5778
        %v6041 = vunpack.c.l.b16 %v5779
        %v6042 = vunpack.c.l.b16 %v5780
        %v6043 = vunpack.c.l.b16 %v5781
        %v6044 = vunpack.c.l.b16 %v5782
        %v6045 = vunpack.c.l.b16 %v5783
        %v6046 = vunpack.c.l.b16 %v5784
        %v6047 = vunpack.c.l.b16 %v5785
        %v6048 = vunpack.c.l.b16 %v5786
        %v6049 = vunpack.c.l.b16 %v5787
        %v6050 = vunpack.c.l.b16 %v5788
        %v6051 = vunpack.c.l.b16 %v5789
        %v6052 = vunpack.c.l.b16 %v5790
        %v6053 = vunpack.c.l.b16 %v5791
        %v6054 = vunpack.c.l.b16 %v5792
        %v6055 = vunpack.c.l.b16 %v5793
        %v6056 = vunpack.c.l.b16 %v5794
        %v6057 = vunpack.c.l.b16 %v5795
        %v6058 = vunpack.c.l.b16 %v5796
        %v6059 = vunpack.c.l.b16 %v5797
        %v6060 = vunpack.c.l.b16 %v5798
        %v6061 = vunpack.c.l.b16 %v5799
        %v6062 = vunpack.c.l.b16 %v5800
        %v6063 = vunpack.c.l.b16 %v5801
        %v6064 = vunpack.c.l.b16 %v5802
        %v6065 = vunpack.c.l.b16 %v5803
        %v6066 = vunpack.c.l.b16 %v5804
        %v6067 = vunpack.c.l.b16 %v5805
        %v6068 = vunpack.c.l.b16 %v5806
        %v6069 = vunpack.c.l.b16 %v5807
        %v6070 = vunpack.c.l.b16 %v5808
        %v6071 = vunpack.c.l.b16 %v5809
        %v6072 = vunpack.c.l.b16 %v5810
        %v6073 = vunpack.c.l.b16 %v5811
        %v6074 = vunpack.c.l.b16 %v5812
        %v6075 = vunpack.c.l.b16 %v5813
        %v6076 = vunpack.c.l.b16 %v5814
        %v6077 = vunpack.c.l.b16 %v5815
        %v6078 = vunpack.c.l.b16 %v5816
        %v6079 = vunpack.c.l.b16 %v5817
        %v6080 = vunpack.c.l.b16 %v5818
        %v6081 = vunpack.c.l.b16 %v5819
        %v6082 = vunpack.c.l.b16 %v5820
        %v6083 = vunpack.c.l.b16 %v5821
        %v6084 = vunpack.c.l.b16 %v5822
        %v6085 = vunpack.c.l.b16 %v5823
        %v6086 = vunpack.c.l.b16 %v5824
        %v6087 = vunpack.c.l.b16 %v5825
        %v6088 = vunpack.c.l.b16 %v5826
        %v6089 = vunpack.c.l.b16 %v5827
        %v6090 = vunpack.c.l.b16 %v5828
        %v6091 = vunpack.c.l.b16 %v5829
        %v6092 = vunpack.c.l.b16 %v5830
        %v6093 = vunpack.c.l.b16 %v5831
        %v6094 = vunpack.c.l.b16 %v5832
        %v6095 = vunpack.c.l.b16 %v5833
        %v6096 = vunpack.c.l.b16 %v5834
        %v6097 = vunpack.c.l.b16 %v5835
        %v6098 = vunpack.c.l.b16 %v5836
        %v6099 = vunpack.c.l.b16 %v5837
        %v6100 = vunpack.c.l.b16 %v5838
        %v6101 = vunpack.c.l.b16 %v5839
        %v6102 = vunpack.c.l.b16 %v5840
        %v6103 = vunpack.c.l.b16 %v5841
        %v6104 = vunpack.c.l.b16 %v5842
        %v6105 = vunpack.c.l.b16 %v5843
        %v6106 = vunpack.c.l.b16 %v5844
        %v6107 = vunpack.c.l.b16 %v5845
        %v6108 = vunpack.c.l.b16 %v5846
        %v6109 = vunpack.c.l.b16 %v5847
        %v6110 = vunpack.c.l.b16 %v5848
        %v6111 = vpack.c.b16 %v6032, %v6031
        %v6112 = vpack.c.b16 %v6034, %v6033
        %v6113 = vpack.c.b16 %v6036, %v6035
        %v6114 = vpack.c.b16 %v6038, %v6037
        %v6115 = vpack.c.b16 %v6040, %v6039
        %v6116 = vpack.c.b16 %v6042, %v6041
        %v6117 = vpack.c.b16 %v6044, %v6043
        %v6118 = vpack.c.b16 %v6046, %v6045
        %v6119 = vpack.c.b16 %v6048, %v6047
        %v6120 = vpack.c.b16 %v6050, %v6049
        %v6121 = vpack.c.b16 %v6052, %v6051
        %v6122 = vpack.c.b16 %v6054, %v6053
        %v6123 = vpack.c.b16 %v6056, %v6055
        %v6124 = vpack.c.b16 %v6058, %v6057
        %v6125 = vpack.c.b16 %v6060, %v6059
        %v6126 = vpack.c.b16 %v6062, %v6061
        %v6127 = vpack.c.b16 %v6064, %v6063
        %v6128 = vpack.c.b16 %v6066, %v6065
        %v6129 = vpack.c.b16 %v6068, %v6067
        %v6130 = vpack.c.b16 %v6070, %v6069
        %v6131 = vpack.c.b16 %v6072, %v6071
        %v6132 = vpack.c.b16 %v6074, %v6073
        %v6133 = vpack.c.b16 %v6076, %v6075
        %v6134 = vpack.c.b16 %v6078, %v6077
        %v6135 = vpack.c.b16 %v6080, %v6079
        %v6136 = vpack.c.b16 %v6082, %v6081
        %v6137 = vpack.c.b16 %v6084, %v6083
        %v6138 = vpack.c.b16 %v6086, %v6085
        %v6139 = vpack.c.b16 %v6088, %v6087
        %v6140 = vpack.c.b16 %v6090, %v6089
        %v6141 = vpack.c.b16 %v6092, %v6091
        %v6142 = vpack.c.b16 %v6094, %v6093
        %v6143 = vpack.c.b16 %v6096, %v6095
        %v6144 = vpack.c.b16 %v6098, %v6097
        %v6145 = vpack.c.b16 %v6100, %v6099
        %v6146 = vpack.c.b16 %v6102, %v6101
        %v6147 = vpack.c.b16 %v6104, %v6103
        %v6148 = vpack.c.b16 %v6106, %v6105
        %v6149 = vpack.c.b16 %v6108, %v6107
        %v6150 = vpack.c.b16 %v6110, %v6109
        %6191 = vmatpush.bf16.msra.mxu0 %v6118
        %6192 = vmatpush.bf16.msra.mxu0 %v6117
        %6193 = vmatpush.bf16.msra.mxu0 %v6116
        %6194 = vmatpush.bf16.msra.mxu0 %v6115
        %6195 = vmatpush.bf16.msra.mxu0 %v6114
        %6196 = vmatpush.bf16.msra.mxu0 %v6113
        %6197 = vmatpush.bf16.msra.mxu0 %v6112
        %6198 = vmatpush.bf16.msra.mxu0 %v6111
        %6199 = vmatmul.bf16.gmra.mxu0 %v5914
        %v6200 = vpop.f32.mrf.mxu0
        %v6201 = vadd.f32 %v5950, %v6200
        %v6202 = vpop.f32.mrf.mxu0
        %v6203 = vadd.f32 %v5950, %v6202
        %6204 = vmatmul.bf16.gmra.mxu0 %v5919
        %v6205 = vpop.f32.mrf.mxu0
        %v6206 = vadd.f32 %v5950, %v6205
        %v6207 = vpop.f32.mrf.mxu0
        %v6208 = vadd.f32 %v5950, %v6207
        %6209 = vmatmul.bf16.gmra.mxu0 %v5924
        %v6210 = vpop.f32.mrf.mxu0
        %v6211 = vadd.f32 %v5950, %v6210
        %v6212 = vpop.f32.mrf.mxu0
        %v6213 = vadd.f32 %v5950, %v6212
        %6214 = vmatmul.bf16.gmra.mxu0 %v5929
        %v6215 = vpop.f32.mrf.mxu0
        %v6216 = vadd.f32 %v5950, %v6215
        %v6217 = vpop.f32.mrf.mxu0
        %v6218 = vadd.f32 %v5950, %v6217
        %6219 = vmatmul.bf16.gmra.mxu0 %v5934
        %v6220 = vpop.f32.mrf.mxu0
        %v6221 = vadd.f32 %v5950, %v6220
        %v6222 = vpop.f32.mrf.mxu0
        %v6223 = vadd.f32 %v5950, %v6222
        %6224 = vmatmul.bf16.gmra.mxu0 %v5939
        %v6225 = vpop.f32.mrf.mxu0
        %v6226 = vadd.f32 %v5950, %v6225
        %v6227 = vpop.f32.mrf.mxu0
        %v6228 = vadd.f32 %v5950, %v6227
        %6229 = vmatmul.bf16.gmra.mxu0 %v5944
        %v6230 = vpop.f32.mrf.mxu0
        %v6231 = vadd.f32 %v5950, %v6230
        %v6232 = vpop.f32.mrf.mxu0
        %6233 = vdwg.mxu0
        %6234 = vmatpush.bf16.msra.mxu0 %v6126
        %6235 = vmatpush.bf16.msra.mxu0 %v6125
        %6236 = vmatpush.bf16.msra.mxu0 %v6124
        %6237 = vmatpush.bf16.msra.mxu0 %v6123
        %6238 = vmatpush.bf16.msra.mxu0 %v6122
        %6239 = vmatpush.bf16.msra.mxu0 %v6121
        %6240 = vmatpush.bf16.msra.mxu0 %v6120
        %6241 = vmatpush.bf16.msra.mxu0 %v6119
        %6242 = vmatmul.bf16.gmra.mxu0 %v5915
        %v6243 = vpop.f32.mrf.mxu0
        %v6244 = vadd.f32 %v6201, %v6243
        %v6245 = vpop.f32.mrf.mxu0
        %v6246 = vadd.f32 %v6203, %v6245
        %6247 = vmatmul.bf16.gmra.mxu0 %v5920
        %v6248 = vpop.f32.mrf.mxu0
        %v6249 = vadd.f32 %v6206, %v6248
        %v6250 = vpop.f32.mrf.mxu0
        %v6251 = vadd.f32 %v6208, %v6250
        %6252 = vmatmul.bf16.gmra.mxu0 %v5925
        %v6253 = vpop.f32.mrf.mxu0
        %v6254 = vadd.f32 %v6211, %v6253
        %v6255 = vpop.f32.mrf.mxu0
        %v6256 = vadd.f32 %v6213, %v6255
        %6257 = vmatmul.bf16.gmra.mxu0 %v5930
        %v6258 = vpop.f32.mrf.mxu0
        %v6259 = vadd.f32 %v6216, %v6258
        %v6260 = vpop.f32.mrf.mxu0
        %v6261 = vadd.f32 %v6218, %v6260
        %6262 = vmatmul.bf16.gmra.mxu0 %v5935
        %v6263 = vpop.f32.mrf.mxu0
        %v6264 = vadd.f32 %v6221, %v6263
        %v6265 = vpop.f32.mrf.mxu0
        %v6266 = vadd.f32 %v6223, %v6265
        %6267 = vmatmul.bf16.gmra.mxu0 %v5940
        %v6268 = vpop.f32.mrf.mxu0
        %v6269 = vadd.f32 %v6226, %v6268
        %v6270 = vpop.f32.mrf.mxu0
        %v6271 = vadd.f32 %v6228, %v6270
        %6272 = vmatmul.bf16.gmra.mxu0 %v5945
        %v6273 = vpop.f32.mrf.mxu0
        %v6274 = vadd.f32 %v6231, %v6273
        %v6275 = vpop.f32.mrf.mxu0
        %6276 = vdwg.mxu0
        %6277 = vmatpush.bf16.msra.mxu0 %v6134
        %6278 = vmatpush.bf16.msra.mxu0 %v6133
        %6279 = vmatpush.bf16.msra.mxu0 %v6132
        %6280 = vmatpush.bf16.msra.mxu0 %v6131
        %6281 = vmatpush.bf16.msra.mxu0 %v6130
        %6282 = vmatpush.bf16.msra.mxu0 %v6129
        %6283 = vmatpush.bf16.msra.mxu0 %v6128
        %6284 = vmatpush.bf16.msra.mxu0 %v6127
        %6285 = vmatmul.bf16.gmra.mxu0 %v5916
        %v6286 = vpop.f32.mrf.mxu0
        %v6287 = vadd.f32 %v6244, %v6286
        %v6288 = vpop.f32.mrf.mxu0
        %v6289 = vadd.f32 %v6246, %v6288
        %6290 = vmatmul.bf16.gmra.mxu0 %v5921
        %v6291 = vpop.f32.mrf.mxu0
        %v6292 = vadd.f32 %v6249, %v6291
        %v6293 = vpop.f32.mrf.mxu0
        %v6294 = vadd.f32 %v6251, %v6293
        %6295 = vmatmul.bf16.gmra.mxu0 %v5926
        %v6296 = vpop.f32.mrf.mxu0
        %v6297 = vadd.f32 %v6254, %v6296
        %v6298 = vpop.f32.mrf.mxu0
        %v6299 = vadd.f32 %v6256, %v6298
        %6300 = vmatmul.bf16.gmra.mxu0 %v5931
        %v6301 = vpop.f32.mrf.mxu0
        %v6302 = vadd.f32 %v6259, %v6301
        %v6303 = vpop.f32.mrf.mxu0
        %v6304 = vadd.f32 %v6261, %v6303
        %6305 = vmatmul.bf16.gmra.mxu0 %v5936
        %v6306 = vpop.f32.mrf.mxu0
        %v6307 = vadd.f32 %v6264, %v6306
        %v6308 = vpop.f32.mrf.mxu0
        %v6309 = vadd.f32 %v6266, %v6308
        %6310 = vmatmul.bf16.gmra.mxu0 %v5941
        %v6311 = vpop.f32.mrf.mxu0
        %v6312 = vadd.f32 %v6269, %v6311
        %v6313 = vpop.f32.mrf.mxu0
        %v6314 = vadd.f32 %v6271, %v6313
        %6315 = vmatmul.bf16.gmra.mxu0 %v5946
        %v6316 = vpop.f32.mrf.mxu0
        %v6317 = vadd.f32 %v6274, %v6316
        %v6318 = vpop.f32.mrf.mxu0
        %6319 = vdwg.mxu0
        %6320 = vmatpush.bf16.msra.mxu0 %v6142
        %6321 = vmatpush.bf16.msra.mxu0 %v6141
        %6322 = vmatpush.bf16.msra.mxu0 %v6140
        %6323 = vmatpush.bf16.msra.mxu0 %v6139
        %6324 = vmatpush.bf16.msra.mxu0 %v6138
        %6325 = vmatpush.bf16.msra.mxu0 %v6137
        %6326 = vmatpush.bf16.msra.mxu0 %v6136
        %6327 = vmatpush.bf16.msra.mxu0 %v6135
        %6328 = vmatmul.bf16.gmra.mxu0 %v5917
        %v6329 = vpop.f32.mrf.mxu0
        %v6330 = vadd.f32 %v6287, %v6329
        %v6331 = vpop.f32.mrf.mxu0
        %v6332 = vadd.f32 %v6289, %v6331
        %6333 = vmatmul.bf16.gmra.mxu0 %v5922
        %v6334 = vpop.f32.mrf.mxu0
        %v6335 = vadd.f32 %v6292, %v6334
        %v6336 = vpop.f32.mrf.mxu0
        %v6337 = vadd.f32 %v6294, %v6336
        %6338 = vmatmul.bf16.gmra.mxu0 %v5927
        %v6339 = vpop.f32.mrf.mxu0
        %v6340 = vadd.f32 %v6297, %v6339
        %v6341 = vpop.f32.mrf.mxu0
        %v6342 = vadd.f32 %v6299, %v6341
        %6343 = vmatmul.bf16.gmra.mxu0 %v5932
        %v6344 = vpop.f32.mrf.mxu0
        %v6345 = vadd.f32 %v6302, %v6344
        %v6346 = vpop.f32.mrf.mxu0
        %v6347 = vadd.f32 %v6304, %v6346
        %6348 = vmatmul.bf16.gmra.mxu0 %v5937
        %v6349 = vpop.f32.mrf.mxu0
        %v6350 = vadd.f32 %v6307, %v6349
        %v6351 = vpop.f32.mrf.mxu0
        %v6352 = vadd.f32 %v6309, %v6351
        %6353 = vmatmul.bf16.gmra.mxu0 %v5942
        %v6354 = vpop.f32.mrf.mxu0
        %v6355 = vadd.f32 %v6312, %v6354
        %v6356 = vpop.f32.mrf.mxu0
        %v6357 = vadd.f32 %v6314, %v6356
        %6358 = vmatmul.bf16.gmra.mxu0 %v5947
        %v6359 = vpop.f32.mrf.mxu0
        %v6360 = vadd.f32 %v6317, %v6359
        %v6361 = vpop.f32.mrf.mxu0
        %6362 = vdwg.mxu0
        %6363 = vmatpush.bf16.msra.mxu0 %v6150
        %6364 = vmatpush.bf16.msra.mxu0 %v6149
        %6365 = vmatpush.bf16.msra.mxu0 %v6148
        %6366 = vmatpush.bf16.msra.mxu0 %v6147
        %6367 = vmatpush.bf16.msra.mxu0 %v6146
        %6368 = vmatpush.bf16.msra.mxu0 %v6145
        %6369 = vmatpush.bf16.msra.mxu0 %v6144
        %6370 = vmatpush.bf16.msra.mxu0 %v6143
        %6371 = vmatmul.bf16.gmra.mxu0 %v5918
        %v6372 = vpop.f32.mrf.mxu0
        %v6373 = vadd.f32 %v6330, %v6372
        %v6374 = vpop.f32.mrf.mxu0
        %v6375 = vadd.f32 %v6332, %v6374
        %6376 = vmatmul.bf16.gmra.mxu0 %v5923
        %v6377 = vpop.f32.mrf.mxu0
        %v6378 = vadd.f32 %v6335, %v6377
        %v6379 = vpop.f32.mrf.mxu0
        %v6380 = vadd.f32 %v6337, %v6379
        %6381 = vmatmul.bf16.gmra.mxu0 %v5928
        %v6382 = vpop.f32.mrf.mxu0
        %v6383 = vadd.f32 %v6340, %v6382
        %v6384 = vpop.f32.mrf.mxu0
        %v6385 = vadd.f32 %v6342, %v6384
        %6386 = vmatmul.bf16.gmra.mxu0 %v5933
        %v6387 = vpop.f32.mrf.mxu0
        %v6388 = vadd.f32 %v6345, %v6387
        %v6389 = vpop.f32.mrf.mxu0
        %v6390 = vadd.f32 %v6347, %v6389
        %6391 = vmatmul.bf16.gmra.mxu0 %v5938
        %v6392 = vpop.f32.mrf.mxu0
        %v6393 = vadd.f32 %v6350, %v6392
        %v6394 = vpop.f32.mrf.mxu0
        %v6395 = vadd.f32 %v6352, %v6394
        %6396 = vmatmul.bf16.gmra.mxu0 %v5943
        %v6397 = vpop.f32.mrf.mxu0
        %v6398 = vadd.f32 %v6355, %v6397
        %v6399 = vpop.f32.mrf.mxu0
        %v6400 = vadd.f32 %v6357, %v6399
        %6401 = vmatmul.bf16.gmra.mxu0 %v5948
        %v6402 = vpop.f32.mrf.mxu0
        %v6403 = vadd.f32 %v6360, %v6402
        %v6404 = vpop.f32.mrf.mxu0
        %6405 = vdwg.mxu0
        %v6406 = vmul.f32 %v6373, 0.5
        %v6407 = vmul.f32 %v6375, 0.5
        %v6408 = vmul.f32 %v6378, 0.5
        %v6409 = vmul.f32 %v6380, 0.5
        %v6410 = vmul.f32 %v6383, 0.5
        %v6411 = vmul.f32 %v6385, 0.5
        %v6412 = vmul.f32 %v6388, 0.5
        %v6413 = vmul.f32 %v6390, 0.5
        %v6414 = vmul.f32 %v6393, 0.5
        %v6415 = vmul.f32 %v6395, 0.5
        %v6416 = vmul.f32 %v6398, 0.5
        %v6417 = vmul.f32 %v6400, 0.5
        %v6418 = vmul.f32 %v6403, 0.5
        %v6419 = vmul.f32 %v6373, 0.70710677
        %v6420 = vmul.f32 %v6375, 0.70710677
        %v6421 = vmul.f32 %v6378, 0.70710677
        %v6422 = vmul.f32 %v6380, 0.70710677
        %v6423 = vmul.f32 %v6383, 0.70710677
        %v6424 = vmul.f32 %v6385, 0.70710677
        %v6425 = vmul.f32 %v6388, 0.70710677
        %v6426 = vmul.f32 %v6390, 0.70710677
        %v6427 = vmul.f32 %v6393, 0.70710677
        %v6428 = vmul.f32 %v6395, 0.70710677
        %v6429 = vmul.f32 %v6398, 0.70710677
        %v6430 = vmul.f32 %v6400, 0.70710677
        %v6431 = vmul.f32 %v6403, 0.70710677
        %v6432 = vmul.f32 %v6419, %v6419
        %v6433 = vmin.f32 16.0, %v6432
        %v6434 = vmul.f32 %v6433, 2.1237322e-06
        %v6435 = vadd.f32 %v6434, 0.00028619796
        %v6436 = vmul.f32 %v6433, %v6435
        %v6437 = vadd.f32 %v6436, 0.0036580483
        %v6438 = vmul.f32 %v6433, %v6437
        %v6439 = vadd.f32 %v6438, 0.05243302
        %v6440 = vmul.f32 %v6433, %v6439
        %v6441 = vadd.f32 %v6440, 0.18741608
        %v6442 = vmul.f32 %v6433, %v6441
        %v6443 = vadd.f32 %v6442, 1.1283791
        %v6444 = vmul.f32 %v6419, %v6443
        %v6445 = vmul.f32 %v6433, 3.8918573e-05
        %v6446 = vadd.f32 %v6445, 0.001143296
        %v6447 = vmul.f32 %v6433, %v6446
        %v6448 = vadd.f32 %v6447, 0.014752088
        %v6449 = vmul.f32 %v6433, %v6448
        %v6450 = vadd.f32 %v6449, 0.112945676
        %v6451 = vmul.f32 %v6433, %v6450
        %v6452 = vadd.f32 %v6451, 0.4994258
        %v6453 = vmul.f32 %v6433, %v6452
        %v6454 = vadd.f32 %v6453, 1.0
        %v6455 = vrcp.pop %v6454
        %v6456 = vmul.f32 %v6454, %v6455
        %v6457 = vsub.f32 1.0, %v6456
        %v6458 = vmul.f32 %v6455, %v6457
        %v6459 = vadd.f32 %v6455, %v6458
        %vm6460 = vweird.f32 %v6454
        %vm6461 = vweird.f32 %v6455
        %vm6462 = vmor %vm6460, %vm6461
        %v6463 = vsel %vm6462, %v6455, %v6459
        %v6464 = vand.u32 2147483647, %v6454
        %vm6465 = vcmp.eq.f32.partialorder %v6464, 8.507059e+37
        %v6466 = vand.u32 %v6454, 2147483648
        %v6467 = vor.u32 1.1754944e-38, %v6466
        %v6468 = vsel %vm6465, %v6467, %v6463
        %v6469 = vmul.f32 %v6444, %v6468
        %v6470 = vmin.f32 %v6469, 1.0
        %v6471 = vmax.f32 %v6470, -1.0
        %v6472 = vmul.f32 %v6420, %v6420
        %v6473 = vmin.f32 16.0, %v6472
        %v6474 = vmul.f32 %v6473, 2.1237322e-06
        %v6475 = vadd.f32 %v6474, 0.00028619796
        %v6476 = vmul.f32 %v6473, %v6475
        %v6477 = vadd.f32 %v6476, 0.0036580483
        %v6478 = vmul.f32 %v6473, %v6477
        %v6479 = vadd.f32 %v6478, 0.05243302
        %v6480 = vmul.f32 %v6473, %v6479
        %v6481 = vadd.f32 %v6480, 0.18741608
        %v6482 = vmul.f32 %v6473, %v6481
        %v6483 = vadd.f32 %v6482, 1.1283791
        %v6484 = vmul.f32 %v6420, %v6483
        %v6485 = vmul.f32 %v6473, 3.8918573e-05
        %v6486 = vadd.f32 %v6485, 0.001143296
        %v6487 = vmul.f32 %v6473, %v6486
        %v6488 = vadd.f32 %v6487, 0.014752088
        %v6489 = vmul.f32 %v6473, %v6488
        %v6490 = vadd.f32 %v6489, 0.112945676
        %v6491 = vmul.f32 %v6473, %v6490
        %v6492 = vadd.f32 %v6491, 0.4994258
        %v6493 = vmul.f32 %v6473, %v6492
        %v6494 = vadd.f32 %v6493, 1.0
        %v6495 = vrcp.pop %v6494
        %v6496 = vmul.f32 %v6494, %v6495
        %v6497 = vsub.f32 1.0, %v6496
        %v6498 = vmul.f32 %v6495, %v6497
        %v6499 = vadd.f32 %v6495, %v6498
        %vm6500 = vweird.f32 %v6494
        %vm6501 = vweird.f32 %v6495
        %vm6502 = vmor %vm6500, %vm6501
        %v6503 = vsel %vm6502, %v6495, %v6499
        %v6504 = vand.u32 2147483647, %v6494
        %vm6505 = vcmp.eq.f32.partialorder %v6504, 8.507059e+37
        %v6506 = vand.u32 %v6494, 2147483648
        %v6507 = vor.u32 1.1754944e-38, %v6506
        %v6508 = vsel %vm6505, %v6507, %v6503
        %v6509 = vmul.f32 %v6484, %v6508
        %v6510 = vmin.f32 %v6509, 1.0
        %v6511 = vmax.f32 %v6510, -1.0
        %v6512 = vmul.f32 %v6421, %v6421
        %v6513 = vmin.f32 16.0, %v6512
        %v6514 = vmul.f32 %v6513, 2.1237322e-06
        %v6515 = vadd.f32 %v6514, 0.00028619796
        %v6516 = vmul.f32 %v6513, %v6515
        %v6517 = vadd.f32 %v6516, 0.0036580483
        %v6518 = vmul.f32 %v6513, %v6517
        %v6519 = vadd.f32 %v6518, 0.05243302
        %v6520 = vmul.f32 %v6513, %v6519
        %v6521 = vadd.f32 %v6520, 0.18741608
        %v6522 = vmul.f32 %v6513, %v6521
        %v6523 = vadd.f32 %v6522, 1.1283791
        %v6524 = vmul.f32 %v6421, %v6523
        %v6525 = vmul.f32 %v6513, 3.8918573e-05
        %v6526 = vadd.f32 %v6525, 0.001143296
        %v6527 = vmul.f32 %v6513, %v6526
        %v6528 = vadd.f32 %v6527, 0.014752088
        %v6529 = vmul.f32 %v6513, %v6528
        %v6530 = vadd.f32 %v6529, 0.112945676
        %v6531 = vmul.f32 %v6513, %v6530
        %v6532 = vadd.f32 %v6531, 0.4994258
        %v6533 = vmul.f32 %v6513, %v6532
        %v6534 = vadd.f32 %v6533, 1.0
        %v6535 = vrcp.pop %v6534
        %v6536 = vmul.f32 %v6534, %v6535
        %v6537 = vsub.f32 1.0, %v6536
        %v6538 = vmul.f32 %v6535, %v6537
        %v6539 = vadd.f32 %v6535, %v6538
        %vm6540 = vweird.f32 %v6534
        %vm6541 = vweird.f32 %v6535
        %vm6542 = vmor %vm6540, %vm6541
        %v6543 = vsel %vm6542, %v6535, %v6539
        %v6544 = vand.u32 2147483647, %v6534
        %vm6545 = vcmp.eq.f32.partialorder %v6544, 8.507059e+37
        %v6546 = vand.u32 %v6534, 2147483648
        %v6547 = vor.u32 1.1754944e-38, %v6546
        %v6548 = vsel %vm6545, %v6547, %v6543
        %v6549 = vmul.f32 %v6524, %v6548
        %v6550 = vmin.f32 %v6549, 1.0
        %v6551 = vmax.f32 %v6550, -1.0
        %v6552 = vmul.f32 %v6422, %v6422
        %v6553 = vmin.f32 16.0, %v6552
        %v6554 = vmul.f32 %v6553, 2.1237322e-06
        %v6555 = vadd.f32 %v6554, 0.00028619796
        %v6556 = vmul.f32 %v6553, %v6555
        %v6557 = vadd.f32 %v6556, 0.0036580483
        %v6558 = vmul.f32 %v6553, %v6557
        %v6559 = vadd.f32 %v6558, 0.05243302
        %v6560 = vmul.f32 %v6553, %v6559
        %v6561 = vadd.f32 %v6560, 0.18741608
        %v6562 = vmul.f32 %v6553, %v6561
        %v6563 = vadd.f32 %v6562, 1.1283791
        %v6564 = vmul.f32 %v6422, %v6563
        %v6565 = vmul.f32 %v6553, 3.8918573e-05
        %v6566 = vadd.f32 %v6565, 0.001143296
        %v6567 = vmul.f32 %v6553, %v6566
        %v6568 = vadd.f32 %v6567, 0.014752088
        %v6569 = vmul.f32 %v6553, %v6568
        %v6570 = vadd.f32 %v6569, 0.112945676
        %v6571 = vmul.f32 %v6553, %v6570
        %v6572 = vadd.f32 %v6571, 0.4994258
        %v6573 = vmul.f32 %v6553, %v6572
        %v6574 = vadd.f32 %v6573, 1.0
        %v6575 = vrcp.pop %v6574
        %v6576 = vmul.f32 %v6574, %v6575
        %v6577 = vsub.f32 1.0, %v6576
        %v6578 = vmul.f32 %v6575, %v6577
        %v6579 = vadd.f32 %v6575, %v6578
        %vm6580 = vweird.f32 %v6574
        %vm6581 = vweird.f32 %v6575
        %vm6582 = vmor %vm6580, %vm6581
        %v6583 = vsel %vm6582, %v6575, %v6579
        %v6584 = vand.u32 2147483647, %v6574
        %vm6585 = vcmp.eq.f32.partialorder %v6584, 8.507059e+37
        %v6586 = vand.u32 %v6574, 2147483648
        %v6587 = vor.u32 1.1754944e-38, %v6586
        %v6588 = vsel %vm6585, %v6587, %v6583
        %v6589 = vmul.f32 %v6564, %v6588
        %v6590 = vmin.f32 %v6589, 1.0
        %v6591 = vmax.f32 %v6590, -1.0
        %v6592 = vmul.f32 %v6423, %v6423
        %v6593 = vmin.f32 16.0, %v6592
        %v6594 = vmul.f32 %v6593, 2.1237322e-06
        %v6595 = vadd.f32 %v6594, 0.00028619796
        %v6596 = vmul.f32 %v6593, %v6595
        %v6597 = vadd.f32 %v6596, 0.0036580483
        %v6598 = vmul.f32 %v6593, %v6597
        %v6599 = vadd.f32 %v6598, 0.05243302
        %v6600 = vmul.f32 %v6593, %v6599
        %v6601 = vadd.f32 %v6600, 0.18741608
        %v6602 = vmul.f32 %v6593, %v6601
        %v6603 = vadd.f32 %v6602, 1.1283791
        %v6604 = vmul.f32 %v6423, %v6603
        %v6605 = vmul.f32 %v6593, 3.8918573e-05
        %v6606 = vadd.f32 %v6605, 0.001143296
        %v6607 = vmul.f32 %v6593, %v6606
        %v6608 = vadd.f32 %v6607, 0.014752088
        %v6609 = vmul.f32 %v6593, %v6608
        %v6610 = vadd.f32 %v6609, 0.112945676
        %v6611 = vmul.f32 %v6593, %v6610
        %v6612 = vadd.f32 %v6611, 0.4994258
        %v6613 = vmul.f32 %v6593, %v6612
        %v6614 = vadd.f32 %v6613, 1.0
        %v6615 = vrcp.pop %v6614
        %v6616 = vmul.f32 %v6614, %v6615
        %v6617 = vsub.f32 1.0, %v6616
        %v6618 = vmul.f32 %v6615, %v6617
        %v6619 = vadd.f32 %v6615, %v6618
        %vm6620 = vweird.f32 %v6614
        %vm6621 = vweird.f32 %v6615
        %vm6622 = vmor %vm6620, %vm6621
        %v6623 = vsel %vm6622, %v6615, %v6619
        %v6624 = vand.u32 2147483647, %v6614
        %vm6625 = vcmp.eq.f32.partialorder %v6624, 8.507059e+37
        %v6626 = vand.u32 %v6614, 2147483648
        %v6627 = vor.u32 1.1754944e-38, %v6626
        %v6628 = vsel %vm6625, %v6627, %v6623
        %v6629 = vmul.f32 %v6604, %v6628
        %v6630 = vmin.f32 %v6629, 1.0
        %v6631 = vmax.f32 %v6630, -1.0
        %v6632 = vmul.f32 %v6424, %v6424
        %v6633 = vmin.f32 16.0, %v6632
        %v6634 = vmul.f32 %v6633, 2.1237322e-06
        %v6635 = vadd.f32 %v6634, 0.00028619796
        %v6636 = vmul.f32 %v6633, %v6635
        %v6637 = vadd.f32 %v6636, 0.0036580483
        %v6638 = vmul.f32 %v6633, %v6637
        %v6639 = vadd.f32 %v6638, 0.05243302
        %v6640 = vmul.f32 %v6633, %v6639
        %v6641 = vadd.f32 %v6640, 0.18741608
        %v6642 = vmul.f32 %v6633, %v6641
        %v6643 = vadd.f32 %v6642, 1.1283791
        %v6644 = vmul.f32 %v6424, %v6643
        %v6645 = vmul.f32 %v6633, 3.8918573e-05
        %v6646 = vadd.f32 %v6645, 0.001143296
        %v6647 = vmul.f32 %v6633, %v6646
        %v6648 = vadd.f32 %v6647, 0.014752088
        %v6649 = vmul.f32 %v6633, %v6648
        %v6650 = vadd.f32 %v6649, 0.112945676
        %v6651 = vmul.f32 %v6633, %v6650
        %v6652 = vadd.f32 %v6651, 0.4994258
        %v6653 = vmul.f32 %v6633, %v6652
        %v6654 = vadd.f32 %v6653, 1.0
        %v6655 = vrcp.pop %v6654
        %v6656 = vmul.f32 %v6654, %v6655
        %v6657 = vsub.f32 1.0, %v6656
        %v6658 = vmul.f32 %v6655, %v6657
        %v6659 = vadd.f32 %v6655, %v6658
        %vm6660 = vweird.f32 %v6654
        %vm6661 = vweird.f32 %v6655
        %vm6662 = vmor %vm6660, %vm6661
        %v6663 = vsel %vm6662, %v6655, %v6659
        %v6664 = vand.u32 2147483647, %v6654
        %vm6665 = vcmp.eq.f32.partialorder %v6664, 8.507059e+37
        %v6666 = vand.u32 %v6654, 2147483648
        %v6667 = vor.u32 1.1754944e-38, %v6666
        %v6668 = vsel %vm6665, %v6667, %v6663
        %v6669 = vmul.f32 %v6644, %v6668
        %v6670 = vmin.f32 %v6669, 1.0
        %v6671 = vmax.f32 %v6670, -1.0
        %v6672 = vmul.f32 %v6425, %v6425
        %v6673 = vmin.f32 16.0, %v6672
        %v6674 = vmul.f32 %v6673, 2.1237322e-06
        %v6675 = vadd.f32 %v6674, 0.00028619796
        %v6676 = vmul.f32 %v6673, %v6675
        %v6677 = vadd.f32 %v6676, 0.0036580483
        %v6678 = vmul.f32 %v6673, %v6677
        %v6679 = vadd.f32 %v6678, 0.05243302
        %v6680 = vmul.f32 %v6673, %v6679
        %v6681 = vadd.f32 %v6680, 0.18741608
        %v6682 = vmul.f32 %v6673, %v6681
        %v6683 = vadd.f32 %v6682, 1.1283791
        %v6684 = vmul.f32 %v6425, %v6683
        %v6685 = vmul.f32 %v6673, 3.8918573e-05
        %v6686 = vadd.f32 %v6685, 0.001143296
        %v6687 = vmul.f32 %v6673, %v6686
        %v6688 = vadd.f32 %v6687, 0.014752088
        %v6689 = vmul.f32 %v6673, %v6688
        %v6690 = vadd.f32 %v6689, 0.112945676
        %v6691 = vmul.f32 %v6673, %v6690
        %v6692 = vadd.f32 %v6691, 0.4994258
        %v6693 = vmul.f32 %v6673, %v6692
        %v6694 = vadd.f32 %v6693, 1.0
        %v6695 = vrcp.pop %v6694
        %v6696 = vmul.f32 %v6694, %v6695
        %v6697 = vsub.f32 1.0, %v6696
        %v6698 = vmul.f32 %v6695, %v6697
        %v6699 = vadd.f32 %v6695, %v6698
        %vm6700 = vweird.f32 %v6694
        %vm6701 = vweird.f32 %v6695
        %vm6702 = vmor %vm6700, %vm6701
        %v6703 = vsel %vm6702, %v6695, %v6699
        %v6704 = vand.u32 2147483647, %v6694
        %vm6705 = vcmp.eq.f32.partialorder %v6704, 8.507059e+37
        %v6706 = vand.u32 %v6694, 2147483648
        %v6707 = vor.u32 1.1754944e-38, %v6706
        %v6708 = vsel %vm6705, %v6707, %v6703
        %v6709 = vmul.f32 %v6684, %v6708
        %v6710 = vmin.f32 %v6709, 1.0
        %v6711 = vmax.f32 %v6710, -1.0
        %v6712 = vmul.f32 %v6426, %v6426
        %v6713 = vmin.f32 16.0, %v6712
        %v6714 = vmul.f32 %v6713, 2.1237322e-06
        %v6715 = vadd.f32 %v6714, 0.00028619796
        %v6716 = vmul.f32 %v6713, %v6715
        %v6717 = vadd.f32 %v6716, 0.0036580483
        %v6718 = vmul.f32 %v6713, %v6717
        %v6719 = vadd.f32 %v6718, 0.05243302
        %v6720 = vmul.f32 %v6713, %v6719
        %v6721 = vadd.f32 %v6720, 0.18741608
        %v6722 = vmul.f32 %v6713, %v6721
        %v6723 = vadd.f32 %v6722, 1.1283791
        %v6724 = vmul.f32 %v6426, %v6723
        %v6725 = vmul.f32 %v6713, 3.8918573e-05
        %v6726 = vadd.f32 %v6725, 0.001143296
        %v6727 = vmul.f32 %v6713, %v6726
        %v6728 = vadd.f32 %v6727, 0.014752088
        %v6729 = vmul.f32 %v6713, %v6728
        %v6730 = vadd.f32 %v6729, 0.112945676
        %v6731 = vmul.f32 %v6713, %v6730
        %v6732 = vadd.f32 %v6731, 0.4994258
        %v6733 = vmul.f32 %v6713, %v6732
        %v6734 = vadd.f32 %v6733, 1.0
        %v6735 = vrcp.pop %v6734
        %v6736 = vmul.f32 %v6734, %v6735
        %v6737 = vsub.f32 1.0, %v6736
        %v6738 = vmul.f32 %v6735, %v6737
        %v6739 = vadd.f32 %v6735, %v6738
        %vm6740 = vweird.f32 %v6734
        %vm6741 = vweird.f32 %v6735
        %vm6742 = vmor %vm6740, %vm6741
        %v6743 = vsel %vm6742, %v6735, %v6739
        %v6744 = vand.u32 2147483647, %v6734
        %vm6745 = vcmp.eq.f32.partialorder %v6744, 8.507059e+37
        %v6746 = vand.u32 %v6734, 2147483648
        %v6747 = vor.u32 1.1754944e-38, %v6746
        %v6748 = vsel %vm6745, %v6747, %v6743
        %v6749 = vmul.f32 %v6724, %v6748
        %v6750 = vmin.f32 %v6749, 1.0
        %v6751 = vmax.f32 %v6750, -1.0
        %v6752 = vmul.f32 %v6427, %v6427
        %v6753 = vmin.f32 16.0, %v6752
        %v6754 = vmul.f32 %v6753, 2.1237322e-06
        %v6755 = vadd.f32 %v6754, 0.00028619796
        %v6756 = vmul.f32 %v6753, %v6755
        %v6757 = vadd.f32 %v6756, 0.0036580483
        %v6758 = vmul.f32 %v6753, %v6757
        %v6759 = vadd.f32 %v6758, 0.05243302
        %v6760 = vmul.f32 %v6753, %v6759
        %v6761 = vadd.f32 %v6760, 0.18741608
        %v6762 = vmul.f32 %v6753, %v6761
        %v6763 = vadd.f32 %v6762, 1.1283791
        %v6764 = vmul.f32 %v6427, %v6763
        %v6765 = vmul.f32 %v6753, 3.8918573e-05
        %v6766 = vadd.f32 %v6765, 0.001143296
        %v6767 = vmul.f32 %v6753, %v6766
        %v6768 = vadd.f32 %v6767, 0.014752088
        %v6769 = vmul.f32 %v6753, %v6768
        %v6770 = vadd.f32 %v6769, 0.112945676
        %v6771 = vmul.f32 %v6753, %v6770
        %v6772 = vadd.f32 %v6771, 0.4994258
        %v6773 = vmul.f32 %v6753, %v6772
        %v6774 = vadd.f32 %v6773, 1.0
        %v6775 = vrcp.pop %v6774
        %v6776 = vmul.f32 %v6774, %v6775
        %v6777 = vsub.f32 1.0, %v6776
        %v6778 = vmul.f32 %v6775, %v6777
        %v6779 = vadd.f32 %v6775, %v6778
        %vm6780 = vweird.f32 %v6774
        %vm6781 = vweird.f32 %v6775
        %vm6782 = vmor %vm6780, %vm6781
        %v6783 = vsel %vm6782, %v6775, %v6779
        %v6784 = vand.u32 2147483647, %v6774
        %vm6785 = vcmp.eq.f32.partialorder %v6784, 8.507059e+37
        %v6786 = vand.u32 %v6774, 2147483648
        %v6787 = vor.u32 1.1754944e-38, %v6786
        %v6788 = vsel %vm6785, %v6787, %v6783
        %v6789 = vmul.f32 %v6764, %v6788
        %v6790 = vmin.f32 %v6789, 1.0
        %v6791 = vmax.f32 %v6790, -1.0
        %v6792 = vmul.f32 %v6428, %v6428
        %v6793 = vmin.f32 16.0, %v6792
        %v6794 = vmul.f32 %v6793, 2.1237322e-06
        %v6795 = vadd.f32 %v6794, 0.00028619796
        %v6796 = vmul.f32 %v6793, %v6795
        %v6797 = vadd.f32 %v6796, 0.0036580483
        %v6798 = vmul.f32 %v6793, %v6797
        %v6799 = vadd.f32 %v6798, 0.05243302
        %v6800 = vmul.f32 %v6793, %v6799
        %v6801 = vadd.f32 %v6800, 0.18741608
        %v6802 = vmul.f32 %v6793, %v6801
        %v6803 = vadd.f32 %v6802, 1.1283791
        %v6804 = vmul.f32 %v6428, %v6803
        %v6805 = vmul.f32 %v6793, 3.8918573e-05
        %v6806 = vadd.f32 %v6805, 0.001143296
        %v6807 = vmul.f32 %v6793, %v6806
        %v6808 = vadd.f32 %v6807, 0.014752088
        %v6809 = vmul.f32 %v6793, %v6808
        %v6810 = vadd.f32 %v6809, 0.112945676
        %v6811 = vmul.f32 %v6793, %v6810
        %v6812 = vadd.f32 %v6811, 0.4994258
        %v6813 = vmul.f32 %v6793, %v6812
        %v6814 = vadd.f32 %v6813, 1.0
        %v6815 = vrcp.pop %v6814
        %v6816 = vmul.f32 %v6814, %v6815
        %v6817 = vsub.f32 1.0, %v6816
        %v6818 = vmul.f32 %v6815, %v6817
        %v6819 = vadd.f32 %v6815, %v6818
        %vm6820 = vweird.f32 %v6814
        %vm6821 = vweird.f32 %v6815
        %vm6822 = vmor %vm6820, %vm6821
        %v6823 = vsel %vm6822, %v6815, %v6819
        %v6824 = vand.u32 2147483647, %v6814
        %vm6825 = vcmp.eq.f32.partialorder %v6824, 8.507059e+37
        %v6826 = vand.u32 %v6814, 2147483648
        %v6827 = vor.u32 1.1754944e-38, %v6826
        %v6828 = vsel %vm6825, %v6827, %v6823
        %v6829 = vmul.f32 %v6804, %v6828
        %v6830 = vmin.f32 %v6829, 1.0
        %v6831 = vmax.f32 %v6830, -1.0
        %v6832 = vmul.f32 %v6429, %v6429
        %v6833 = vmin.f32 16.0, %v6832
        %v6834 = vmul.f32 %v6833, 2.1237322e-06
        %v6835 = vadd.f32 %v6834, 0.00028619796
        %v6836 = vmul.f32 %v6833, %v6835
        %v6837 = vadd.f32 %v6836, 0.0036580483
        %v6838 = vmul.f32 %v6833, %v6837
        %v6839 = vadd.f32 %v6838, 0.05243302
        %v6840 = vmul.f32 %v6833, %v6839
        %v6841 = vadd.f32 %v6840, 0.18741608
        %v6842 = vmul.f32 %v6833, %v6841
        %v6843 = vadd.f32 %v6842, 1.1283791
        %v6844 = vmul.f32 %v6429, %v6843
        %v6845 = vmul.f32 %v6833, 3.8918573e-05
        %v6846 = vadd.f32 %v6845, 0.001143296
        %v6847 = vmul.f32 %v6833, %v6846
        %v6848 = vadd.f32 %v6847, 0.014752088
        %v6849 = vmul.f32 %v6833, %v6848
        %v6850 = vadd.f32 %v6849, 0.112945676
        %v6851 = vmul.f32 %v6833, %v6850
        %v6852 = vadd.f32 %v6851, 0.4994258
        %v6853 = vmul.f32 %v6833, %v6852
        %v6854 = vadd.f32 %v6853, 1.0
        %v6855 = vrcp.pop %v6854
        %v6856 = vmul.f32 %v6854, %v6855
        %v6857 = vsub.f32 1.0, %v6856
        %v6858 = vmul.f32 %v6855, %v6857
        %v6859 = vadd.f32 %v6855, %v6858
        %vm6860 = vweird.f32 %v6854
        %vm6861 = vweird.f32 %v6855
        %vm6862 = vmor %vm6860, %vm6861
        %v6863 = vsel %vm6862, %v6855, %v6859
        %v6864 = vand.u32 2147483647, %v6854
        %vm6865 = vcmp.eq.f32.partialorder %v6864, 8.507059e+37
        %v6866 = vand.u32 %v6854, 2147483648
        %v6867 = vor.u32 1.1754944e-38, %v6866
        %v6868 = vsel %vm6865, %v6867, %v6863
        %v6869 = vmul.f32 %v6844, %v6868
        %v6870 = vmin.f32 %v6869, 1.0
        %v6871 = vmax.f32 %v6870, -1.0
        %v6872 = vmul.f32 %v6430, %v6430
        %v6873 = vmin.f32 16.0, %v6872
        %v6874 = vmul.f32 %v6873, 2.1237322e-06
        %v6875 = vadd.f32 %v6874, 0.00028619796
        %v6876 = vmul.f32 %v6873, %v6875
        %v6877 = vadd.f32 %v6876, 0.0036580483
        %v6878 = vmul.f32 %v6873, %v6877
        %v6879 = vadd.f32 %v6878, 0.05243302
        %v6880 = vmul.f32 %v6873, %v6879
        %v6881 = vadd.f32 %v6880, 0.18741608
        %v6882 = vmul.f32 %v6873, %v6881
        %v6883 = vadd.f32 %v6882, 1.1283791
        %v6884 = vmul.f32 %v6430, %v6883
        %v6885 = vmul.f32 %v6873, 3.8918573e-05
        %v6886 = vadd.f32 %v6885, 0.001143296
        %v6887 = vmul.f32 %v6873, %v6886
        %v6888 = vadd.f32 %v6887, 0.014752088
        %v6889 = vmul.f32 %v6873, %v6888
        %v6890 = vadd.f32 %v6889, 0.112945676
        %v6891 = vmul.f32 %v6873, %v6890
        %v6892 = vadd.f32 %v6891, 0.4994258
        %v6893 = vmul.f32 %v6873, %v6892
        %v6894 = vadd.f32 %v6893, 1.0
        %v6895 = vrcp.pop %v6894
        %v6896 = vmul.f32 %v6894, %v6895
        %v6897 = vsub.f32 1.0, %v6896
        %v6898 = vmul.f32 %v6895, %v6897
        %v6899 = vadd.f32 %v6895, %v6898
        %vm6900 = vweird.f32 %v6894
        %vm6901 = vweird.f32 %v6895
        %vm6902 = vmor %vm6900, %vm6901
        %v6903 = vsel %vm6902, %v6895, %v6899
        %v6904 = vand.u32 2147483647, %v6894
        %vm6905 = vcmp.eq.f32.partialorder %v6904, 8.507059e+37
        %v6906 = vand.u32 %v6894, 2147483648
        %v6907 = vor.u32 1.1754944e-38, %v6906
        %v6908 = vsel %vm6905, %v6907, %v6903
        %v6909 = vmul.f32 %v6884, %v6908
        %v6910 = vmin.f32 %v6909, 1.0
        %v6911 = vmax.f32 %v6910, -1.0
        %v6912 = vmul.f32 %v6431, %v6431
        %v6913 = vmin.f32 16.0, %v6912
        %v6914 = vmul.f32 %v6913, 2.1237322e-06
        %v6915 = vadd.f32 %v6914, 0.00028619796
        %v6916 = vmul.f32 %v6913, %v6915
        %v6917 = vadd.f32 %v6916, 0.0036580483
        %v6918 = vmul.f32 %v6913, %v6917
        %v6919 = vadd.f32 %v6918, 0.05243302
        %v6920 = vmul.f32 %v6913, %v6919
        %v6921 = vadd.f32 %v6920, 0.18741608
        %v6922 = vmul.f32 %v6913, %v6921
        %v6923 = vadd.f32 %v6922, 1.1283791
        %v6924 = vmul.f32 %v6431, %v6923
        %v6925 = vmul.f32 %v6913, 3.8918573e-05
        %v6926 = vadd.f32 %v6925, 0.001143296
        %v6927 = vmul.f32 %v6913, %v6926
        %v6928 = vadd.f32 %v6927, 0.014752088
        %v6929 = vmul.f32 %v6913, %v6928
        %v6930 = vadd.f32 %v6929, 0.112945676
        %v6931 = vmul.f32 %v6913, %v6930
        %v6932 = vadd.f32 %v6931, 0.4994258
        %v6933 = vmul.f32 %v6913, %v6932
        %v6934 = vadd.f32 %v6933, 1.0
        %v6935 = vrcp.pop %v6934
        %v6936 = vmul.f32 %v6934, %v6935
        %v6937 = vsub.f32 1.0, %v6936
        %v6938 = vmul.f32 %v6935, %v6937
        %v6939 = vadd.f32 %v6935, %v6938
        %vm6940 = vweird.f32 %v6934
        %vm6941 = vweird.f32 %v6935
        %vm6942 = vmor %vm6940, %vm6941
        %v6943 = vsel %vm6942, %v6935, %v6939
        %v6944 = vand.u32 2147483647, %v6934
        %vm6945 = vcmp.eq.f32.partialorder %v6944, 8.507059e+37
        %v6946 = vand.u32 %v6934, 2147483648
        %v6947 = vor.u32 1.1754944e-38, %v6946
        %v6948 = vsel %vm6945, %v6947, %v6943
        %v6949 = vmul.f32 %v6924, %v6948
        %v6950 = vmin.f32 %v6949, 1.0
        %v6951 = vmax.f32 %v6950, -1.0
        %v6952 = vadd.f32 %v6471, 1.0
        %v6953 = vadd.f32 %v6511, 1.0
        %v6954 = vadd.f32 %v6551, 1.0
        %v6955 = vadd.f32 %v6591, 1.0
        %v6956 = vadd.f32 %v6631, 1.0
        %v6957 = vadd.f32 %v6671, 1.0
        %v6958 = vadd.f32 %v6711, 1.0
        %v6959 = vadd.f32 %v6751, 1.0
        %v6960 = vadd.f32 %v6791, 1.0
        %v6961 = vadd.f32 %v6831, 1.0
        %v6962 = vadd.f32 %v6871, 1.0
        %v6963 = vadd.f32 %v6911, 1.0
        %v6964 = vadd.f32 %v6951, 1.0
        %v6965 = vmul.f32 %v6406, %v6952
        %v6966 = vmul.f32 %v6407, %v6953
        %v6967 = vmul.f32 %v6408, %v6954
        %v6968 = vmul.f32 %v6409, %v6955
        %v6969 = vmul.f32 %v6410, %v6956
        %v6970 = vmul.f32 %v6411, %v6957
        %v6971 = vmul.f32 %v6412, %v6958
        %v6972 = vmul.f32 %v6413, %v6959
        %v6973 = vmul.f32 %v6414, %v6960
        %v6974 = vmul.f32 %v6415, %v6961
        %v6975 = vmul.f32 %v6416, %v6962
        %v6976 = vmul.f32 %v6417, %v6963
        %v6977 = vmul.f32 %v6418, %v6964
        %6978 = vst [vmem:[#allocation3] sm:$0xff] %v6965
        %6979 = vst [vmem:[#allocation3 + $0x8] sm:$0xff] %v6966
        %6980 = vst [vmem:[#allocation3 + $0x10] sm:$0xff] %v6967
        %6981 = vst [vmem:[#allocation3 + $0x18] sm:$0xff] %v6968
        %6982 = vst [vmem:[#allocation3 + $0x20] sm:$0xff] %v6969
        %6983 = vst [vmem:[#allocation3 + $0x28] sm:$0xff] %v6970
        %6984 = vst [vmem:[#allocation3 + $0x30] sm:$0xff] %v6971
        %6985 = vst [vmem:[#allocation3 + $0x38] sm:$0xff] %v6972
        %6986 = vst [vmem:[#allocation3 + $0x40] sm:$0xff] %v6973
        %6987 = vst [vmem:[#allocation3 + $0x48] sm:$0xff] %v6974
        %6988 = vst [vmem:[#allocation3 + $0x50] sm:$0xff] %v6975
        %6989 = vst [vmem:[#allocation3 + $0x58] sm:$0xff] %v6976
        %6990 = vst [vmem:[#allocation3 + $0x60] sm:$0x7] %v6977
        %v6991 = vld [vmem:[#allocation3] ss:$4 sm:$0xff]
        %s6992 = scalar_lea.vmem [#allocation3], 32
        %v6993 = vld [vmem:[%s6992] ss:$4 sm:$0xff]
        %s6994 = scalar_lea.vmem [#allocation3], 64
        %v6995 = vld [vmem:[%s6994] ss:$4 sm:$0xff]
        %6996 = vst [vmem:[#allocation9] sm:$0xff] %v6991
        %6997 = vst [vmem:[#allocation9 + $0x28] sm:$0xff] %v6993
        %6998 = vst [vmem:[#allocation9 + $0x50] sm:$0xff] %v6995
        %s6999 = scalar_lea.vmem [#allocation3], 1
        %v7000 = vld [vmem:[%s6999] ss:$4 sm:$0xff]
        %s7001 = scalar_lea.vmem [#allocation3], 33
        %v7002 = vld [vmem:[%s7001] ss:$4 sm:$0xff]
        %s7003 = scalar_lea.vmem [#allocation3], 65
        %v7004 = vld [vmem:[%s7003] ss:$4 sm:$0xff]
        %7005 = vst [vmem:[#allocation9 + $0x8] sm:$0xff] %v7000
        %7006 = vst [vmem:[#allocation9 + $0x30] sm:$0xff] %v7002
        %7007 = vst [vmem:[#allocation9 + $0x58] sm:$0xff] %v7004
        %s7008 = scalar_lea.vmem [#allocation3], 2
        %v7009 = vld [vmem:[%s7008] ss:$4 sm:$0xff]
        %s7010 = scalar_lea.vmem [#allocation3], 34
        %v7011 = vld [vmem:[%s7010] ss:$4 sm:$0xff]
        %s7012 = scalar_lea.vmem [#allocation3], 66
        %v7013 = vld [vmem:[%s7012] ss:$4 sm:$0xff]
        %7014 = vst [vmem:[#allocation9 + $0x10] sm:$0xff] %v7009
        %7015 = vst [vmem:[#allocation9 + $0x38] sm:$0xff] %v7011
        %7016 = vst [vmem:[#allocation9 + $0x60] sm:$0xff] %v7013
        %s7017 = scalar_lea.vmem [#allocation3], 3
        %v7018 = vld [vmem:[%s7017] ss:$4 sm:$0xff]
        %s7019 = scalar_lea.vmem [#allocation3], 35
        %v7020 = vld [vmem:[%s7019] ss:$4 sm:$0xff]
        %s7021 = scalar_lea.vmem [#allocation3], 67
        %v7022 = vld [vmem:[%s7021] ss:$4 sm:$0xff]
        %7023 = vst [vmem:[#allocation9 + $0x18] sm:$0xff] %v7018
        %7024 = vst [vmem:[#allocation9 + $0x40] sm:$0xff] %v7020
        %7025 = vst [vmem:[#allocation9 + $0x68] sm:$0xff] %v7022
        %s7026 = scalar_lea.vmem [#allocation3], 4
        %v7027 = vld [vmem:[%s7026] ss:$4 sm:$0xff]
        %s7028 = scalar_lea.vmem [#allocation3], 36
        %v7029 = vld [vmem:[%s7028] ss:$4 sm:$0xff]
        %s7030 = scalar_lea.vmem [#allocation3], 68
        %v7031 = vld [vmem:[%s7030] ss:$4 sm:$0xff]
        %7032 = vst [vmem:[#allocation9 + $0x20] sm:$0xff] %v7027
        %7033 = vst [vmem:[#allocation9 + $0x48] sm:$0xff] %v7029
        %7034 = vst [vmem:[#allocation9 + $0x70] sm:$0xff] %v7031
        %v7035 = vld [vmem:[#allocation14 + $0x140] sm:$0xf]
        %v7036 = vld [vmem:[#allocation14 + $0x144] sm:$0xf]
        %v7037 = vld [vmem:[#allocation14 + $0x148] sm:$0xf]
        %v7038 = vld [vmem:[#allocation14 + $0x14c] sm:$0xf]
        %v7039 = vld [vmem:[#allocation14 + $0x150] sm:$0xf]
        %v7040 = vld [vmem:[#allocation14 + $0x154] sm:$0xf]
        %v7041 = vld [vmem:[#allocation14 + $0x158] sm:$0xf]
        %v7042 = vld [vmem:[#allocation14 + $0x15c] sm:$0xf]
        %v7043 = vld [vmem:[#allocation14 + $0x160] sm:$0xf]
        %v7044 = vld [vmem:[#allocation14 + $0x164] sm:$0xf]
        %v7045 = vld [vmem:[#allocation14 + $0x168] sm:$0xf]
        %v7046 = vld [vmem:[#allocation14 + $0x16c] sm:$0xf]
        %v7047 = vld [vmem:[#allocation14 + $0x170] sm:$0xf]
        %v7048 = vld [vmem:[#allocation14 + $0x174] sm:$0xf]
        %v7049 = vld [vmem:[#allocation14 + $0x178] sm:$0xf]
        %v7050 = vld [vmem:[#allocation14 + $0x17c] sm:$0xf]
        %v7051 = vld [vmem:[#allocation14 + $0x180] sm:$0xf]
        %v7052 = vld [vmem:[#allocation14 + $0x184] sm:$0xf]
        %v7053 = vld [vmem:[#allocation14 + $0x188] sm:$0xf]
        %v7054 = vld [vmem:[#allocation14 + $0x18c] sm:$0xf]
        %v7055 = vld [vmem:[#allocation14 + $0x190] sm:$0xf]
        %v7056 = vld [vmem:[#allocation14 + $0x194] sm:$0xf]
        %v7057 = vld [vmem:[#allocation14 + $0x198] sm:$0xf]
        %v7058 = vld [vmem:[#allocation14 + $0x19c] sm:$0xf]
        %v7059 = vld [vmem:[#allocation14 + $0x1a0] sm:$0xf]
        %v7060 = vld [vmem:[#allocation14 + $0x1a4] sm:$0xf]
        %v7061 = vld [vmem:[#allocation14 + $0x1a8] sm:$0xf]
        %v7062 = vld [vmem:[#allocation14 + $0x1ac] sm:$0xf]
        %v7063 = vld [vmem:[#allocation14 + $0x1b0] sm:$0xf]
        %v7064 = vld [vmem:[#allocation14 + $0x1b4] sm:$0xf]
        %v7065 = vld [vmem:[#allocation14 + $0x1b8] sm:$0xf]
        %v7066 = vld [vmem:[#allocation14 + $0x1bc] sm:$0xf]
        %v7067 = vld [vmem:[#allocation14 + $0x1c0] sm:$0xf]
        %v7068 = vld [vmem:[#allocation14 + $0x1c4] sm:$0xf]
        %v7069 = vld [vmem:[#allocation14 + $0x1c8] sm:$0xf]
        %v7070 = vld [vmem:[#allocation14 + $0x1cc] sm:$0xf]
        %v7071 = vld [vmem:[#allocation14 + $0x1d0] sm:$0xf]
        %v7072 = vld [vmem:[#allocation14 + $0x1d4] sm:$0xf]
        %v7073 = vld [vmem:[#allocation14 + $0x1d8] sm:$0xf]
        %v7074 = vld [vmem:[#allocation14 + $0x1dc] sm:$0xf]
        %v7075 = vld [vmem:[#allocation14 + $0x1e0] sm:$0xf]
        %v7076 = vld [vmem:[#allocation14 + $0x1e4] sm:$0xf]
        %v7077 = vld [vmem:[#allocation14 + $0x1e8] sm:$0xf]
        %v7078 = vld [vmem:[#allocation14 + $0x1ec] sm:$0xf]
        %v7079 = vld [vmem:[#allocation14 + $0x1f0] sm:$0xf]
        %v7080 = vld [vmem:[#allocation14 + $0x1f4] sm:$0xf]
        %v7081 = vld [vmem:[#allocation14 + $0x1f8] sm:$0xf]
        %v7082 = vld [vmem:[#allocation14 + $0x1fc] sm:$0xf]
        %v7083 = vld [vmem:[#allocation14 + $0x200] sm:$0xf]
        %v7084 = vld [vmem:[#allocation14 + $0x204] sm:$0xf]
        %v7085 = vld [vmem:[#allocation14 + $0x208] sm:$0xf]
        %v7086 = vld [vmem:[#allocation14 + $0x20c] sm:$0xf]
        %v7087 = vld [vmem:[#allocation14 + $0x210] sm:$0xf]
        %v7088 = vld [vmem:[#allocation14 + $0x214] sm:$0xf]
        %v7089 = vld [vmem:[#allocation14 + $0x218] sm:$0xf]
        %v7090 = vld [vmem:[#allocation14 + $0x21c] sm:$0xf]
        %v7091 = vld [vmem:[#allocation14 + $0x220] sm:$0xf]
        %v7092 = vld [vmem:[#allocation14 + $0x224] sm:$0xf]
        %v7093 = vld [vmem:[#allocation14 + $0x228] sm:$0xf]
        %v7094 = vld [vmem:[#allocation14 + $0x22c] sm:$0xf]
        %v7095 = vld [vmem:[#allocation14 + $0x230] sm:$0xf]
        %v7096 = vld [vmem:[#allocation14 + $0x234] sm:$0xf]
        %v7097 = vld [vmem:[#allocation14 + $0x238] sm:$0xf]
        %v7098 = vld [vmem:[#allocation14 + $0x23c] sm:$0xf]
        %v7099 = vld [vmem:[#allocation14 + $0x240] sm:$0xf]
        %v7100 = vld [vmem:[#allocation14 + $0x244] sm:$0xf]
        %v7101 = vld [vmem:[#allocation14 + $0x248] sm:$0xf]
        %v7102 = vld [vmem:[#allocation14 + $0x24c] sm:$0xf]
        %v7103 = vld [vmem:[#allocation14 + $0x250] sm:$0xf]
        %v7104 = vld [vmem:[#allocation14 + $0x254] sm:$0xf]
        %v7105 = vld [vmem:[#allocation14 + $0x258] sm:$0xf]
        %v7106 = vld [vmem:[#allocation14 + $0x25c] sm:$0xf]
        %v7107 = vld [vmem:[#allocation14 + $0x260] sm:$0xf]
        %v7108 = vld [vmem:[#allocation14 + $0x264] sm:$0xf]
        %v7109 = vld [vmem:[#allocation14 + $0x268] sm:$0xf]
        %v7110 = vld [vmem:[#allocation14 + $0x26c] sm:$0xf]
        %v7111 = vld [vmem:[#allocation14 + $0x270] sm:$0xf]
        %v7112 = vld [vmem:[#allocation14 + $0x274] sm:$0xf]
        %v7113 = vld [vmem:[#allocation14 + $0x278] sm:$0xf]
        %v7114 = vld [vmem:[#allocation14 + $0x27c] sm:$0xf]
        %v7115 = vld [vmem:[#allocation9] sm:$0xff]
        %v7116 = vld [vmem:[#allocation9 + $0x8] sm:$0xff]
        %v7117 = vld [vmem:[#allocation9 + $0x10] sm:$0xff]
        %v7118 = vld [vmem:[#allocation9 + $0x18] sm:$0xff]
        %v7119 = vld [vmem:[#allocation9 + $0x20] sm:$0xff]
        %v7120 = vld [vmem:[#allocation9 + $0x28] sm:$0xff]
        %v7121 = vld [vmem:[#allocation9 + $0x30] sm:$0xff]
        %v7122 = vld [vmem:[#allocation9 + $0x38] sm:$0xff]
        %v7123 = vld [vmem:[#allocation9 + $0x40] sm:$0xff]
        %v7124 = vld [vmem:[#allocation9 + $0x48] sm:$0xff]
        %v7125 = vld [vmem:[#allocation9 + $0x50] sm:$0xff]
        %v7126 = vld [vmem:[#allocation9 + $0x58] sm:$0xff]
        %v7127 = vld [vmem:[#allocation9 + $0x60] sm:$0xff]
        %v7128 = vld [vmem:[#allocation9 + $0x68] sm:$0xff]
        %v7129 = vld [vmem:[#allocation9 + $0x70] sm:$0xff]
        %v7130 = vpack.c.bf16 %v7120, %v7115
        %v7131 = vpack.c.bf16 %v7121, %v7116
        %v7132 = vpack.c.bf16 %v7122, %v7117
        %v7133 = vpack.c.bf16 %v7123, %v7118
        %v7134 = vpack.c.bf16 %v7124, %v7119
        %v7135 = vpack.c.bf16 %v7125, %v7125
        %v7136 = vpack.c.bf16 %v7126, %v7126
        %v7137 = vpack.c.bf16 %v7127, %v7127
        %v7138 = vpack.c.bf16 %v7128, %v7128
        %v7139 = vpack.c.bf16 %v7129, %v7129
        %v7140 = vld [vmem:[%s3 + $0x2] sm:$0x1]
        %v7141 = vperm.slane %v7140, 0
        %v7222 = vunpack.c.l.b16 %v7035
        %v7223 = vunpack.c.l.b16 %v7036
        %v7224 = vunpack.c.l.b16 %v7037
        %v7225 = vunpack.c.l.b16 %v7038
        %v7226 = vunpack.c.l.b16 %v7039
        %v7227 = vunpack.c.l.b16 %v7040
        %v7228 = vunpack.c.l.b16 %v7041
        %v7229 = vunpack.c.l.b16 %v7042
        %v7230 = vunpack.c.l.b16 %v7043
        %v7231 = vunpack.c.l.b16 %v7044
        %v7232 = vunpack.c.l.b16 %v7045
        %v7233 = vunpack.c.l.b16 %v7046
        %v7234 = vunpack.c.l.b16 %v7047
        %v7235 = vunpack.c.l.b16 %v7048
        %v7236 = vunpack.c.l.b16 %v7049
        %v7237 = vunpack.c.l.b16 %v7050
        %v7238 = vunpack.c.l.b16 %v7051
        %v7239 = vunpack.c.l.b16 %v7052
        %v7240 = vunpack.c.l.b16 %v7053
        %v7241 = vunpack.c.l.b16 %v7054
        %v7242 = vunpack.c.l.b16 %v7055
        %v7243 = vunpack.c.l.b16 %v7056
        %v7244 = vunpack.c.l.b16 %v7057
        %v7245 = vunpack.c.l.b16 %v7058
        %v7246 = vunpack.c.l.b16 %v7059
        %v7247 = vunpack.c.l.b16 %v7060
        %v7248 = vunpack.c.l.b16 %v7061
        %v7249 = vunpack.c.l.b16 %v7062
        %v7250 = vunpack.c.l.b16 %v7063
        %v7251 = vunpack.c.l.b16 %v7064
        %v7252 = vunpack.c.l.b16 %v7065
        %v7253 = vunpack.c.l.b16 %v7066
        %v7254 = vunpack.c.l.b16 %v7067
        %v7255 = vunpack.c.l.b16 %v7068
        %v7256 = vunpack.c.l.b16 %v7069
        %v7257 = vunpack.c.l.b16 %v7070
        %v7258 = vunpack.c.l.b16 %v7071
        %v7259 = vunpack.c.l.b16 %v7072
        %v7260 = vunpack.c.l.b16 %v7073
        %v7261 = vunpack.c.l.b16 %v7074
        %v7262 = vunpack.c.l.b16 %v7075
        %v7263 = vunpack.c.l.b16 %v7076
        %v7264 = vunpack.c.l.b16 %v7077
        %v7265 = vunpack.c.l.b16 %v7078
        %v7266 = vunpack.c.l.b16 %v7079
        %v7267 = vunpack.c.l.b16 %v7080
        %v7268 = vunpack.c.l.b16 %v7081
        %v7269 = vunpack.c.l.b16 %v7082
        %v7270 = vunpack.c.l.b16 %v7083
        %v7271 = vunpack.c.l.b16 %v7084
        %v7272 = vunpack.c.l.b16 %v7085
        %v7273 = vunpack.c.l.b16 %v7086
        %v7274 = vunpack.c.l.b16 %v7087
        %v7275 = vunpack.c.l.b16 %v7088
        %v7276 = vunpack.c.l.b16 %v7089
        %v7277 = vunpack.c.l.b16 %v7090
        %v7278 = vunpack.c.l.b16 %v7091
        %v7279 = vunpack.c.l.b16 %v7092
        %v7280 = vunpack.c.l.b16 %v7093
        %v7281 = vunpack.c.l.b16 %v7094
        %v7282 = vunpack.c.l.b16 %v7095
        %v7283 = vunpack.c.l.b16 %v7096
        %v7284 = vunpack.c.l.b16 %v7097
        %v7285 = vunpack.c.l.b16 %v7098
        %v7286 = vunpack.c.l.b16 %v7099
        %v7287 = vunpack.c.l.b16 %v7100
        %v7288 = vunpack.c.l.b16 %v7101
        %v7289 = vunpack.c.l.b16 %v7102
        %v7290 = vunpack.c.l.b16 %v7103
        %v7291 = vunpack.c.l.b16 %v7104
        %v7292 = vunpack.c.l.b16 %v7105
        %v7293 = vunpack.c.l.b16 %v7106
        %v7294 = vunpack.c.l.b16 %v7107
        %v7295 = vunpack.c.l.b16 %v7108
        %v7296 = vunpack.c.l.b16 %v7109
        %v7297 = vunpack.c.l.b16 %v7110
        %v7298 = vunpack.c.l.b16 %v7111
        %v7299 = vunpack.c.l.b16 %v7112
        %v7300 = vunpack.c.l.b16 %v7113
        %v7301 = vunpack.c.l.b16 %v7114
        %v7302 = vpack.c.b16 %v7223, %v7222
        %v7303 = vpack.c.b16 %v7225, %v7224
        %v7304 = vpack.c.b16 %v7227, %v7226
        %v7305 = vpack.c.b16 %v7229, %v7228
        %v7306 = vpack.c.b16 %v7231, %v7230
        %v7307 = vpack.c.b16 %v7233, %v7232
        %v7308 = vpack.c.b16 %v7235, %v7234
        %v7309 = vpack.c.b16 %v7237, %v7236
        %v7310 = vpack.c.b16 %v7239, %v7238
        %v7311 = vpack.c.b16 %v7241, %v7240
        %v7312 = vpack.c.b16 %v7243, %v7242
        %v7313 = vpack.c.b16 %v7245, %v7244
        %v7314 = vpack.c.b16 %v7247, %v7246
        %v7315 = vpack.c.b16 %v7249, %v7248
        %v7316 = vpack.c.b16 %v7251, %v7250
        %v7317 = vpack.c.b16 %v7253, %v7252
        %v7318 = vpack.c.b16 %v7255, %v7254
        %v7319 = vpack.c.b16 %v7257, %v7256
        %v7320 = vpack.c.b16 %v7259, %v7258
        %v7321 = vpack.c.b16 %v7261, %v7260
        %v7322 = vpack.c.b16 %v7263, %v7262
        %v7323 = vpack.c.b16 %v7265, %v7264
        %v7324 = vpack.c.b16 %v7267, %v7266
        %v7325 = vpack.c.b16 %v7269, %v7268
        %v7326 = vpack.c.b16 %v7271, %v7270
        %v7327 = vpack.c.b16 %v7273, %v7272
        %v7328 = vpack.c.b16 %v7275, %v7274
        %v7329 = vpack.c.b16 %v7277, %v7276
        %v7330 = vpack.c.b16 %v7279, %v7278
        %v7331 = vpack.c.b16 %v7281, %v7280
        %v7332 = vpack.c.b16 %v7283, %v7282
        %v7333 = vpack.c.b16 %v7285, %v7284
        %v7334 = vpack.c.b16 %v7287, %v7286
        %v7335 = vpack.c.b16 %v7289, %v7288
        %v7336 = vpack.c.b16 %v7291, %v7290
        %v7337 = vpack.c.b16 %v7293, %v7292
        %v7338 = vpack.c.b16 %v7295, %v7294
        %v7339 = vpack.c.b16 %v7297, %v7296
        %v7340 = vpack.c.b16 %v7299, %v7298
        %v7341 = vpack.c.b16 %v7301, %v7300
        %7382 = vmatpush.bf16.msra.mxu0 %v7309
        %7383 = vmatpush.bf16.msra.mxu0 %v7308
        %7384 = vmatpush.bf16.msra.mxu0 %v7307
        %7385 = vmatpush.bf16.msra.mxu0 %v7306
        %7386 = vmatpush.bf16.msra.mxu0 %v7305
        %7387 = vmatpush.bf16.msra.mxu0 %v7304
        %7388 = vmatpush.bf16.msra.mxu0 %v7303
        %7389 = vmatpush.bf16.msra.mxu0 %v7302
        %7390 = vmatmul.bf16.gmra.mxu0 %v7130
        %v7391 = vpop.f32.mrf.mxu0
        %v7392 = vadd.f32 %v7141, %v7391
        %v7393 = vpop.f32.mrf.mxu0
        %v7394 = vadd.f32 %v7141, %v7393
        %7395 = vmatmul.bf16.gmra.mxu0 %v7135
        %v7396 = vpop.f32.mrf.mxu0
        %v7397 = vadd.f32 %v7141, %v7396
        %v7398 = vpop.f32.mrf.mxu0
        %7399 = vdwg.mxu0
        %7400 = vmatpush.bf16.msra.mxu0 %v7317
        %7401 = vmatpush.bf16.msra.mxu0 %v7316
        %7402 = vmatpush.bf16.msra.mxu0 %v7315
        %7403 = vmatpush.bf16.msra.mxu0 %v7314
        %7404 = vmatpush.bf16.msra.mxu0 %v7313
        %7405 = vmatpush.bf16.msra.mxu0 %v7312
        %7406 = vmatpush.bf16.msra.mxu0 %v7311
        %7407 = vmatpush.bf16.msra.mxu0 %v7310
        %7408 = vmatmul.bf16.gmra.mxu0 %v7131
        %v7409 = vpop.f32.mrf.mxu0
        %v7410 = vadd.f32 %v7392, %v7409
        %v7411 = vpop.f32.mrf.mxu0
        %v7412 = vadd.f32 %v7394, %v7411
        %7413 = vmatmul.bf16.gmra.mxu0 %v7136
        %v7414 = vpop.f32.mrf.mxu0
        %v7415 = vadd.f32 %v7397, %v7414
        %v7416 = vpop.f32.mrf.mxu0
        %7417 = vdwg.mxu0
        %7418 = vmatpush.bf16.msra.mxu0 %v7325
        %7419 = vmatpush.bf16.msra.mxu0 %v7324
        %7420 = vmatpush.bf16.msra.mxu0 %v7323
        %7421 = vmatpush.bf16.msra.mxu0 %v7322
        %7422 = vmatpush.bf16.msra.mxu0 %v7321
        %7423 = vmatpush.bf16.msra.mxu0 %v7320
        %7424 = vmatpush.bf16.msra.mxu0 %v7319
        %7425 = vmatpush.bf16.msra.mxu0 %v7318
        %7426 = vmatmul.bf16.gmra.mxu0 %v7132
        %v7427 = vpop.f32.mrf.mxu0
        %v7428 = vadd.f32 %v7410, %v7427
        %v7429 = vpop.f32.mrf.mxu0
        %v7430 = vadd.f32 %v7412, %v7429
        %7431 = vmatmul.bf16.gmra.mxu0 %v7137
        %v7432 = vpop.f32.mrf.mxu0
        %v7433 = vadd.f32 %v7415, %v7432
        %v7434 = vpop.f32.mrf.mxu0
        %7435 = vdwg.mxu0
        %7436 = vmatpush.bf16.msra.mxu0 %v7333
        %7437 = vmatpush.bf16.msra.mxu0 %v7332
        %7438 = vmatpush.bf16.msra.mxu0 %v7331
        %7439 = vmatpush.bf16.msra.mxu0 %v7330
        %7440 = vmatpush.bf16.msra.mxu0 %v7329
        %7441 = vmatpush.bf16.msra.mxu0 %v7328
        %7442 = vmatpush.bf16.msra.mxu0 %v7327
        %7443 = vmatpush.bf16.msra.mxu0 %v7326
        %7444 = vmatmul.bf16.gmra.mxu0 %v7133
        %v7445 = vpop.f32.mrf.mxu0
        %v7446 = vadd.f32 %v7428, %v7445
        %v7447 = vpop.f32.mrf.mxu0
        %v7448 = vadd.f32 %v7430, %v7447
        %7449 = vmatmul.bf16.gmra.mxu0 %v7138
        %v7450 = vpop.f32.mrf.mxu0
        %v7451 = vadd.f32 %v7433, %v7450
        %v7452 = vpop.f32.mrf.mxu0
        %7453 = vdwg.mxu0
        %7454 = vmatpush.bf16.msra.mxu0 %v7341
        %7455 = vmatpush.bf16.msra.mxu0 %v7340
        %7456 = vmatpush.bf16.msra.mxu0 %v7339
        %7457 = vmatpush.bf16.msra.mxu0 %v7338
        %7458 = vmatpush.bf16.msra.mxu0 %v7337
        %7459 = vmatpush.bf16.msra.mxu0 %v7336
        %7460 = vmatpush.bf16.msra.mxu0 %v7335
        %7461 = vmatpush.bf16.msra.mxu0 %v7334
        %7462 = vmatmul.bf16.gmra.mxu0 %v7134
        %v7463 = vpop.f32.mrf.mxu0
        %v7464 = vadd.f32 %v7446, %v7463
        %v7465 = vpop.f32.mrf.mxu0
        %v7466 = vadd.f32 %v7448, %v7465
        %7467 = vmatmul.bf16.gmra.mxu0 %v7139
        %v7468 = vpop.f32.mrf.mxu0
        %v7469 = vadd.f32 %v7451, %v7468
        %v7470 = vpop.f32.mrf.mxu0
        %7471 = vdwg.mxu0
        %v7472 = vmul.f32 %v7464, 0.5
        %v7473 = vmul.f32 %v7466, 0.5
        %v7474 = vmul.f32 %v7469, 0.5
        %v7475 = vmul.f32 %v7464, 0.70710677
        %v7476 = vmul.f32 %v7466, 0.70710677
        %v7477 = vmul.f32 %v7469, 0.70710677
        %v7478 = vmul.f32 %v7475, %v7475
        %v7479 = vmin.f32 16.0, %v7478
        %v7480 = vmul.f32 %v7479, 2.1237322e-06
        %v7481 = vadd.f32 %v7480, 0.00028619796
        %v7482 = vmul.f32 %v7479, %v7481
        %v7483 = vadd.f32 %v7482, 0.0036580483
        %v7484 = vmul.f32 %v7479, %v7483
        %v7485 = vadd.f32 %v7484, 0.05243302
        %v7486 = vmul.f32 %v7479, %v7485
        %v7487 = vadd.f32 %v7486, 0.18741608
        %v7488 = vmul.f32 %v7479, %v7487
        %v7489 = vadd.f32 %v7488, 1.1283791
        %v7490 = vmul.f32 %v7475, %v7489
        %v7491 = vmul.f32 %v7479, 3.8918573e-05
        %v7492 = vadd.f32 %v7491, 0.001143296
        %v7493 = vmul.f32 %v7479, %v7492
        %v7494 = vadd.f32 %v7493, 0.014752088
        %v7495 = vmul.f32 %v7479, %v7494
        %v7496 = vadd.f32 %v7495, 0.112945676
        %v7497 = vmul.f32 %v7479, %v7496
        %v7498 = vadd.f32 %v7497, 0.4994258
        %v7499 = vmul.f32 %v7479, %v7498
        %v7500 = vadd.f32 %v7499, 1.0
        %v7501 = vrcp.pop %v7500
        %v7502 = vmul.f32 %v7500, %v7501
        %v7503 = vsub.f32 1.0, %v7502
        %v7504 = vmul.f32 %v7501, %v7503
        %v7505 = vadd.f32 %v7501, %v7504
        %vm7506 = vweird.f32 %v7500
        %vm7507 = vweird.f32 %v7501
        %vm7508 = vmor %vm7506, %vm7507
        %v7509 = vsel %vm7508, %v7501, %v7505
        %v7510 = vand.u32 2147483647, %v7500
        %vm7511 = vcmp.eq.f32.partialorder %v7510, 8.507059e+37
        %v7512 = vand.u32 %v7500, 2147483648
        %v7513 = vor.u32 1.1754944e-38, %v7512
        %v7514 = vsel %vm7511, %v7513, %v7509
        %v7515 = vmul.f32 %v7490, %v7514
        %v7516 = vmin.f32 %v7515, 1.0
        %v7517 = vmax.f32 %v7516, -1.0
        %v7518 = vmul.f32 %v7476, %v7476
        %v7519 = vmin.f32 16.0, %v7518
        %v7520 = vmul.f32 %v7519, 2.1237322e-06
        %v7521 = vadd.f32 %v7520, 0.00028619796
        %v7522 = vmul.f32 %v7519, %v7521
        %v7523 = vadd.f32 %v7522, 0.0036580483
        %v7524 = vmul.f32 %v7519, %v7523
        %v7525 = vadd.f32 %v7524, 0.05243302
        %v7526 = vmul.f32 %v7519, %v7525
        %v7527 = vadd.f32 %v7526, 0.18741608
        %v7528 = vmul.f32 %v7519, %v7527
        %v7529 = vadd.f32 %v7528, 1.1283791
        %v7530 = vmul.f32 %v7476, %v7529
        %v7531 = vmul.f32 %v7519, 3.8918573e-05
        %v7532 = vadd.f32 %v7531, 0.001143296
        %v7533 = vmul.f32 %v7519, %v7532
        %v7534 = vadd.f32 %v7533, 0.014752088
        %v7535 = vmul.f32 %v7519, %v7534
        %v7536 = vadd.f32 %v7535, 0.112945676
        %v7537 = vmul.f32 %v7519, %v7536
        %v7538 = vadd.f32 %v7537, 0.4994258
        %v7539 = vmul.f32 %v7519, %v7538
        %v7540 = vadd.f32 %v7539, 1.0
        %v7541 = vrcp.pop %v7540
        %v7542 = vmul.f32 %v7540, %v7541
        %v7543 = vsub.f32 1.0, %v7542
        %v7544 = vmul.f32 %v7541, %v7543
        %v7545 = vadd.f32 %v7541, %v7544
        %vm7546 = vweird.f32 %v7540
        %vm7547 = vweird.f32 %v7541
        %vm7548 = vmor %vm7546, %vm7547
        %v7549 = vsel %vm7548, %v7541, %v7545
        %v7550 = vand.u32 2147483647, %v7540
        %vm7551 = vcmp.eq.f32.partialorder %v7550, 8.507059e+37
        %v7552 = vand.u32 %v7540, 2147483648
        %v7553 = vor.u32 1.1754944e-38, %v7552
        %v7554 = vsel %vm7551, %v7553, %v7549
        %v7555 = vmul.f32 %v7530, %v7554
        %v7556 = vmin.f32 %v7555, 1.0
        %v7557 = vmax.f32 %v7556, -1.0
        %v7558 = vmul.f32 %v7477, %v7477
        %v7559 = vmin.f32 16.0, %v7558
        %v7560 = vmul.f32 %v7559, 2.1237322e-06
        %v7561 = vadd.f32 %v7560, 0.00028619796
        %v7562 = vmul.f32 %v7559, %v7561
        %v7563 = vadd.f32 %v7562, 0.0036580483
        %v7564 = vmul.f32 %v7559, %v7563
        %v7565 = vadd.f32 %v7564, 0.05243302
        %v7566 = vmul.f32 %v7559, %v7565
        %v7567 = vadd.f32 %v7566, 0.18741608
        %v7568 = vmul.f32 %v7559, %v7567
        %v7569 = vadd.f32 %v7568, 1.1283791
        %v7570 = vmul.f32 %v7477, %v7569
        %v7571 = vmul.f32 %v7559, 3.8918573e-05
        %v7572 = vadd.f32 %v7571, 0.001143296
        %v7573 = vmul.f32 %v7559, %v7572
        %v7574 = vadd.f32 %v7573, 0.014752088
        %v7575 = vmul.f32 %v7559, %v7574
        %v7576 = vadd.f32 %v7575, 0.112945676
        %v7577 = vmul.f32 %v7559, %v7576
        %v7578 = vadd.f32 %v7577, 0.4994258
        %v7579 = vmul.f32 %v7559, %v7578
        %v7580 = vadd.f32 %v7579, 1.0
        %v7581 = vrcp.pop %v7580
        %v7582 = vmul.f32 %v7580, %v7581
        %v7583 = vsub.f32 1.0, %v7582
        %v7584 = vmul.f32 %v7581, %v7583
        %v7585 = vadd.f32 %v7581, %v7584
        %vm7586 = vweird.f32 %v7580
        %vm7587 = vweird.f32 %v7581
        %vm7588 = vmor %vm7586, %vm7587
        %v7589 = vsel %vm7588, %v7581, %v7585
        %v7590 = vand.u32 2147483647, %v7580
        %vm7591 = vcmp.eq.f32.partialorder %v7590, 8.507059e+37
        %v7592 = vand.u32 %v7580, 2147483648
        %v7593 = vor.u32 1.1754944e-38, %v7592
        %v7594 = vsel %vm7591, %v7593, %v7589
        %v7595 = vmul.f32 %v7570, %v7594
        %v7596 = vmin.f32 %v7595, 1.0
        %v7597 = vmax.f32 %v7596, -1.0
        %v7598 = vadd.f32 %v7517, 1.0
        %v7599 = vadd.f32 %v7557, 1.0
        %v7600 = vadd.f32 %v7597, 1.0
        %v7601 = vmul.f32 %v7472, %v7598
        %v7602 = vmul.f32 %v7473, %v7599
        %v7603 = vmul.f32 %v7474, %v7600
        %7604 = vst [vmem:[#allocation4] sm:$0xff] %v7601
        %7605 = vst [vmem:[#allocation4 + $0x8] sm:$0xff] %v7602
        %7606 = vst [vmem:[#allocation4 + $0x10] sm:$0xff] %v7603
        %v7607 = vld [vmem:[#allocation4] ss:$2 sm:$0xff]
        %s7608 = scalar_lea.vmem [#allocation4], 16
        %v7609 = vld [vmem:[%s7608] ss:$2 sm:$0x7]
        %7610 = vst [vmem:[#allocation10] sm:$0xff] %v7607
        %7611 = vst [vmem:[#allocation10 + $0x18] sm:$0x7] %v7609
        %s7612 = scalar_lea.vmem [#allocation4], 1
        %v7613 = vld [vmem:[%s7612] ss:$2 sm:$0xff]
        %s7614 = scalar_lea.vmem [#allocation4], 17
        %v7615 = vld [vmem:[%s7614] ss:$2 sm:$0x7]
        %7616 = vst [vmem:[#allocation10 + $0x8] sm:$0xff] %v7613
        %7617 = vst [vmem:[#allocation10 + $0x20] sm:$0x7] %v7615
        %s7618 = scalar_lea.vmem [#allocation4], 2
        %v7619 = vld [vmem:[%s7618] ss:$2 sm:$0xff]
        %s7620 = scalar_lea.vmem [#allocation4], 18
        %v7621 = vld [vmem:[%s7620] ss:$2 sm:$0x7]
        %7622 = vst [vmem:[#allocation10 + $0x10] sm:$0xff] %v7619
        %7623 = vst [vmem:[#allocation10 + $0x28] sm:$0x7] %v7621
        %v7624 = vld [vmem:[#allocation14 + $0x280] sm:$0xf]
        %v7625 = vld [vmem:[#allocation14 + $0x284] sm:$0xf]
        %v7626 = vld [vmem:[#allocation14 + $0x288] sm:$0xf]
        %v7627 = vld [vmem:[#allocation14 + $0x28c] sm:$0xf]
        %v7628 = vld [vmem:[#allocation14 + $0x290] sm:$0xf]
        %v7629 = vld [vmem:[#allocation14 + $0x294] sm:$0xf]
        %v7630 = vld [vmem:[#allocation14 + $0x298] sm:$0xf]
        %v7631 = vld [vmem:[#allocation14 + $0x29c] sm:$0xf]
        %v7632 = vld [vmem:[#allocation14 + $0x2a0] sm:$0xf]
        %v7633 = vld [vmem:[#allocation14 + $0x2a4] sm:$0xf]
        %v7634 = vld [vmem:[#allocation14 + $0x2a8] sm:$0xf]
        %v7635 = vld [vmem:[#allocation14 + $0x2ac] sm:$0xf]
        %v7636 = vld [vmem:[#allocation14 + $0x2b0] sm:$0xf]
        %v7637 = vld [vmem:[#allocation14 + $0x2b4] sm:$0xf]
        %v7638 = vld [vmem:[#allocation14 + $0x2b8] sm:$0xf]
        %v7639 = vld [vmem:[#allocation14 + $0x2bc] sm:$0xf]
        %v7640 = vld [vmem:[#allocation14 + $0x2c0] sm:$0xf]
        %v7641 = vld [vmem:[#allocation14 + $0x2c4] sm:$0xf]
        %v7642 = vld [vmem:[#allocation14 + $0x2c8] sm:$0xf]
        %v7643 = vld [vmem:[#allocation14 + $0x2cc] sm:$0xf]
        %v7644 = vld [vmem:[#allocation14 + $0x2d0] sm:$0xf]
        %v7645 = vld [vmem:[#allocation14 + $0x2d4] sm:$0xf]
        %v7646 = vld [vmem:[#allocation14 + $0x2d8] sm:$0xf]
        %v7647 = vld [vmem:[#allocation14 + $0x2dc] sm:$0xf]
        %v7648 = vld [vmem:[#allocation14 + $0x2e0] sm:$0xf]
        %v7649 = vld [vmem:[#allocation14 + $0x2e4] sm:$0xf]
        %v7650 = vld [vmem:[#allocation14 + $0x2e8] sm:$0xf]
        %v7651 = vld [vmem:[#allocation14 + $0x2ec] sm:$0xf]
        %v7652 = vld [vmem:[#allocation14 + $0x2f0] sm:$0xf]
        %v7653 = vld [vmem:[#allocation14 + $0x2f4] sm:$0xf]
        %v7654 = vld [vmem:[#allocation14 + $0x2f8] sm:$0xf]
        %v7655 = vld [vmem:[#allocation14 + $0x2fc] sm:$0xf]
        %v7656 = vld [vmem:[#allocation14 + $0x300] sm:$0xf]
        %v7657 = vld [vmem:[#allocation14 + $0x304] sm:$0xf]
        %v7658 = vld [vmem:[#allocation14 + $0x308] sm:$0xf]
        %v7659 = vld [vmem:[#allocation14 + $0x30c] sm:$0xf]
        %v7660 = vld [vmem:[#allocation14 + $0x310] sm:$0xf]
        %v7661 = vld [vmem:[#allocation14 + $0x314] sm:$0xf]
        %v7662 = vld [vmem:[#allocation14 + $0x318] sm:$0xf]
        %v7663 = vld [vmem:[#allocation14 + $0x31c] sm:$0xf]
        %v7664 = vld [vmem:[#allocation14 + $0x320] sm:$0xf]
        %v7665 = vld [vmem:[#allocation14 + $0x324] sm:$0xf]
        %v7666 = vld [vmem:[#allocation14 + $0x328] sm:$0xf]
        %v7667 = vld [vmem:[#allocation14 + $0x32c] sm:$0xf]
        %v7668 = vld [vmem:[#allocation14 + $0x330] sm:$0xf]
        %v7669 = vld [vmem:[#allocation14 + $0x334] sm:$0xf]
        %v7670 = vld [vmem:[#allocation14 + $0x338] sm:$0xf]
        %v7671 = vld [vmem:[#allocation14 + $0x33c] sm:$0xf]
        %v7672 = vld [vmem:[#allocation10] sm:$0xff]
        %v7673 = vld [vmem:[#allocation10 + $0x8] sm:$0xff]
        %v7674 = vld [vmem:[#allocation10 + $0x10] sm:$0xff]
        %v7675 = vld [vmem:[#allocation10 + $0x18] sm:$0x7]
        %v7676 = vld [vmem:[#allocation10 + $0x20] sm:$0x7]
        %v7677 = vld [vmem:[#allocation10 + $0x28] sm:$0x7]
        %v7678 = vpack.c.bf16 %v7675, %v7672
        %v7679 = vpack.c.bf16 %v7676, %v7673
        %v7680 = vpack.c.bf16 %v7677, %v7674
        %v7681 = vld [vmem:[%s3 + $0x3] sm:$0x1]
        %v7682 = vperm.slane %v7681, 0
        %v7731 = vunpack.c.l.b16 %v7624
        %v7732 = vunpack.c.l.b16 %v7625
        %v7733 = vunpack.c.l.b16 %v7626
        %v7734 = vunpack.c.l.b16 %v7627
        %v7735 = vunpack.c.l.b16 %v7628
        %v7736 = vunpack.c.l.b16 %v7629
        %v7737 = vunpack.c.l.b16 %v7630
        %v7738 = vunpack.c.l.b16 %v7631
        %v7739 = vunpack.c.l.b16 %v7632
        %v7740 = vunpack.c.l.b16 %v7633
        %v7741 = vunpack.c.l.b16 %v7634
        %v7742 = vunpack.c.l.b16 %v7635
        %v7743 = vunpack.c.l.b16 %v7636
        %v7744 = vunpack.c.l.b16 %v7637
        %v7745 = vunpack.c.l.b16 %v7638
        %v7746 = vunpack.c.l.b16 %v7639
        %v7747 = vunpack.c.l.b16 %v7640
        %v7748 = vunpack.c.l.b16 %v7641
        %v7749 = vunpack.c.l.b16 %v7642
        %v7750 = vunpack.c.l.b16 %v7643
        %v7751 = vunpack.c.l.b16 %v7644
        %v7752 = vunpack.c.l.b16 %v7645
        %v7753 = vunpack.c.l.b16 %v7646
        %v7754 = vunpack.c.l.b16 %v7647
        %v7755 = vunpack.c.l.b16 %v7648
        %v7756 = vunpack.c.l.b16 %v7649
        %v7757 = vunpack.c.l.b16 %v7650
        %v7758 = vunpack.c.l.b16 %v7651
        %v7759 = vunpack.c.l.b16 %v7652
        %v7760 = vunpack.c.l.b16 %v7653
        %v7761 = vunpack.c.l.b16 %v7654
        %v7762 = vunpack.c.l.b16 %v7655
        %v7763 = vunpack.c.l.b16 %v7656
        %v7764 = vunpack.c.l.b16 %v7657
        %v7765 = vunpack.c.l.b16 %v7658
        %v7766 = vunpack.c.l.b16 %v7659
        %v7767 = vunpack.c.l.b16 %v7660
        %v7768 = vunpack.c.l.b16 %v7661
        %v7769 = vunpack.c.l.b16 %v7662
        %v7770 = vunpack.c.l.b16 %v7663
        %v7771 = vunpack.c.l.b16 %v7664
        %v7772 = vunpack.c.l.b16 %v7665
        %v7773 = vunpack.c.l.b16 %v7666
        %v7774 = vunpack.c.l.b16 %v7667
        %v7775 = vunpack.c.l.b16 %v7668
        %v7776 = vunpack.c.l.b16 %v7669
        %v7777 = vunpack.c.l.b16 %v7670
        %v7778 = vunpack.c.l.b16 %v7671
        %v7779 = vpack.c.b16 %v7732, %v7731
        %v7780 = vpack.c.b16 %v7734, %v7733
        %v7781 = vpack.c.b16 %v7736, %v7735
        %v7782 = vpack.c.b16 %v7738, %v7737
        %v7783 = vpack.c.b16 %v7740, %v7739
        %v7784 = vpack.c.b16 %v7742, %v7741
        %v7785 = vpack.c.b16 %v7744, %v7743
        %v7786 = vpack.c.b16 %v7746, %v7745
        %v7787 = vpack.c.b16 %v7748, %v7747
        %v7788 = vpack.c.b16 %v7750, %v7749
        %v7789 = vpack.c.b16 %v7752, %v7751
        %v7790 = vpack.c.b16 %v7754, %v7753
        %v7791 = vpack.c.b16 %v7756, %v7755
        %v7792 = vpack.c.b16 %v7758, %v7757
        %v7793 = vpack.c.b16 %v7760, %v7759
        %v7794 = vpack.c.b16 %v7762, %v7761
        %v7795 = vpack.c.b16 %v7764, %v7763
        %v7796 = vpack.c.b16 %v7766, %v7765
        %v7797 = vpack.c.b16 %v7768, %v7767
        %v7798 = vpack.c.b16 %v7770, %v7769
        %v7799 = vpack.c.b16 %v7772, %v7771
        %v7800 = vpack.c.b16 %v7774, %v7773
        %v7801 = vpack.c.b16 %v7776, %v7775
        %v7802 = vpack.c.b16 %v7778, %v7777
        %7827 = vmatpush.bf16.msra.mxu0 %v7786
        %7828 = vmatpush.bf16.msra.mxu0 %v7785
        %7829 = vmatpush.bf16.msra.mxu0 %v7784
        %7830 = vmatpush.bf16.msra.mxu0 %v7783
        %7831 = vmatpush.bf16.msra.mxu0 %v7782
        %7832 = vmatpush.bf16.msra.mxu0 %v7781
        %7833 = vmatpush.bf16.msra.mxu0 %v7780
        %7834 = vmatpush.bf16.msra.mxu0 %v7779
        %7835 = vmatmul.bf16.gmra.mxu0 %v7678
        %v7836 = vpop.f32.mrf.mxu0
        %v7837 = vadd.f32 %v7682, %v7836
        %v7838 = vpop.f32.mrf.mxu0
        %v7839 = vadd.f32 %v7682, %v7838
        %7840 = vdwg.mxu0
        %7841 = vmatpush.bf16.msra.mxu0 %v7794
        %7842 = vmatpush.bf16.msra.mxu0 %v7793
        %7843 = vmatpush.bf16.msra.mxu0 %v7792
        %7844 = vmatpush.bf16.msra.mxu0 %v7791
        %7845 = vmatpush.bf16.msra.mxu0 %v7790
        %7846 = vmatpush.bf16.msra.mxu0 %v7789
        %7847 = vmatpush.bf16.msra.mxu0 %v7788
        %7848 = vmatpush.bf16.msra.mxu0 %v7787
        %7849 = vmatmul.bf16.gmra.mxu0 %v7679
        %v7850 = vpop.f32.mrf.mxu0
        %v7851 = vadd.f32 %v7837, %v7850
        %v7852 = vpop.f32.mrf.mxu0
        %v7853 = vadd.f32 %v7839, %v7852
        %7854 = vdwg.mxu0
        %7855 = vmatpush.bf16.msra.mxu0 %v7802
        %7856 = vmatpush.bf16.msra.mxu0 %v7801
        %7857 = vmatpush.bf16.msra.mxu0 %v7800
        %7858 = vmatpush.bf16.msra.mxu0 %v7799
        %7859 = vmatpush.bf16.msra.mxu0 %v7798
        %7860 = vmatpush.bf16.msra.mxu0 %v7797
        %7861 = vmatpush.bf16.msra.mxu0 %v7796
        %7862 = vmatpush.bf16.msra.mxu0 %v7795
        %7863 = vmatmul.bf16.gmra.mxu0 %v7680
        %v7864 = vpop.f32.mrf.mxu0
        %v7865 = vadd.f32 %v7851, %v7864
        %v7866 = vpop.f32.mrf.mxu0
        %v7867 = vadd.f32 %v7853, %v7866
        %7868 = vdwg.mxu0
        %v7869 = vmul.f32 %v7865, 0.5
        %v7870 = vmul.f32 %v7867, 0.5
        %v7871 = vmul.f32 %v7865, 0.70710677
        %v7872 = vmul.f32 %v7867, 0.70710677
        %v7873 = vmul.f32 %v7871, %v7871
        %v7874 = vmin.f32 16.0, %v7873
        %v7875 = vmul.f32 %v7874, 2.1237322e-06
        %v7876 = vadd.f32 %v7875, 0.00028619796
        %v7877 = vmul.f32 %v7874, %v7876
        %v7878 = vadd.f32 %v7877, 0.0036580483
        %v7879 = vmul.f32 %v7874, %v7878
        %v7880 = vadd.f32 %v7879, 0.05243302
        %v7881 = vmul.f32 %v7874, %v7880
        %v7882 = vadd.f32 %v7881, 0.18741608
        %v7883 = vmul.f32 %v7874, %v7882
        %v7884 = vadd.f32 %v7883, 1.1283791
        %v7885 = vmul.f32 %v7871, %v7884
        %v7886 = vmul.f32 %v7874, 3.8918573e-05
        %v7887 = vadd.f32 %v7886, 0.001143296
        %v7888 = vmul.f32 %v7874, %v7887
        %v7889 = vadd.f32 %v7888, 0.014752088
        %v7890 = vmul.f32 %v7874, %v7889
        %v7891 = vadd.f32 %v7890, 0.112945676
        %v7892 = vmul.f32 %v7874, %v7891
        %v7893 = vadd.f32 %v7892, 0.4994258
        %v7894 = vmul.f32 %v7874, %v7893
        %v7895 = vadd.f32 %v7894, 1.0
        %v7896 = vrcp.pop %v7895
        %v7897 = vmul.f32 %v7895, %v7896
        %v7898 = vsub.f32 1.0, %v7897
        %v7899 = vmul.f32 %v7896, %v7898
        %v7900 = vadd.f32 %v7896, %v7899
        %vm7901 = vweird.f32 %v7895
        %vm7902 = vweird.f32 %v7896
        %vm7903 = vmor %vm7901, %vm7902
        %v7904 = vsel %vm7903, %v7896, %v7900
        %v7905 = vand.u32 2147483647, %v7895
        %vm7906 = vcmp.eq.f32.partialorder %v7905, 8.507059e+37
        %v7907 = vand.u32 %v7895, 2147483648
        %v7908 = vor.u32 1.1754944e-38, %v7907
        %v7909 = vsel %vm7906, %v7908, %v7904
        %v7910 = vmul.f32 %v7885, %v7909
        %v7911 = vmin.f32 %v7910, 1.0
        %v7912 = vmax.f32 %v7911, -1.0
        %v7913 = vmul.f32 %v7872, %v7872
        %v7914 = vmin.f32 16.0, %v7913
        %v7915 = vmul.f32 %v7914, 2.1237322e-06
        %v7916 = vadd.f32 %v7915, 0.00028619796
        %v7917 = vmul.f32 %v7914, %v7916
        %v7918 = vadd.f32 %v7917, 0.0036580483
        %v7919 = vmul.f32 %v7914, %v7918
        %v7920 = vadd.f32 %v7919, 0.05243302
        %v7921 = vmul.f32 %v7914, %v7920
        %v7922 = vadd.f32 %v7921, 0.18741608
        %v7923 = vmul.f32 %v7914, %v7922
        %v7924 = vadd.f32 %v7923, 1.1283791
        %v7925 = vmul.f32 %v7872, %v7924
        %v7926 = vmul.f32 %v7914, 3.8918573e-05
        %v7927 = vadd.f32 %v7926, 0.001143296
        %v7928 = vmul.f32 %v7914, %v7927
        %v7929 = vadd.f32 %v7928, 0.014752088
        %v7930 = vmul.f32 %v7914, %v7929
        %v7931 = vadd.f32 %v7930, 0.112945676
        %v7932 = vmul.f32 %v7914, %v7931
        %v7933 = vadd.f32 %v7932, 0.4994258
        %v7934 = vmul.f32 %v7914, %v7933
        %v7935 = vadd.f32 %v7934, 1.0
        %v7936 = vrcp.pop %v7935
        %v7937 = vmul.f32 %v7935, %v7936
        %v7938 = vsub.f32 1.0, %v7937
        %v7939 = vmul.f32 %v7936, %v7938
        %v7940 = vadd.f32 %v7936, %v7939
        %vm7941 = vweird.f32 %v7935
        %vm7942 = vweird.f32 %v7936
        %vm7943 = vmor %vm7941, %vm7942
        %v7944 = vsel %vm7943, %v7936, %v7940
        %v7945 = vand.u32 2147483647, %v7935
        %vm7946 = vcmp.eq.f32.partialorder %v7945, 8.507059e+37
        %v7947 = vand.u32 %v7935, 2147483648
        %v7948 = vor.u32 1.1754944e-38, %v7947
        %v7949 = vsel %vm7946, %v7948, %v7944
        %v7950 = vmul.f32 %v7925, %v7949
        %v7951 = vmin.f32 %v7950, 1.0
        %v7952 = vmax.f32 %v7951, -1.0
        %v7953 = vadd.f32 %v7912, 1.0
        %v7954 = vadd.f32 %v7952, 1.0
        %v7955 = vmul.f32 %v7869, %v7953
        %v7956 = vmul.f32 %v7870, %v7954
        %7957 = vst [vmem:[#allocation5] sm:$0xff] %v7955
        %7958 = vst [vmem:[#allocation5 + $0x8] sm:$0x7] %v7956
        %v7959 = vld [vmem:[#allocation5] ss:$2 sm:$0x1f]
        %7960 = vst [vmem:[#allocation11] sm:$0x1f] %v7959
        %s7961 = scalar_lea.vmem [#allocation5], 1
        %v7962 = vld [vmem:[%s7961] ss:$2 sm:$0x1f]
        %7963 = vst [vmem:[#allocation11 + $0x8] sm:$0x1f] %v7962
        %s7964 = scalar_lea.vmem [#allocation5], 2
        %v7965 = vld [vmem:[%s7964] ss:$2 sm:$0x1f]
        %7966 = vst [vmem:[#allocation11 + $0x10] sm:$0x1f] %v7965
        %v7967 = vld [vmem:[#allocation14 + $0x340] sm:$0xf]
        %v7968 = vld [vmem:[#allocation14 + $0x344] sm:$0xf]
        %v7969 = vld [vmem:[#allocation14 + $0x348] sm:$0xf]
        %v7970 = vld [vmem:[#allocation14 + $0x34c] sm:$0xf]
        %v7971 = vld [vmem:[#allocation14 + $0x350] sm:$0xf]
        %v7972 = vld [vmem:[#allocation14 + $0x354] sm:$0xf]
        %v7973 = vld [vmem:[#allocation14 + $0x358] sm:$0xf]
        %v7974 = vld [vmem:[#allocation14 + $0x35c] sm:$0xf]
        %v7975 = vld [vmem:[#allocation14 + $0x360] sm:$0xf]
        %v7976 = vld [vmem:[#allocation14 + $0x364] sm:$0xf]
        %v7977 = vld [vmem:[#allocation14 + $0x368] sm:$0xf]
        %v7978 = vld [vmem:[#allocation14 + $0x36c] sm:$0xf]
        %v7979 = vld [vmem:[#allocation14 + $0x370] sm:$0xf]
        %v7980 = vld [vmem:[#allocation14 + $0x374] sm:$0xf]
        %v7981 = vld [vmem:[#allocation14 + $0x378] sm:$0xf]
        %v7982 = vld [vmem:[#allocation14 + $0x37c] sm:$0xf]
        %v7983 = vld [vmem:[#allocation14 + $0x380] sm:$0xf]
        %v7984 = vld [vmem:[#allocation14 + $0x384] sm:$0xf]
        %v7985 = vld [vmem:[#allocation14 + $0x388] sm:$0xf]
        %v7986 = vld [vmem:[#allocation14 + $0x38c] sm:$0xf]
        %v7987 = vld [vmem:[#allocation14 + $0x390] sm:$0xf]
        %v7988 = vld [vmem:[#allocation14 + $0x394] sm:$0xf]
        %v7989 = vld [vmem:[#allocation14 + $0x398] sm:$0xf]
        %v7990 = vld [vmem:[#allocation14 + $0x39c] sm:$0xf]
        %v7991 = vld [vmem:[#allocation14 + $0x3a0] sm:$0xf]
        %v7992 = vld [vmem:[#allocation14 + $0x3a4] sm:$0xf]
        %v7993 = vld [vmem:[#allocation14 + $0x3a8] sm:$0xf]
        %v7994 = vld [vmem:[#allocation14 + $0x3ac] sm:$0xf]
        %v7995 = vld [vmem:[#allocation14 + $0x3b0] sm:$0xf]
        %v7996 = vld [vmem:[#allocation14 + $0x3b4] sm:$0xf]
        %v7997 = vld [vmem:[#allocation14 + $0x3b8] sm:$0xf]
        %v7998 = vld [vmem:[#allocation14 + $0x3bc] sm:$0xf]
        %v7999 = vld [vmem:[#allocation14 + $0x3c0] sm:$0xf]
        %v8000 = vld [vmem:[#allocation14 + $0x3c4] sm:$0xf]
        %v8001 = vld [vmem:[#allocation14 + $0x3c8] sm:$0xf]
        %v8002 = vld [vmem:[#allocation14 + $0x3cc] sm:$0xf]
        %v8003 = vld [vmem:[#allocation14 + $0x3d0] sm:$0xf]
        %v8004 = vld [vmem:[#allocation14 + $0x3d4] sm:$0xf]
        %v8005 = vld [vmem:[#allocation14 + $0x3d8] sm:$0xf]
        %v8006 = vld [vmem:[#allocation14 + $0x3dc] sm:$0xf]
        %v8007 = vld [vmem:[#allocation14 + $0x3e0] sm:$0xf]
        %v8008 = vld [vmem:[#allocation14 + $0x3e4] sm:$0xf]
        %v8009 = vld [vmem:[#allocation14 + $0x3e8] sm:$0xf]
        %v8010 = vld [vmem:[#allocation14 + $0x3ec] sm:$0xf]
        %v8011 = vld [vmem:[#allocation14 + $0x3f0] sm:$0xf]
        %v8012 = vld [vmem:[#allocation14 + $0x3f4] sm:$0xf]
        %v8013 = vld [vmem:[#allocation14 + $0x3f8] sm:$0xf]
        %v8014 = vld [vmem:[#allocation14 + $0x3fc] sm:$0xf]
        %v8015 = vld [vmem:[#allocation11] sm:$0x1f]
        %v8016 = vld [vmem:[#allocation11 + $0x8] sm:$0x1f]
        %v8017 = vld [vmem:[#allocation11 + $0x10] sm:$0x1f]
        %v8018 = vpack.c.bf16 %v8015, %v8015
        %v8019 = vpack.c.bf16 %v8016, %v8016
        %v8020 = vpack.c.bf16 %v8017, %v8017
        %v8021 = vld [vmem:[%s3 + $0x4] sm:$0x1]
        %v8022 = vperm.slane %v8021, 0
        %v8071 = vunpack.c.l.b16 %v7967
        %v8072 = vunpack.c.l.b16 %v7968
        %v8073 = vunpack.c.l.b16 %v7969
        %v8074 = vunpack.c.l.b16 %v7970
        %v8075 = vunpack.c.l.b16 %v7971
        %v8076 = vunpack.c.l.b16 %v7972
        %v8077 = vunpack.c.l.b16 %v7973
        %v8078 = vunpack.c.l.b16 %v7974
        %v8079 = vunpack.c.l.b16 %v7975
        %v8080 = vunpack.c.l.b16 %v7976
        %v8081 = vunpack.c.l.b16 %v7977
        %v8082 = vunpack.c.l.b16 %v7978
        %v8083 = vunpack.c.l.b16 %v7979
        %v8084 = vunpack.c.l.b16 %v7980
        %v8085 = vunpack.c.l.b16 %v7981
        %v8086 = vunpack.c.l.b16 %v7982
        %v8087 = vunpack.c.l.b16 %v7983
        %v8088 = vunpack.c.l.b16 %v7984
        %v8089 = vunpack.c.l.b16 %v7985
        %v8090 = vunpack.c.l.b16 %v7986
        %v8091 = vunpack.c.l.b16 %v7987
        %v8092 = vunpack.c.l.b16 %v7988
        %v8093 = vunpack.c.l.b16 %v7989
        %v8094 = vunpack.c.l.b16 %v7990
        %v8095 = vunpack.c.l.b16 %v7991
        %v8096 = vunpack.c.l.b16 %v7992
        %v8097 = vunpack.c.l.b16 %v7993
        %v8098 = vunpack.c.l.b16 %v7994
        %v8099 = vunpack.c.l.b16 %v7995
        %v8100 = vunpack.c.l.b16 %v7996
        %v8101 = vunpack.c.l.b16 %v7997
        %v8102 = vunpack.c.l.b16 %v7998
        %v8103 = vunpack.c.l.b16 %v7999
        %v8104 = vunpack.c.l.b16 %v8000
        %v8105 = vunpack.c.l.b16 %v8001
        %v8106 = vunpack.c.l.b16 %v8002
        %v8107 = vunpack.c.l.b16 %v8003
        %v8108 = vunpack.c.l.b16 %v8004
        %v8109 = vunpack.c.l.b16 %v8005
        %v8110 = vunpack.c.l.b16 %v8006
        %v8111 = vunpack.c.l.b16 %v8007
        %v8112 = vunpack.c.l.b16 %v8008
        %v8113 = vunpack.c.l.b16 %v8009
        %v8114 = vunpack.c.l.b16 %v8010
        %v8115 = vunpack.c.l.b16 %v8011
        %v8116 = vunpack.c.l.b16 %v8012
        %v8117 = vunpack.c.l.b16 %v8013
        %v8118 = vunpack.c.l.b16 %v8014
        %v8119 = vpack.c.b16 %v8072, %v8071
        %v8120 = vpack.c.b16 %v8074, %v8073
        %v8121 = vpack.c.b16 %v8076, %v8075
        %v8122 = vpack.c.b16 %v8078, %v8077
        %v8123 = vpack.c.b16 %v8080, %v8079
        %v8124 = vpack.c.b16 %v8082, %v8081
        %v8125 = vpack.c.b16 %v8084, %v8083
        %v8126 = vpack.c.b16 %v8086, %v8085
        %v8127 = vpack.c.b16 %v8088, %v8087
        %v8128 = vpack.c.b16 %v8090, %v8089
        %v8129 = vpack.c.b16 %v8092, %v8091
        %v8130 = vpack.c.b16 %v8094, %v8093
        %v8131 = vpack.c.b16 %v8096, %v8095
        %v8132 = vpack.c.b16 %v8098, %v8097
        %v8133 = vpack.c.b16 %v8100, %v8099
        %v8134 = vpack.c.b16 %v8102, %v8101
        %v8135 = vpack.c.b16 %v8104, %v8103
        %v8136 = vpack.c.b16 %v8106, %v8105
        %v8137 = vpack.c.b16 %v8108, %v8107
        %v8138 = vpack.c.b16 %v8110, %v8109
        %v8139 = vpack.c.b16 %v8112, %v8111
        %v8140 = vpack.c.b16 %v8114, %v8113
        %v8141 = vpack.c.b16 %v8116, %v8115
        %v8142 = vpack.c.b16 %v8118, %v8117
        %8167 = vmatpush.bf16.msra.mxu0 %v8126
        %8168 = vmatpush.bf16.msra.mxu0 %v8125
        %8169 = vmatpush.bf16.msra.mxu0 %v8124
        %8170 = vmatpush.bf16.msra.mxu0 %v8123
        %8171 = vmatpush.bf16.msra.mxu0 %v8122
        %8172 = vmatpush.bf16.msra.mxu0 %v8121
        %8173 = vmatpush.bf16.msra.mxu0 %v8120
        %8174 = vmatpush.bf16.msra.mxu0 %v8119
        %8175 = vmatmul.bf16.gmra.mxu0 %v8018
        %v8176 = vpop.f32.mrf.mxu0
        %v8177 = vadd.f32 %v8022, %v8176
        %v8178 = vpop.f32.mrf.mxu0
        %8179 = vdwg.mxu0
        %8180 = vmatpush.bf16.msra.mxu0 %v8134
        %8181 = vmatpush.bf16.msra.mxu0 %v8133
        %8182 = vmatpush.bf16.msra.mxu0 %v8132
        %8183 = vmatpush.bf16.msra.mxu0 %v8131
        %8184 = vmatpush.bf16.msra.mxu0 %v8130
        %8185 = vmatpush.bf16.msra.mxu0 %v8129
        %8186 = vmatpush.bf16.msra.mxu0 %v8128
        %8187 = vmatpush.bf16.msra.mxu0 %v8127
        %8188 = vmatmul.bf16.gmra.mxu0 %v8019
        %v8189 = vpop.f32.mrf.mxu0
        %v8190 = vadd.f32 %v8177, %v8189
        %v8191 = vpop.f32.mrf.mxu0
        %8192 = vdwg.mxu0
        %8193 = vmatpush.bf16.msra.mxu0 %v8142
        %8194 = vmatpush.bf16.msra.mxu0 %v8141
        %8195 = vmatpush.bf16.msra.mxu0 %v8140
        %8196 = vmatpush.bf16.msra.mxu0 %v8139
        %8197 = vmatpush.bf16.msra.mxu0 %v8138
        %8198 = vmatpush.bf16.msra.mxu0 %v8137
        %8199 = vmatpush.bf16.msra.mxu0 %v8136
        %8200 = vmatpush.bf16.msra.mxu0 %v8135
        %8201 = vmatmul.bf16.gmra.mxu0 %v8020
        %v8202 = vpop.f32.mrf.mxu0
        %v8203 = vadd.f32 %v8190, %v8202
        %v8204 = vpop.f32.mrf.mxu0
        %8205 = vdwg.mxu0
        %v8206 = vmul.f32 %v8203, 0.5
        %v8207 = vmul.f32 %v8203, 0.70710677
        %v8208 = vmul.f32 %v8207, %v8207
        %v8209 = vmin.f32 16.0, %v8208
        %v8210 = vmul.f32 %v8209, 2.1237322e-06
        %v8211 = vadd.f32 %v8210, 0.00028619796
        %v8212 = vmul.f32 %v8209, %v8211
        %v8213 = vadd.f32 %v8212, 0.0036580483
        %v8214 = vmul.f32 %v8209, %v8213
        %v8215 = vadd.f32 %v8214, 0.05243302
        %v8216 = vmul.f32 %v8209, %v8215
        %v8217 = vadd.f32 %v8216, 0.18741608
        %v8218 = vmul.f32 %v8209, %v8217
        %v8219 = vadd.f32 %v8218, 1.1283791
        %v8220 = vmul.f32 %v8207, %v8219
        %v8221 = vmul.f32 %v8209, 3.8918573e-05
        %v8222 = vadd.f32 %v8221, 0.001143296
        %v8223 = vmul.f32 %v8209, %v8222
        %v8224 = vadd.f32 %v8223, 0.014752088
        %v8225 = vmul.f32 %v8209, %v8224
        %v8226 = vadd.f32 %v8225, 0.112945676
        %v8227 = vmul.f32 %v8209, %v8226
        %v8228 = vadd.f32 %v8227, 0.4994258
        %v8229 = vmul.f32 %v8209, %v8228
        %v8230 = vadd.f32 %v8229, 1.0
        %v8231 = vrcp.pop %v8230
        %v8232 = vmul.f32 %v8230, %v8231
        %v8233 = vsub.f32 1.0, %v8232
        %v8234 = vmul.f32 %v8231, %v8233
        %v8235 = vadd.f32 %v8231, %v8234
        %vm8236 = vweird.f32 %v8230
        %vm8237 = vweird.f32 %v8231
        %vm8238 = vmor %vm8236, %vm8237
        %v8239 = vsel %vm8238, %v8231, %v8235
        %v8240 = vand.u32 2147483647, %v8230
        %vm8241 = vcmp.eq.f32.partialorder %v8240, 8.507059e+37
        %v8242 = vand.u32 %v8230, 2147483648
        %v8243 = vor.u32 1.1754944e-38, %v8242
        %v8244 = vsel %vm8241, %v8243, %v8239
        %v8245 = vmul.f32 %v8220, %v8244
        %v8246 = vmin.f32 %v8245, 1.0
        %v8247 = vmax.f32 %v8246, -1.0
        %v8248 = vadd.f32 %v8247, 1.0
        %v8249 = vmul.f32 %v8206, %v8248
        %8250 = vst [vmem:[#allocation6] sm:$0x1f] %v8249
        %v8251 = vld [vmem:[#allocation6] ss:$2 sm:$0x3]
        %8252 = vst [vmem:[#allocation12] sm:$0x3] %v8251
        %s8253 = scalar_lea.vmem [#allocation6], 1
        %v8254 = vld [vmem:[%s8253] ss:$2 sm:$0x3]
        %8255 = vst [vmem:[#allocation12 + $0x2] sm:$0x3] %v8254
        %v8256 = vld [vmem:[#allocation14 + $0x400] sm:$0xf]
        %v8257 = vld [vmem:[#allocation14 + $0x404] sm:$0xf]
        %v8258 = vld [vmem:[#allocation14 + $0x408] sm:$0xf]
        %v8259 = vld [vmem:[#allocation14 + $0x40c] sm:$0xf]
        %v8260 = vld [vmem:[#allocation14 + $0x410] sm:$0xf]
        %v8261 = vld [vmem:[#allocation14 + $0x414] sm:$0xf]
        %v8262 = vld [vmem:[#allocation14 + $0x418] sm:$0xf]
        %v8263 = vld [vmem:[#allocation14 + $0x41c] sm:$0xf]
        %v8264 = vld [vmem:[#allocation14 + $0x420] sm:$0xf]
        %v8265 = vld [vmem:[#allocation14 + $0x424] sm:$0xf]
        %v8266 = vld [vmem:[#allocation14 + $0x428] sm:$0xf]
        %v8267 = vld [vmem:[#allocation14 + $0x42c] sm:$0xf]
        %v8268 = vld [vmem:[#allocation14 + $0x430] sm:$0xf]
        %v8269 = vld [vmem:[#allocation14 + $0x434] sm:$0xf]
        %v8270 = vld [vmem:[#allocation14 + $0x438] sm:$0xf]
        %v8271 = vld [vmem:[#allocation14 + $0x43c] sm:$0xf]
        %v8272 = vld [vmem:[#allocation14 + $0x440] sm:$0xf]
        %v8273 = vld [vmem:[#allocation14 + $0x444] sm:$0xf]
        %v8274 = vld [vmem:[#allocation14 + $0x448] sm:$0xf]
        %v8275 = vld [vmem:[#allocation14 + $0x44c] sm:$0xf]
        %v8276 = vld [vmem:[#allocation14 + $0x450] sm:$0xf]
        %v8277 = vld [vmem:[#allocation14 + $0x454] sm:$0xf]
        %v8278 = vld [vmem:[#allocation14 + $0x458] sm:$0xf]
        %v8279 = vld [vmem:[#allocation14 + $0x45c] sm:$0xf]
        %v8280 = vld [vmem:[#allocation14 + $0x460] sm:$0xf]
        %v8281 = vld [vmem:[#allocation14 + $0x464] sm:$0xf]
        %v8282 = vld [vmem:[#allocation14 + $0x468] sm:$0xf]
        %v8283 = vld [vmem:[#allocation14 + $0x46c] sm:$0xf]
        %v8284 = vld [vmem:[#allocation14 + $0x470] sm:$0xf]
        %v8285 = vld [vmem:[#allocation14 + $0x474] sm:$0xf]
        %v8286 = vld [vmem:[#allocation14 + $0x478] sm:$0xf]
        %v8287 = vld [vmem:[#allocation14 + $0x47c] sm:$0xf]
        %v8288 = vld [vmem:[#allocation12] sm:$0xf]
        %8290 = vst [vmem:[#allocation1] ss:$4 sm:$0xff] %v8288
        %v8291 = vld.sshfl [vmem:[#allocation1] sm:$0xff pattern:$0x73625140]
        %v8292 = vld.sshfl [vmem:[#allocation1 + $0x8] sm:$0xff pattern:$0x73625140]
        %v8295 = vpack.c.bf16 %v8291, %v8291
        %v8296 = vpack.c.bf16 %v8292, %v8292
        %v8297 = vld [vmem:[%s3 + $0x5] sm:$0x1]
        %v8298 = vperm.slane %v8297, 0
        %v8331 = vunpack.c.l.b16 %v8256
        %v8332 = vunpack.c.l.b16 %v8257
        %v8333 = vunpack.c.l.b16 %v8258
        %v8334 = vunpack.c.l.b16 %v8259
        %v8335 = vunpack.c.l.b16 %v8260
        %v8336 = vunpack.c.l.b16 %v8261
        %v8337 = vunpack.c.l.b16 %v8262
        %v8338 = vunpack.c.l.b16 %v8263
        %v8339 = vunpack.c.l.b16 %v8264
        %v8340 = vunpack.c.l.b16 %v8265
        %v8341 = vunpack.c.l.b16 %v8266
        %v8342 = vunpack.c.l.b16 %v8267
        %v8343 = vunpack.c.l.b16 %v8268
        %v8344 = vunpack.c.l.b16 %v8269
        %v8345 = vunpack.c.l.b16 %v8270
        %v8346 = vunpack.c.l.b16 %v8271
        %v8347 = vunpack.c.l.b16 %v8272
        %v8348 = vunpack.c.l.b16 %v8273
        %v8349 = vunpack.c.l.b16 %v8274
        %v8350 = vunpack.c.l.b16 %v8275
        %v8351 = vunpack.c.l.b16 %v8276
        %v8352 = vunpack.c.l.b16 %v8277
        %v8353 = vunpack.c.l.b16 %v8278
        %v8354 = vunpack.c.l.b16 %v8279
        %v8355 = vunpack.c.l.b16 %v8280
        %v8356 = vunpack.c.l.b16 %v8281
        %v8357 = vunpack.c.l.b16 %v8282
        %v8358 = vunpack.c.l.b16 %v8283
        %v8359 = vunpack.c.l.b16 %v8284
        %v8360 = vunpack.c.l.b16 %v8285
        %v8361 = vunpack.c.l.b16 %v8286
        %v8362 = vunpack.c.l.b16 %v8287
        %v8363 = vpack.c.b16 %v8332, %v8331
        %v8364 = vpack.c.b16 %v8334, %v8333
        %v8365 = vpack.c.b16 %v8336, %v8335
        %v8366 = vpack.c.b16 %v8338, %v8337
        %v8367 = vpack.c.b16 %v8340, %v8339
        %v8368 = vpack.c.b16 %v8342, %v8341
        %v8369 = vpack.c.b16 %v8344, %v8343
        %v8370 = vpack.c.b16 %v8346, %v8345
        %v8371 = vpack.c.b16 %v8348, %v8347
        %v8372 = vpack.c.b16 %v8350, %v8349
        %v8373 = vpack.c.b16 %v8352, %v8351
        %v8374 = vpack.c.b16 %v8354, %v8353
        %v8375 = vpack.c.b16 %v8356, %v8355
        %v8376 = vpack.c.b16 %v8358, %v8357
        %v8377 = vpack.c.b16 %v8360, %v8359
        %v8378 = vpack.c.b16 %v8362, %v8361
        %8395 = vmatpush.bf16.msra.mxu0 %v8370
        %8396 = vmatpush.bf16.msra.mxu0 %v8369
        %8397 = vmatpush.bf16.msra.mxu0 %v8368
        %8398 = vmatpush.bf16.msra.mxu0 %v8367
        %8399 = vmatpush.bf16.msra.mxu0 %v8366
        %8400 = vmatpush.bf16.msra.mxu0 %v8365
        %8401 = vmatpush.bf16.msra.mxu0 %v8364
        %8402 = vmatpush.bf16.msra.mxu0 %v8363
        %8403 = vmatmul.bf16.gmra.mxu0 %v8295
        %v8404 = vpop.f32.mrf.mxu0
        %v8405 = vadd.f32 %v8298, %v8404
        %v8406 = vpop.f32.mrf.mxu0
        %8407 = vdwg.mxu0
        %8408 = vmatpush.bf16.msra.mxu0 %v8378
        %8409 = vmatpush.bf16.msra.mxu0 %v8377
        %8410 = vmatpush.bf16.msra.mxu0 %v8376
        %8411 = vmatpush.bf16.msra.mxu0 %v8375
        %8412 = vmatpush.bf16.msra.mxu0 %v8374
        %8413 = vmatpush.bf16.msra.mxu0 %v8373
        %8414 = vmatpush.bf16.msra.mxu0 %v8372
        %8415 = vmatpush.bf16.msra.mxu0 %v8371
        %8416 = vmatmul.bf16.gmra.mxu0 %v8296
        %v8417 = vpop.f32.mrf.mxu0
        %v8418 = vadd.f32 %v8405, %v8417
        %v8419 = vpop.f32.mrf.mxu0
        %8420 = vdwg.mxu0
        %v8421 = vmul.f32 %v8418, 0.5
        %v8422 = vmul.f32 %v8418, 0.70710677
        %v8423 = vmul.f32 %v8422, %v8422
        %v8424 = vmin.f32 16.0, %v8423
        %v8425 = vmul.f32 %v8424, 2.1237322e-06
        %v8426 = vadd.f32 %v8425, 0.00028619796
        %v8427 = vmul.f32 %v8424, %v8426
        %v8428 = vadd.f32 %v8427, 0.0036580483
        %v8429 = vmul.f32 %v8424, %v8428
        %v8430 = vadd.f32 %v8429, 0.05243302
        %v8431 = vmul.f32 %v8424, %v8430
        %v8432 = vadd.f32 %v8431, 0.18741608
        %v8433 = vmul.f32 %v8424, %v8432
        %v8434 = vadd.f32 %v8433, 1.1283791
        %v8435 = vmul.f32 %v8422, %v8434
        %v8436 = vmul.f32 %v8424, 3.8918573e-05
        %v8437 = vadd.f32 %v8436, 0.001143296
        %v8438 = vmul.f32 %v8424, %v8437
        %v8439 = vadd.f32 %v8438, 0.014752088
        %v8440 = vmul.f32 %v8424, %v8439
        %v8441 = vadd.f32 %v8440, 0.112945676
        %v8442 = vmul.f32 %v8424, %v8441
        %v8443 = vadd.f32 %v8442, 0.4994258
        %v8444 = vmul.f32 %v8424, %v8443
        %v8445 = vadd.f32 %v8444, 1.0
        %v8446 = vrcp.pop %v8445
        %v8447 = vmul.f32 %v8445, %v8446
        %v8448 = vsub.f32 1.0, %v8447
        %v8449 = vmul.f32 %v8446, %v8448
        %v8450 = vadd.f32 %v8446, %v8449
        %vm8451 = vweird.f32 %v8445
        %vm8452 = vweird.f32 %v8446
        %vm8453 = vmor %vm8451, %vm8452
        %v8454 = vsel %vm8453, %v8446, %v8450
        %v8455 = vand.u32 2147483647, %v8445
        %vm8456 = vcmp.eq.f32.partialorder %v8455, 8.507059e+37
        %v8457 = vand.u32 %v8445, 2147483648
        %v8458 = vor.u32 1.1754944e-38, %v8457
        %v8459 = vsel %vm8456, %v8458, %v8454
        %v8460 = vmul.f32 %v8435, %v8459
        %v8461 = vmin.f32 %v8460, 1.0
        %v8462 = vmax.f32 %v8461, -1.0
        %v8463 = vadd.f32 %v8462, 1.0
        %v8464 = vmul.f32 %v8421, %v8463
        %8465 = vst [vmem:[#allocation7] sm:$0x3] %v8464
        %v8466 = vld [vmem:[#allocation7] ss:$2 sm:$0x1]
        %v8467 = vlaneseq
        %vm8468 = vcmp.ge.s32.totalorder %v8467, 0
        %vm8469 = vcmp.lt.s32.totalorder %v8467, 128
        %vm8470 = vmand %vm8468, %vm8469
        %8471 = vst.msk [vmem:[#allocation13] sm:$0x1] %vm8470, %v8466
        %s8472 = scalar_lea.vmem [#allocation7], 1
        %v8473 = vld [vmem:[%s8472] ss:$2 sm:$0x1]
        %8474 = vst.msk [vmem:[#allocation13 + $0x1] sm:$0x1] %vm8470, %v8473
        %v8475 = vld [vmem:[#allocation14 + $0x480] sm:$0xf]
        %v8476 = vld [vmem:[#allocation14 + $0x484] sm:$0xf]
        %v8477 = vld [vmem:[#allocation14 + $0x488] sm:$0xf]
        %v8478 = vld [vmem:[#allocation14 + $0x48c] sm:$0xf]
        %v8479 = vld [vmem:[#allocation14 + $0x490] sm:$0xf]
        %v8480 = vld [vmem:[#allocation14 + $0x494] sm:$0xf]
        %v8481 = vld [vmem:[#allocation14 + $0x498] sm:$0xf]
        %v8482 = vld [vmem:[#allocation14 + $0x49c] sm:$0xf]
        %v8483 = vld [vmem:[#allocation14 + $0x4a0] sm:$0xf]
        %v8484 = vld [vmem:[#allocation14 + $0x4a4] sm:$0xf]
        %v8485 = vld [vmem:[#allocation14 + $0x4a8] sm:$0xf]
        %v8486 = vld [vmem:[#allocation14 + $0x4ac] sm:$0xf]
        %v8487 = vld [vmem:[#allocation14 + $0x4b0] sm:$0xf]
        %v8488 = vld [vmem:[#allocation14 + $0x4b4] sm:$0xf]
        %v8489 = vld [vmem:[#allocation14 + $0x4b8] sm:$0xf]
        %v8490 = vld [vmem:[#allocation14 + $0x4bc] sm:$0xf]
        %v8491 = vld [vmem:[#allocation14 + $0x4c0] sm:$0xf]
        %v8492 = vld [vmem:[#allocation14 + $0x4c4] sm:$0xf]
        %v8493 = vld [vmem:[#allocation14 + $0x4c8] sm:$0xf]
        %v8494 = vld [vmem:[#allocation14 + $0x4cc] sm:$0xf]
        %v8495 = vld [vmem:[#allocation14 + $0x4d0] sm:$0xf]
        %v8496 = vld [vmem:[#allocation14 + $0x4d4] sm:$0xf]
        %v8497 = vld [vmem:[#allocation14 + $0x4d8] sm:$0xf]
        %v8498 = vld [vmem:[#allocation14 + $0x4dc] sm:$0xf]
        %v8499 = vld [vmem:[#allocation14 + $0x4e0] sm:$0xf]
        %v8500 = vld [vmem:[#allocation14 + $0x4e4] sm:$0xf]
        %v8501 = vld [vmem:[#allocation14 + $0x4e8] sm:$0xf]
        %v8502 = vld [vmem:[#allocation14 + $0x4ec] sm:$0xf]
        %v8503 = vld [vmem:[#allocation14 + $0x4f0] sm:$0xf]
        %v8504 = vld [vmem:[#allocation14 + $0x4f4] sm:$0xf]
        %v8505 = vld [vmem:[#allocation14 + $0x4f8] sm:$0xf]
        %v8506 = vld [vmem:[#allocation14 + $0x4fc] sm:$0xf]
        %v8507 = vld [vmem:[#allocation13] sm:$0x3]
        %v8509 = vperm.slane %v8507, 0
        %v8510 = vperm.slane %v8507, 1
        %v8513 = vpack.c.bf16 %v8509, %v8509
        %v8514 = vpack.c.bf16 %v8510, %v8510
        %v8515 = vld [vmem:[%s3 + $0x6] sm:$0x1]
        %v8548 = vunpack.c.l.b16 %v8475
        %v8549 = vunpack.c.l.b16 %v8476
        %v8550 = vunpack.c.l.b16 %v8477
        %v8551 = vunpack.c.l.b16 %v8478
        %v8552 = vunpack.c.l.b16 %v8479
        %v8553 = vunpack.c.l.b16 %v8480
        %v8554 = vunpack.c.l.b16 %v8481
        %v8555 = vunpack.c.l.b16 %v8482
        %v8556 = vunpack.c.l.b16 %v8483
        %v8557 = vunpack.c.l.b16 %v8484
        %v8558 = vunpack.c.l.b16 %v8485
        %v8559 = vunpack.c.l.b16 %v8486
        %v8560 = vunpack.c.l.b16 %v8487
        %v8561 = vunpack.c.l.b16 %v8488
        %v8562 = vunpack.c.l.b16 %v8489
        %v8563 = vunpack.c.l.b16 %v8490
        %v8564 = vunpack.c.l.b16 %v8491
        %v8565 = vunpack.c.l.b16 %v8492
        %v8566 = vunpack.c.l.b16 %v8493
        %v8567 = vunpack.c.l.b16 %v8494
        %v8568 = vunpack.c.l.b16 %v8495
        %v8569 = vunpack.c.l.b16 %v8496
        %v8570 = vunpack.c.l.b16 %v8497
        %v8571 = vunpack.c.l.b16 %v8498
        %v8572 = vunpack.c.l.b16 %v8499
        %v8573 = vunpack.c.l.b16 %v8500
        %v8574 = vunpack.c.l.b16 %v8501
        %v8575 = vunpack.c.l.b16 %v8502
        %v8576 = vunpack.c.l.b16 %v8503
        %v8577 = vunpack.c.l.b16 %v8504
        %v8578 = vunpack.c.l.b16 %v8505
        %v8579 = vunpack.c.l.b16 %v8506
        %v8580 = vpack.c.b16 %v8549, %v8548
        %v8581 = vpack.c.b16 %v8551, %v8550
        %v8582 = vpack.c.b16 %v8553, %v8552
        %v8583 = vpack.c.b16 %v8555, %v8554
        %v8584 = vpack.c.b16 %v8557, %v8556
        %v8585 = vpack.c.b16 %v8559, %v8558
        %v8586 = vpack.c.b16 %v8561, %v8560
        %v8587 = vpack.c.b16 %v8563, %v8562
        %v8588 = vpack.c.b16 %v8565, %v8564
        %v8589 = vpack.c.b16 %v8567, %v8566
        %v8590 = vpack.c.b16 %v8569, %v8568
        %v8591 = vpack.c.b16 %v8571, %v8570
        %v8592 = vpack.c.b16 %v8573, %v8572
        %v8593 = vpack.c.b16 %v8575, %v8574
        %v8594 = vpack.c.b16 %v8577, %v8576
        %v8595 = vpack.c.b16 %v8579, %v8578
        %8612 = vmatpush.bf16.msra.mxu0 %v8587
        %8613 = vmatpush.bf16.msra.mxu0 %v8586
        %8614 = vmatpush.bf16.msra.mxu0 %v8585
        %8615 = vmatpush.bf16.msra.mxu0 %v8584
        %8616 = vmatpush.bf16.msra.mxu0 %v8583
        %8617 = vmatpush.bf16.msra.mxu0 %v8582
        %8618 = vmatpush.bf16.msra.mxu0 %v8581
        %8619 = vmatpush.bf16.msra.mxu0 %v8580
        %8620 = vmatmul.bf16.gmra.mxu0 %v8513
        %v8621 = vpop.f32.mrf.mxu0
        %v8622 = vadd.f32 %v8515, %v8621
        %v8623 = vpop.f32.mrf.mxu0
        %8624 = vdwg.mxu0
        %8625 = vmatpush.bf16.msra.mxu0 %v8595
        %8626 = vmatpush.bf16.msra.mxu0 %v8594
        %8627 = vmatpush.bf16.msra.mxu0 %v8593
        %8628 = vmatpush.bf16.msra.mxu0 %v8592
        %8629 = vmatpush.bf16.msra.mxu0 %v8591
        %8630 = vmatpush.bf16.msra.mxu0 %v8590
        %8631 = vmatpush.bf16.msra.mxu0 %v8589
        %8632 = vmatpush.bf16.msra.mxu0 %v8588
        %8633 = vmatmul.bf16.gmra.mxu0 %v8514
        %v8634 = vpop.f32.mrf.mxu0
        %v8635 = vadd.f32 %v8622, %v8634
        %v8636 = vpop.f32.mrf.mxu0
        %8637 = vdwg.mxu0
        %v8638 = vmul.f32 %v8635, 0.5
        %v8639 = vmul.f32 %v8635, 0.70710677
        %v8640 = vmul.f32 %v8639, %v8639
        %v8641 = vmin.f32 16.0, %v8640
        %v8642 = vmul.f32 %v8641, 2.1237322e-06
        %v8643 = vadd.f32 %v8642, 0.00028619796
        %v8644 = vmul.f32 %v8641, %v8643
        %v8645 = vadd.f32 %v8644, 0.0036580483
        %v8646 = vmul.f32 %v8641, %v8645
        %v8647 = vadd.f32 %v8646, 0.05243302
        %v8648 = vmul.f32 %v8641, %v8647
        %v8649 = vadd.f32 %v8648, 0.18741608
        %v8650 = vmul.f32 %v8641, %v8649
        %v8651 = vadd.f32 %v8650, 1.1283791
        %v8652 = vmul.f32 %v8639, %v8651
        %v8653 = vmul.f32 %v8641, 3.8918573e-05
        %v8654 = vadd.f32 %v8653, 0.001143296
        %v8655 = vmul.f32 %v8641, %v8654
        %v8656 = vadd.f32 %v8655, 0.014752088
        %v8657 = vmul.f32 %v8641, %v8656
        %v8658 = vadd.f32 %v8657, 0.112945676
        %v8659 = vmul.f32 %v8641, %v8658
        %v8660 = vadd.f32 %v8659, 0.4994258
        %v8661 = vmul.f32 %v8641, %v8660
        %v8662 = vadd.f32 %v8661, 1.0
        %v8663 = vrcp.pop %v8662
        %v8664 = vmul.f32 %v8662, %v8663
        %v8665 = vsub.f32 1.0, %v8664
        %v8666 = vmul.f32 %v8663, %v8665
        %v8667 = vadd.f32 %v8663, %v8666
        %vm8668 = vweird.f32 %v8662
        %vm8669 = vweird.f32 %v8663
        %vm8670 = vmor %vm8668, %vm8669
        %v8671 = vsel %vm8670, %v8663, %v8667
        %v8672 = vand.u32 2147483647, %v8662
        %vm8673 = vcmp.eq.f32.partialorder %v8672, 8.507059e+37
        %v8674 = vand.u32 %v8662, 2147483648
        %v8675 = vor.u32 1.1754944e-38, %v8674
        %v8676 = vsel %vm8673, %v8675, %v8671
        %v8677 = vmul.f32 %v8652, %v8676
        %v8678 = vmin.f32 %v8677, 1.0
        %v8679 = vmax.f32 %v8678, -1.0
        %v8680 = vadd.f32 %v8679, 1.0
        %v8681 = vmul.f32 %v8638, %v8680
        %8682 = vst [vmem:[%s210] sm:$0x1] %v8681
        %p8683 = scmp.lt.s32.totalorder %s16, 1
        %s8684 = scalar_select %p8683, %s16, 1
        %s8685 = scalar_lea.vmem %s4, %s8684
        // Predicated region
        $region41: #{_forward.1} parent=35 // pred_check
          %p8686 = pneg %p123
        $region42: #{_forward.1} parent=35 // pred_check_branch
          %8688 = sbr.rel (%p8686) target = $region44
        $region43: #{_forward.1} parent=35 // pred_region
          _
        $region44: #{_forward.1} parent=35 // pred_fallthru
          _
      $region36: #{_forward.1} parent=5 // pred_fallthru
        _
      %p8689 = scmp.le.s32.totalorder 2, %s11
      // Predicated region
      $region45: #{_forward.1} parent=5 // pred_check
        %p8690 = pneg %p8689
      $region46: #{_forward.1} parent=5 // pred_check_branch
        %8692 = sbr.rel (%p8690) target = $region48
      $region47: #{_forward.1} parent=5 // pred_region
        %s8693 = ssub.s32 %s11, 2
        // Predicated region
        $region49: #{_forward.1} parent=47 // pred_check
          %p8694 = pneg %p129
        $region50: #{_forward.1} parent=47 // pred_check_branch
          %8696 = sbr.rel (%p8694) target = $region52
        $region51: #{_forward.1} parent=47 // pred_region
          %p8697 = scmp.lt.s32.totalorder %s17, 1
          %s8698 = scalar_select %p8697, %s17, 1
          %s8699 = scalar_lea.vmem %s4, %s8698
        $region52: #{_forward.1} parent=47 // pred_fallthru
          _
      $region48: #{_forward.1} parent=5 // pred_fallthru
        _
    $region6: #{_forward.1} parent=1 // loop_footer
      %s15 = sadd.s32 1, %s11
    $region7: #{_forward.1} parent=1 // loop_footer_branch
      %10 = sbr.rel target = $region3
    $region8: #{_forward.1} parent=1 // loop_exit
      _
    %8700 = vsyncpa [#allocation15], 1
    %s8701 = scalar_lea.sflag [#allocation15], 1
    %8702 = vsyncpa %s8701, 1

</llo_original>
